<compile_context>
chip_gen: v6e
topology: v6e:2x2x1
jax: 0.10.0
libtpu: 0.0.40
codegen_flags: <defaults>
</compile_context>

<pallas_src>
import functools

import jax
import jax.numpy as jnp
from jax.experimental import pallas as pl
from jax.experimental.pallas import tpu as pltpu

_INV_SQRT2 = 0.7071067811865476


def _gelu(y):
    # Exact (erf-based) GELU, matching torch.nn.GELU()'s default.
    return 0.5 * y * (1.0 + jax.lax.erf(y * _INV_SQRT2))


# ----------------------------------------------------------------------------
# Fused whole-network kernel (one grid step == one tile of `bt` batch elements)
# ----------------------------------------------------------------------------
def _generator_kernel(a_ref, w1_ref, b1_ref, w2_ref, b2_ref, w3_ref, b3_ref,
                      w4_ref, b4_ref, o_ref, h1_ref, h2_ref, h3_ref):
    """Row/column bookkeeping (per grid step, bt = batch tile):
         h1 : rows = b*16 + p1,           p1 = dh1*4 + dw1 (4x4 layer-1 pixels), 512 ch
         h2 : rows = q2*(bt*16) + h1-row, q2 = dh2*2 + dw2,                      256 ch
         h3 : rows = q3*(bt*64) + h2-row, q3 = dh3*2 + dw3,                      128 ch
         out: rows as h3; cols = co*4 + dh4*2 + dw4 (12 real cols, zero-padded to 128)
       Depth-to-space never moves data: it is encoded by which weight column block is
       used and which contiguous scratch row block receives the result.
    """
    m1 = h1_ref.shape[0]   # bt * 16
    m2 = h2_ref.shape[0]   # bt * 64

    # ---- layer 1: ConvTranspose2d(Z, 512, k=4, s=2) on a 1x1 input.
    # The block-diagonal latent (built outside) turns "one input pixel -> 16 output
    # pixels" into a single (bt*16, 16Z) @ (16Z, 512) matmul.  BN folded, exact GELU.
    y = jnp.dot(a_ref[...], w1_ref[...], preferred_element_type=jnp.float32)
    h1_ref[...] = _gelu(y + b1_ref[...]).astype(h1_ref.dtype)

    # ---- layer 2: k=2, s=2 -> per-pixel matmul; one weight column block per tap.
    h1 = h1_ref[...]
    b2 = b2_ref[...]                     # hoisted out of the tap loop (no re-load)
    for q in range(4):
        y = jnp.dot(h1, w2_ref[q], preferred_element_type=jnp.float32)
        h2_ref[pl.ds(q * m1, m1), :] = _gelu(y + b2).astype(h2_ref.dtype)

    # ---- layer 3: taps paired along lanes (N=256) to fill the wide MXU; the two
    # 128-lane halves land in adjacent contiguous scratch row blocks (free slices).
    h2 = h2_ref[...]
    b3 = b3_ref[...]                     # hoisted
    for j in range(2):
        y = jnp.dot(h2, w3_ref[j], preferred_element_type=jnp.float32)
        act = _gelu(y + b3).astype(h3_ref.dtype)
        h3_ref[pl.ds((2 * j) * m2, m2), :] = act[:, :128]
        h3_ref[pl.ds((2 * j + 1) * m2, m2), :] = act[:, 128:]

    # ---- layer 4: no BN, tanh.  12 real columns zero-padded to 128 -> lane-dense
    # store; output is bf16 to halve HBM writeback (cast to f32 after the decode).
    y = jnp.dot(h3_ref[...], w4_ref[...], preferred_element_type=jnp.float32)
    o_ref[...] = jnp.tanh(y + b4_ref[...]).astype(o_ref.dtype)


# ----------------------------------------------------------------------------
# Parameter construction (deterministic, synthetic) + folding into kernel layout
# ----------------------------------------------------------------------------
def make_params(key, latent_space_size):
    if not isinstance(latent_space_size, int):
        raise AttributeError("Incorrect type for latent space")
    if latent_space_size <= 0:
        raise ValueError("Latent space must have size 1 or greater")
    Z = latent_space_size
    layer_defs = [(Z, 512, 4), (512, 256, 2), (256, 128, 2), (128, 3, 2)]
    params = []
    for (cin, cout, k) in layer_defs:
        key, kw, kb, kg, kbt, km, kv = jax.random.split(key, 7)
        params.append(dict(
            w=0.05 * jax.random.normal(kw, (cin, cout, k, k), jnp.float32),
            b=0.05 * jax.random.normal(kb, (cout,), jnp.float32),
            gamma=1.0 + 0.1 * jax.random.normal(kg, (cout,), jnp.float32),
            beta=0.1 * jax.random.normal(kbt, (cout,), jnp.float32),
            mean=0.1 * jax.random.normal(km, (cout,), jnp.float32),
            var=jax.random.uniform(kv, (cout,), jnp.float32, 0.5, 1.5),
            k=k, cin=cin, cout=cout))
    return params


def prepare_params(params, compute_dtype=jnp.bfloat16, eps=1e-5):
    """Fold conv bias + eval-mode BN into weights/bias and reshape to kernel layout."""
    def fold(p, use_bn):
        if use_bn:
            s = p["gamma"] * jax.lax.rsqrt(p["var"] + eps)
            t = p["beta"] + (p["b"] - p["mean"]) * s
        else:
            s = jnp.ones_like(p["b"])
            t = p["b"]
        return s, t

    p1, p2, p3, p4 = params
    Z = p1["cin"]
    P1 = p1["k"] * p1["k"]                       # 16 output pixels of layer 1

    # layer 1: rows ordered (p1 = dh*4 + dw, z), cols = out channel; BN scale folded in.
    s, t = fold(p1, use_bn=True)
    w1 = jnp.transpose(p1["w"], (2, 3, 0, 1)).reshape(P1 * Z, p1["cout"]) * s[None, :]
    b1 = t.reshape(1, p1["cout"]).astype(jnp.float32)

    def k2(p, use_bn):
        s, t = fold(p, use_bn)
        w = jnp.transpose(p["w"], (2, 3, 0, 1)).reshape(4, p["cin"], p["cout"])
        return w * s[None, None, :], t.reshape(1, p["cout"]).astype(jnp.float32)

    w2, b2 = k2(p2, use_bn=True)
    w3, b3 = k2(p3, use_bn=True)
    # Pair layer-3 taps along lanes: w3p[j] = [tap 2j | tap 2j+1] -> N=256 matmuls.
    w3 = jnp.concatenate([w3[0::2], w3[1::2]], axis=-1)      # (2, 256, 256)
    b3 = jnp.concatenate([b3, b3], axis=-1)                  # (1, 256)

    # layer 4: cols = (co, dh, dw) -> 12 real columns, zero-padded to 128 lanes.
    ncol = p4["cout"] * 4
    w4 = jnp.pad(p4["w"].reshape(p4["cin"], ncol), ((0, 0), (0, 128 - ncol)))
    b4 = jnp.pad(jnp.repeat(p4["b"], 4), (0, 128 - ncol)).reshape(1, 128).astype(jnp.float32)

    cd = compute_dtype
    return dict(w1=w1.astype(cd), b1=b1, w2=w2.astype(cd), b2=b2,
                w3=w3.astype(cd), b3=b3, w4=w4.astype(cd), b4=b4)


# ----------------------------------------------------------------------------
# Generator forward (single fused pallas_call, batch-stacked tiles)
# ----------------------------------------------------------------------------
def generator_forward(x, prepped, *, tile_b=8):
    """x: (B, latent). Returns (B, 3, 32, 32) float32, matching the PyTorch module."""
    B = x.shape[0]
    cd = prepped["w1"].dtype
    Z = prepped["w1"].shape[0] // 16

    bt = max(1, min(tile_b, B))
    nb = -(-B // bt)                       # grid length (keep >= 2 so v7x's 2 TCs split work)
    Bp = nb * bt
    if Bp != B:
        x = jnp.pad(x, ((0, Bp - B), (0, 0)))

    # Block-diagonal latent: A[b*16 + p, p2*Z + z] = x[b, z] * (p == p2), so the 1x1-input
    # deconv (one input pixel -> 16 output pixels) becomes a single in-kernel matmul.
    eye = jnp.eye(16, dtype=x.dtype)
    a = (eye[None, :, :, None] * x[:, None, None, :]).reshape(Bp * 16, 16 * Z).astype(cd)

    # Explicit scoped-VMEM limit: resident weights + double-buffered per-tile I/O +
    # scratch + headroom; never below the 32 MiB default, capped v7x-safe.
    itemsize = jnp.dtype(cd).itemsize
    w_bytes = sum(int(v.size) * v.dtype.itemsize for v in prepped.values())
    io_bytes = (bt * 16 * 16 * Z + bt * 256 * 128) * itemsize
    scr_bytes = (bt * 16 * 512 + bt * 64 * 256 + bt * 256 * 128) * itemsize
    vmem_limit = int(min(max(2 * (w_bytes + io_bytes) + scr_bytes + (8 << 20),
                             32 << 20), 64 << 20))

    out = pl.pallas_call(
        _generator_kernel,
        out_shape=jax.ShapeDtypeStruct((Bp * 256, 128), jnp.bfloat16),
        grid=(nb,),
        in_specs=[
            pl.BlockSpec((bt * 16, 16 * Z), lambda i: (i, 0)),   # batch-stacked latent tile
            pl.BlockSpec((16 * Z, 512), lambda i: (0, 0)),       # weights stay resident
            pl.BlockSpec((1, 512), lambda i: (0, 0)),
            pl.BlockSpec((4, 512, 256), lambda i: (0, 0, 0)),
            pl.BlockSpec((1, 256), lambda i: (0, 0)),
            pl.BlockSpec((2, 256, 256), lambda i: (0, 0, 0)),    # layer-3 taps paired (N=256)
            pl.BlockSpec((1, 256), lambda i: (0, 0)),
            pl.BlockSpec((128, 128), lambda i: (0, 0)),
            pl.BlockSpec((1, 128), lambda i: (0, 0)),
        ],
        out_specs=pl.BlockSpec((bt * 256, 128), lambda i: (i, 0)),
        scratch_shapes=[
            pltpu.VMEM((bt * 16, 512), cd),     # h1: bt x  4x4  x 512
            pltpu.VMEM((bt * 64, 256), cd),     # h2: bt x  8x8  x 256
            pltpu.VMEM((bt * 256, 128), cd),    # h3: bt x 16x16 x 128
        ],
        compiler_params=pltpu.CompilerParams(
            dimension_semantics=("parallel",),   # batch tiles independent (v7x 2 TCs)
            vmem_limit_bytes=vmem_limit),
    )(a, prepped["w1"], prepped["b1"], prepped["w2"], prepped["b2"],
      prepped["w3"], prepped["b3"], prepped["w4"], prepped["b4"])

    # Decode kernel layout back to NCHW (tiny: B*3*32*32 real elements).
    # rows: (tile, dh3, dw3, dh2, dw2, b, dh1, dw1); cols: (co, dh4, dw4);
    # h = 8*dh1 + 4*dh2 + 2*dh3 + dh4,  w = 8*dw1 + 4*dw2 + 2*dw3 + dw4.
    y = out[:, :12].reshape(nb, 2, 2, 2, 2, bt, 4, 4, 3, 2, 2)
    y = jnp.transpose(y, (0, 5, 8, 6, 3, 1, 9, 7, 4, 2, 10))
    y = y.reshape(Bp, 3, 32, 32)[:B]
    return y.astype(jnp.float32)


# ----------------------------------------------------------------------------
# Pure-JAX reference (same math, no Pallas) for a sanity check
# ----------------------------------------------------------------------------
def generator_forward_ref(x, params):
    def bn(y, p):
        s = p["gamma"] / jnp.sqrt(p["var"] + 1e-5)
        return ((y - p["mean"][None, :, None, None]) * s[None, :, None, None]
                + p["beta"][None, :, None, None])

    def gelu(y):
        return 0.5 * y * (1.0 + jax.lax.erf(y / jnp.sqrt(2.0)))

    p = params[0]
    y = jnp.einsum("bz,zchw->bchw", x, p["w"]) + p["b"][None, :, None, None]
    h = gelu(bn(y, p))
    for li in (1, 2, 3):
        p = params[li]
        y = jnp.einsum("bihw,icde->bchdwe", h, p["w"])
        Bc, C, Hh, _, Ww, _ = y.shape
        y = y.reshape(Bc, C, 2 * Hh, 2 * Ww) + p["b"][None, :, None, None]
        h = gelu(bn(y, p)) if li < 3 else jnp.tanh(y)
    return h


# ----------------------------------------------------------------------------
if __name__ == "__main__":
    B = 16          # with tile_b=8 -> grid=(2,): both v7x TensorCores get a batch tile
    LATENT = 16

    key = jax.random.PRNGKey(0)
    key, kx, kp = jax.random.split(key, 3)
    x = jax.random.normal(kx, (B, LATENT), jnp.float32)
    params = make_params(kp, LATENT)
    prepped = prepare_params(params)              # BN folded (eval mode), bf16 weights

    fwd = jax.jit(functools.partial(generator_forward, tile_b=8))
    out = jax.block_until_ready(fwd(x, prepped))
    assert out.shape == (B, 3, 32, 32), out.shape

    ref = jax.block_until_ready(generator_forward_ref(x, params))
    max_err = float(jnp.max(jnp.abs(out - ref)))
    # bf16 MXU operands / activations / output (f32 accumulation) vs f32 reference.
    assert max_err < 3e-2, max_err

    print("KERNEL_OK")
</pallas_src>

<mosaic_0001>
module attributes {stable_mosaic.version = 11 : i64} {
  func.func @_generator_kernel(%arg0: i32, %arg1: memref<128x256xbf16, #tpu.memory_space<vmem>>, %arg2: memref<256x512xbf16, #tpu.memory_space<vmem>>, %arg3: memref<1x512xf32, #tpu.memory_space<vmem>>, %arg4: memref<4x512x256xbf16, #tpu.memory_space<vmem>>, %arg5: memref<1x256xf32, #tpu.memory_space<vmem>>, %arg6: memref<2x256x256xbf16, #tpu.memory_space<vmem>>, %arg7: memref<1x256xf32, #tpu.memory_space<vmem>>, %arg8: memref<128x128xbf16, #tpu.memory_space<vmem>>, %arg9: memref<1x128xf32, #tpu.memory_space<vmem>>, %arg10: memref<2048x128xbf16, #tpu.memory_space<vmem>>, %arg11: memref<128x512xbf16, #tpu.memory_space<vmem>>, %arg12: memref<512x256xbf16, #tpu.memory_space<vmem>>, %arg13: memref<2048x128xbf16, #tpu.memory_space<vmem>>) attributes {dimension_semantics = [#tpu.dimension_semantics<parallel>], iteration_bounds = array<i64: 2>, scalar_prefetch = 0 : i64, scratch_operands = 3 : i64, tpu.core_type = #tpu.core_type<tc>, window_params = [{transform_indices = @transform_0, window_bounds = array<i64: 128, 256>}, {pipeline_mode = #tpu.pipeline_mode<synchronous>, transform_indices = @transform_1, window_bounds = array<i64: 256, 512>}, {pipeline_mode = #tpu.pipeline_mode<synchronous>, transform_indices = @transform_2, window_bounds = array<i64: 1, 512>}, {pipeline_mode = #tpu.pipeline_mode<synchronous>, transform_indices = @transform_3, window_bounds = array<i64: 4, 512, 256>}, {pipeline_mode = #tpu.pipeline_mode<synchronous>, transform_indices = @transform_4, window_bounds = array<i64: 1, 256>}, {pipeline_mode = #tpu.pipeline_mode<synchronous>, transform_indices = @transform_5, window_bounds = array<i64: 2, 256, 256>}, {pipeline_mode = #tpu.pipeline_mode<synchronous>, transform_indices = @transform_6, window_bounds = array<i64: 1, 256>}, {pipeline_mode = #tpu.pipeline_mode<synchronous>, transform_indices = @transform_7, window_bounds = array<i64: 128, 128>}, {pipeline_mode = #tpu.pipeline_mode<synchronous>, transform_indices = @transform_8, window_bounds = array<i64: 1, 128>}, {transform_indices = @transform_9, window_bounds = array<i64: 2048, 128>}]} {
    %c0 = arith.constant 0 : index
    %c0_0 = arith.constant 0 : index
    %0 = vector.load %arg1[%c0, %c0_0] : memref<128x256xbf16, #tpu.memory_space<vmem>>, vector<128x256xbf16>
    %c0_1 = arith.constant 0 : index
    %c0_2 = arith.constant 0 : index
    %1 = vector.load %arg2[%c0_1, %c0_2] : memref<256x512xbf16, #tpu.memory_space<vmem>>, vector<256x512xbf16>
    %cst = arith.constant dense<0.000000e+00> : vector<128x512xf32>
    %2 = tpu.matmul %0, %1, %cst {dimension_numbers = #tpu.dot_dimension_numbers<[1], [0], [0], [1], [0, 0, 1, 1], [], []>} : vector<128x256xbf16>, vector<256x512xbf16>, vector<128x512xf32> -> vector<128x512xf32>
    %c0_3 = arith.constant 0 : index
    %c0_4 = arith.constant 0 : index
    %3 = vector.load %arg3[%c0_3, %c0_4] : memref<1x512xf32, #tpu.memory_space<vmem>>, vector<1x512xf32>
    %4 = vector.broadcast %3 : vector<1x512xf32> to vector<128x512xf32>
    %5 = arith.addf %2, %4 : vector<128x512xf32>
    %cst_5 = arith.constant 5.000000e-01 : f32
    %6 = vector.broadcast %cst_5 : f32 to vector<128x512xf32>
    %7 = arith.mulf %6, %5 : vector<128x512xf32>
    %cst_6 = arith.constant 0.707106769 : f32
    %8 = vector.broadcast %cst_6 : f32 to vector<128x512xf32>
    %9 = arith.mulf %5, %8 : vector<128x512xf32>
    %10 = math.erf %9 : vector<128x512xf32>
    %cst_7 = arith.constant 1.000000e+00 : f32
    %11 = vector.broadcast %cst_7 : f32 to vector<128x512xf32>
    %12 = arith.addf %11, %10 : vector<128x512xf32>
    %13 = arith.mulf %7, %12 : vector<128x512xf32>
    %14 = arith.truncf %13 : vector<128x512xf32> to vector<128x512xbf16>
    %c0_8 = arith.constant 0 : index
    %c0_9 = arith.constant 0 : index
    %15 = vector.load %arg11[%c0_8, %c0_9] : memref<128x512xbf16, #tpu.memory_space<vmem>>, vector<128x512xbf16>
    tpu.vector_store %arg11[%c0_8, %c0_9], %14 {strides = array<i32>} : memref<128x512xbf16, #tpu.memory_space<vmem>>, vector<128x512xbf16>,
    %c0_10 = arith.constant 0 : index
    %c0_11 = arith.constant 0 : index
    %16 = vector.load %arg11[%c0_10, %c0_11] : memref<128x512xbf16, #tpu.memory_space<vmem>>, vector<128x512xbf16>
    %c0_12 = arith.constant 0 : index
    %c0_13 = arith.constant 0 : index
    %17 = vector.load %arg5[%c0_12, %c0_13] : memref<1x256xf32, #tpu.memory_space<vmem>>, vector<1x256xf32>
    %c0_14 = arith.constant 0 : index
    %c0_15 = arith.constant 0 : index
    %c0_16 = arith.constant 0 : index
    %18 = vector.load %arg4[%c0_14, %c0_15, %c0_16] : memref<4x512x256xbf16, #tpu.memory_space<vmem>>, vector<1x512x256xbf16>
    %19 = vector.shape_cast %18 : vector<1x512x256xbf16> to vector<512x256xbf16>
    %cst_17 = arith.constant dense<0.000000e+00> : vector<128x256xf32>
    %20 = tpu.matmul %16, %19, %cst_17 {dimension_numbers = #tpu.dot_dimension_numbers<[1], [0], [0], [1], [0, 0, 1, 1], [], []>} : vector<128x512xbf16>, vector<512x256xbf16>, vector<128x256xf32> -> vector<128x256xf32>
    %21 = vector.broadcast %17 : vector<1x256xf32> to vector<128x256xf32>
    %22 = arith.addf %20, %21 : vector<128x256xf32>
    %cst_18 = arith.constant 5.000000e-01 : f32
    %23 = vector.broadcast %cst_18 : f32 to vector<128x256xf32>
    %24 = arith.mulf %23, %22 : vector<128x256xf32>
    %cst_19 = arith.constant 0.707106769 : f32
    %25 = vector.broadcast %cst_19 : f32 to vector<128x256xf32>
    %26 = arith.mulf %22, %25 : vector<128x256xf32>
    %27 = math.erf %26 : vector<128x256xf32>
    %cst_20 = arith.constant 1.000000e+00 : f32
    %28 = vector.broadcast %cst_20 : f32 to vector<128x256xf32>
    %29 = arith.addf %28, %27 : vector<128x256xf32>
    %30 = arith.mulf %24, %29 : vector<128x256xf32>
    %31 = arith.truncf %30 : vector<128x256xf32> to vector<128x256xbf16>
    %c0_21 = arith.constant 0 : index
    %c0_22 = arith.constant 0 : index
    %32 = vector.load %arg12[%c0_21, %c0_22] : memref<512x256xbf16, #tpu.memory_space<vmem>>, vector<128x256xbf16>
    tpu.vector_store %arg12[%c0_21, %c0_22], %31 {strides = array<i32>} : memref<512x256xbf16, #tpu.memory_space<vmem>>, vector<128x256xbf16>,
    %c1 = arith.constant 1 : index
    %c0_23 = arith.constant 0 : index
    %c0_24 = arith.constant 0 : index
    %33 = vector.load %arg4[%c1, %c0_23, %c0_24] : memref<4x512x256xbf16, #tpu.memory_space<vmem>>, vector<1x512x256xbf16>
    %34 = vector.shape_cast %33 : vector<1x512x256xbf16> to vector<512x256xbf16>
    %cst_25 = arith.constant dense<0.000000e+00> : vector<128x256xf32>
    %35 = tpu.matmul %16, %34, %cst_25 {dimension_numbers = #tpu.dot_dimension_numbers<[1], [0], [0], [1], [0, 0, 1, 1], [], []>} : vector<128x512xbf16>, vector<512x256xbf16>, vector<128x256xf32> -> vector<128x256xf32>
    %36 = vector.broadcast %17 : vector<1x256xf32> to vector<128x256xf32>
    %37 = arith.addf %35, %36 : vector<128x256xf32>
    %cst_26 = arith.constant 5.000000e-01 : f32
    %38 = vector.broadcast %cst_26 : f32 to vector<128x256xf32>
    %39 = arith.mulf %38, %37 : vector<128x256xf32>
    %cst_27 = arith.constant 0.707106769 : f32
    %40 = vector.broadcast %cst_27 : f32 to vector<128x256xf32>
    %41 = arith.mulf %37, %40 : vector<128x256xf32>
    %42 = math.erf %41 : vector<128x256xf32>
    %cst_28 = arith.constant 1.000000e+00 : f32
    %43 = vector.broadcast %cst_28 : f32 to vector<128x256xf32>
    %44 = arith.addf %43, %42 : vector<128x256xf32>
    %45 = arith.mulf %39, %44 : vector<128x256xf32>
    %46 = arith.truncf %45 : vector<128x256xf32> to vector<128x256xbf16>
    %c128 = arith.constant 128 : index
    %c0_29 = arith.constant 0 : index
    %47 = vector.load %arg12[%c128, %c0_29] : memref<512x256xbf16, #tpu.memory_space<vmem>>, vector<128x256xbf16>
    tpu.vector_store %arg12[%c128, %c0_29], %46 {strides = array<i32>} : memref<512x256xbf16, #tpu.memory_space<vmem>>, vector<128x256xbf16>,
    %c2 = arith.constant 2 : index
    %c0_30 = arith.constant 0 : index
    %c0_31 = arith.constant 0 : index
    %48 = vector.load %arg4[%c2, %c0_30, %c0_31] : memref<4x512x256xbf16, #tpu.memory_space<vmem>>, vector<1x512x256xbf16>
    %49 = vector.shape_cast %48 : vector<1x512x256xbf16> to vector<512x256xbf16>
    %cst_32 = arith.constant dense<0.000000e+00> : vector<128x256xf32>
    %50 = tpu.matmul %16, %49, %cst_32 {dimension_numbers = #tpu.dot_dimension_numbers<[1], [0], [0], [1], [0, 0, 1, 1], [], []>} : vector<128x512xbf16>, vector<512x256xbf16>, vector<128x256xf32> -> vector<128x256xf32>
    %51 = vector.broadcast %17 : vector<1x256xf32> to vector<128x256xf32>
    %52 = arith.addf %50, %51 : vector<128x256xf32>
    %cst_33 = arith.constant 5.000000e-01 : f32
    %53 = vector.broadcast %cst_33 : f32 to vector<128x256xf32>
    %54 = arith.mulf %53, %52 : vector<128x256xf32>
    %cst_34 = arith.constant 0.707106769 : f32
    %55 = vector.broadcast %cst_34 : f32 to vector<128x256xf32>
    %56 = arith.mulf %52, %55 : vector<128x256xf32>
    %57 = math.erf %56 : vector<128x256xf32>
    %cst_35 = arith.constant 1.000000e+00 : f32
    %58 = vector.broadcast %cst_35 : f32 to vector<128x256xf32>
    %59 = arith.addf %58, %57 : vector<128x256xf32>
    %60 = arith.mulf %54, %59 : vector<128x256xf32>
    %61 = arith.truncf %60 : vector<128x256xf32> to vector<128x256xbf16>
    %c256 = arith.constant 256 : index
    %c0_36 = arith.constant 0 : index
    %62 = vector.load %arg12[%c256, %c0_36] : memref<512x256xbf16, #tpu.memory_space<vmem>>, vector<128x256xbf16>
    tpu.vector_store %arg12[%c256, %c0_36], %61 {strides = array<i32>} : memref<512x256xbf16, #tpu.memory_space<vmem>>, vector<128x256xbf16>,
    %c3 = arith.constant 3 : index
    %c0_37 = arith.constant 0 : index
    %c0_38 = arith.constant 0 : index
    %63 = vector.load %arg4[%c3, %c0_37, %c0_38] : memref<4x512x256xbf16, #tpu.memory_space<vmem>>, vector<1x512x256xbf16>
    %64 = vector.shape_cast %63 : vector<1x512x256xbf16> to vector<512x256xbf16>
    %cst_39 = arith.constant dense<0.000000e+00> : vector<128x256xf32>
    %65 = tpu.matmul %16, %64, %cst_39 {dimension_numbers = #tpu.dot_dimension_numbers<[1], [0], [0], [1], [0, 0, 1, 1], [], []>} : vector<128x512xbf16>, vector<512x256xbf16>, vector<128x256xf32> -> vector<128x256xf32>
    %66 = vector.broadcast %17 : vector<1x256xf32> to vector<128x256xf32>
    %67 = arith.addf %65, %66 : vector<128x256xf32>
    %cst_40 = arith.constant 5.000000e-01 : f32
    %68 = vector.broadcast %cst_40 : f32 to vector<128x256xf32>
    %69 = arith.mulf %68, %67 : vector<128x256xf32>
    %cst_41 = arith.constant 0.707106769 : f32
    %70 = vector.broadcast %cst_41 : f32 to vector<128x256xf32>
    %71 = arith.mulf %67, %70 : vector<128x256xf32>
    %72 = math.erf %71 : vector<128x256xf32>
    %cst_42 = arith.constant 1.000000e+00 : f32
    %73 = vector.broadcast %cst_42 : f32 to vector<128x256xf32>
    %74 = arith.addf %73, %72 : vector<128x256xf32>
    %75 = arith.mulf %69, %74 : vector<128x256xf32>
    %76 = arith.truncf %75 : vector<128x256xf32> to vector<128x256xbf16>
    %c384 = arith.constant 384 : index
    %c0_43 = arith.constant 0 : index
    %77 = vector.load %arg12[%c384, %c0_43] : memref<512x256xbf16, #tpu.memory_space<vmem>>, vector<128x256xbf16>
    tpu.vector_store %arg12[%c384, %c0_43], %76 {strides = array<i32>} : memref<512x256xbf16, #tpu.memory_space<vmem>>, vector<128x256xbf16>,
    %c0_44 = arith.constant 0 : index
    %c0_45 = arith.constant 0 : index
    %78 = vector.load %arg12[%c0_44, %c0_45] : memref<512x256xbf16, #tpu.memory_space<vmem>>, vector<512x256xbf16>
    %c0_46 = arith.constant 0 : index
    %c0_47 = arith.constant 0 : index
    %79 = vector.load %arg7[%c0_46, %c0_47] : memref<1x256xf32, #tpu.memory_space<vmem>>, vector<1x256xf32>
    %c0_48 = arith.constant 0 : index
    %c0_49 = arith.constant 0 : index
    %c0_50 = arith.constant 0 : index
    %80 = vector.load %arg6[%c0_48, %c0_49, %c0_50] : memref<2x256x256xbf16, #tpu.memory_space<vmem>>, vector<1x256x256xbf16>
    %81 = vector.shape_cast %80 : vector<1x256x256xbf16> to vector<256x256xbf16>
    %cst_51 = arith.constant dense<0.000000e+00> : vector<512x256xf32>
    %82 = tpu.matmul %78, %81, %cst_51 {dimension_numbers = #tpu.dot_dimension_numbers<[1], [0], [0], [1], [0, 0, 1, 1], [], []>} : vector<512x256xbf16>, vector<256x256xbf16>, vector<512x256xf32> -> vector<512x256xf32>
    %83 = vector.broadcast %79 : vector<1x256xf32> to vector<512x256xf32>
    %84 = arith.addf %82, %83 : vector<512x256xf32>
    %cst_52 = arith.constant 5.000000e-01 : f32
    %85 = vector.broadcast %cst_52 : f32 to vector<512x256xf32>
    %86 = arith.mulf %85, %84 : vector<512x256xf32>
    %cst_53 = arith.constant 0.707106769 : f32
    %87 = vector.broadcast %cst_53 : f32 to vector<512x256xf32>
    %88 = arith.mulf %84, %87 : vector<512x256xf32>
    %89 = math.erf %88 : vector<512x256xf32>
    %cst_54 = arith.constant 1.000000e+00 : f32
    %90 = vector.broadcast %cst_54 : f32 to vector<512x256xf32>
    %91 = arith.addf %90, %89 : vector<512x256xf32>
    %92 = arith.mulf %86, %91 : vector<512x256xf32>
    %93 = arith.truncf %92 : vector<512x256xf32> to vector<512x256xbf16>
    %94 = vector.extract_strided_slice %93 {offsets = [0, 0], sizes = [512, 128], strides = [1, 1]} : vector<512x256xbf16> to vector<512x128xbf16>
    %c0_55 = arith.constant 0 : index
    %c0_56 = arith.constant 0 : index
    %95 = vector.load %arg13[%c0_55, %c0_56] : memref<2048x128xbf16, #tpu.memory_space<vmem>>, vector<512x128xbf16>
    tpu.vector_store %arg13[%c0_55, %c0_56], %94 {strides = array<i32>} : memref<2048x128xbf16, #tpu.memory_space<vmem>>, vector<512x128xbf16>,
    %96 = vector.extract_strided_slice %93 {offsets = [0, 128], sizes = [512, 128], strides = [1, 1]} : vector<512x256xbf16> to vector<512x128xbf16>
    %c512 = arith.constant 512 : index
    %c0_57 = arith.constant 0 : index
    %97 = vector.load %arg13[%c512, %c0_57] : memref<2048x128xbf16, #tpu.memory_space<vmem>>, vector<512x128xbf16>
    tpu.vector_store %arg13[%c512, %c0_57], %96 {strides = array<i32>} : memref<2048x128xbf16, #tpu.memory_space<vmem>>, vector<512x128xbf16>,
    %c1_58 = arith.constant 1 : index
    %c0_59 = arith.constant 0 : index
    %c0_60 = arith.constant 0 : index
    %98 = vector.load %arg6[%c1_58, %c0_59, %c0_60] : memref<2x256x256xbf16, #tpu.memory_space<vmem>>, vector<1x256x256xbf16>
    %99 = vector.shape_cast %98 : vector<1x256x256xbf16> to vector<256x256xbf16>
    %cst_61 = arith.constant dense<0.000000e+00> : vector<512x256xf32>
    %100 = tpu.matmul %78, %99, %cst_61 {dimension_numbers = #tpu.dot_dimension_numbers<[1], [0], [0], [1], [0, 0, 1, 1], [], []>} : vector<512x256xbf16>, vector<256x256xbf16>, vector<512x256xf32> -> vector<512x256xf32>
    %101 = vector.broadcast %79 : vector<1x256xf32> to vector<512x256xf32>
    %102 = arith.addf %100, %101 : vector<512x256xf32>
    %cst_62 = arith.constant 5.000000e-01 : f32
    %103 = vector.broadcast %cst_62 : f32 to vector<512x256xf32>
    %104 = arith.mulf %103, %102 : vector<512x256xf32>
    %cst_63 = arith.constant 0.707106769 : f32
    %105 = vector.broadcast %cst_63 : f32 to vector<512x256xf32>
    %106 = arith.mulf %102, %105 : vector<512x256xf32>
    %107 = math.erf %106 : vector<512x256xf32>
    %cst_64 = arith.constant 1.000000e+00 : f32
    %108 = vector.broadcast %cst_64 : f32 to vector<512x256xf32>
    %109 = arith.addf %108, %107 : vector<512x256xf32>
    %110 = arith.mulf %104, %109 : vector<512x256xf32>
    %111 = arith.truncf %110 : vector<512x256xf32> to vector<512x256xbf16>
    %112 = vector.extract_strided_slice %111 {offsets = [0, 0], sizes = [512, 128], strides = [1, 1]} : vector<512x256xbf16> to vector<512x128xbf16>
    %c1024 = arith.constant 1024 : index
    %c0_65 = arith.constant 0 : index
    %113 = vector.load %arg13[%c1024, %c0_65] : memref<2048x128xbf16, #tpu.memory_space<vmem>>, vector<512x128xbf16>
    tpu.vector_store %arg13[%c1024, %c0_65], %112 {strides = array<i32>} : memref<2048x128xbf16, #tpu.memory_space<vmem>>, vector<512x128xbf16>,
    %114 = vector.extract_strided_slice %111 {offsets = [0, 128], sizes = [512, 128], strides = [1, 1]} : vector<512x256xbf16> to vector<512x128xbf16>
    %c1536 = arith.constant 1536 : index
    %c0_66 = arith.constant 0 : index
    %115 = vector.load %arg13[%c1536, %c0_66] : memref<2048x128xbf16, #tpu.memory_space<vmem>>, vector<512x128xbf16>
    tpu.vector_store %arg13[%c1536, %c0_66], %114 {strides = array<i32>} : memref<2048x128xbf16, #tpu.memory_space<vmem>>, vector<512x128xbf16>,
    %c0_67 = arith.constant 0 : index
    %c0_68 = arith.constant 0 : index
    %116 = vector.load %arg13[%c0_67, %c0_68] : memref<2048x128xbf16, #tpu.memory_space<vmem>>, vector<2048x128xbf16>
    %c0_69 = arith.constant 0 : index
    %c0_70 = arith.constant 0 : index
    %117 = vector.load %arg8[%c0_69, %c0_70] : memref<128x128xbf16, #tpu.memory_space<vmem>>, vector<128x128xbf16>
    %cst_71 = arith.constant dense<0.000000e+00> : vector<2048x128xf32>
    %118 = tpu.matmul %116, %117, %cst_71 {dimension_numbers = #tpu.dot_dimension_numbers<[1], [0], [0], [1], [0, 0, 1, 1], [], []>} : vector<2048x128xbf16>, vector<128x128xbf16>, vector<2048x128xf32> -> vector<2048x128xf32>
    %c0_72 = arith.constant 0 : index
    %c0_73 = arith.constant 0 : index
    %119 = vector.load %arg9[%c0_72, %c0_73] : memref<1x128xf32, #tpu.memory_space<vmem>>, vector<1x128xf32>
    %120 = vector.broadcast %119 : vector<1x128xf32> to vector<2048x128xf32>
    %121 = arith.addf %118, %120 : vector<2048x128xf32>
    %122 = math.tanh %121 : vector<2048x128xf32>
    %123 = arith.truncf %122 : vector<2048x128xf32> to vector<2048x128xbf16>
    %c0_74 = arith.constant 0 : index
    %c0_75 = arith.constant 0 : index
    %124 = vector.load %arg10[%c0_74, %c0_75] : memref<2048x128xbf16, #tpu.memory_space<vmem>>, vector<2048x128xbf16>
    tpu.vector_store %arg10[%c0_74, %c0_75], %123 {strides = array<i32>} : memref<2048x128xbf16, #tpu.memory_space<vmem>>, vector<2048x128xbf16>,
    return
  }
  func.func @transform_0(%arg0: i32) -> (i32, i32) {
    %c0_i32 = arith.constant 0 : i32
    %c0_i32_0 = arith.constant 0 : i32
    return %arg0, %c0_i32 : i32, i32
  }
  func.func @transform_1(%arg0: i32) -> (i32, i32) {
    %c0_i32 = arith.constant 0 : i32
    %c0_i32_0 = arith.constant 0 : i32
    %c0_i32_1 = arith.constant 0 : i32
    return %c0_i32, %c0_i32_0 : i32, i32
  }
  func.func @transform_2(%arg0: i32) -> (i32, i32) {
    %c0_i32 = arith.constant 0 : i32
    %c0_i32_0 = arith.constant 0 : i32
    %c0_i32_1 = arith.constant 0 : i32
    return %c0_i32, %c0_i32_0 : i32, i32
  }
  func.func @transform_3(%arg0: i32) -> (i32, i32, i32) {
    %c0_i32 = arith.constant 0 : i32
    %c0_i32_0 = arith.constant 0 : i32
    %c0_i32_1 = arith.constant 0 : i32
    %c0_i32_2 = arith.constant 0 : i32
    return %c0_i32, %c0_i32_0, %c0_i32_1 : i32, i32, i32
  }
  func.func @transform_4(%arg0: i32) -> (i32, i32) {
    %c0_i32 = arith.constant 0 : i32
    %c0_i32_0 = arith.constant 0 : i32
    %c0_i32_1 = arith.constant 0 : i32
    return %c0_i32, %c0_i32_0 : i32, i32
  }
  func.func @transform_5(%arg0: i32) -> (i32, i32, i32) {
    %c0_i32 = arith.constant 0 : i32
    %c0_i32_0 = arith.constant 0 : i32
    %c0_i32_1 = arith.constant 0 : i32
    %c0_i32_2 = arith.constant 0 : i32
    return %c0_i32, %c0_i32_0, %c0_i32_1 : i32, i32, i32
  }
  func.func @transform_6(%arg0: i32) -> (i32, i32) {
    %c0_i32 = arith.constant 0 : i32
    %c0_i32_0 = arith.constant 0 : i32
    %c0_i32_1 = arith.constant 0 : i32
    return %c0_i32, %c0_i32_0 : i32, i32
  }
  func.func @transform_7(%arg0: i32) -> (i32, i32) {
    %c0_i32 = arith.constant 0 : i32
    %c0_i32_0 = arith.constant 0 : i32
    %c0_i32_1 = arith.constant 0 : i32
    return %c0_i32, %c0_i32_0 : i32, i32
  }
  func.func @transform_8(%arg0: i32) -> (i32, i32) {
    %c0_i32 = arith.constant 0 : i32
    %c0_i32_0 = arith.constant 0 : i32
    %c0_i32_1 = arith.constant 0 : i32
    return %c0_i32, %c0_i32_0 : i32, i32
  }
  func.func @transform_9(%arg0: i32) -> (i32, i32) {
    %c0_i32 = arith.constant 0 : i32
    %c0_i32_0 = arith.constant 0 : i32
    return %arg0, %c0_i32 : i32, i32
  }
}

</mosaic_0001>

<llo_original>
// kernel: generator_forward.1
$region0: #{generator_forward.1}
  #allocation0 [shape = 'u32[]', space=smem, size = 0x4, offset = 0x4, fixed_abs, tag = 'smem constant byte address 0x4 - core index']
  #allocation1 [shape = 'u32[144,128]{1,0:T(1,128)}', space=vmem, size = 0x12000, scoped, tag = 'internal scratch']
  #allocation2 [shape = 'bf16[128,512]{1,0:T(8,128)(2,1)}', space=vmem, size = 0x20000, scoped, tag = 'scratch operand']
  #allocation3 [shape = 'bf16[512,256]{1,0:T(8,128)(2,1)}', space=vmem, size = 0x40000, scoped, tag = 'scratch operand']
  #allocation4 [shape = 'bf16[2048,128]{1,0:T(8,128)(2,1)}', space=vmem, size = 0x80000, scoped, tag = 'scratch operand']
  %s0 = inlined_call_operand.vmem [shape: bf16[256,256], index: 0, kind: input, shape index: {}]
  %s1 = inlined_call_operand.vmem [shape: bf16[256,512], index: 1, kind: input, shape index: {}]
  %s2 = inlined_call_operand.vmem [shape: f32[1,512], index: 2, kind: input, shape index: {}]
  %s3 = inlined_call_operand.vmem [shape: bf16[4,512,256], index: 3, kind: input, shape index: {}]
  %s4 = inlined_call_operand.vmem [shape: f32[1,256], index: 4, kind: input, shape index: {}]
  %s5 = inlined_call_operand.vmem [shape: bf16[2,256,256], index: 5, kind: input, shape index: {}]
  %s6 = inlined_call_operand.vmem [shape: f32[1,256], index: 6, kind: input, shape index: {}]
  %s7 = inlined_call_operand.vmem [shape: bf16[128,128], index: 7, kind: input, shape index: {}]
  %s8 = inlined_call_operand.vmem [shape: f32[1,128], index: 8, kind: input, shape index: {}]
  %s9 = inlined_call_operand.vmem [shape: bf16[4096,128], index: 9, kind: output, shape index: {}]
  %s10 = sld [smem:[#allocation0]]
  $region69: #{generator_forward.1} parent=0
    _
  %s12 = ssub.s32 1, %s10
  %s13 = scalar_select 0, %s12, %s10
  loop: start=0, step=1, limit=4
  $region2: #{generator_forward.1} parent=0 // loop_pre_header
    _
  $region3: #{generator_forward.1} parent=0 // loop_header
    %s15 = sphi 0, %s19
    %p16 = scmp.ge.s32.totalorder %s15, 4
    %s25 = sphi 0, %s27
    %s28 = sphi 0, %s25
    %s29 = sphi 0, %s28
    %s45 = sphi 0, %s29
    %s49 = sphi 0, %s49
    %s51 = sphi 0, %s49
    %s52 = sphi 0, %s51
    %s66 = sphi 0, %s52
    %s70 = sphi 0, %s70
    %s72 = sphi 0, %s70
    %s73 = sphi 0, %s72
    %s87 = sphi 0, %s73
    %s91 = sphi 0, %s91
    %s93 = sphi 0, %s91
    %s94 = sphi 0, %s93
    %s108 = sphi 0, %s94
    %s112 = sphi 0, %s112
    %s114 = sphi 0, %s112
    %s115 = sphi 0, %s114
    %s129 = sphi 0, %s115
    %s133 = sphi 0, %s133
    %s135 = sphi 0, %s133
    %s136 = sphi 0, %s135
    %s150 = sphi 0, %s136
    %s154 = sphi 0, %s154
    %s156 = sphi 0, %s154
    %s157 = sphi 0, %s156
    %s171 = sphi 0, %s157
    %s175 = sphi 0, %s175
    %s177 = sphi 0, %s175
    %s178 = sphi 0, %s177
    %s192 = sphi 0, %s178
    %s196 = sphi 0, %s196
    %s198 = sphi 0, %s196
    %s199 = sphi 0, %s198
    %s213 = sphi 0, %s199
    %s219 = sphi 0, %s221
    %s222 = sphi 0, %s219
    %s223 = sphi 0, %s222
    %s239 = sphi 0, %s223
  $region4: #{generator_forward.1} parent=0 // loop_header_branch
    %18 = sbr.rel (%p16) target = $region8
  $region5: #{generator_forward.1} parent=0 // loop_body
    %s20 = ssub.s32 %s15, 1
    %s21 = ssub.s32 %s15, 2
    %s22 = sadd.s32 %s15, 1
    %s23 = ssub.s32 %s15, %s22
    %p24 = scmp.eq.s32.totalorder %s23, 0
    %s26 = sadd.s32 %s25, 1
    %s27 = scalar_select %p24, %s25, %s26
    %p30 = pneg %p24
    %p31 = scmp.eq.s32.totalorder %s15, 1
    %p32 = por %p30, %p31
    %p33 = scmp.ne.s32.totalorder %s25, %s28
    %p34 = scmp.eq.s32.totalorder %s15, 0
    %p35 = por %p33, %p34
    %p36 = scmp.ne.s32.totalorder %s25, %s28
    %p37 = scmp.eq.s32.totalorder %s20, 1
    %p38 = por %p36, %p37
    %p39 = scmp.ne.s32.totalorder %s28, %s29
    %p40 = scmp.eq.s32.totalorder %s20, 0
    %p41 = por %p39, %p40
    %p42 = scmp.ne.s32.totalorder %s28, %s29
    %p43 = scmp.eq.s32.totalorder %s21, 1
    %p44 = por %p42, %p43
    %p46 = scmp.ne.s32.totalorder %s29, %s45
    %p47 = scmp.eq.s32.totalorder %s21, 0
    %p48 = por %p46, %p47
    %s50 = sadd.s32 %s49, 1
    %p53 = scmp.eq.s32.totalorder %s15, 1
    %p54 = scmp.ne.s32.totalorder %s49, %s51
    %p55 = scmp.eq.s32.totalorder %s15, 0
    %p56 = por %p54, %p55
    %p57 = scmp.ne.s32.totalorder %s49, %s51
    %p58 = scmp.eq.s32.totalorder %s20, 1
    %p59 = por %p57, %p58
    %p60 = scmp.ne.s32.totalorder %s51, %s52
    %p61 = scmp.eq.s32.totalorder %s20, 0
    %p62 = por %p60, %p61
    %p63 = scmp.ne.s32.totalorder %s51, %s52
    %p64 = scmp.eq.s32.totalorder %s21, 1
    %p65 = por %p63, %p64
    %p67 = scmp.ne.s32.totalorder %s52, %s66
    %p68 = scmp.eq.s32.totalorder %s21, 0
    %p69 = por %p67, %p68
    %s71 = sadd.s32 %s70, 1
    %p74 = scmp.eq.s32.totalorder %s15, 1
    %p75 = scmp.ne.s32.totalorder %s70, %s72
    %p76 = scmp.eq.s32.totalorder %s15, 0
    %p77 = por %p75, %p76
    %p78 = scmp.ne.s32.totalorder %s70, %s72
    %p79 = scmp.eq.s32.totalorder %s20, 1
    %p80 = por %p78, %p79
    %p81 = scmp.ne.s32.totalorder %s72, %s73
    %p82 = scmp.eq.s32.totalorder %s20, 0
    %p83 = por %p81, %p82
    %p84 = scmp.ne.s32.totalorder %s72, %s73
    %p85 = scmp.eq.s32.totalorder %s21, 1
    %p86 = por %p84, %p85
    %p88 = scmp.ne.s32.totalorder %s73, %s87
    %p89 = scmp.eq.s32.totalorder %s21, 0
    %p90 = por %p88, %p89
    %s92 = sadd.s32 %s91, 1
    %p95 = scmp.eq.s32.totalorder %s15, 1
    %p96 = scmp.ne.s32.totalorder %s91, %s93
    %p97 = scmp.eq.s32.totalorder %s15, 0
    %p98 = por %p96, %p97
    %p99 = scmp.ne.s32.totalorder %s91, %s93
    %p100 = scmp.eq.s32.totalorder %s20, 1
    %p101 = por %p99, %p100
    %p102 = scmp.ne.s32.totalorder %s93, %s94
    %p103 = scmp.eq.s32.totalorder %s20, 0
    %p104 = por %p102, %p103
    %p105 = scmp.ne.s32.totalorder %s93, %s94
    %p106 = scmp.eq.s32.totalorder %s21, 1
    %p107 = por %p105, %p106
    %p109 = scmp.ne.s32.totalorder %s94, %s108
    %p110 = scmp.eq.s32.totalorder %s21, 0
    %p111 = por %p109, %p110
    %s113 = sadd.s32 %s112, 1
    %p116 = scmp.eq.s32.totalorder %s15, 1
    %p117 = scmp.ne.s32.totalorder %s112, %s114
    %p118 = scmp.eq.s32.totalorder %s15, 0
    %p119 = por %p117, %p118
    %p120 = scmp.ne.s32.totalorder %s112, %s114
    %p121 = scmp.eq.s32.totalorder %s20, 1
    %p122 = por %p120, %p121
    %p123 = scmp.ne.s32.totalorder %s114, %s115
    %p124 = scmp.eq.s32.totalorder %s20, 0
    %p125 = por %p123, %p124
    %p126 = scmp.ne.s32.totalorder %s114, %s115
    %p127 = scmp.eq.s32.totalorder %s21, 1
    %p128 = por %p126, %p127
    %p130 = scmp.ne.s32.totalorder %s115, %s129
    %p131 = scmp.eq.s32.totalorder %s21, 0
    %p132 = por %p130, %p131
    %s134 = sadd.s32 %s133, 1
    %p137 = scmp.eq.s32.totalorder %s15, 1
    %p138 = scmp.ne.s32.totalorder %s133, %s135
    %p139 = scmp.eq.s32.totalorder %s15, 0
    %p140 = por %p138, %p139
    %p141 = scmp.ne.s32.totalorder %s133, %s135
    %p142 = scmp.eq.s32.totalorder %s20, 1
    %p143 = por %p141, %p142
    %p144 = scmp.ne.s32.totalorder %s135, %s136
    %p145 = scmp.eq.s32.totalorder %s20, 0
    %p146 = por %p144, %p145
    %p147 = scmp.ne.s32.totalorder %s135, %s136
    %p148 = scmp.eq.s32.totalorder %s21, 1
    %p149 = por %p147, %p148
    %p151 = scmp.ne.s32.totalorder %s136, %s150
    %p152 = scmp.eq.s32.totalorder %s21, 0
    %p153 = por %p151, %p152
    %s155 = sadd.s32 %s154, 1
    %p158 = scmp.eq.s32.totalorder %s15, 1
    %p159 = scmp.ne.s32.totalorder %s154, %s156
    %p160 = scmp.eq.s32.totalorder %s15, 0
    %p161 = por %p159, %p160
    %p162 = scmp.ne.s32.totalorder %s154, %s156
    %p163 = scmp.eq.s32.totalorder %s20, 1
    %p164 = por %p162, %p163
    %p165 = scmp.ne.s32.totalorder %s156, %s157
    %p166 = scmp.eq.s32.totalorder %s20, 0
    %p167 = por %p165, %p166
    %p168 = scmp.ne.s32.totalorder %s156, %s157
    %p169 = scmp.eq.s32.totalorder %s21, 1
    %p170 = por %p168, %p169
    %p172 = scmp.ne.s32.totalorder %s157, %s171
    %p173 = scmp.eq.s32.totalorder %s21, 0
    %p174 = por %p172, %p173
    %s176 = sadd.s32 %s175, 1
    %p179 = scmp.eq.s32.totalorder %s15, 1
    %p180 = scmp.ne.s32.totalorder %s175, %s177
    %p181 = scmp.eq.s32.totalorder %s15, 0
    %p182 = por %p180, %p181
    %p183 = scmp.ne.s32.totalorder %s175, %s177
    %p184 = scmp.eq.s32.totalorder %s20, 1
    %p185 = por %p183, %p184
    %p186 = scmp.ne.s32.totalorder %s177, %s178
    %p187 = scmp.eq.s32.totalorder %s20, 0
    %p188 = por %p186, %p187
    %p189 = scmp.ne.s32.totalorder %s177, %s178
    %p190 = scmp.eq.s32.totalorder %s21, 1
    %p191 = por %p189, %p190
    %p193 = scmp.ne.s32.totalorder %s178, %s192
    %p194 = scmp.eq.s32.totalorder %s21, 0
    %p195 = por %p193, %p194
    %s197 = sadd.s32 %s196, 1
    %p200 = scmp.eq.s32.totalorder %s15, 1
    %p201 = scmp.ne.s32.totalorder %s196, %s198
    %p202 = scmp.eq.s32.totalorder %s15, 0
    %p203 = por %p201, %p202
    %p204 = scmp.ne.s32.totalorder %s196, %s198
    %p205 = scmp.eq.s32.totalorder %s20, 1
    %p206 = por %p204, %p205
    %p207 = scmp.ne.s32.totalorder %s198, %s199
    %p208 = scmp.eq.s32.totalorder %s20, 0
    %p209 = por %p207, %p208
    %p210 = scmp.ne.s32.totalorder %s198, %s199
    %p211 = scmp.eq.s32.totalorder %s21, 1
    %p212 = por %p210, %p211
    %p214 = scmp.ne.s32.totalorder %s199, %s213
    %p215 = scmp.eq.s32.totalorder %s21, 0
    %p216 = por %p214, %p215
    %s217 = ssub.s32 %s15, %s22
    %p218 = scmp.eq.s32.totalorder %s217, 0
    %s220 = sadd.s32 %s219, 1
    %s221 = scalar_select %p218, %s219, %s220
    %p224 = pneg %p218
    %p225 = scmp.eq.s32.totalorder %s15, 1
    %p226 = por %p224, %p225
    %p227 = scmp.ne.s32.totalorder %s219, %s222
    %p228 = scmp.eq.s32.totalorder %s15, 0
    %p229 = por %p227, %p228
    %p230 = scmp.ne.s32.totalorder %s219, %s222
    %p231 = scmp.eq.s32.totalorder %s20, 1
    %p232 = por %p230, %p231
    %p233 = scmp.ne.s32.totalorder %s222, %s223
    %p234 = scmp.eq.s32.totalorder %s20, 0
    %p235 = por %p233, %p234
    %p236 = scmp.ne.s32.totalorder %s222, %s223
    %p237 = scmp.eq.s32.totalorder %s21, 1
    %p238 = por %p236, %p237
    %p240 = scmp.ne.s32.totalorder %s223, %s239
    %p241 = scmp.eq.s32.totalorder %s21, 0
    %p242 = por %p240, %p241
    %p243 = scmp.le.s32.totalorder 1, %s15
    %p244 = scmp.lt.s32.totalorder %s15, 3
    %p245 = pnand %p243, %p244
    %p246 = pneg %p245
    // Predicated region
    $region9: #{generator_forward.1} parent=5 // pred_check
      _
    $region10: #{generator_forward.1} parent=5 // pred_check_branch
      %248 = sbr.rel (%p245) target = $region12
    $region11: #{generator_forward.1} parent=5 // pred_region
      %s249 = ssub.s32 %s15, 1
      // Predicated region
      $region13: #{generator_forward.1} parent=11 // pred_check
        %p250 = pneg %p62
      $region14: #{generator_forward.1} parent=11 // pred_check_branch
        %252 = sbr.rel (%p250) target = $region16
      $region15: #{generator_forward.1} parent=11 // pred_region
        _
      $region16: #{generator_forward.1} parent=11 // pred_fallthru
        _
      // Predicated region
      $region17: #{generator_forward.1} parent=11 // pred_check
        %p253 = pneg %p83
      $region18: #{generator_forward.1} parent=11 // pred_check_branch
        %255 = sbr.rel (%p253) target = $region20
      $region19: #{generator_forward.1} parent=11 // pred_region
        _
      $region20: #{generator_forward.1} parent=11 // pred_fallthru
        _
      // Predicated region
      $region21: #{generator_forward.1} parent=11 // pred_check
        %p256 = pneg %p104
      $region22: #{generator_forward.1} parent=11 // pred_check_branch
        %258 = sbr.rel (%p256) target = $region24
      $region23: #{generator_forward.1} parent=11 // pred_region
        _
      $region24: #{generator_forward.1} parent=11 // pred_fallthru
        _
      // Predicated region
      $region25: #{generator_forward.1} parent=11 // pred_check
        %p259 = pneg %p125
      $region26: #{generator_forward.1} parent=11 // pred_check_branch
        %261 = sbr.rel (%p259) target = $region28
      $region27: #{generator_forward.1} parent=11 // pred_region
        _
      $region28: #{generator_forward.1} parent=11 // pred_fallthru
        _
      // Predicated region
      $region29: #{generator_forward.1} parent=11 // pred_check
        %p262 = pneg %p146
      $region30: #{generator_forward.1} parent=11 // pred_check_branch
        %264 = sbr.rel (%p262) target = $region32
      $region31: #{generator_forward.1} parent=11 // pred_region
        _
      $region32: #{generator_forward.1} parent=11 // pred_fallthru
        _
      // Predicated region
      $region33: #{generator_forward.1} parent=11 // pred_check
        %p265 = pneg %p167
      $region34: #{generator_forward.1} parent=11 // pred_check_branch
        %267 = sbr.rel (%p265) target = $region36
      $region35: #{generator_forward.1} parent=11 // pred_region
        _
      $region36: #{generator_forward.1} parent=11 // pred_fallthru
        _
      // Predicated region
      $region37: #{generator_forward.1} parent=11 // pred_check
        %p268 = pneg %p188
      $region38: #{generator_forward.1} parent=11 // pred_check_branch
        %270 = sbr.rel (%p268) target = $region40
      $region39: #{generator_forward.1} parent=11 // pred_region
        _
      $region40: #{generator_forward.1} parent=11 // pred_fallthru
        _
      // Predicated region
      $region41: #{generator_forward.1} parent=11 // pred_check
        %p271 = pneg %p209
      $region42: #{generator_forward.1} parent=11 // pred_check_branch
        %273 = sbr.rel (%p271) target = $region44
      $region43: #{generator_forward.1} parent=11 // pred_region
        _
      $region44: #{generator_forward.1} parent=11 // pred_fallthru
        _
    $region12: #{generator_forward.1} parent=5 // pred_fallthru
      _
    %p274 = scmp.lt.s32.totalorder %s15, 2
    // Predicated region
    $region45: #{generator_forward.1} parent=5 // pred_check
      %p275 = pneg %p274
    $region46: #{generator_forward.1} parent=5 // pred_check_branch
      %277 = sbr.rel (%p275) target = $region48
    $region47: #{generator_forward.1} parent=5 // pred_region
      // Predicated region
      $region49: #{generator_forward.1} parent=47 // pred_check
        %p278 = pneg %p35
      $region50: #{generator_forward.1} parent=47 // pred_check_branch
        %280 = sbr.rel (%p278) target = $region52
      $region51: #{generator_forward.1} parent=47 // pred_region
        %s281 = smul.u32 16, %s15
        %p282 = scmp.lt.s32.totalorder %s281, 31
        %s283 = scalar_select %p282, %s281, 31
        %s284 = smul.addr %s283, 2
        %s285 = smul.addr %s284, 4
        %s286 = scalar_lea.vmem %s0, %s285
        %s287 = smul.u32 16, %s15
      $region52: #{generator_forward.1} parent=47 // pred_fallthru
        _
    $region48: #{generator_forward.1} parent=5 // pred_fallthru
      _
    %p288 = scmp.le.s32.totalorder 1, %s15
    %p289 = scmp.lt.s32.totalorder %s15, 3
    %p290 = pnand %p288, %p289
    %p291 = pneg %p290
    // Predicated region
    $region53: #{generator_forward.1} parent=5 // pred_check
      _
    $region54: #{generator_forward.1} parent=5 // pred_check_branch
      %293 = sbr.rel (%p290) target = $region56
    $region55: #{generator_forward.1} parent=5 // pred_region
      %s294 = ssub.s32 %s15, 1
      %s295 = smul.u32 16, %s20
      %p296 = scmp.lt.s32.totalorder %s295, 31
      %s297 = scalar_select %p296, %s295, 31
      %s298 = smul.addr %s297, 2
      %s299 = smul.addr %s298, 4
      %s300 = scalar_lea.vmem %s0, %s299
      %p301 = pneg %p41
      %p302 = pneg %p38
      %p303 = pneg %p62
      %p304 = pneg %p59
      %p305 = pneg %p83
      %p306 = pneg %p80
      %p307 = pneg %p104
      %p308 = pneg %p101
      %p309 = pneg %p125
      %p310 = pneg %p122
      %p311 = pneg %p146
      %p312 = pneg %p143
      %p313 = pneg %p167
      %p314 = pneg %p164
      %p315 = pneg %p188
      %p316 = pneg %p185
      %p317 = pneg %p209
      %p318 = pneg %p206
      %p319 = pneg %p235
      %p320 = pneg %p232
      %s321 = smul.u32 256, %s20
      %p322 = scmp.lt.s32.totalorder %s321, 511
      %s323 = scalar_select %p322, %s321, 511
      %s324 = smul.addr %s323, 4
      %s325 = scalar_lea.vmem %s9, %s324
      %s326 = smul.u32 16, %s20
      %p327 = scmp.lt.s32.totalorder %s326, 31
      %s328 = scalar_select %p327, %s326, 31
      %s329 = smul.addr %s328, 2
      %s330 = smul.addr %s329, 4
      %s331 = scalar_lea.vmem %s0, %s330
      %s332 = smul.u32 16, %s20
      %s333 = smul.u32 256, %s20
      %p334 = scmp.lt.s32.totalorder %s333, 511
      %s335 = scalar_select %p334, %s333, 511
      %s336 = smul.addr %s335, 4
      %s337 = scalar_lea.vmem %s9, %s336
      %s338 = smul.u32 256, %s20
      %v340 = vld [vmem:[%s331] sm:$0xff]
      %v341 = vld [vmem:[%s331 + $0x8] sm:$0xff]
      %v342 = vld [vmem:[%s331 + $0x10] sm:$0xff]
      %v343 = vld [vmem:[%s331 + $0x18] sm:$0xff]
      %v344 = vld [vmem:[%s331 + $0x20] sm:$0xff]
      %v345 = vld [vmem:[%s331 + $0x28] sm:$0xff]
      %v346 = vld [vmem:[%s331 + $0x30] sm:$0xff]
      %v347 = vld [vmem:[%s331 + $0x38] sm:$0xff]
      %v348 = vld [vmem:[%s331 + $0x40] sm:$0xff]
      %v349 = vld [vmem:[%s331 + $0x48] sm:$0xff]
      %v350 = vld [vmem:[%s331 + $0x50] sm:$0xff]
      %v351 = vld [vmem:[%s331 + $0x58] sm:$0xff]
      %v352 = vld [vmem:[%s331 + $0x60] sm:$0xff]
      %v353 = vld [vmem:[%s331 + $0x68] sm:$0xff]
      %v354 = vld [vmem:[%s331 + $0x70] sm:$0xff]
      %v355 = vld [vmem:[%s331 + $0x78] sm:$0xff]
      %v356 = vld [vmem:[%s1] sm:$0xff]
      %v357 = vld [vmem:[%s1 + $0x8] sm:$0xff]
      %v358 = vld [vmem:[%s1 + $0x10] sm:$0xff]
      %v359 = vld [vmem:[%s1 + $0x18] sm:$0xff]
      %v360 = vld [vmem:[%s1 + $0x20] sm:$0xff]
      %v361 = vld [vmem:[%s1 + $0x28] sm:$0xff]
      %v362 = vld [vmem:[%s1 + $0x30] sm:$0xff]
      %v363 = vld [vmem:[%s1 + $0x38] sm:$0xff]
      %v364 = vld [vmem:[%s1 + $0x40] sm:$0xff]
      %v365 = vld [vmem:[%s1 + $0x48] sm:$0xff]
      %v366 = vld [vmem:[%s1 + $0x50] sm:$0xff]
      %v367 = vld [vmem:[%s1 + $0x58] sm:$0xff]
      %v368 = vld [vmem:[%s1 + $0x60] sm:$0xff]
      %v369 = vld [vmem:[%s1 + $0x68] sm:$0xff]
      %v370 = vld [vmem:[%s1 + $0x70] sm:$0xff]
      %v371 = vld [vmem:[%s1 + $0x78] sm:$0xff]
      %v372 = vld [vmem:[%s1 + $0x80] sm:$0xff]
      %v373 = vld [vmem:[%s1 + $0x88] sm:$0xff]
      %v374 = vld [vmem:[%s1 + $0x90] sm:$0xff]
      %v375 = vld [vmem:[%s1 + $0x98] sm:$0xff]
      %v376 = vld [vmem:[%s1 + $0xa0] sm:$0xff]
      %v377 = vld [vmem:[%s1 + $0xa8] sm:$0xff]
      %v378 = vld [vmem:[%s1 + $0xb0] sm:$0xff]
      %v379 = vld [vmem:[%s1 + $0xb8] sm:$0xff]
      %v380 = vld [vmem:[%s1 + $0xc0] sm:$0xff]
      %v381 = vld [vmem:[%s1 + $0xc8] sm:$0xff]
      %v382 = vld [vmem:[%s1 + $0xd0] sm:$0xff]
      %v383 = vld [vmem:[%s1 + $0xd8] sm:$0xff]
      %v384 = vld [vmem:[%s1 + $0xe0] sm:$0xff]
      %v385 = vld [vmem:[%s1 + $0xe8] sm:$0xff]
      %v386 = vld [vmem:[%s1 + $0xf0] sm:$0xff]
      %v387 = vld [vmem:[%s1 + $0xf8] sm:$0xff]
      %v388 = vld [vmem:[%s1 + $0x100] sm:$0xff]
      %v389 = vld [vmem:[%s1 + $0x108] sm:$0xff]
      %v390 = vld [vmem:[%s1 + $0x110] sm:$0xff]
      %v391 = vld [vmem:[%s1 + $0x118] sm:$0xff]
      %v392 = vld [vmem:[%s1 + $0x120] sm:$0xff]
      %v393 = vld [vmem:[%s1 + $0x128] sm:$0xff]
      %v394 = vld [vmem:[%s1 + $0x130] sm:$0xff]
      %v395 = vld [vmem:[%s1 + $0x138] sm:$0xff]
      %v396 = vld [vmem:[%s1 + $0x140] sm:$0xff]
      %v397 = vld [vmem:[%s1 + $0x148] sm:$0xff]
      %v398 = vld [vmem:[%s1 + $0x150] sm:$0xff]
      %v399 = vld [vmem:[%s1 + $0x158] sm:$0xff]
      %v400 = vld [vmem:[%s1 + $0x160] sm:$0xff]
      %v401 = vld [vmem:[%s1 + $0x168] sm:$0xff]
      %v402 = vld [vmem:[%s1 + $0x170] sm:$0xff]
      %v403 = vld [vmem:[%s1 + $0x178] sm:$0xff]
      %v404 = vld [vmem:[%s1 + $0x180] sm:$0xff]
      %v405 = vld [vmem:[%s1 + $0x188] sm:$0xff]
      %v406 = vld [vmem:[%s1 + $0x190] sm:$0xff]
      %v407 = vld [vmem:[%s1 + $0x198] sm:$0xff]
      %v408 = vld [vmem:[%s1 + $0x1a0] sm:$0xff]
      %v409 = vld [vmem:[%s1 + $0x1a8] sm:$0xff]
      %v410 = vld [vmem:[%s1 + $0x1b0] sm:$0xff]
      %v411 = vld [vmem:[%s1 + $0x1b8] sm:$0xff]
      %v412 = vld [vmem:[%s1 + $0x1c0] sm:$0xff]
      %v413 = vld [vmem:[%s1 + $0x1c8] sm:$0xff]
      %v414 = vld [vmem:[%s1 + $0x1d0] sm:$0xff]
      %v415 = vld [vmem:[%s1 + $0x1d8] sm:$0xff]
      %v416 = vld [vmem:[%s1 + $0x1e0] sm:$0xff]
      %v417 = vld [vmem:[%s1 + $0x1e8] sm:$0xff]
      %v418 = vld [vmem:[%s1 + $0x1f0] sm:$0xff]
      %v419 = vld [vmem:[%s1 + $0x1f8] sm:$0xff]
      %v420 = vld [vmem:[%s2] sm:$0xf]
      %v422 = vlaneseq
      %v423 = vshrl.u32 %v422, 7
      %v424 = vsub.s32 0, %v423
      %v425 = vrot.slane %v420, %v424
      %v426 = vlaneseq
      %v427 = vshrl.u32 %v426, 7
      %v428 = vsub.s32 1, %v427
      %v429 = vrot.slane %v420, %v428
      %v430 = vlaneseq
      %v431 = vshrl.u32 %v430, 7
      %v432 = vsub.s32 2, %v431
      %v433 = vrot.slane %v420, %v432
      %v434 = vlaneseq
      %v435 = vshrl.u32 %v434, 7
      %v436 = vsub.s32 3, %v435
      %v437 = vrot.slane %v420, %v436
      %v458 = vunpack.c.l.b16 %v340
      %v459 = vunpack.c.h.b16 %v340
      %v460 = vunpack.c.l.b16 %v341
      %v461 = vunpack.c.h.b16 %v341
      %v462 = vunpack.c.l.b16 %v342
      %v463 = vunpack.c.h.b16 %v342
      %v464 = vunpack.c.l.b16 %v343
      %v465 = vunpack.c.h.b16 %v343
      %v466 = vunpack.c.l.b16 %v344
      %v467 = vunpack.c.h.b16 %v344
      %v468 = vunpack.c.l.b16 %v345
      %v469 = vunpack.c.h.b16 %v345
      %v470 = vunpack.c.l.b16 %v346
      %v471 = vunpack.c.h.b16 %v346
      %v472 = vunpack.c.l.b16 %v347
      %v473 = vunpack.c.h.b16 %v347
      %v474 = vunpack.c.l.b16 %v348
      %v475 = vunpack.c.h.b16 %v348
      %v476 = vunpack.c.l.b16 %v349
      %v477 = vunpack.c.h.b16 %v349
      %v478 = vunpack.c.l.b16 %v350
      %v479 = vunpack.c.h.b16 %v350
      %v480 = vunpack.c.l.b16 %v351
      %v481 = vunpack.c.h.b16 %v351
      %v482 = vunpack.c.l.b16 %v352
      %v483 = vunpack.c.h.b16 %v352
      %v484 = vunpack.c.l.b16 %v353
      %v485 = vunpack.c.h.b16 %v353
      %v486 = vunpack.c.l.b16 %v354
      %v487 = vunpack.c.h.b16 %v354
      %v488 = vunpack.c.l.b16 %v355
      %v489 = vunpack.c.h.b16 %v355
      %v490 = vpack.c.b16 %v460, %v458
      %v491 = vpack.c.b16 %v461, %v459
      %v492 = vpack.c.b16 %v464, %v462
      %v493 = vpack.c.b16 %v465, %v463
      %v494 = vpack.c.b16 %v468, %v466
      %v495 = vpack.c.b16 %v469, %v467
      %v496 = vpack.c.b16 %v472, %v470
      %v497 = vpack.c.b16 %v473, %v471
      %v498 = vpack.c.b16 %v476, %v474
      %v499 = vpack.c.b16 %v477, %v475
      %v500 = vpack.c.b16 %v480, %v478
      %v501 = vpack.c.b16 %v481, %v479
      %v502 = vpack.c.b16 %v484, %v482
      %v503 = vpack.c.b16 %v485, %v483
      %v504 = vpack.c.b16 %v488, %v486
      %v505 = vpack.c.b16 %v489, %v487
      %v586 = vunpack.c.l.b16 %v356
      %v587 = vunpack.c.h.b16 %v356
      %v588 = vunpack.c.l.b16 %v357
      %v589 = vunpack.c.h.b16 %v357
      %v590 = vunpack.c.l.b16 %v358
      %v591 = vunpack.c.h.b16 %v358
      %v592 = vunpack.c.l.b16 %v359
      %v593 = vunpack.c.h.b16 %v359
      %v594 = vunpack.c.l.b16 %v360
      %v595 = vunpack.c.h.b16 %v360
      %v596 = vunpack.c.l.b16 %v361
      %v597 = vunpack.c.h.b16 %v361
      %v598 = vunpack.c.l.b16 %v362
      %v599 = vunpack.c.h.b16 %v362
      %v600 = vunpack.c.l.b16 %v363
      %v601 = vunpack.c.h.b16 %v363
      %v602 = vunpack.c.l.b16 %v364
      %v603 = vunpack.c.h.b16 %v364
      %v604 = vunpack.c.l.b16 %v365
      %v605 = vunpack.c.h.b16 %v365
      %v606 = vunpack.c.l.b16 %v366
      %v607 = vunpack.c.h.b16 %v366
      %v608 = vunpack.c.l.b16 %v367
      %v609 = vunpack.c.h.b16 %v367
      %v610 = vunpack.c.l.b16 %v368
      %v611 = vunpack.c.h.b16 %v368
      %v612 = vunpack.c.l.b16 %v369
      %v613 = vunpack.c.h.b16 %v369
      %v614 = vunpack.c.l.b16 %v370
      %v615 = vunpack.c.h.b16 %v370
      %v616 = vunpack.c.l.b16 %v371
      %v617 = vunpack.c.h.b16 %v371
      %v618 = vunpack.c.l.b16 %v372
      %v619 = vunpack.c.h.b16 %v372
      %v620 = vunpack.c.l.b16 %v373
      %v621 = vunpack.c.h.b16 %v373
      %v622 = vunpack.c.l.b16 %v374
      %v623 = vunpack.c.h.b16 %v374
      %v624 = vunpack.c.l.b16 %v375
      %v625 = vunpack.c.h.b16 %v375
      %v626 = vunpack.c.l.b16 %v376
      %v627 = vunpack.c.h.b16 %v376
      %v628 = vunpack.c.l.b16 %v377
      %v629 = vunpack.c.h.b16 %v377
      %v630 = vunpack.c.l.b16 %v378
      %v631 = vunpack.c.h.b16 %v378
      %v632 = vunpack.c.l.b16 %v379
      %v633 = vunpack.c.h.b16 %v379
      %v634 = vunpack.c.l.b16 %v380
      %v635 = vunpack.c.h.b16 %v380
      %v636 = vunpack.c.l.b16 %v381
      %v637 = vunpack.c.h.b16 %v381
      %v638 = vunpack.c.l.b16 %v382
      %v639 = vunpack.c.h.b16 %v382
      %v640 = vunpack.c.l.b16 %v383
      %v641 = vunpack.c.h.b16 %v383
      %v642 = vunpack.c.l.b16 %v384
      %v643 = vunpack.c.h.b16 %v384
      %v644 = vunpack.c.l.b16 %v385
      %v645 = vunpack.c.h.b16 %v385
      %v646 = vunpack.c.l.b16 %v386
      %v647 = vunpack.c.h.b16 %v386
      %v648 = vunpack.c.l.b16 %v387
      %v649 = vunpack.c.h.b16 %v387
      %v650 = vunpack.c.l.b16 %v388
      %v651 = vunpack.c.h.b16 %v388
      %v652 = vunpack.c.l.b16 %v389
      %v653 = vunpack.c.h.b16 %v389
      %v654 = vunpack.c.l.b16 %v390
      %v655 = vunpack.c.h.b16 %v390
      %v656 = vunpack.c.l.b16 %v391
      %v657 = vunpack.c.h.b16 %v391
      %v658 = vunpack.c.l.b16 %v392
      %v659 = vunpack.c.h.b16 %v392
      %v660 = vunpack.c.l.b16 %v393
      %v661 = vunpack.c.h.b16 %v393
      %v662 = vunpack.c.l.b16 %v394
      %v663 = vunpack.c.h.b16 %v394
      %v664 = vunpack.c.l.b16 %v395
      %v665 = vunpack.c.h.b16 %v395
      %v666 = vunpack.c.l.b16 %v396
      %v667 = vunpack.c.h.b16 %v396
      %v668 = vunpack.c.l.b16 %v397
      %v669 = vunpack.c.h.b16 %v397
      %v670 = vunpack.c.l.b16 %v398
      %v671 = vunpack.c.h.b16 %v398
      %v672 = vunpack.c.l.b16 %v399
      %v673 = vunpack.c.h.b16 %v399
      %v674 = vunpack.c.l.b16 %v400
      %v675 = vunpack.c.h.b16 %v400
      %v676 = vunpack.c.l.b16 %v401
      %v677 = vunpack.c.h.b16 %v401
      %v678 = vunpack.c.l.b16 %v402
      %v679 = vunpack.c.h.b16 %v402
      %v680 = vunpack.c.l.b16 %v403
      %v681 = vunpack.c.h.b16 %v403
      %v682 = vunpack.c.l.b16 %v404
      %v683 = vunpack.c.h.b16 %v404
      %v684 = vunpack.c.l.b16 %v405
      %v685 = vunpack.c.h.b16 %v405
      %v686 = vunpack.c.l.b16 %v406
      %v687 = vunpack.c.h.b16 %v406
      %v688 = vunpack.c.l.b16 %v407
      %v689 = vunpack.c.h.b16 %v407
      %v690 = vunpack.c.l.b16 %v408
      %v691 = vunpack.c.h.b16 %v408
      %v692 = vunpack.c.l.b16 %v409
      %v693 = vunpack.c.h.b16 %v409
      %v694 = vunpack.c.l.b16 %v410
      %v695 = vunpack.c.h.b16 %v410
      %v696 = vunpack.c.l.b16 %v411
      %v697 = vunpack.c.h.b16 %v411
      %v698 = vunpack.c.l.b16 %v412
      %v699 = vunpack.c.h.b16 %v412
      %v700 = vunpack.c.l.b16 %v413
      %v701 = vunpack.c.h.b16 %v413
      %v702 = vunpack.c.l.b16 %v414
      %v703 = vunpack.c.h.b16 %v414
      %v704 = vunpack.c.l.b16 %v415
      %v705 = vunpack.c.h.b16 %v415
      %v706 = vunpack.c.l.b16 %v416
      %v707 = vunpack.c.h.b16 %v416
      %v708 = vunpack.c.l.b16 %v417
      %v709 = vunpack.c.h.b16 %v417
      %v710 = vunpack.c.l.b16 %v418
      %v711 = vunpack.c.h.b16 %v418
      %v712 = vunpack.c.l.b16 %v419
      %v713 = vunpack.c.h.b16 %v419
      %v714 = vpack.c.b16 %v590, %v586
      %v715 = vpack.c.b16 %v591, %v587
      %v716 = vpack.c.b16 %v592, %v588
      %v717 = vpack.c.b16 %v593, %v589
      %v718 = vpack.c.b16 %v598, %v594
      %v719 = vpack.c.b16 %v599, %v595
      %v720 = vpack.c.b16 %v600, %v596
      %v721 = vpack.c.b16 %v601, %v597
      %v722 = vpack.c.b16 %v606, %v602
      %v723 = vpack.c.b16 %v607, %v603
      %v724 = vpack.c.b16 %v608, %v604
      %v725 = vpack.c.b16 %v609, %v605
      %v726 = vpack.c.b16 %v614, %v610
      %v727 = vpack.c.b16 %v615, %v611
      %v728 = vpack.c.b16 %v616, %v612
      %v729 = vpack.c.b16 %v617, %v613
      %v730 = vpack.c.b16 %v622, %v618
      %v731 = vpack.c.b16 %v623, %v619
      %v732 = vpack.c.b16 %v624, %v620
      %v733 = vpack.c.b16 %v625, %v621
      %v734 = vpack.c.b16 %v630, %v626
      %v735 = vpack.c.b16 %v631, %v627
      %v736 = vpack.c.b16 %v632, %v628
      %v737 = vpack.c.b16 %v633, %v629
      %v738 = vpack.c.b16 %v638, %v634
      %v739 = vpack.c.b16 %v639, %v635
      %v740 = vpack.c.b16 %v640, %v636
      %v741 = vpack.c.b16 %v641, %v637
      %v742 = vpack.c.b16 %v646, %v642
      %v743 = vpack.c.b16 %v647, %v643
      %v744 = vpack.c.b16 %v648, %v644
      %v745 = vpack.c.b16 %v649, %v645
      %v746 = vpack.c.b16 %v654, %v650
      %v747 = vpack.c.b16 %v655, %v651
      %v748 = vpack.c.b16 %v656, %v652
      %v749 = vpack.c.b16 %v657, %v653
      %v750 = vpack.c.b16 %v662, %v658
      %v751 = vpack.c.b16 %v663, %v659
      %v752 = vpack.c.b16 %v664, %v660
      %v753 = vpack.c.b16 %v665, %v661
      %v754 = vpack.c.b16 %v670, %v666
      %v755 = vpack.c.b16 %v671, %v667
      %v756 = vpack.c.b16 %v672, %v668
      %v757 = vpack.c.b16 %v673, %v669
      %v758 = vpack.c.b16 %v678, %v674
      %v759 = vpack.c.b16 %v679, %v675
      %v760 = vpack.c.b16 %v680, %v676
      %v761 = vpack.c.b16 %v681, %v677
      %v762 = vpack.c.b16 %v686, %v682
      %v763 = vpack.c.b16 %v687, %v683
      %v764 = vpack.c.b16 %v688, %v684
      %v765 = vpack.c.b16 %v689, %v685
      %v766 = vpack.c.b16 %v694, %v690
      %v767 = vpack.c.b16 %v695, %v691
      %v768 = vpack.c.b16 %v696, %v692
      %v769 = vpack.c.b16 %v697, %v693
      %v770 = vpack.c.b16 %v702, %v698
      %v771 = vpack.c.b16 %v703, %v699
      %v772 = vpack.c.b16 %v704, %v700
      %v773 = vpack.c.b16 %v705, %v701
      %v774 = vpack.c.b16 %v710, %v706
      %v775 = vpack.c.b16 %v711, %v707
      %v776 = vpack.c.b16 %v712, %v708
      %v777 = vpack.c.b16 %v713, %v709
      %842 = vmatprep.subr.bf16.mxu0 %v743
      %843 = vmatpush1.bf16.msra.mxu0 %v742
      %844 = vmatprep.subr.bf16.mxu0 %v739
      %845 = vmatpush1.bf16.msra.mxu0 %v738
      %846 = vmatprep.subr.bf16.mxu0 %v735
      %847 = vmatpush1.bf16.msra.mxu0 %v734
      %848 = vmatprep.subr.bf16.mxu0 %v731
      %849 = vmatpush1.bf16.msra.mxu0 %v730
      %850 = vmatprep.subr.bf16.mxu0 %v727
      %851 = vmatpush1.bf16.msra.mxu0 %v726
      %852 = vmatprep.subr.bf16.mxu0 %v723
      %853 = vmatpush1.bf16.msra.mxu0 %v722
      %854 = vmatprep.subr.bf16.mxu0 %v719
      %855 = vmatpush1.bf16.msra.mxu0 %v718
      %856 = vmatprep.subr.bf16.mxu0 %v715
      %857 = vmatpush1.bf16.msra.mxu0 %v714
      %858 = vmatprep.subr.bf16.mxu0 %v775
      %859 = vmatpush2.bf16.msra.mxu0 %v774
      %860 = vmatprep.subr.bf16.mxu0 %v771
      %861 = vmatpush2.bf16.msra.mxu0 %v770
      %862 = vmatprep.subr.bf16.mxu0 %v767
      %863 = vmatpush2.bf16.msra.mxu0 %v766
      %864 = vmatprep.subr.bf16.mxu0 %v763
      %865 = vmatpush2.bf16.msra.mxu0 %v762
      %866 = vmatprep.subr.bf16.mxu0 %v759
      %867 = vmatpush2.bf16.msra.mxu0 %v758
      %868 = vmatprep.subr.bf16.mxu0 %v755
      %869 = vmatpush2.bf16.msra.mxu0 %v754
      %870 = vmatprep.subr.bf16.mxu0 %v751
      %871 = vmatpush2.bf16.msra.mxu0 %v750
      %872 = vmatprep.subr.bf16.mxu0 %v747
      %873 = vmatpush2.bf16.msra.mxu0 %v746
      %874 = vmatprep.mubr.bf16.mxu0 %v491
      %875 = vmatmul.mubr.bf16.gmra.mxu0 %v490
      %v876 = vpop.f32.mrf.mxu0
      %v877 = vadd.f32 %v425, %v876
      %v878 = vpop.f32.mrf.mxu0
      %v879 = vadd.f32 %v429, %v878
      %v880 = vpop.f32.mrf.mxu0
      %v881 = vadd.f32 %v425, %v880
      %v882 = vpop.f32.mrf.mxu0
      %v883 = vadd.f32 %v429, %v882
      %884 = vmatprep.mubr.bf16.mxu0 %v493
      %885 = vmatmul.mubr.bf16.gmra.mxu0 %v492
      %v886 = vpop.f32.mrf.mxu0
      %v887 = vadd.f32 %v425, %v886
      %v888 = vpop.f32.mrf.mxu0
      %v889 = vadd.f32 %v429, %v888
      %v890 = vpop.f32.mrf.mxu0
      %v891 = vadd.f32 %v425, %v890
      %v892 = vpop.f32.mrf.mxu0
      %v893 = vadd.f32 %v429, %v892
      %894 = vmatprep.mubr.bf16.mxu0 %v495
      %895 = vmatmul.mubr.bf16.gmra.mxu0 %v494
      %v896 = vpop.f32.mrf.mxu0
      %v897 = vadd.f32 %v425, %v896
      %v898 = vpop.f32.mrf.mxu0
      %v899 = vadd.f32 %v429, %v898
      %v900 = vpop.f32.mrf.mxu0
      %v901 = vadd.f32 %v425, %v900
      %v902 = vpop.f32.mrf.mxu0
      %v903 = vadd.f32 %v429, %v902
      %904 = vmatprep.mubr.bf16.mxu0 %v497
      %905 = vmatmul.mubr.bf16.gmra.mxu0 %v496
      %v906 = vpop.f32.mrf.mxu0
      %v907 = vadd.f32 %v425, %v906
      %v908 = vpop.f32.mrf.mxu0
      %v909 = vadd.f32 %v429, %v908
      %v910 = vpop.f32.mrf.mxu0
      %v911 = vadd.f32 %v425, %v910
      %v912 = vpop.f32.mrf.mxu0
      %v913 = vadd.f32 %v429, %v912
      %914 = vmatprep.mubr.bf16.mxu0 %v499
      %915 = vmatmul.mubr.bf16.gmra.mxu0 %v498
      %v916 = vpop.f32.mrf.mxu0
      %v917 = vadd.f32 %v425, %v916
      %v918 = vpop.f32.mrf.mxu0
      %v919 = vadd.f32 %v429, %v918
      %v920 = vpop.f32.mrf.mxu0
      %v921 = vadd.f32 %v425, %v920
      %v922 = vpop.f32.mrf.mxu0
      %v923 = vadd.f32 %v429, %v922
      %924 = vmatprep.mubr.bf16.mxu0 %v501
      %925 = vmatmul.mubr.bf16.gmra.mxu0 %v500
      %v926 = vpop.f32.mrf.mxu0
      %v927 = vadd.f32 %v425, %v926
      %v928 = vpop.f32.mrf.mxu0
      %v929 = vadd.f32 %v429, %v928
      %v930 = vpop.f32.mrf.mxu0
      %v931 = vadd.f32 %v425, %v930
      %v932 = vpop.f32.mrf.mxu0
      %v933 = vadd.f32 %v429, %v932
      %934 = vmatprep.mubr.bf16.mxu0 %v503
      %935 = vmatmul.mubr.bf16.gmra.mxu0 %v502
      %v936 = vpop.f32.mrf.mxu0
      %v937 = vadd.f32 %v425, %v936
      %v938 = vpop.f32.mrf.mxu0
      %v939 = vadd.f32 %v429, %v938
      %v940 = vpop.f32.mrf.mxu0
      %v941 = vadd.f32 %v425, %v940
      %v942 = vpop.f32.mrf.mxu0
      %v943 = vadd.f32 %v429, %v942
      %944 = vmatprep.mubr.bf16.mxu0 %v505
      %945 = vmatmul.mubr.bf16.gmra.mxu0 %v504
      %v946 = vpop.f32.mrf.mxu0
      %v947 = vadd.f32 %v425, %v946
      %v948 = vpop.f32.mrf.mxu0
      %v949 = vadd.f32 %v429, %v948
      %v950 = vpop.f32.mrf.mxu0
      %v951 = vadd.f32 %v425, %v950
      %v952 = vpop.f32.mrf.mxu0
      %v953 = vadd.f32 %v429, %v952
      %954 = vdwg.mxu0
      %955 = vmatprep.subr.bf16.mxu0 %v745
      %956 = vmatpush1.bf16.msra.mxu0 %v744
      %957 = vmatprep.subr.bf16.mxu0 %v741
      %958 = vmatpush1.bf16.msra.mxu0 %v740
      %959 = vmatprep.subr.bf16.mxu0 %v737
      %960 = vmatpush1.bf16.msra.mxu0 %v736
      %961 = vmatprep.subr.bf16.mxu0 %v733
      %962 = vmatpush1.bf16.msra.mxu0 %v732
      %963 = vmatprep.subr.bf16.mxu0 %v729
      %964 = vmatpush1.bf16.msra.mxu0 %v728
      %965 = vmatprep.subr.bf16.mxu0 %v725
      %966 = vmatpush1.bf16.msra.mxu0 %v724
      %967 = vmatprep.subr.bf16.mxu0 %v721
      %968 = vmatpush1.bf16.msra.mxu0 %v720
      %969 = vmatprep.subr.bf16.mxu0 %v717
      %970 = vmatpush1.bf16.msra.mxu0 %v716
      %971 = vmatprep.subr.bf16.mxu0 %v777
      %972 = vmatpush2.bf16.msra.mxu0 %v776
      %973 = vmatprep.subr.bf16.mxu0 %v773
      %974 = vmatpush2.bf16.msra.mxu0 %v772
      %975 = vmatprep.subr.bf16.mxu0 %v769
      %976 = vmatpush2.bf16.msra.mxu0 %v768
      %977 = vmatprep.subr.bf16.mxu0 %v765
      %978 = vmatpush2.bf16.msra.mxu0 %v764
      %979 = vmatprep.subr.bf16.mxu0 %v761
      %980 = vmatpush2.bf16.msra.mxu0 %v760
      %981 = vmatprep.subr.bf16.mxu0 %v757
      %982 = vmatpush2.bf16.msra.mxu0 %v756
      %983 = vmatprep.subr.bf16.mxu0 %v753
      %984 = vmatpush2.bf16.msra.mxu0 %v752
      %985 = vmatprep.subr.bf16.mxu0 %v749
      %986 = vmatpush2.bf16.msra.mxu0 %v748
      %987 = vmatprep.mubr.bf16.mxu0 %v491
      %988 = vmatmul.mubr.bf16.gmra.mxu0 %v490
      %v989 = vpop.f32.mrf.mxu0
      %v990 = vadd.f32 %v433, %v989
      %v991 = vpop.f32.mrf.mxu0
      %v992 = vadd.f32 %v437, %v991
      %v993 = vpop.f32.mrf.mxu0
      %v994 = vadd.f32 %v433, %v993
      %v995 = vpop.f32.mrf.mxu0
      %v996 = vadd.f32 %v437, %v995
      %997 = vmatprep.mubr.bf16.mxu0 %v493
      %998 = vmatmul.mubr.bf16.gmra.mxu0 %v492
      %v999 = vpop.f32.mrf.mxu0
      %v1000 = vadd.f32 %v433, %v999
      %v1001 = vpop.f32.mrf.mxu0
      %v1002 = vadd.f32 %v437, %v1001
      %v1003 = vpop.f32.mrf.mxu0
      %v1004 = vadd.f32 %v433, %v1003
      %v1005 = vpop.f32.mrf.mxu0
      %v1006 = vadd.f32 %v437, %v1005
      %1007 = vmatprep.mubr.bf16.mxu0 %v495
      %1008 = vmatmul.mubr.bf16.gmra.mxu0 %v494
      %v1009 = vpop.f32.mrf.mxu0
      %v1010 = vadd.f32 %v433, %v1009
      %v1011 = vpop.f32.mrf.mxu0
      %v1012 = vadd.f32 %v437, %v1011
      %v1013 = vpop.f32.mrf.mxu0
      %v1014 = vadd.f32 %v433, %v1013
      %v1015 = vpop.f32.mrf.mxu0
      %v1016 = vadd.f32 %v437, %v1015
      %1017 = vmatprep.mubr.bf16.mxu0 %v497
      %1018 = vmatmul.mubr.bf16.gmra.mxu0 %v496
      %v1019 = vpop.f32.mrf.mxu0
      %v1020 = vadd.f32 %v433, %v1019
      %v1021 = vpop.f32.mrf.mxu0
      %v1022 = vadd.f32 %v437, %v1021
      %v1023 = vpop.f32.mrf.mxu0
      %v1024 = vadd.f32 %v433, %v1023
      %v1025 = vpop.f32.mrf.mxu0
      %v1026 = vadd.f32 %v437, %v1025
      %1027 = vmatprep.mubr.bf16.mxu0 %v499
      %1028 = vmatmul.mubr.bf16.gmra.mxu0 %v498
      %v1029 = vpop.f32.mrf.mxu0
      %v1030 = vadd.f32 %v433, %v1029
      %v1031 = vpop.f32.mrf.mxu0
      %v1032 = vadd.f32 %v437, %v1031
      %v1033 = vpop.f32.mrf.mxu0
      %v1034 = vadd.f32 %v433, %v1033
      %v1035 = vpop.f32.mrf.mxu0
      %v1036 = vadd.f32 %v437, %v1035
      %1037 = vmatprep.mubr.bf16.mxu0 %v501
      %1038 = vmatmul.mubr.bf16.gmra.mxu0 %v500
      %v1039 = vpop.f32.mrf.mxu0
      %v1040 = vadd.f32 %v433, %v1039
      %v1041 = vpop.f32.mrf.mxu0
      %v1042 = vadd.f32 %v437, %v1041
      %v1043 = vpop.f32.mrf.mxu0
      %v1044 = vadd.f32 %v433, %v1043
      %v1045 = vpop.f32.mrf.mxu0
      %v1046 = vadd.f32 %v437, %v1045
      %1047 = vmatprep.mubr.bf16.mxu0 %v503
      %1048 = vmatmul.mubr.bf16.gmra.mxu0 %v502
      %v1049 = vpop.f32.mrf.mxu0
      %v1050 = vadd.f32 %v433, %v1049
      %v1051 = vpop.f32.mrf.mxu0
      %v1052 = vadd.f32 %v437, %v1051
      %v1053 = vpop.f32.mrf.mxu0
      %v1054 = vadd.f32 %v433, %v1053
      %v1055 = vpop.f32.mrf.mxu0
      %v1056 = vadd.f32 %v437, %v1055
      %1057 = vmatprep.mubr.bf16.mxu0 %v505
      %1058 = vmatmul.mubr.bf16.gmra.mxu0 %v504
      %v1059 = vpop.f32.mrf.mxu0
      %v1060 = vadd.f32 %v433, %v1059
      %v1061 = vpop.f32.mrf.mxu0
      %v1062 = vadd.f32 %v437, %v1061
      %v1063 = vpop.f32.mrf.mxu0
      %v1064 = vadd.f32 %v433, %v1063
      %v1065 = vpop.f32.mrf.mxu0
      %v1066 = vadd.f32 %v437, %v1065
      %1067 = vdwg.mxu0
      %v1068 = vmul.f32 %v877, 0.5
      %v1069 = vmul.f32 %v879, 0.5
      %v1070 = vmul.f32 %v990, 0.5
      %v1071 = vmul.f32 %v992, 0.5
      %v1072 = vmul.f32 %v881, 0.5
      %v1073 = vmul.f32 %v883, 0.5
      %v1074 = vmul.f32 %v994, 0.5
      %v1075 = vmul.f32 %v996, 0.5
      %v1076 = vmul.f32 %v887, 0.5
      %v1077 = vmul.f32 %v889, 0.5
      %v1078 = vmul.f32 %v1000, 0.5
      %v1079 = vmul.f32 %v1002, 0.5
      %v1080 = vmul.f32 %v891, 0.5
      %v1081 = vmul.f32 %v893, 0.5
      %v1082 = vmul.f32 %v1004, 0.5
      %v1083 = vmul.f32 %v1006, 0.5
      %v1084 = vmul.f32 %v897, 0.5
      %v1085 = vmul.f32 %v899, 0.5
      %v1086 = vmul.f32 %v1010, 0.5
      %v1087 = vmul.f32 %v1012, 0.5
      %v1088 = vmul.f32 %v901, 0.5
      %v1089 = vmul.f32 %v903, 0.5
      %v1090 = vmul.f32 %v1014, 0.5
      %v1091 = vmul.f32 %v1016, 0.5
      %v1092 = vmul.f32 %v907, 0.5
      %v1093 = vmul.f32 %v909, 0.5
      %v1094 = vmul.f32 %v1020, 0.5
      %v1095 = vmul.f32 %v1022, 0.5
      %v1096 = vmul.f32 %v911, 0.5
      %v1097 = vmul.f32 %v913, 0.5
      %v1098 = vmul.f32 %v1024, 0.5
      %v1099 = vmul.f32 %v1026, 0.5
      %v1100 = vmul.f32 %v917, 0.5
      %v1101 = vmul.f32 %v919, 0.5
      %v1102 = vmul.f32 %v1030, 0.5
      %v1103 = vmul.f32 %v1032, 0.5
      %v1104 = vmul.f32 %v921, 0.5
      %v1105 = vmul.f32 %v923, 0.5
      %v1106 = vmul.f32 %v1034, 0.5
      %v1107 = vmul.f32 %v1036, 0.5
      %v1108 = vmul.f32 %v927, 0.5
      %v1109 = vmul.f32 %v929, 0.5
      %v1110 = vmul.f32 %v1040, 0.5
      %v1111 = vmul.f32 %v1042, 0.5
      %v1112 = vmul.f32 %v931, 0.5
      %v1113 = vmul.f32 %v933, 0.5
      %v1114 = vmul.f32 %v1044, 0.5
      %v1115 = vmul.f32 %v1046, 0.5
      %v1116 = vmul.f32 %v937, 0.5
      %v1117 = vmul.f32 %v939, 0.5
      %v1118 = vmul.f32 %v1050, 0.5
      %v1119 = vmul.f32 %v1052, 0.5
      %v1120 = vmul.f32 %v941, 0.5
      %v1121 = vmul.f32 %v943, 0.5
      %v1122 = vmul.f32 %v1054, 0.5
      %v1123 = vmul.f32 %v1056, 0.5
      %v1124 = vmul.f32 %v947, 0.5
      %v1125 = vmul.f32 %v949, 0.5
      %v1126 = vmul.f32 %v1060, 0.5
      %v1127 = vmul.f32 %v1062, 0.5
      %v1128 = vmul.f32 %v951, 0.5
      %v1129 = vmul.f32 %v953, 0.5
      %v1130 = vmul.f32 %v1064, 0.5
      %v1131 = vmul.f32 %v1066, 0.5
      %v1132 = vmul.f32 %v877, 0.70710677
      %v1133 = vmul.f32 %v879, 0.70710677
      %v1134 = vmul.f32 %v990, 0.70710677
      %v1135 = vmul.f32 %v992, 0.70710677
      %v1136 = vmul.f32 %v881, 0.70710677
      %v1137 = vmul.f32 %v883, 0.70710677
      %v1138 = vmul.f32 %v994, 0.70710677
      %v1139 = vmul.f32 %v996, 0.70710677
      %v1140 = vmul.f32 %v887, 0.70710677
      %v1141 = vmul.f32 %v889, 0.70710677
      %v1142 = vmul.f32 %v1000, 0.70710677
      %v1143 = vmul.f32 %v1002, 0.70710677
      %v1144 = vmul.f32 %v891, 0.70710677
      %v1145 = vmul.f32 %v893, 0.70710677
      %v1146 = vmul.f32 %v1004, 0.70710677
      %v1147 = vmul.f32 %v1006, 0.70710677
      %v1148 = vmul.f32 %v897, 0.70710677
      %v1149 = vmul.f32 %v899, 0.70710677
      %v1150 = vmul.f32 %v1010, 0.70710677
      %v1151 = vmul.f32 %v1012, 0.70710677
      %v1152 = vmul.f32 %v901, 0.70710677
      %v1153 = vmul.f32 %v903, 0.70710677
      %v1154 = vmul.f32 %v1014, 0.70710677
      %v1155 = vmul.f32 %v1016, 0.70710677
      %v1156 = vmul.f32 %v907, 0.70710677
      %v1157 = vmul.f32 %v909, 0.70710677
      %v1158 = vmul.f32 %v1020, 0.70710677
      %v1159 = vmul.f32 %v1022, 0.70710677
      %v1160 = vmul.f32 %v911, 0.70710677
      %v1161 = vmul.f32 %v913, 0.70710677
      %v1162 = vmul.f32 %v1024, 0.70710677
      %v1163 = vmul.f32 %v1026, 0.70710677
      %v1164 = vmul.f32 %v917, 0.70710677
      %v1165 = vmul.f32 %v919, 0.70710677
      %v1166 = vmul.f32 %v1030, 0.70710677
      %v1167 = vmul.f32 %v1032, 0.70710677
      %v1168 = vmul.f32 %v921, 0.70710677
      %v1169 = vmul.f32 %v923, 0.70710677
      %v1170 = vmul.f32 %v1034, 0.70710677
      %v1171 = vmul.f32 %v1036, 0.70710677
      %v1172 = vmul.f32 %v927, 0.70710677
      %v1173 = vmul.f32 %v929, 0.70710677
      %v1174 = vmul.f32 %v1040, 0.70710677
      %v1175 = vmul.f32 %v1042, 0.70710677
      %v1176 = vmul.f32 %v931, 0.70710677
      %v1177 = vmul.f32 %v933, 0.70710677
      %v1178 = vmul.f32 %v1044, 0.70710677
      %v1179 = vmul.f32 %v1046, 0.70710677
      %v1180 = vmul.f32 %v937, 0.70710677
      %v1181 = vmul.f32 %v939, 0.70710677
      %v1182 = vmul.f32 %v1050, 0.70710677
      %v1183 = vmul.f32 %v1052, 0.70710677
      %v1184 = vmul.f32 %v941, 0.70710677
      %v1185 = vmul.f32 %v943, 0.70710677
      %v1186 = vmul.f32 %v1054, 0.70710677
      %v1187 = vmul.f32 %v1056, 0.70710677
      %v1188 = vmul.f32 %v947, 0.70710677
      %v1189 = vmul.f32 %v949, 0.70710677
      %v1190 = vmul.f32 %v1060, 0.70710677
      %v1191 = vmul.f32 %v1062, 0.70710677
      %v1192 = vmul.f32 %v951, 0.70710677
      %v1193 = vmul.f32 %v953, 0.70710677
      %v1194 = vmul.f32 %v1064, 0.70710677
      %v1195 = vmul.f32 %v1066, 0.70710677
      %v1196 = verf.f32.pop %v1132
      %v1197 = verf.f32.pop %v1133
      %v1198 = verf.f32.pop %v1134
      %v1199 = verf.f32.pop %v1135
      %v1200 = verf.f32.pop %v1136
      %v1201 = verf.f32.pop %v1137
      %v1202 = verf.f32.pop %v1138
      %v1203 = verf.f32.pop %v1139
      %v1204 = verf.f32.pop %v1140
      %v1205 = verf.f32.pop %v1141
      %v1206 = verf.f32.pop %v1142
      %v1207 = verf.f32.pop %v1143
      %v1208 = verf.f32.pop %v1144
      %v1209 = verf.f32.pop %v1145
      %v1210 = verf.f32.pop %v1146
      %v1211 = verf.f32.pop %v1147
      %v1212 = verf.f32.pop %v1148
      %v1213 = verf.f32.pop %v1149
      %v1214 = verf.f32.pop %v1150
      %v1215 = verf.f32.pop %v1151
      %v1216 = verf.f32.pop %v1152
      %v1217 = verf.f32.pop %v1153
      %v1218 = verf.f32.pop %v1154
      %v1219 = verf.f32.pop %v1155
      %v1220 = verf.f32.pop %v1156
      %v1221 = verf.f32.pop %v1157
      %v1222 = verf.f32.pop %v1158
      %v1223 = verf.f32.pop %v1159
      %v1224 = verf.f32.pop %v1160
      %v1225 = verf.f32.pop %v1161
      %v1226 = verf.f32.pop %v1162
      %v1227 = verf.f32.pop %v1163
      %v1228 = verf.f32.pop %v1164
      %v1229 = verf.f32.pop %v1165
      %v1230 = verf.f32.pop %v1166
      %v1231 = verf.f32.pop %v1167
      %v1232 = verf.f32.pop %v1168
      %v1233 = verf.f32.pop %v1169
      %v1234 = verf.f32.pop %v1170
      %v1235 = verf.f32.pop %v1171
      %v1236 = verf.f32.pop %v1172
      %v1237 = verf.f32.pop %v1173
      %v1238 = verf.f32.pop %v1174
      %v1239 = verf.f32.pop %v1175
      %v1240 = verf.f32.pop %v1176
      %v1241 = verf.f32.pop %v1177
      %v1242 = verf.f32.pop %v1178
      %v1243 = verf.f32.pop %v1179
      %v1244 = verf.f32.pop %v1180
      %v1245 = verf.f32.pop %v1181
      %v1246 = verf.f32.pop %v1182
      %v1247 = verf.f32.pop %v1183
      %v1248 = verf.f32.pop %v1184
      %v1249 = verf.f32.pop %v1185
      %v1250 = verf.f32.pop %v1186
      %v1251 = verf.f32.pop %v1187
      %v1252 = verf.f32.pop %v1188
      %v1253 = verf.f32.pop %v1189
      %v1254 = verf.f32.pop %v1190
      %v1255 = verf.f32.pop %v1191
      %v1256 = verf.f32.pop %v1192
      %v1257 = verf.f32.pop %v1193
      %v1258 = verf.f32.pop %v1194
      %v1259 = verf.f32.pop %v1195
      %v1260 = vadd.f32 %v1196, 1.0
      %v1261 = vadd.f32 %v1197, 1.0
      %v1262 = vadd.f32 %v1198, 1.0
      %v1263 = vadd.f32 %v1199, 1.0
      %v1264 = vadd.f32 %v1200, 1.0
      %v1265 = vadd.f32 %v1201, 1.0
      %v1266 = vadd.f32 %v1202, 1.0
      %v1267 = vadd.f32 %v1203, 1.0
      %v1268 = vadd.f32 %v1204, 1.0
      %v1269 = vadd.f32 %v1205, 1.0
      %v1270 = vadd.f32 %v1206, 1.0
      %v1271 = vadd.f32 %v1207, 1.0
      %v1272 = vadd.f32 %v1208, 1.0
      %v1273 = vadd.f32 %v1209, 1.0
      %v1274 = vadd.f32 %v1210, 1.0
      %v1275 = vadd.f32 %v1211, 1.0
      %v1276 = vadd.f32 %v1212, 1.0
      %v1277 = vadd.f32 %v1213, 1.0
      %v1278 = vadd.f32 %v1214, 1.0
      %v1279 = vadd.f32 %v1215, 1.0
      %v1280 = vadd.f32 %v1216, 1.0
      %v1281 = vadd.f32 %v1217, 1.0
      %v1282 = vadd.f32 %v1218, 1.0
      %v1283 = vadd.f32 %v1219, 1.0
      %v1284 = vadd.f32 %v1220, 1.0
      %v1285 = vadd.f32 %v1221, 1.0
      %v1286 = vadd.f32 %v1222, 1.0
      %v1287 = vadd.f32 %v1223, 1.0
      %v1288 = vadd.f32 %v1224, 1.0
      %v1289 = vadd.f32 %v1225, 1.0
      %v1290 = vadd.f32 %v1226, 1.0
      %v1291 = vadd.f32 %v1227, 1.0
      %v1292 = vadd.f32 %v1228, 1.0
      %v1293 = vadd.f32 %v1229, 1.0
      %v1294 = vadd.f32 %v1230, 1.0
      %v1295 = vadd.f32 %v1231, 1.0
      %v1296 = vadd.f32 %v1232, 1.0
      %v1297 = vadd.f32 %v1233, 1.0
      %v1298 = vadd.f32 %v1234, 1.0
      %v1299 = vadd.f32 %v1235, 1.0
      %v1300 = vadd.f32 %v1236, 1.0
      %v1301 = vadd.f32 %v1237, 1.0
      %v1302 = vadd.f32 %v1238, 1.0
      %v1303 = vadd.f32 %v1239, 1.0
      %v1304 = vadd.f32 %v1240, 1.0
      %v1305 = vadd.f32 %v1241, 1.0
      %v1306 = vadd.f32 %v1242, 1.0
      %v1307 = vadd.f32 %v1243, 1.0
      %v1308 = vadd.f32 %v1244, 1.0
      %v1309 = vadd.f32 %v1245, 1.0
      %v1310 = vadd.f32 %v1246, 1.0
      %v1311 = vadd.f32 %v1247, 1.0
      %v1312 = vadd.f32 %v1248, 1.0
      %v1313 = vadd.f32 %v1249, 1.0
      %v1314 = vadd.f32 %v1250, 1.0
      %v1315 = vadd.f32 %v1251, 1.0
      %v1316 = vadd.f32 %v1252, 1.0
      %v1317 = vadd.f32 %v1253, 1.0
      %v1318 = vadd.f32 %v1254, 1.0
      %v1319 = vadd.f32 %v1255, 1.0
      %v1320 = vadd.f32 %v1256, 1.0
      %v1321 = vadd.f32 %v1257, 1.0
      %v1322 = vadd.f32 %v1258, 1.0
      %v1323 = vadd.f32 %v1259, 1.0
      %v1324 = vmul.f32 %v1068, %v1260
      %v1325 = vmul.f32 %v1069, %v1261
      %v1326 = vmul.f32 %v1070, %v1262
      %v1327 = vmul.f32 %v1071, %v1263
      %v1328 = vmul.f32 %v1072, %v1264
      %v1329 = vmul.f32 %v1073, %v1265
      %v1330 = vmul.f32 %v1074, %v1266
      %v1331 = vmul.f32 %v1075, %v1267
      %v1332 = vmul.f32 %v1076, %v1268
      %v1333 = vmul.f32 %v1077, %v1269
      %v1334 = vmul.f32 %v1078, %v1270
      %v1335 = vmul.f32 %v1079, %v1271
      %v1336 = vmul.f32 %v1080, %v1272
      %v1337 = vmul.f32 %v1081, %v1273
      %v1338 = vmul.f32 %v1082, %v1274
      %v1339 = vmul.f32 %v1083, %v1275
      %v1340 = vmul.f32 %v1084, %v1276
      %v1341 = vmul.f32 %v1085, %v1277
      %v1342 = vmul.f32 %v1086, %v1278
      %v1343 = vmul.f32 %v1087, %v1279
      %v1344 = vmul.f32 %v1088, %v1280
      %v1345 = vmul.f32 %v1089, %v1281
      %v1346 = vmul.f32 %v1090, %v1282
      %v1347 = vmul.f32 %v1091, %v1283
      %v1348 = vmul.f32 %v1092, %v1284
      %v1349 = vmul.f32 %v1093, %v1285
      %v1350 = vmul.f32 %v1094, %v1286
      %v1351 = vmul.f32 %v1095, %v1287
      %v1352 = vmul.f32 %v1096, %v1288
      %v1353 = vmul.f32 %v1097, %v1289
      %v1354 = vmul.f32 %v1098, %v1290
      %v1355 = vmul.f32 %v1099, %v1291
      %v1356 = vmul.f32 %v1100, %v1292
      %v1357 = vmul.f32 %v1101, %v1293
      %v1358 = vmul.f32 %v1102, %v1294
      %v1359 = vmul.f32 %v1103, %v1295
      %v1360 = vmul.f32 %v1104, %v1296
      %v1361 = vmul.f32 %v1105, %v1297
      %v1362 = vmul.f32 %v1106, %v1298
      %v1363 = vmul.f32 %v1107, %v1299
      %v1364 = vmul.f32 %v1108, %v1300
      %v1365 = vmul.f32 %v1109, %v1301
      %v1366 = vmul.f32 %v1110, %v1302
      %v1367 = vmul.f32 %v1111, %v1303
      %v1368 = vmul.f32 %v1112, %v1304
      %v1369 = vmul.f32 %v1113, %v1305
      %v1370 = vmul.f32 %v1114, %v1306
      %v1371 = vmul.f32 %v1115, %v1307
      %v1372 = vmul.f32 %v1116, %v1308
      %v1373 = vmul.f32 %v1117, %v1309
      %v1374 = vmul.f32 %v1118, %v1310
      %v1375 = vmul.f32 %v1119, %v1311
      %v1376 = vmul.f32 %v1120, %v1312
      %v1377 = vmul.f32 %v1121, %v1313
      %v1378 = vmul.f32 %v1122, %v1314
      %v1379 = vmul.f32 %v1123, %v1315
      %v1380 = vmul.f32 %v1124, %v1316
      %v1381 = vmul.f32 %v1125, %v1317
      %v1382 = vmul.f32 %v1126, %v1318
      %v1383 = vmul.f32 %v1127, %v1319
      %v1384 = vmul.f32 %v1128, %v1320
      %v1385 = vmul.f32 %v1129, %v1321
      %v1386 = vmul.f32 %v1130, %v1322
      %v1387 = vmul.f32 %v1131, %v1323
      %v1388 = vpack.c.bf16 %v1328, %v1324
      %v1389 = vpack.c.bf16 %v1329, %v1325
      %v1390 = vpack.c.bf16 %v1330, %v1326
      %v1391 = vpack.c.bf16 %v1331, %v1327
      %v1392 = vpack.c.bf16 %v1336, %v1332
      %v1393 = vpack.c.bf16 %v1337, %v1333
      %v1394 = vpack.c.bf16 %v1338, %v1334
      %v1395 = vpack.c.bf16 %v1339, %v1335
      %v1396 = vpack.c.bf16 %v1344, %v1340
      %v1397 = vpack.c.bf16 %v1345, %v1341
      %v1398 = vpack.c.bf16 %v1346, %v1342
      %v1399 = vpack.c.bf16 %v1347, %v1343
      %v1400 = vpack.c.bf16 %v1352, %v1348
      %v1401 = vpack.c.bf16 %v1353, %v1349
      %v1402 = vpack.c.bf16 %v1354, %v1350
      %v1403 = vpack.c.bf16 %v1355, %v1351
      %v1404 = vpack.c.bf16 %v1360, %v1356
      %v1405 = vpack.c.bf16 %v1361, %v1357
      %v1406 = vpack.c.bf16 %v1362, %v1358
      %v1407 = vpack.c.bf16 %v1363, %v1359
      %v1408 = vpack.c.bf16 %v1368, %v1364
      %v1409 = vpack.c.bf16 %v1369, %v1365
      %v1410 = vpack.c.bf16 %v1370, %v1366
      %v1411 = vpack.c.bf16 %v1371, %v1367
      %v1412 = vpack.c.bf16 %v1376, %v1372
      %v1413 = vpack.c.bf16 %v1377, %v1373
      %v1414 = vpack.c.bf16 %v1378, %v1374
      %v1415 = vpack.c.bf16 %v1379, %v1375
      %v1416 = vpack.c.bf16 %v1384, %v1380
      %v1417 = vpack.c.bf16 %v1385, %v1381
      %v1418 = vpack.c.bf16 %v1386, %v1382
      %v1419 = vpack.c.bf16 %v1387, %v1383
      %v1452 = vunpack.c.l.b16 %v1388
      %v1453 = vunpack.c.l.b16 %v1389
      %v1454 = vunpack.c.l.b16 %v1390
      %v1455 = vunpack.c.l.b16 %v1391
      %v1456 = vunpack.c.h.b16 %v1388
      %v1457 = vunpack.c.h.b16 %v1389
      %v1458 = vunpack.c.h.b16 %v1390
      %v1459 = vunpack.c.h.b16 %v1391
      %v1460 = vunpack.c.l.b16 %v1392
      %v1461 = vunpack.c.l.b16 %v1393
      %v1462 = vunpack.c.l.b16 %v1394
      %v1463 = vunpack.c.l.b16 %v1395
      %v1464 = vunpack.c.h.b16 %v1392
      %v1465 = vunpack.c.h.b16 %v1393
      %v1466 = vunpack.c.h.b16 %v1394
      %v1467 = vunpack.c.h.b16 %v1395
      %v1468 = vunpack.c.l.b16 %v1396
      %v1469 = vunpack.c.l.b16 %v1397
      %v1470 = vunpack.c.l.b16 %v1398
      %v1471 = vunpack.c.l.b16 %v1399
      %v1472 = vunpack.c.h.b16 %v1396
      %v1473 = vunpack.c.h.b16 %v1397
      %v1474 = vunpack.c.h.b16 %v1398
      %v1475 = vunpack.c.h.b16 %v1399
      %v1476 = vunpack.c.l.b16 %v1400
      %v1477 = vunpack.c.l.b16 %v1401
      %v1478 = vunpack.c.l.b16 %v1402
      %v1479 = vunpack.c.l.b16 %v1403
      %v1480 = vunpack.c.h.b16 %v1400
      %v1481 = vunpack.c.h.b16 %v1401
      %v1482 = vunpack.c.h.b16 %v1402
      %v1483 = vunpack.c.h.b16 %v1403
      %v1484 = vunpack.c.l.b16 %v1404
      %v1485 = vunpack.c.l.b16 %v1405
      %v1486 = vunpack.c.l.b16 %v1406
      %v1487 = vunpack.c.l.b16 %v1407
      %v1488 = vunpack.c.h.b16 %v1404
      %v1489 = vunpack.c.h.b16 %v1405
      %v1490 = vunpack.c.h.b16 %v1406
      %v1491 = vunpack.c.h.b16 %v1407
      %v1492 = vunpack.c.l.b16 %v1408
      %v1493 = vunpack.c.l.b16 %v1409
      %v1494 = vunpack.c.l.b16 %v1410
      %v1495 = vunpack.c.l.b16 %v1411
      %v1496 = vunpack.c.h.b16 %v1408
      %v1497 = vunpack.c.h.b16 %v1409
      %v1498 = vunpack.c.h.b16 %v1410
      %v1499 = vunpack.c.h.b16 %v1411
      %v1500 = vunpack.c.l.b16 %v1412
      %v1501 = vunpack.c.l.b16 %v1413
      %v1502 = vunpack.c.l.b16 %v1414
      %v1503 = vunpack.c.l.b16 %v1415
      %v1504 = vunpack.c.h.b16 %v1412
      %v1505 = vunpack.c.h.b16 %v1413
      %v1506 = vunpack.c.h.b16 %v1414
      %v1507 = vunpack.c.h.b16 %v1415
      %v1508 = vunpack.c.l.b16 %v1416
      %v1509 = vunpack.c.l.b16 %v1417
      %v1510 = vunpack.c.l.b16 %v1418
      %v1511 = vunpack.c.l.b16 %v1419
      %v1512 = vunpack.c.h.b16 %v1416
      %v1513 = vunpack.c.h.b16 %v1417
      %v1514 = vunpack.c.h.b16 %v1418
      %v1515 = vunpack.c.h.b16 %v1419
      %v1516 = vpack.c.b16 %v1453, %v1452
      %v1517 = vpack.c.b16 %v1455, %v1454
      %v1518 = vpack.c.b16 %v1457, %v1456
      %v1519 = vpack.c.b16 %v1459, %v1458
      %v1520 = vpack.c.b16 %v1461, %v1460
      %v1521 = vpack.c.b16 %v1463, %v1462
      %v1522 = vpack.c.b16 %v1465, %v1464
      %v1523 = vpack.c.b16 %v1467, %v1466
      %v1524 = vpack.c.b16 %v1469, %v1468
      %v1525 = vpack.c.b16 %v1471, %v1470
      %v1526 = vpack.c.b16 %v1473, %v1472
      %v1527 = vpack.c.b16 %v1475, %v1474
      %v1528 = vpack.c.b16 %v1477, %v1476
      %v1529 = vpack.c.b16 %v1479, %v1478
      %v1530 = vpack.c.b16 %v1481, %v1480
      %v1531 = vpack.c.b16 %v1483, %v1482
      %v1532 = vpack.c.b16 %v1485, %v1484
      %v1533 = vpack.c.b16 %v1487, %v1486
      %v1534 = vpack.c.b16 %v1489, %v1488
      %v1535 = vpack.c.b16 %v1491, %v1490
      %v1536 = vpack.c.b16 %v1493, %v1492
      %v1537 = vpack.c.b16 %v1495, %v1494
      %v1538 = vpack.c.b16 %v1497, %v1496
      %v1539 = vpack.c.b16 %v1499, %v1498
      %v1540 = vpack.c.b16 %v1501, %v1500
      %v1541 = vpack.c.b16 %v1503, %v1502
      %v1542 = vpack.c.b16 %v1505, %v1504
      %v1543 = vpack.c.b16 %v1507, %v1506
      %v1544 = vpack.c.b16 %v1509, %v1508
      %v1545 = vpack.c.b16 %v1511, %v1510
      %v1546 = vpack.c.b16 %v1513, %v1512
      %v1547 = vpack.c.b16 %v1515, %v1514
      %1580 = vst [vmem:[#allocation2] sm:$0xff] %v1516
      %1581 = vst [vmem:[#allocation2 + $0x8] sm:$0xff] %v1517
      %1582 = vst [vmem:[#allocation2 + $0x10] sm:$0xff] %v1518
      %1583 = vst [vmem:[#allocation2 + $0x18] sm:$0xff] %v1519
      %1584 = vst [vmem:[#allocation2 + $0x20] sm:$0xff] %v1520
      %1585 = vst [vmem:[#allocation2 + $0x28] sm:$0xff] %v1521
      %1586 = vst [vmem:[#allocation2 + $0x30] sm:$0xff] %v1522
      %1587 = vst [vmem:[#allocation2 + $0x38] sm:$0xff] %v1523
      %1588 = vst [vmem:[#allocation2 + $0x40] sm:$0xff] %v1524
      %1589 = vst [vmem:[#allocation2 + $0x48] sm:$0xff] %v1525
      %1590 = vst [vmem:[#allocation2 + $0x50] sm:$0xff] %v1526
      %1591 = vst [vmem:[#allocation2 + $0x58] sm:$0xff] %v1527
      %1592 = vst [vmem:[#allocation2 + $0x60] sm:$0xff] %v1528
      %1593 = vst [vmem:[#allocation2 + $0x68] sm:$0xff] %v1529
      %1594 = vst [vmem:[#allocation2 + $0x70] sm:$0xff] %v1530
      %1595 = vst [vmem:[#allocation2 + $0x78] sm:$0xff] %v1531
      %1596 = vst [vmem:[#allocation2 + $0x80] sm:$0xff] %v1532
      %1597 = vst [vmem:[#allocation2 + $0x88] sm:$0xff] %v1533
      %1598 = vst [vmem:[#allocation2 + $0x90] sm:$0xff] %v1534
      %1599 = vst [vmem:[#allocation2 + $0x98] sm:$0xff] %v1535
      %1600 = vst [vmem:[#allocation2 + $0xa0] sm:$0xff] %v1536
      %1601 = vst [vmem:[#allocation2 + $0xa8] sm:$0xff] %v1537
      %1602 = vst [vmem:[#allocation2 + $0xb0] sm:$0xff] %v1538
      %1603 = vst [vmem:[#allocation2 + $0xb8] sm:$0xff] %v1539
      %1604 = vst [vmem:[#allocation2 + $0xc0] sm:$0xff] %v1540
      %1605 = vst [vmem:[#allocation2 + $0xc8] sm:$0xff] %v1541
      %1606 = vst [vmem:[#allocation2 + $0xd0] sm:$0xff] %v1542
      %1607 = vst [vmem:[#allocation2 + $0xd8] sm:$0xff] %v1543
      %1608 = vst [vmem:[#allocation2 + $0xe0] sm:$0xff] %v1544
      %1609 = vst [vmem:[#allocation2 + $0xe8] sm:$0xff] %v1545
      %1610 = vst [vmem:[#allocation2 + $0xf0] sm:$0xff] %v1546
      %1611 = vst [vmem:[#allocation2 + $0xf8] sm:$0xff] %v1547
      %v1612 = vld [vmem:[#allocation2] sm:$0xff]
      %v1613 = vld [vmem:[#allocation2 + $0x8] sm:$0xff]
      %v1614 = vld [vmem:[#allocation2 + $0x10] sm:$0xff]
      %v1615 = vld [vmem:[#allocation2 + $0x18] sm:$0xff]
      %v1616 = vld [vmem:[#allocation2 + $0x20] sm:$0xff]
      %v1617 = vld [vmem:[#allocation2 + $0x28] sm:$0xff]
      %v1618 = vld [vmem:[#allocation2 + $0x30] sm:$0xff]
      %v1619 = vld [vmem:[#allocation2 + $0x38] sm:$0xff]
      %v1620 = vld [vmem:[#allocation2 + $0x40] sm:$0xff]
      %v1621 = vld [vmem:[#allocation2 + $0x48] sm:$0xff]
      %v1622 = vld [vmem:[#allocation2 + $0x50] sm:$0xff]
      %v1623 = vld [vmem:[#allocation2 + $0x58] sm:$0xff]
      %v1624 = vld [vmem:[#allocation2 + $0x60] sm:$0xff]
      %v1625 = vld [vmem:[#allocation2 + $0x68] sm:$0xff]
      %v1626 = vld [vmem:[#allocation2 + $0x70] sm:$0xff]
      %v1627 = vld [vmem:[#allocation2 + $0x78] sm:$0xff]
      %v1628 = vld [vmem:[#allocation2 + $0x80] sm:$0xff]
      %v1629 = vld [vmem:[#allocation2 + $0x88] sm:$0xff]
      %v1630 = vld [vmem:[#allocation2 + $0x90] sm:$0xff]
      %v1631 = vld [vmem:[#allocation2 + $0x98] sm:$0xff]
      %v1632 = vld [vmem:[#allocation2 + $0xa0] sm:$0xff]
      %v1633 = vld [vmem:[#allocation2 + $0xa8] sm:$0xff]
      %v1634 = vld [vmem:[#allocation2 + $0xb0] sm:$0xff]
      %v1635 = vld [vmem:[#allocation2 + $0xb8] sm:$0xff]
      %v1636 = vld [vmem:[#allocation2 + $0xc0] sm:$0xff]
      %v1637 = vld [vmem:[#allocation2 + $0xc8] sm:$0xff]
      %v1638 = vld [vmem:[#allocation2 + $0xd0] sm:$0xff]
      %v1639 = vld [vmem:[#allocation2 + $0xd8] sm:$0xff]
      %v1640 = vld [vmem:[#allocation2 + $0xe0] sm:$0xff]
      %v1641 = vld [vmem:[#allocation2 + $0xe8] sm:$0xff]
      %v1642 = vld [vmem:[#allocation2 + $0xf0] sm:$0xff]
      %v1643 = vld [vmem:[#allocation2 + $0xf8] sm:$0xff]
      %v1644 = vld [vmem:[%s4] sm:$0x3]
      %v1645 = vld [vmem:[%s3] sm:$0xff]
      %v1646 = vld [vmem:[%s3 + $0x8] sm:$0xff]
      %v1647 = vld [vmem:[%s3 + $0x10] sm:$0xff]
      %v1648 = vld [vmem:[%s3 + $0x18] sm:$0xff]
      %v1649 = vld [vmem:[%s3 + $0x20] sm:$0xff]
      %v1650 = vld [vmem:[%s3 + $0x28] sm:$0xff]
      %v1651 = vld [vmem:[%s3 + $0x30] sm:$0xff]
      %v1652 = vld [vmem:[%s3 + $0x38] sm:$0xff]
      %v1653 = vld [vmem:[%s3 + $0x40] sm:$0xff]
      %v1654 = vld [vmem:[%s3 + $0x48] sm:$0xff]
      %v1655 = vld [vmem:[%s3 + $0x50] sm:$0xff]
      %v1656 = vld [vmem:[%s3 + $0x58] sm:$0xff]
      %v1657 = vld [vmem:[%s3 + $0x60] sm:$0xff]
      %v1658 = vld [vmem:[%s3 + $0x68] sm:$0xff]
      %v1659 = vld [vmem:[%s3 + $0x70] sm:$0xff]
      %v1660 = vld [vmem:[%s3 + $0x78] sm:$0xff]
      %v1661 = vld [vmem:[%s3 + $0x80] sm:$0xff]
      %v1662 = vld [vmem:[%s3 + $0x88] sm:$0xff]
      %v1663 = vld [vmem:[%s3 + $0x90] sm:$0xff]
      %v1664 = vld [vmem:[%s3 + $0x98] sm:$0xff]
      %v1665 = vld [vmem:[%s3 + $0xa0] sm:$0xff]
      %v1666 = vld [vmem:[%s3 + $0xa8] sm:$0xff]
      %v1667 = vld [vmem:[%s3 + $0xb0] sm:$0xff]
      %v1668 = vld [vmem:[%s3 + $0xb8] sm:$0xff]
      %v1669 = vld [vmem:[%s3 + $0xc0] sm:$0xff]
      %v1670 = vld [vmem:[%s3 + $0xc8] sm:$0xff]
      %v1671 = vld [vmem:[%s3 + $0xd0] sm:$0xff]
      %v1672 = vld [vmem:[%s3 + $0xd8] sm:$0xff]
      %v1673 = vld [vmem:[%s3 + $0xe0] sm:$0xff]
      %v1674 = vld [vmem:[%s3 + $0xe8] sm:$0xff]
      %v1675 = vld [vmem:[%s3 + $0xf0] sm:$0xff]
      %v1676 = vld [vmem:[%s3 + $0xf8] sm:$0xff]
      %v1677 = vld [vmem:[%s3 + $0x100] sm:$0xff]
      %v1678 = vld [vmem:[%s3 + $0x108] sm:$0xff]
      %v1679 = vld [vmem:[%s3 + $0x110] sm:$0xff]
      %v1680 = vld [vmem:[%s3 + $0x118] sm:$0xff]
      %v1681 = vld [vmem:[%s3 + $0x120] sm:$0xff]
      %v1682 = vld [vmem:[%s3 + $0x128] sm:$0xff]
      %v1683 = vld [vmem:[%s3 + $0x130] sm:$0xff]
      %v1684 = vld [vmem:[%s3 + $0x138] sm:$0xff]
      %v1685 = vld [vmem:[%s3 + $0x140] sm:$0xff]
      %v1686 = vld [vmem:[%s3 + $0x148] sm:$0xff]
      %v1687 = vld [vmem:[%s3 + $0x150] sm:$0xff]
      %v1688 = vld [vmem:[%s3 + $0x158] sm:$0xff]
      %v1689 = vld [vmem:[%s3 + $0x160] sm:$0xff]
      %v1690 = vld [vmem:[%s3 + $0x168] sm:$0xff]
      %v1691 = vld [vmem:[%s3 + $0x170] sm:$0xff]
      %v1692 = vld [vmem:[%s3 + $0x178] sm:$0xff]
      %v1693 = vld [vmem:[%s3 + $0x180] sm:$0xff]
      %v1694 = vld [vmem:[%s3 + $0x188] sm:$0xff]
      %v1695 = vld [vmem:[%s3 + $0x190] sm:$0xff]
      %v1696 = vld [vmem:[%s3 + $0x198] sm:$0xff]
      %v1697 = vld [vmem:[%s3 + $0x1a0] sm:$0xff]
      %v1698 = vld [vmem:[%s3 + $0x1a8] sm:$0xff]
      %v1699 = vld [vmem:[%s3 + $0x1b0] sm:$0xff]
      %v1700 = vld [vmem:[%s3 + $0x1b8] sm:$0xff]
      %v1701 = vld [vmem:[%s3 + $0x1c0] sm:$0xff]
      %v1702 = vld [vmem:[%s3 + $0x1c8] sm:$0xff]
      %v1703 = vld [vmem:[%s3 + $0x1d0] sm:$0xff]
      %v1704 = vld [vmem:[%s3 + $0x1d8] sm:$0xff]
      %v1705 = vld [vmem:[%s3 + $0x1e0] sm:$0xff]
      %v1706 = vld [vmem:[%s3 + $0x1e8] sm:$0xff]
      %v1707 = vld [vmem:[%s3 + $0x1f0] sm:$0xff]
      %v1708 = vld [vmem:[%s3 + $0x1f8] sm:$0xff]
      %v1710 = vlaneseq
      %v1711 = vshrl.u32 %v1710, 7
      %v1712 = vsub.s32 0, %v1711
      %v1713 = vrot.slane %v1644, %v1712
      %v1714 = vlaneseq
      %v1715 = vshrl.u32 %v1714, 7
      %v1716 = vsub.s32 1, %v1715
      %v1717 = vrot.slane %v1644, %v1716
      %v1752 = vunpack.c.l.b16 %v1612
      %v1753 = vunpack.c.h.b16 %v1612
      %v1754 = vunpack.c.l.b16 %v1613
      %v1755 = vunpack.c.h.b16 %v1613
      %v1756 = vunpack.c.l.b16 %v1614
      %v1757 = vunpack.c.h.b16 %v1614
      %v1758 = vunpack.c.l.b16 %v1615
      %v1759 = vunpack.c.h.b16 %v1615
      %v1760 = vunpack.c.l.b16 %v1616
      %v1761 = vunpack.c.h.b16 %v1616
      %v1762 = vunpack.c.l.b16 %v1617
      %v1763 = vunpack.c.h.b16 %v1617
      %v1764 = vunpack.c.l.b16 %v1618
      %v1765 = vunpack.c.h.b16 %v1618
      %v1766 = vunpack.c.l.b16 %v1619
      %v1767 = vunpack.c.h.b16 %v1619
      %v1768 = vunpack.c.l.b16 %v1620
      %v1769 = vunpack.c.h.b16 %v1620
      %v1770 = vunpack.c.l.b16 %v1621
      %v1771 = vunpack.c.h.b16 %v1621
      %v1772 = vunpack.c.l.b16 %v1622
      %v1773 = vunpack.c.h.b16 %v1622
      %v1774 = vunpack.c.l.b16 %v1623
      %v1775 = vunpack.c.h.b16 %v1623
      %v1776 = vunpack.c.l.b16 %v1624
      %v1777 = vunpack.c.h.b16 %v1624
      %v1778 = vunpack.c.l.b16 %v1625
      %v1779 = vunpack.c.h.b16 %v1625
      %v1780 = vunpack.c.l.b16 %v1626
      %v1781 = vunpack.c.h.b16 %v1626
      %v1782 = vunpack.c.l.b16 %v1627
      %v1783 = vunpack.c.h.b16 %v1627
      %v1784 = vunpack.c.l.b16 %v1628
      %v1785 = vunpack.c.h.b16 %v1628
      %v1786 = vunpack.c.l.b16 %v1629
      %v1787 = vunpack.c.h.b16 %v1629
      %v1788 = vunpack.c.l.b16 %v1630
      %v1789 = vunpack.c.h.b16 %v1630
      %v1790 = vunpack.c.l.b16 %v1631
      %v1791 = vunpack.c.h.b16 %v1631
      %v1792 = vunpack.c.l.b16 %v1632
      %v1793 = vunpack.c.h.b16 %v1632
      %v1794 = vunpack.c.l.b16 %v1633
      %v1795 = vunpack.c.h.b16 %v1633
      %v1796 = vunpack.c.l.b16 %v1634
      %v1797 = vunpack.c.h.b16 %v1634
      %v1798 = vunpack.c.l.b16 %v1635
      %v1799 = vunpack.c.h.b16 %v1635
      %v1800 = vunpack.c.l.b16 %v1636
      %v1801 = vunpack.c.h.b16 %v1636
      %v1802 = vunpack.c.l.b16 %v1637
      %v1803 = vunpack.c.h.b16 %v1637
      %v1804 = vunpack.c.l.b16 %v1638
      %v1805 = vunpack.c.h.b16 %v1638
      %v1806 = vunpack.c.l.b16 %v1639
      %v1807 = vunpack.c.h.b16 %v1639
      %v1808 = vunpack.c.l.b16 %v1640
      %v1809 = vunpack.c.h.b16 %v1640
      %v1810 = vunpack.c.l.b16 %v1641
      %v1811 = vunpack.c.h.b16 %v1641
      %v1812 = vunpack.c.l.b16 %v1642
      %v1813 = vunpack.c.h.b16 %v1642
      %v1814 = vunpack.c.l.b16 %v1643
      %v1815 = vunpack.c.h.b16 %v1643
      %v1816 = vpack.c.b16 %v1756, %v1752
      %v1817 = vpack.c.b16 %v1757, %v1753
      %v1818 = vpack.c.b16 %v1758, %v1754
      %v1819 = vpack.c.b16 %v1759, %v1755
      %v1820 = vpack.c.b16 %v1764, %v1760
      %v1821 = vpack.c.b16 %v1765, %v1761
      %v1822 = vpack.c.b16 %v1766, %v1762
      %v1823 = vpack.c.b16 %v1767, %v1763
      %v1824 = vpack.c.b16 %v1772, %v1768
      %v1825 = vpack.c.b16 %v1773, %v1769
      %v1826 = vpack.c.b16 %v1774, %v1770
      %v1827 = vpack.c.b16 %v1775, %v1771
      %v1828 = vpack.c.b16 %v1780, %v1776
      %v1829 = vpack.c.b16 %v1781, %v1777
      %v1830 = vpack.c.b16 %v1782, %v1778
      %v1831 = vpack.c.b16 %v1783, %v1779
      %v1832 = vpack.c.b16 %v1788, %v1784
      %v1833 = vpack.c.b16 %v1789, %v1785
      %v1834 = vpack.c.b16 %v1790, %v1786
      %v1835 = vpack.c.b16 %v1791, %v1787
      %v1836 = vpack.c.b16 %v1796, %v1792
      %v1837 = vpack.c.b16 %v1797, %v1793
      %v1838 = vpack.c.b16 %v1798, %v1794
      %v1839 = vpack.c.b16 %v1799, %v1795
      %v1840 = vpack.c.b16 %v1804, %v1800
      %v1841 = vpack.c.b16 %v1805, %v1801
      %v1842 = vpack.c.b16 %v1806, %v1802
      %v1843 = vpack.c.b16 %v1807, %v1803
      %v1844 = vpack.c.b16 %v1812, %v1808
      %v1845 = vpack.c.b16 %v1813, %v1809
      %v1846 = vpack.c.b16 %v1814, %v1810
      %v1847 = vpack.c.b16 %v1815, %v1811
      %v1944 = vunpack.c.l.b16 %v1645
      %v1945 = vunpack.c.h.b16 %v1645
      %v1946 = vunpack.c.l.b16 %v1646
      %v1947 = vunpack.c.h.b16 %v1646
      %v1948 = vunpack.c.l.b16 %v1647
      %v1949 = vunpack.c.h.b16 %v1647
      %v1950 = vunpack.c.l.b16 %v1648
      %v1951 = vunpack.c.h.b16 %v1648
      %v1952 = vunpack.c.l.b16 %v1649
      %v1953 = vunpack.c.h.b16 %v1649
      %v1954 = vunpack.c.l.b16 %v1650
      %v1955 = vunpack.c.h.b16 %v1650
      %v1956 = vunpack.c.l.b16 %v1651
      %v1957 = vunpack.c.h.b16 %v1651
      %v1958 = vunpack.c.l.b16 %v1652
      %v1959 = vunpack.c.h.b16 %v1652
      %v1960 = vunpack.c.l.b16 %v1653
      %v1961 = vunpack.c.h.b16 %v1653
      %v1962 = vunpack.c.l.b16 %v1654
      %v1963 = vunpack.c.h.b16 %v1654
      %v1964 = vunpack.c.l.b16 %v1655
      %v1965 = vunpack.c.h.b16 %v1655
      %v1966 = vunpack.c.l.b16 %v1656
      %v1967 = vunpack.c.h.b16 %v1656
      %v1968 = vunpack.c.l.b16 %v1657
      %v1969 = vunpack.c.h.b16 %v1657
      %v1970 = vunpack.c.l.b16 %v1658
      %v1971 = vunpack.c.h.b16 %v1658
      %v1972 = vunpack.c.l.b16 %v1659
      %v1973 = vunpack.c.h.b16 %v1659
      %v1974 = vunpack.c.l.b16 %v1660
      %v1975 = vunpack.c.h.b16 %v1660
      %v1976 = vunpack.c.l.b16 %v1661
      %v1977 = vunpack.c.h.b16 %v1661
      %v1978 = vunpack.c.l.b16 %v1662
      %v1979 = vunpack.c.h.b16 %v1662
      %v1980 = vunpack.c.l.b16 %v1663
      %v1981 = vunpack.c.h.b16 %v1663
      %v1982 = vunpack.c.l.b16 %v1664
      %v1983 = vunpack.c.h.b16 %v1664
      %v1984 = vunpack.c.l.b16 %v1665
      %v1985 = vunpack.c.h.b16 %v1665
      %v1986 = vunpack.c.l.b16 %v1666
      %v1987 = vunpack.c.h.b16 %v1666
      %v1988 = vunpack.c.l.b16 %v1667
      %v1989 = vunpack.c.h.b16 %v1667
      %v1990 = vunpack.c.l.b16 %v1668
      %v1991 = vunpack.c.h.b16 %v1668
      %v1992 = vunpack.c.l.b16 %v1669
      %v1993 = vunpack.c.h.b16 %v1669
      %v1994 = vunpack.c.l.b16 %v1670
      %v1995 = vunpack.c.h.b16 %v1670
      %v1996 = vunpack.c.l.b16 %v1671
      %v1997 = vunpack.c.h.b16 %v1671
      %v1998 = vunpack.c.l.b16 %v1672
      %v1999 = vunpack.c.h.b16 %v1672
      %v2000 = vunpack.c.l.b16 %v1673
      %v2001 = vunpack.c.h.b16 %v1673
      %v2002 = vunpack.c.l.b16 %v1674
      %v2003 = vunpack.c.h.b16 %v1674
      %v2004 = vunpack.c.l.b16 %v1675
      %v2005 = vunpack.c.h.b16 %v1675
      %v2006 = vunpack.c.l.b16 %v1676
      %v2007 = vunpack.c.h.b16 %v1676
      %v2008 = vunpack.c.l.b16 %v1677
      %v2009 = vunpack.c.h.b16 %v1677
      %v2010 = vunpack.c.l.b16 %v1678
      %v2011 = vunpack.c.h.b16 %v1678
      %v2012 = vunpack.c.l.b16 %v1679
      %v2013 = vunpack.c.h.b16 %v1679
      %v2014 = vunpack.c.l.b16 %v1680
      %v2015 = vunpack.c.h.b16 %v1680
      %v2016 = vunpack.c.l.b16 %v1681
      %v2017 = vunpack.c.h.b16 %v1681
      %v2018 = vunpack.c.l.b16 %v1682
      %v2019 = vunpack.c.h.b16 %v1682
      %v2020 = vunpack.c.l.b16 %v1683
      %v2021 = vunpack.c.h.b16 %v1683
      %v2022 = vunpack.c.l.b16 %v1684
      %v2023 = vunpack.c.h.b16 %v1684
      %v2024 = vunpack.c.l.b16 %v1685
      %v2025 = vunpack.c.h.b16 %v1685
      %v2026 = vunpack.c.l.b16 %v1686
      %v2027 = vunpack.c.h.b16 %v1686
      %v2028 = vunpack.c.l.b16 %v1687
      %v2029 = vunpack.c.h.b16 %v1687
      %v2030 = vunpack.c.l.b16 %v1688
      %v2031 = vunpack.c.h.b16 %v1688
      %v2032 = vunpack.c.l.b16 %v1689
      %v2033 = vunpack.c.h.b16 %v1689
      %v2034 = vunpack.c.l.b16 %v1690
      %v2035 = vunpack.c.h.b16 %v1690
      %v2036 = vunpack.c.l.b16 %v1691
      %v2037 = vunpack.c.h.b16 %v1691
      %v2038 = vunpack.c.l.b16 %v1692
      %v2039 = vunpack.c.h.b16 %v1692
      %v2040 = vunpack.c.l.b16 %v1693
      %v2041 = vunpack.c.h.b16 %v1693
      %v2042 = vunpack.c.l.b16 %v1694
      %v2043 = vunpack.c.h.b16 %v1694
      %v2044 = vunpack.c.l.b16 %v1695
      %v2045 = vunpack.c.h.b16 %v1695
      %v2046 = vunpack.c.l.b16 %v1696
      %v2047 = vunpack.c.h.b16 %v1696
      %v2048 = vunpack.c.l.b16 %v1697
      %v2049 = vunpack.c.h.b16 %v1697
      %v2050 = vunpack.c.l.b16 %v1698
      %v2051 = vunpack.c.h.b16 %v1698
      %v2052 = vunpack.c.l.b16 %v1699
      %v2053 = vunpack.c.h.b16 %v1699
      %v2054 = vunpack.c.l.b16 %v1700
      %v2055 = vunpack.c.h.b16 %v1700
      %v2056 = vunpack.c.l.b16 %v1701
      %v2057 = vunpack.c.h.b16 %v1701
      %v2058 = vunpack.c.l.b16 %v1702
      %v2059 = vunpack.c.h.b16 %v1702
      %v2060 = vunpack.c.l.b16 %v1703
      %v2061 = vunpack.c.h.b16 %v1703
      %v2062 = vunpack.c.l.b16 %v1704
      %v2063 = vunpack.c.h.b16 %v1704
      %v2064 = vunpack.c.l.b16 %v1705
      %v2065 = vunpack.c.h.b16 %v1705
      %v2066 = vunpack.c.l.b16 %v1706
      %v2067 = vunpack.c.h.b16 %v1706
      %v2068 = vunpack.c.l.b16 %v1707
      %v2069 = vunpack.c.h.b16 %v1707
      %v2070 = vunpack.c.l.b16 %v1708
      %v2071 = vunpack.c.h.b16 %v1708
      %v2072 = vpack.c.b16 %v1946, %v1944
      %v2073 = vpack.c.b16 %v1947, %v1945
      %v2074 = vpack.c.b16 %v1950, %v1948
      %v2075 = vpack.c.b16 %v1951, %v1949
      %v2076 = vpack.c.b16 %v1954, %v1952
      %v2077 = vpack.c.b16 %v1955, %v1953
      %v2078 = vpack.c.b16 %v1958, %v1956
      %v2079 = vpack.c.b16 %v1959, %v1957
      %v2080 = vpack.c.b16 %v1962, %v1960
      %v2081 = vpack.c.b16 %v1963, %v1961
      %v2082 = vpack.c.b16 %v1966, %v1964
      %v2083 = vpack.c.b16 %v1967, %v1965
      %v2084 = vpack.c.b16 %v1970, %v1968
      %v2085 = vpack.c.b16 %v1971, %v1969
      %v2086 = vpack.c.b16 %v1974, %v1972
      %v2087 = vpack.c.b16 %v1975, %v1973
      %v2088 = vpack.c.b16 %v1978, %v1976
      %v2089 = vpack.c.b16 %v1979, %v1977
      %v2090 = vpack.c.b16 %v1982, %v1980
      %v2091 = vpack.c.b16 %v1983, %v1981
      %v2092 = vpack.c.b16 %v1986, %v1984
      %v2093 = vpack.c.b16 %v1987, %v1985
      %v2094 = vpack.c.b16 %v1990, %v1988
      %v2095 = vpack.c.b16 %v1991, %v1989
      %v2096 = vpack.c.b16 %v1994, %v1992
      %v2097 = vpack.c.b16 %v1995, %v1993
      %v2098 = vpack.c.b16 %v1998, %v1996
      %v2099 = vpack.c.b16 %v1999, %v1997
      %v2100 = vpack.c.b16 %v2002, %v2000
      %v2101 = vpack.c.b16 %v2003, %v2001
      %v2102 = vpack.c.b16 %v2006, %v2004
      %v2103 = vpack.c.b16 %v2007, %v2005
      %v2104 = vpack.c.b16 %v2010, %v2008
      %v2105 = vpack.c.b16 %v2011, %v2009
      %v2106 = vpack.c.b16 %v2014, %v2012
      %v2107 = vpack.c.b16 %v2015, %v2013
      %v2108 = vpack.c.b16 %v2018, %v2016
      %v2109 = vpack.c.b16 %v2019, %v2017
      %v2110 = vpack.c.b16 %v2022, %v2020
      %v2111 = vpack.c.b16 %v2023, %v2021
      %v2112 = vpack.c.b16 %v2026, %v2024
      %v2113 = vpack.c.b16 %v2027, %v2025
      %v2114 = vpack.c.b16 %v2030, %v2028
      %v2115 = vpack.c.b16 %v2031, %v2029
      %v2116 = vpack.c.b16 %v2034, %v2032
      %v2117 = vpack.c.b16 %v2035, %v2033
      %v2118 = vpack.c.b16 %v2038, %v2036
      %v2119 = vpack.c.b16 %v2039, %v2037
      %v2120 = vpack.c.b16 %v2042, %v2040
      %v2121 = vpack.c.b16 %v2043, %v2041
      %v2122 = vpack.c.b16 %v2046, %v2044
      %v2123 = vpack.c.b16 %v2047, %v2045
      %v2124 = vpack.c.b16 %v2050, %v2048
      %v2125 = vpack.c.b16 %v2051, %v2049
      %v2126 = vpack.c.b16 %v2054, %v2052
      %v2127 = vpack.c.b16 %v2055, %v2053
      %v2128 = vpack.c.b16 %v2058, %v2056
      %v2129 = vpack.c.b16 %v2059, %v2057
      %v2130 = vpack.c.b16 %v2062, %v2060
      %v2131 = vpack.c.b16 %v2063, %v2061
      %v2132 = vpack.c.b16 %v2066, %v2064
      %v2133 = vpack.c.b16 %v2067, %v2065
      %v2134 = vpack.c.b16 %v2070, %v2068
      %v2135 = vpack.c.b16 %v2071, %v2069
      %2200 = vmatprep.subr.bf16.mxu0 %v2087
      %2201 = vmatpush1.bf16.msra.mxu0 %v2086
      %2202 = vmatprep.subr.bf16.mxu0 %v2085
      %2203 = vmatpush1.bf16.msra.mxu0 %v2084
      %2204 = vmatprep.subr.bf16.mxu0 %v2083
      %2205 = vmatpush1.bf16.msra.mxu0 %v2082
      %2206 = vmatprep.subr.bf16.mxu0 %v2081
      %2207 = vmatpush1.bf16.msra.mxu0 %v2080
      %2208 = vmatprep.subr.bf16.mxu0 %v2079
      %2209 = vmatpush1.bf16.msra.mxu0 %v2078
      %2210 = vmatprep.subr.bf16.mxu0 %v2077
      %2211 = vmatpush1.bf16.msra.mxu0 %v2076
      %2212 = vmatprep.subr.bf16.mxu0 %v2075
      %2213 = vmatpush1.bf16.msra.mxu0 %v2074
      %2214 = vmatprep.subr.bf16.mxu0 %v2073
      %2215 = vmatpush1.bf16.msra.mxu0 %v2072
      %2216 = vmatprep.subr.bf16.mxu0 %v2103
      %2217 = vmatpush2.bf16.msra.mxu0 %v2102
      %2218 = vmatprep.subr.bf16.mxu0 %v2101
      %2219 = vmatpush2.bf16.msra.mxu0 %v2100
      %2220 = vmatprep.subr.bf16.mxu0 %v2099
      %2221 = vmatpush2.bf16.msra.mxu0 %v2098
      %2222 = vmatprep.subr.bf16.mxu0 %v2097
      %2223 = vmatpush2.bf16.msra.mxu0 %v2096
      %2224 = vmatprep.subr.bf16.mxu0 %v2095
      %2225 = vmatpush2.bf16.msra.mxu0 %v2094
      %2226 = vmatprep.subr.bf16.mxu0 %v2093
      %2227 = vmatpush2.bf16.msra.mxu0 %v2092
      %2228 = vmatprep.subr.bf16.mxu0 %v2091
      %2229 = vmatpush2.bf16.msra.mxu0 %v2090
      %2230 = vmatprep.subr.bf16.mxu0 %v2089
      %2231 = vmatpush2.bf16.msra.mxu0 %v2088
      %2232 = vmatprep.mubr.bf16.mxu0 %v1817
      %2233 = vmatmul.mubr.bf16.gmra.mxu0 %v1816
      %v2234 = vpop.f32.mrf.mxu0
      %v2235 = vadd.f32 %v1713, %v2234
      %v2236 = vpop.f32.mrf.mxu0
      %v2237 = vadd.f32 %v1717, %v2236
      %v2238 = vpop.f32.mrf.mxu0
      %v2239 = vadd.f32 %v1713, %v2238
      %v2240 = vpop.f32.mrf.mxu0
      %v2241 = vadd.f32 %v1717, %v2240
      %2242 = vmatprep.mubr.bf16.mxu0 %v1821
      %2243 = vmatmul.mubr.bf16.gmra.mxu0 %v1820
      %v2244 = vpop.f32.mrf.mxu0
      %v2245 = vadd.f32 %v1713, %v2244
      %v2246 = vpop.f32.mrf.mxu0
      %v2247 = vadd.f32 %v1717, %v2246
      %v2248 = vpop.f32.mrf.mxu0
      %v2249 = vadd.f32 %v1713, %v2248
      %v2250 = vpop.f32.mrf.mxu0
      %v2251 = vadd.f32 %v1717, %v2250
      %2252 = vmatprep.mubr.bf16.mxu0 %v1825
      %2253 = vmatmul.mubr.bf16.gmra.mxu0 %v1824
      %v2254 = vpop.f32.mrf.mxu0
      %v2255 = vadd.f32 %v1713, %v2254
      %v2256 = vpop.f32.mrf.mxu0
      %v2257 = vadd.f32 %v1717, %v2256
      %v2258 = vpop.f32.mrf.mxu0
      %v2259 = vadd.f32 %v1713, %v2258
      %v2260 = vpop.f32.mrf.mxu0
      %v2261 = vadd.f32 %v1717, %v2260
      %2262 = vmatprep.mubr.bf16.mxu0 %v1829
      %2263 = vmatmul.mubr.bf16.gmra.mxu0 %v1828
      %v2264 = vpop.f32.mrf.mxu0
      %v2265 = vadd.f32 %v1713, %v2264
      %v2266 = vpop.f32.mrf.mxu0
      %v2267 = vadd.f32 %v1717, %v2266
      %v2268 = vpop.f32.mrf.mxu0
      %v2269 = vadd.f32 %v1713, %v2268
      %v2270 = vpop.f32.mrf.mxu0
      %v2271 = vadd.f32 %v1717, %v2270
      %2272 = vmatprep.mubr.bf16.mxu0 %v1833
      %2273 = vmatmul.mubr.bf16.gmra.mxu0 %v1832
      %v2274 = vpop.f32.mrf.mxu0
      %v2275 = vadd.f32 %v1713, %v2274
      %v2276 = vpop.f32.mrf.mxu0
      %v2277 = vadd.f32 %v1717, %v2276
      %v2278 = vpop.f32.mrf.mxu0
      %v2279 = vadd.f32 %v1713, %v2278
      %v2280 = vpop.f32.mrf.mxu0
      %v2281 = vadd.f32 %v1717, %v2280
      %2282 = vmatprep.mubr.bf16.mxu0 %v1837
      %2283 = vmatmul.mubr.bf16.gmra.mxu0 %v1836
      %v2284 = vpop.f32.mrf.mxu0
      %v2285 = vadd.f32 %v1713, %v2284
      %v2286 = vpop.f32.mrf.mxu0
      %v2287 = vadd.f32 %v1717, %v2286
      %v2288 = vpop.f32.mrf.mxu0
      %v2289 = vadd.f32 %v1713, %v2288
      %v2290 = vpop.f32.mrf.mxu0
      %v2291 = vadd.f32 %v1717, %v2290
      %2292 = vmatprep.mubr.bf16.mxu0 %v1841
      %2293 = vmatmul.mubr.bf16.gmra.mxu0 %v1840
      %v2294 = vpop.f32.mrf.mxu0
      %v2295 = vadd.f32 %v1713, %v2294
      %v2296 = vpop.f32.mrf.mxu0
      %v2297 = vadd.f32 %v1717, %v2296
      %v2298 = vpop.f32.mrf.mxu0
      %v2299 = vadd.f32 %v1713, %v2298
      %v2300 = vpop.f32.mrf.mxu0
      %v2301 = vadd.f32 %v1717, %v2300
      %2302 = vmatprep.mubr.bf16.mxu0 %v1845
      %2303 = vmatmul.mubr.bf16.gmra.mxu0 %v1844
      %v2304 = vpop.f32.mrf.mxu0
      %v2305 = vadd.f32 %v1713, %v2304
      %v2306 = vpop.f32.mrf.mxu0
      %v2307 = vadd.f32 %v1717, %v2306
      %v2308 = vpop.f32.mrf.mxu0
      %v2309 = vadd.f32 %v1713, %v2308
      %v2310 = vpop.f32.mrf.mxu0
      %v2311 = vadd.f32 %v1717, %v2310
      %2312 = vdwg.mxu0
      %2313 = vmatprep.subr.bf16.mxu0 %v2119
      %2314 = vmatpush1.bf16.msra.mxu0 %v2118
      %2315 = vmatprep.subr.bf16.mxu0 %v2117
      %2316 = vmatpush1.bf16.msra.mxu0 %v2116
      %2317 = vmatprep.subr.bf16.mxu0 %v2115
      %2318 = vmatpush1.bf16.msra.mxu0 %v2114
      %2319 = vmatprep.subr.bf16.mxu0 %v2113
      %2320 = vmatpush1.bf16.msra.mxu0 %v2112
      %2321 = vmatprep.subr.bf16.mxu0 %v2111
      %2322 = vmatpush1.bf16.msra.mxu0 %v2110
      %2323 = vmatprep.subr.bf16.mxu0 %v2109
      %2324 = vmatpush1.bf16.msra.mxu0 %v2108
      %2325 = vmatprep.subr.bf16.mxu0 %v2107
      %2326 = vmatpush1.bf16.msra.mxu0 %v2106
      %2327 = vmatprep.subr.bf16.mxu0 %v2105
      %2328 = vmatpush1.bf16.msra.mxu0 %v2104
      %2329 = vmatprep.subr.bf16.mxu0 %v2135
      %2330 = vmatpush2.bf16.msra.mxu0 %v2134
      %2331 = vmatprep.subr.bf16.mxu0 %v2133
      %2332 = vmatpush2.bf16.msra.mxu0 %v2132
      %2333 = vmatprep.subr.bf16.mxu0 %v2131
      %2334 = vmatpush2.bf16.msra.mxu0 %v2130
      %2335 = vmatprep.subr.bf16.mxu0 %v2129
      %2336 = vmatpush2.bf16.msra.mxu0 %v2128
      %2337 = vmatprep.subr.bf16.mxu0 %v2127
      %2338 = vmatpush2.bf16.msra.mxu0 %v2126
      %2339 = vmatprep.subr.bf16.mxu0 %v2125
      %2340 = vmatpush2.bf16.msra.mxu0 %v2124
      %2341 = vmatprep.subr.bf16.mxu0 %v2123
      %2342 = vmatpush2.bf16.msra.mxu0 %v2122
      %2343 = vmatprep.subr.bf16.mxu0 %v2121
      %2344 = vmatpush2.bf16.msra.mxu0 %v2120
      %2345 = vmatprep.mubr.bf16.mxu0 %v1819
      %2346 = vmatmul.mubr.bf16.gmra.mxu0 %v1818
      %v2347 = vpop.f32.mrf.mxu0
      %v2348 = vadd.f32 %v2235, %v2347
      %v2349 = vpop.f32.mrf.mxu0
      %v2350 = vadd.f32 %v2237, %v2349
      %v2351 = vpop.f32.mrf.mxu0
      %v2352 = vadd.f32 %v2239, %v2351
      %v2353 = vpop.f32.mrf.mxu0
      %v2354 = vadd.f32 %v2241, %v2353
      %2355 = vmatprep.mubr.bf16.mxu0 %v1823
      %2356 = vmatmul.mubr.bf16.gmra.mxu0 %v1822
      %v2357 = vpop.f32.mrf.mxu0
      %v2358 = vadd.f32 %v2245, %v2357
      %v2359 = vpop.f32.mrf.mxu0
      %v2360 = vadd.f32 %v2247, %v2359
      %v2361 = vpop.f32.mrf.mxu0
      %v2362 = vadd.f32 %v2249, %v2361
      %v2363 = vpop.f32.mrf.mxu0
      %v2364 = vadd.f32 %v2251, %v2363
      %2365 = vmatprep.mubr.bf16.mxu0 %v1827
      %2366 = vmatmul.mubr.bf16.gmra.mxu0 %v1826
      %v2367 = vpop.f32.mrf.mxu0
      %v2368 = vadd.f32 %v2255, %v2367
      %v2369 = vpop.f32.mrf.mxu0
      %v2370 = vadd.f32 %v2257, %v2369
      %v2371 = vpop.f32.mrf.mxu0
      %v2372 = vadd.f32 %v2259, %v2371
      %v2373 = vpop.f32.mrf.mxu0
      %v2374 = vadd.f32 %v2261, %v2373
      %2375 = vmatprep.mubr.bf16.mxu0 %v1831
      %2376 = vmatmul.mubr.bf16.gmra.mxu0 %v1830
      %v2377 = vpop.f32.mrf.mxu0
      %v2378 = vadd.f32 %v2265, %v2377
      %v2379 = vpop.f32.mrf.mxu0
      %v2380 = vadd.f32 %v2267, %v2379
      %v2381 = vpop.f32.mrf.mxu0
      %v2382 = vadd.f32 %v2269, %v2381
      %v2383 = vpop.f32.mrf.mxu0
      %v2384 = vadd.f32 %v2271, %v2383
      %2385 = vmatprep.mubr.bf16.mxu0 %v1835
      %2386 = vmatmul.mubr.bf16.gmra.mxu0 %v1834
      %v2387 = vpop.f32.mrf.mxu0
      %v2388 = vadd.f32 %v2275, %v2387
      %v2389 = vpop.f32.mrf.mxu0
      %v2390 = vadd.f32 %v2277, %v2389
      %v2391 = vpop.f32.mrf.mxu0
      %v2392 = vadd.f32 %v2279, %v2391
      %v2393 = vpop.f32.mrf.mxu0
      %v2394 = vadd.f32 %v2281, %v2393
      %2395 = vmatprep.mubr.bf16.mxu0 %v1839
      %2396 = vmatmul.mubr.bf16.gmra.mxu0 %v1838
      %v2397 = vpop.f32.mrf.mxu0
      %v2398 = vadd.f32 %v2285, %v2397
      %v2399 = vpop.f32.mrf.mxu0
      %v2400 = vadd.f32 %v2287, %v2399
      %v2401 = vpop.f32.mrf.mxu0
      %v2402 = vadd.f32 %v2289, %v2401
      %v2403 = vpop.f32.mrf.mxu0
      %v2404 = vadd.f32 %v2291, %v2403
      %2405 = vmatprep.mubr.bf16.mxu0 %v1843
      %2406 = vmatmul.mubr.bf16.gmra.mxu0 %v1842
      %v2407 = vpop.f32.mrf.mxu0
      %v2408 = vadd.f32 %v2295, %v2407
      %v2409 = vpop.f32.mrf.mxu0
      %v2410 = vadd.f32 %v2297, %v2409
      %v2411 = vpop.f32.mrf.mxu0
      %v2412 = vadd.f32 %v2299, %v2411
      %v2413 = vpop.f32.mrf.mxu0
      %v2414 = vadd.f32 %v2301, %v2413
      %2415 = vmatprep.mubr.bf16.mxu0 %v1847
      %2416 = vmatmul.mubr.bf16.gmra.mxu0 %v1846
      %v2417 = vpop.f32.mrf.mxu0
      %v2418 = vadd.f32 %v2305, %v2417
      %v2419 = vpop.f32.mrf.mxu0
      %v2420 = vadd.f32 %v2307, %v2419
      %v2421 = vpop.f32.mrf.mxu0
      %v2422 = vadd.f32 %v2309, %v2421
      %v2423 = vpop.f32.mrf.mxu0
      %v2424 = vadd.f32 %v2311, %v2423
      %2425 = vdwg.mxu0
      %v2426 = vmul.f32 %v2348, 0.5
      %v2427 = vmul.f32 %v2350, 0.5
      %v2428 = vmul.f32 %v2352, 0.5
      %v2429 = vmul.f32 %v2354, 0.5
      %v2430 = vmul.f32 %v2358, 0.5
      %v2431 = vmul.f32 %v2360, 0.5
      %v2432 = vmul.f32 %v2362, 0.5
      %v2433 = vmul.f32 %v2364, 0.5
      %v2434 = vmul.f32 %v2368, 0.5
      %v2435 = vmul.f32 %v2370, 0.5
      %v2436 = vmul.f32 %v2372, 0.5
      %v2437 = vmul.f32 %v2374, 0.5
      %v2438 = vmul.f32 %v2378, 0.5
      %v2439 = vmul.f32 %v2380, 0.5
      %v2440 = vmul.f32 %v2382, 0.5
      %v2441 = vmul.f32 %v2384, 0.5
      %v2442 = vmul.f32 %v2388, 0.5
      %v2443 = vmul.f32 %v2390, 0.5
      %v2444 = vmul.f32 %v2392, 0.5
      %v2445 = vmul.f32 %v2394, 0.5
      %v2446 = vmul.f32 %v2398, 0.5
      %v2447 = vmul.f32 %v2400, 0.5
      %v2448 = vmul.f32 %v2402, 0.5
      %v2449 = vmul.f32 %v2404, 0.5
      %v2450 = vmul.f32 %v2408, 0.5
      %v2451 = vmul.f32 %v2410, 0.5
      %v2452 = vmul.f32 %v2412, 0.5
      %v2453 = vmul.f32 %v2414, 0.5
      %v2454 = vmul.f32 %v2418, 0.5
      %v2455 = vmul.f32 %v2420, 0.5
      %v2456 = vmul.f32 %v2422, 0.5
      %v2457 = vmul.f32 %v2424, 0.5
      %v2458 = vmul.f32 %v2348, 0.70710677
      %v2459 = vmul.f32 %v2350, 0.70710677
      %v2460 = vmul.f32 %v2352, 0.70710677
      %v2461 = vmul.f32 %v2354, 0.70710677
      %v2462 = vmul.f32 %v2358, 0.70710677
      %v2463 = vmul.f32 %v2360, 0.70710677
      %v2464 = vmul.f32 %v2362, 0.70710677
      %v2465 = vmul.f32 %v2364, 0.70710677
      %v2466 = vmul.f32 %v2368, 0.70710677
      %v2467 = vmul.f32 %v2370, 0.70710677
      %v2468 = vmul.f32 %v2372, 0.70710677
      %v2469 = vmul.f32 %v2374, 0.70710677
      %v2470 = vmul.f32 %v2378, 0.70710677
      %v2471 = vmul.f32 %v2380, 0.70710677
      %v2472 = vmul.f32 %v2382, 0.70710677
      %v2473 = vmul.f32 %v2384, 0.70710677
      %v2474 = vmul.f32 %v2388, 0.70710677
      %v2475 = vmul.f32 %v2390, 0.70710677
      %v2476 = vmul.f32 %v2392, 0.70710677
      %v2477 = vmul.f32 %v2394, 0.70710677
      %v2478 = vmul.f32 %v2398, 0.70710677
      %v2479 = vmul.f32 %v2400, 0.70710677
      %v2480 = vmul.f32 %v2402, 0.70710677
      %v2481 = vmul.f32 %v2404, 0.70710677
      %v2482 = vmul.f32 %v2408, 0.70710677
      %v2483 = vmul.f32 %v2410, 0.70710677
      %v2484 = vmul.f32 %v2412, 0.70710677
      %v2485 = vmul.f32 %v2414, 0.70710677
      %v2486 = vmul.f32 %v2418, 0.70710677
      %v2487 = vmul.f32 %v2420, 0.70710677
      %v2488 = vmul.f32 %v2422, 0.70710677
      %v2489 = vmul.f32 %v2424, 0.70710677
      %v2490 = verf.f32.pop %v2458
      %v2491 = verf.f32.pop %v2459
      %v2492 = verf.f32.pop %v2460
      %v2493 = verf.f32.pop %v2461
      %v2494 = verf.f32.pop %v2462
      %v2495 = verf.f32.pop %v2463
      %v2496 = verf.f32.pop %v2464
      %v2497 = verf.f32.pop %v2465
      %v2498 = verf.f32.pop %v2466
      %v2499 = verf.f32.pop %v2467
      %v2500 = verf.f32.pop %v2468
      %v2501 = verf.f32.pop %v2469
      %v2502 = verf.f32.pop %v2470
      %v2503 = verf.f32.pop %v2471
      %v2504 = verf.f32.pop %v2472
      %v2505 = verf.f32.pop %v2473
      %v2506 = verf.f32.pop %v2474
      %v2507 = verf.f32.pop %v2475
      %v2508 = verf.f32.pop %v2476
      %v2509 = verf.f32.pop %v2477
      %v2510 = verf.f32.pop %v2478
      %v2511 = verf.f32.pop %v2479
      %v2512 = verf.f32.pop %v2480
      %v2513 = verf.f32.pop %v2481
      %v2514 = verf.f32.pop %v2482
      %v2515 = verf.f32.pop %v2483
      %v2516 = verf.f32.pop %v2484
      %v2517 = verf.f32.pop %v2485
      %v2518 = verf.f32.pop %v2486
      %v2519 = verf.f32.pop %v2487
      %v2520 = verf.f32.pop %v2488
      %v2521 = verf.f32.pop %v2489
      %v2522 = vadd.f32 %v2490, 1.0
      %v2523 = vadd.f32 %v2491, 1.0
      %v2524 = vadd.f32 %v2492, 1.0
      %v2525 = vadd.f32 %v2493, 1.0
      %v2526 = vadd.f32 %v2494, 1.0
      %v2527 = vadd.f32 %v2495, 1.0
      %v2528 = vadd.f32 %v2496, 1.0
      %v2529 = vadd.f32 %v2497, 1.0
      %v2530 = vadd.f32 %v2498, 1.0
      %v2531 = vadd.f32 %v2499, 1.0
      %v2532 = vadd.f32 %v2500, 1.0
      %v2533 = vadd.f32 %v2501, 1.0
      %v2534 = vadd.f32 %v2502, 1.0
      %v2535 = vadd.f32 %v2503, 1.0
      %v2536 = vadd.f32 %v2504, 1.0
      %v2537 = vadd.f32 %v2505, 1.0
      %v2538 = vadd.f32 %v2506, 1.0
      %v2539 = vadd.f32 %v2507, 1.0
      %v2540 = vadd.f32 %v2508, 1.0
      %v2541 = vadd.f32 %v2509, 1.0
      %v2542 = vadd.f32 %v2510, 1.0
      %v2543 = vadd.f32 %v2511, 1.0
      %v2544 = vadd.f32 %v2512, 1.0
      %v2545 = vadd.f32 %v2513, 1.0
      %v2546 = vadd.f32 %v2514, 1.0
      %v2547 = vadd.f32 %v2515, 1.0
      %v2548 = vadd.f32 %v2516, 1.0
      %v2549 = vadd.f32 %v2517, 1.0
      %v2550 = vadd.f32 %v2518, 1.0
      %v2551 = vadd.f32 %v2519, 1.0
      %v2552 = vadd.f32 %v2520, 1.0
      %v2553 = vadd.f32 %v2521, 1.0
      %v2554 = vmul.f32 %v2426, %v2522
      %v2555 = vmul.f32 %v2427, %v2523
      %v2556 = vmul.f32 %v2428, %v2524
      %v2557 = vmul.f32 %v2429, %v2525
      %v2558 = vmul.f32 %v2430, %v2526
      %v2559 = vmul.f32 %v2431, %v2527
      %v2560 = vmul.f32 %v2432, %v2528
      %v2561 = vmul.f32 %v2433, %v2529
      %v2562 = vmul.f32 %v2434, %v2530
      %v2563 = vmul.f32 %v2435, %v2531
      %v2564 = vmul.f32 %v2436, %v2532
      %v2565 = vmul.f32 %v2437, %v2533
      %v2566 = vmul.f32 %v2438, %v2534
      %v2567 = vmul.f32 %v2439, %v2535
      %v2568 = vmul.f32 %v2440, %v2536
      %v2569 = vmul.f32 %v2441, %v2537
      %v2570 = vmul.f32 %v2442, %v2538
      %v2571 = vmul.f32 %v2443, %v2539
      %v2572 = vmul.f32 %v2444, %v2540
      %v2573 = vmul.f32 %v2445, %v2541
      %v2574 = vmul.f32 %v2446, %v2542
      %v2575 = vmul.f32 %v2447, %v2543
      %v2576 = vmul.f32 %v2448, %v2544
      %v2577 = vmul.f32 %v2449, %v2545
      %v2578 = vmul.f32 %v2450, %v2546
      %v2579 = vmul.f32 %v2451, %v2547
      %v2580 = vmul.f32 %v2452, %v2548
      %v2581 = vmul.f32 %v2453, %v2549
      %v2582 = vmul.f32 %v2454, %v2550
      %v2583 = vmul.f32 %v2455, %v2551
      %v2584 = vmul.f32 %v2456, %v2552
      %v2585 = vmul.f32 %v2457, %v2553
      %v2586 = vpack.c.bf16 %v2556, %v2554
      %v2587 = vpack.c.bf16 %v2557, %v2555
      %v2588 = vpack.c.bf16 %v2560, %v2558
      %v2589 = vpack.c.bf16 %v2561, %v2559
      %v2590 = vpack.c.bf16 %v2564, %v2562
      %v2591 = vpack.c.bf16 %v2565, %v2563
      %v2592 = vpack.c.bf16 %v2568, %v2566
      %v2593 = vpack.c.bf16 %v2569, %v2567
      %v2594 = vpack.c.bf16 %v2572, %v2570
      %v2595 = vpack.c.bf16 %v2573, %v2571
      %v2596 = vpack.c.bf16 %v2576, %v2574
      %v2597 = vpack.c.bf16 %v2577, %v2575
      %v2598 = vpack.c.bf16 %v2580, %v2578
      %v2599 = vpack.c.bf16 %v2581, %v2579
      %v2600 = vpack.c.bf16 %v2584, %v2582
      %v2601 = vpack.c.bf16 %v2585, %v2583
      %v2618 = vunpack.c.l.b16 %v2586
      %v2619 = vunpack.c.l.b16 %v2587
      %v2620 = vunpack.c.h.b16 %v2586
      %v2621 = vunpack.c.h.b16 %v2587
      %v2622 = vunpack.c.l.b16 %v2588
      %v2623 = vunpack.c.l.b16 %v2589
      %v2624 = vunpack.c.h.b16 %v2588
      %v2625 = vunpack.c.h.b16 %v2589
      %v2626 = vunpack.c.l.b16 %v2590
      %v2627 = vunpack.c.l.b16 %v2591
      %v2628 = vunpack.c.h.b16 %v2590
      %v2629 = vunpack.c.h.b16 %v2591
      %v2630 = vunpack.c.l.b16 %v2592
      %v2631 = vunpack.c.l.b16 %v2593
      %v2632 = vunpack.c.h.b16 %v2592
      %v2633 = vunpack.c.h.b16 %v2593
      %v2634 = vunpack.c.l.b16 %v2594
      %v2635 = vunpack.c.l.b16 %v2595
      %v2636 = vunpack.c.h.b16 %v2594
      %v2637 = vunpack.c.h.b16 %v2595
      %v2638 = vunpack.c.l.b16 %v2596
      %v2639 = vunpack.c.l.b16 %v2597
      %v2640 = vunpack.c.h.b16 %v2596
      %v2641 = vunpack.c.h.b16 %v2597
      %v2642 = vunpack.c.l.b16 %v2598
      %v2643 = vunpack.c.l.b16 %v2599
      %v2644 = vunpack.c.h.b16 %v2598
      %v2645 = vunpack.c.h.b16 %v2599
      %v2646 = vunpack.c.l.b16 %v2600
      %v2647 = vunpack.c.l.b16 %v2601
      %v2648 = vunpack.c.h.b16 %v2600
      %v2649 = vunpack.c.h.b16 %v2601
      %v2650 = vpack.c.b16 %v2619, %v2618
      %v2651 = vpack.c.b16 %v2621, %v2620
      %v2652 = vpack.c.b16 %v2623, %v2622
      %v2653 = vpack.c.b16 %v2625, %v2624
      %v2654 = vpack.c.b16 %v2627, %v2626
      %v2655 = vpack.c.b16 %v2629, %v2628
      %v2656 = vpack.c.b16 %v2631, %v2630
      %v2657 = vpack.c.b16 %v2633, %v2632
      %v2658 = vpack.c.b16 %v2635, %v2634
      %v2659 = vpack.c.b16 %v2637, %v2636
      %v2660 = vpack.c.b16 %v2639, %v2638
      %v2661 = vpack.c.b16 %v2641, %v2640
      %v2662 = vpack.c.b16 %v2643, %v2642
      %v2663 = vpack.c.b16 %v2645, %v2644
      %v2664 = vpack.c.b16 %v2647, %v2646
      %v2665 = vpack.c.b16 %v2649, %v2648
      %2682 = vst [vmem:[#allocation3] sm:$0xff] %v2650
      %2683 = vst [vmem:[#allocation3 + $0x8] sm:$0xff] %v2651
      %2684 = vst [vmem:[#allocation3 + $0x10] sm:$0xff] %v2652
      %2685 = vst [vmem:[#allocation3 + $0x18] sm:$0xff] %v2653
      %2686 = vst [vmem:[#allocation3 + $0x20] sm:$0xff] %v2654
      %2687 = vst [vmem:[#allocation3 + $0x28] sm:$0xff] %v2655
      %2688 = vst [vmem:[#allocation3 + $0x30] sm:$0xff] %v2656
      %2689 = vst [vmem:[#allocation3 + $0x38] sm:$0xff] %v2657
      %2690 = vst [vmem:[#allocation3 + $0x40] sm:$0xff] %v2658
      %2691 = vst [vmem:[#allocation3 + $0x48] sm:$0xff] %v2659
      %2692 = vst [vmem:[#allocation3 + $0x50] sm:$0xff] %v2660
      %2693 = vst [vmem:[#allocation3 + $0x58] sm:$0xff] %v2661
      %2694 = vst [vmem:[#allocation3 + $0x60] sm:$0xff] %v2662
      %2695 = vst [vmem:[#allocation3 + $0x68] sm:$0xff] %v2663
      %2696 = vst [vmem:[#allocation3 + $0x70] sm:$0xff] %v2664
      %2697 = vst [vmem:[#allocation3 + $0x78] sm:$0xff] %v2665
      %s2698 = scalar_lea.vmem %s3, 512
      %v2699 = vld [vmem:[%s2698] sm:$0xff]
      %v2700 = vld [vmem:[%s2698 + $0x8] sm:$0xff]
      %v2701 = vld [vmem:[%s2698 + $0x10] sm:$0xff]
      %v2702 = vld [vmem:[%s2698 + $0x18] sm:$0xff]
      %v2703 = vld [vmem:[%s2698 + $0x20] sm:$0xff]
      %v2704 = vld [vmem:[%s2698 + $0x28] sm:$0xff]
      %v2705 = vld [vmem:[%s2698 + $0x30] sm:$0xff]
      %v2706 = vld [vmem:[%s2698 + $0x38] sm:$0xff]
      %v2707 = vld [vmem:[%s2698 + $0x40] sm:$0xff]
      %v2708 = vld [vmem:[%s2698 + $0x48] sm:$0xff]
      %v2709 = vld [vmem:[%s2698 + $0x50] sm:$0xff]
      %v2710 = vld [vmem:[%s2698 + $0x58] sm:$0xff]
      %v2711 = vld [vmem:[%s2698 + $0x60] sm:$0xff]
      %v2712 = vld [vmem:[%s2698 + $0x68] sm:$0xff]
      %v2713 = vld [vmem:[%s2698 + $0x70] sm:$0xff]
      %v2714 = vld [vmem:[%s2698 + $0x78] sm:$0xff]
      %v2715 = vld [vmem:[%s2698 + $0x80] sm:$0xff]
      %v2716 = vld [vmem:[%s2698 + $0x88] sm:$0xff]
      %v2717 = vld [vmem:[%s2698 + $0x90] sm:$0xff]
      %v2718 = vld [vmem:[%s2698 + $0x98] sm:$0xff]
      %v2719 = vld [vmem:[%s2698 + $0xa0] sm:$0xff]
      %v2720 = vld [vmem:[%s2698 + $0xa8] sm:$0xff]
      %v2721 = vld [vmem:[%s2698 + $0xb0] sm:$0xff]
      %v2722 = vld [vmem:[%s2698 + $0xb8] sm:$0xff]
      %v2723 = vld [vmem:[%s2698 + $0xc0] sm:$0xff]
      %v2724 = vld [vmem:[%s2698 + $0xc8] sm:$0xff]
      %v2725 = vld [vmem:[%s2698 + $0xd0] sm:$0xff]
      %v2726 = vld [vmem:[%s2698 + $0xd8] sm:$0xff]
      %v2727 = vld [vmem:[%s2698 + $0xe0] sm:$0xff]
      %v2728 = vld [vmem:[%s2698 + $0xe8] sm:$0xff]
      %v2729 = vld [vmem:[%s2698 + $0xf0] sm:$0xff]
      %v2730 = vld [vmem:[%s2698 + $0xf8] sm:$0xff]
      %v2731 = vld [vmem:[%s2698 + $0x100] sm:$0xff]
      %v2732 = vld [vmem:[%s2698 + $0x108] sm:$0xff]
      %v2733 = vld [vmem:[%s2698 + $0x110] sm:$0xff]
      %v2734 = vld [vmem:[%s2698 + $0x118] sm:$0xff]
      %v2735 = vld [vmem:[%s2698 + $0x120] sm:$0xff]
      %v2736 = vld [vmem:[%s2698 + $0x128] sm:$0xff]
      %v2737 = vld [vmem:[%s2698 + $0x130] sm:$0xff]
      %v2738 = vld [vmem:[%s2698 + $0x138] sm:$0xff]
      %v2739 = vld [vmem:[%s2698 + $0x140] sm:$0xff]
      %v2740 = vld [vmem:[%s2698 + $0x148] sm:$0xff]
      %v2741 = vld [vmem:[%s2698 + $0x150] sm:$0xff]
      %v2742 = vld [vmem:[%s2698 + $0x158] sm:$0xff]
      %v2743 = vld [vmem:[%s2698 + $0x160] sm:$0xff]
      %v2744 = vld [vmem:[%s2698 + $0x168] sm:$0xff]
      %v2745 = vld [vmem:[%s2698 + $0x170] sm:$0xff]
      %v2746 = vld [vmem:[%s2698 + $0x178] sm:$0xff]
      %v2747 = vld [vmem:[%s2698 + $0x180] sm:$0xff]
      %v2748 = vld [vmem:[%s2698 + $0x188] sm:$0xff]
      %v2749 = vld [vmem:[%s2698 + $0x190] sm:$0xff]
      %v2750 = vld [vmem:[%s2698 + $0x198] sm:$0xff]
      %v2751 = vld [vmem:[%s2698 + $0x1a0] sm:$0xff]
      %v2752 = vld [vmem:[%s2698 + $0x1a8] sm:$0xff]
      %v2753 = vld [vmem:[%s2698 + $0x1b0] sm:$0xff]
      %v2754 = vld [vmem:[%s2698 + $0x1b8] sm:$0xff]
      %v2755 = vld [vmem:[%s2698 + $0x1c0] sm:$0xff]
      %v2756 = vld [vmem:[%s2698 + $0x1c8] sm:$0xff]
      %v2757 = vld [vmem:[%s2698 + $0x1d0] sm:$0xff]
      %v2758 = vld [vmem:[%s2698 + $0x1d8] sm:$0xff]
      %v2759 = vld [vmem:[%s2698 + $0x1e0] sm:$0xff]
      %v2760 = vld [vmem:[%s2698 + $0x1e8] sm:$0xff]
      %v2761 = vld [vmem:[%s2698 + $0x1f0] sm:$0xff]
      %v2762 = vld [vmem:[%s2698 + $0x1f8] sm:$0xff]
      %v2827 = vunpack.c.l.b16 %v2699
      %v2828 = vunpack.c.h.b16 %v2699
      %v2829 = vunpack.c.l.b16 %v2700
      %v2830 = vunpack.c.h.b16 %v2700
      %v2831 = vunpack.c.l.b16 %v2701
      %v2832 = vunpack.c.h.b16 %v2701
      %v2833 = vunpack.c.l.b16 %v2702
      %v2834 = vunpack.c.h.b16 %v2702
      %v2835 = vunpack.c.l.b16 %v2703
      %v2836 = vunpack.c.h.b16 %v2703
      %v2837 = vunpack.c.l.b16 %v2704
      %v2838 = vunpack.c.h.b16 %v2704
      %v2839 = vunpack.c.l.b16 %v2705
      %v2840 = vunpack.c.h.b16 %v2705
      %v2841 = vunpack.c.l.b16 %v2706
      %v2842 = vunpack.c.h.b16 %v2706
      %v2843 = vunpack.c.l.b16 %v2707
      %v2844 = vunpack.c.h.b16 %v2707
      %v2845 = vunpack.c.l.b16 %v2708
      %v2846 = vunpack.c.h.b16 %v2708
      %v2847 = vunpack.c.l.b16 %v2709
      %v2848 = vunpack.c.h.b16 %v2709
      %v2849 = vunpack.c.l.b16 %v2710
      %v2850 = vunpack.c.h.b16 %v2710
      %v2851 = vunpack.c.l.b16 %v2711
      %v2852 = vunpack.c.h.b16 %v2711
      %v2853 = vunpack.c.l.b16 %v2712
      %v2854 = vunpack.c.h.b16 %v2712
      %v2855 = vunpack.c.l.b16 %v2713
      %v2856 = vunpack.c.h.b16 %v2713
      %v2857 = vunpack.c.l.b16 %v2714
      %v2858 = vunpack.c.h.b16 %v2714
      %v2859 = vunpack.c.l.b16 %v2715
      %v2860 = vunpack.c.h.b16 %v2715
      %v2861 = vunpack.c.l.b16 %v2716
      %v2862 = vunpack.c.h.b16 %v2716
      %v2863 = vunpack.c.l.b16 %v2717
      %v2864 = vunpack.c.h.b16 %v2717
      %v2865 = vunpack.c.l.b16 %v2718
      %v2866 = vunpack.c.h.b16 %v2718
      %v2867 = vunpack.c.l.b16 %v2719
      %v2868 = vunpack.c.h.b16 %v2719
      %v2869 = vunpack.c.l.b16 %v2720
      %v2870 = vunpack.c.h.b16 %v2720
      %v2871 = vunpack.c.l.b16 %v2721
      %v2872 = vunpack.c.h.b16 %v2721
      %v2873 = vunpack.c.l.b16 %v2722
      %v2874 = vunpack.c.h.b16 %v2722
      %v2875 = vunpack.c.l.b16 %v2723
      %v2876 = vunpack.c.h.b16 %v2723
      %v2877 = vunpack.c.l.b16 %v2724
      %v2878 = vunpack.c.h.b16 %v2724
      %v2879 = vunpack.c.l.b16 %v2725
      %v2880 = vunpack.c.h.b16 %v2725
      %v2881 = vunpack.c.l.b16 %v2726
      %v2882 = vunpack.c.h.b16 %v2726
      %v2883 = vunpack.c.l.b16 %v2727
      %v2884 = vunpack.c.h.b16 %v2727
      %v2885 = vunpack.c.l.b16 %v2728
      %v2886 = vunpack.c.h.b16 %v2728
      %v2887 = vunpack.c.l.b16 %v2729
      %v2888 = vunpack.c.h.b16 %v2729
      %v2889 = vunpack.c.l.b16 %v2730
      %v2890 = vunpack.c.h.b16 %v2730
      %v2891 = vunpack.c.l.b16 %v2731
      %v2892 = vunpack.c.h.b16 %v2731
      %v2893 = vunpack.c.l.b16 %v2732
      %v2894 = vunpack.c.h.b16 %v2732
      %v2895 = vunpack.c.l.b16 %v2733
      %v2896 = vunpack.c.h.b16 %v2733
      %v2897 = vunpack.c.l.b16 %v2734
      %v2898 = vunpack.c.h.b16 %v2734
      %v2899 = vunpack.c.l.b16 %v2735
      %v2900 = vunpack.c.h.b16 %v2735
      %v2901 = vunpack.c.l.b16 %v2736
      %v2902 = vunpack.c.h.b16 %v2736
      %v2903 = vunpack.c.l.b16 %v2737
      %v2904 = vunpack.c.h.b16 %v2737
      %v2905 = vunpack.c.l.b16 %v2738
      %v2906 = vunpack.c.h.b16 %v2738
      %v2907 = vunpack.c.l.b16 %v2739
      %v2908 = vunpack.c.h.b16 %v2739
      %v2909 = vunpack.c.l.b16 %v2740
      %v2910 = vunpack.c.h.b16 %v2740
      %v2911 = vunpack.c.l.b16 %v2741
      %v2912 = vunpack.c.h.b16 %v2741
      %v2913 = vunpack.c.l.b16 %v2742
      %v2914 = vunpack.c.h.b16 %v2742
      %v2915 = vunpack.c.l.b16 %v2743
      %v2916 = vunpack.c.h.b16 %v2743
      %v2917 = vunpack.c.l.b16 %v2744
      %v2918 = vunpack.c.h.b16 %v2744
      %v2919 = vunpack.c.l.b16 %v2745
      %v2920 = vunpack.c.h.b16 %v2745
      %v2921 = vunpack.c.l.b16 %v2746
      %v2922 = vunpack.c.h.b16 %v2746
      %v2923 = vunpack.c.l.b16 %v2747
      %v2924 = vunpack.c.h.b16 %v2747
      %v2925 = vunpack.c.l.b16 %v2748
      %v2926 = vunpack.c.h.b16 %v2748
      %v2927 = vunpack.c.l.b16 %v2749
      %v2928 = vunpack.c.h.b16 %v2749
      %v2929 = vunpack.c.l.b16 %v2750
      %v2930 = vunpack.c.h.b16 %v2750
      %v2931 = vunpack.c.l.b16 %v2751
      %v2932 = vunpack.c.h.b16 %v2751
      %v2933 = vunpack.c.l.b16 %v2752
      %v2934 = vunpack.c.h.b16 %v2752
      %v2935 = vunpack.c.l.b16 %v2753
      %v2936 = vunpack.c.h.b16 %v2753
      %v2937 = vunpack.c.l.b16 %v2754
      %v2938 = vunpack.c.h.b16 %v2754
      %v2939 = vunpack.c.l.b16 %v2755
      %v2940 = vunpack.c.h.b16 %v2755
      %v2941 = vunpack.c.l.b16 %v2756
      %v2942 = vunpack.c.h.b16 %v2756
      %v2943 = vunpack.c.l.b16 %v2757
      %v2944 = vunpack.c.h.b16 %v2757
      %v2945 = vunpack.c.l.b16 %v2758
      %v2946 = vunpack.c.h.b16 %v2758
      %v2947 = vunpack.c.l.b16 %v2759
      %v2948 = vunpack.c.h.b16 %v2759
      %v2949 = vunpack.c.l.b16 %v2760
      %v2950 = vunpack.c.h.b16 %v2760
      %v2951 = vunpack.c.l.b16 %v2761
      %v2952 = vunpack.c.h.b16 %v2761
      %v2953 = vunpack.c.l.b16 %v2762
      %v2954 = vunpack.c.h.b16 %v2762
      %v2955 = vpack.c.b16 %v2829, %v2827
      %v2956 = vpack.c.b16 %v2830, %v2828
      %v2957 = vpack.c.b16 %v2833, %v2831
      %v2958 = vpack.c.b16 %v2834, %v2832
      %v2959 = vpack.c.b16 %v2837, %v2835
      %v2960 = vpack.c.b16 %v2838, %v2836
      %v2961 = vpack.c.b16 %v2841, %v2839
      %v2962 = vpack.c.b16 %v2842, %v2840
      %v2963 = vpack.c.b16 %v2845, %v2843
      %v2964 = vpack.c.b16 %v2846, %v2844
      %v2965 = vpack.c.b16 %v2849, %v2847
      %v2966 = vpack.c.b16 %v2850, %v2848
      %v2967 = vpack.c.b16 %v2853, %v2851
      %v2968 = vpack.c.b16 %v2854, %v2852
      %v2969 = vpack.c.b16 %v2857, %v2855
      %v2970 = vpack.c.b16 %v2858, %v2856
      %v2971 = vpack.c.b16 %v2861, %v2859
      %v2972 = vpack.c.b16 %v2862, %v2860
      %v2973 = vpack.c.b16 %v2865, %v2863
      %v2974 = vpack.c.b16 %v2866, %v2864
      %v2975 = vpack.c.b16 %v2869, %v2867
      %v2976 = vpack.c.b16 %v2870, %v2868
      %v2977 = vpack.c.b16 %v2873, %v2871
      %v2978 = vpack.c.b16 %v2874, %v2872
      %v2979 = vpack.c.b16 %v2877, %v2875
      %v2980 = vpack.c.b16 %v2878, %v2876
      %v2981 = vpack.c.b16 %v2881, %v2879
      %v2982 = vpack.c.b16 %v2882, %v2880
      %v2983 = vpack.c.b16 %v2885, %v2883
      %v2984 = vpack.c.b16 %v2886, %v2884
      %v2985 = vpack.c.b16 %v2889, %v2887
      %v2986 = vpack.c.b16 %v2890, %v2888
      %v2987 = vpack.c.b16 %v2893, %v2891
      %v2988 = vpack.c.b16 %v2894, %v2892
      %v2989 = vpack.c.b16 %v2897, %v2895
      %v2990 = vpack.c.b16 %v2898, %v2896
      %v2991 = vpack.c.b16 %v2901, %v2899
      %v2992 = vpack.c.b16 %v2902, %v2900
      %v2993 = vpack.c.b16 %v2905, %v2903
      %v2994 = vpack.c.b16 %v2906, %v2904
      %v2995 = vpack.c.b16 %v2909, %v2907
      %v2996 = vpack.c.b16 %v2910, %v2908
      %v2997 = vpack.c.b16 %v2913, %v2911
      %v2998 = vpack.c.b16 %v2914, %v2912
      %v2999 = vpack.c.b16 %v2917, %v2915
      %v3000 = vpack.c.b16 %v2918, %v2916
      %v3001 = vpack.c.b16 %v2921, %v2919
      %v3002 = vpack.c.b16 %v2922, %v2920
      %v3003 = vpack.c.b16 %v2925, %v2923
      %v3004 = vpack.c.b16 %v2926, %v2924
      %v3005 = vpack.c.b16 %v2929, %v2927
      %v3006 = vpack.c.b16 %v2930, %v2928
      %v3007 = vpack.c.b16 %v2933, %v2931
      %v3008 = vpack.c.b16 %v2934, %v2932
      %v3009 = vpack.c.b16 %v2937, %v2935
      %v3010 = vpack.c.b16 %v2938, %v2936
      %v3011 = vpack.c.b16 %v2941, %v2939
      %v3012 = vpack.c.b16 %v2942, %v2940
      %v3013 = vpack.c.b16 %v2945, %v2943
      %v3014 = vpack.c.b16 %v2946, %v2944
      %v3015 = vpack.c.b16 %v2949, %v2947
      %v3016 = vpack.c.b16 %v2950, %v2948
      %v3017 = vpack.c.b16 %v2953, %v2951
      %v3018 = vpack.c.b16 %v2954, %v2952
      %3083 = vmatprep.subr.bf16.mxu0 %v2970
      %3084 = vmatpush1.bf16.msra.mxu0 %v2969
      %3085 = vmatprep.subr.bf16.mxu0 %v2968
      %3086 = vmatpush1.bf16.msra.mxu0 %v2967
      %3087 = vmatprep.subr.bf16.mxu0 %v2966
      %3088 = vmatpush1.bf16.msra.mxu0 %v2965
      %3089 = vmatprep.subr.bf16.mxu0 %v2964
      %3090 = vmatpush1.bf16.msra.mxu0 %v2963
      %3091 = vmatprep.subr.bf16.mxu0 %v2962
      %3092 = vmatpush1.bf16.msra.mxu0 %v2961
      %3093 = vmatprep.subr.bf16.mxu0 %v2960
      %3094 = vmatpush1.bf16.msra.mxu0 %v2959
      %3095 = vmatprep.subr.bf16.mxu0 %v2958
      %3096 = vmatpush1.bf16.msra.mxu0 %v2957
      %3097 = vmatprep.subr.bf16.mxu0 %v2956
      %3098 = vmatpush1.bf16.msra.mxu0 %v2955
      %3099 = vmatprep.subr.bf16.mxu0 %v2986
      %3100 = vmatpush2.bf16.msra.mxu0 %v2985
      %3101 = vmatprep.subr.bf16.mxu0 %v2984
      %3102 = vmatpush2.bf16.msra.mxu0 %v2983
      %3103 = vmatprep.subr.bf16.mxu0 %v2982
      %3104 = vmatpush2.bf16.msra.mxu0 %v2981
      %3105 = vmatprep.subr.bf16.mxu0 %v2980
      %3106 = vmatpush2.bf16.msra.mxu0 %v2979
      %3107 = vmatprep.subr.bf16.mxu0 %v2978
      %3108 = vmatpush2.bf16.msra.mxu0 %v2977
      %3109 = vmatprep.subr.bf16.mxu0 %v2976
      %3110 = vmatpush2.bf16.msra.mxu0 %v2975
      %3111 = vmatprep.subr.bf16.mxu0 %v2974
      %3112 = vmatpush2.bf16.msra.mxu0 %v2973
      %3113 = vmatprep.subr.bf16.mxu0 %v2972
      %3114 = vmatpush2.bf16.msra.mxu0 %v2971
      %3115 = vmatprep.mubr.bf16.mxu0 %v1817
      %3116 = vmatmul.mubr.bf16.gmra.mxu0 %v1816
      %v3117 = vpop.f32.mrf.mxu0
      %v3118 = vadd.f32 %v1713, %v3117
      %v3119 = vpop.f32.mrf.mxu0
      %v3120 = vadd.f32 %v1717, %v3119
      %v3121 = vpop.f32.mrf.mxu0
      %v3122 = vadd.f32 %v1713, %v3121
      %v3123 = vpop.f32.mrf.mxu0
      %v3124 = vadd.f32 %v1717, %v3123
      %3125 = vmatprep.mubr.bf16.mxu0 %v1821
      %3126 = vmatmul.mubr.bf16.gmra.mxu0 %v1820
      %v3127 = vpop.f32.mrf.mxu0
      %v3128 = vadd.f32 %v1713, %v3127
      %v3129 = vpop.f32.mrf.mxu0
      %v3130 = vadd.f32 %v1717, %v3129
      %v3131 = vpop.f32.mrf.mxu0
      %v3132 = vadd.f32 %v1713, %v3131
      %v3133 = vpop.f32.mrf.mxu0
      %v3134 = vadd.f32 %v1717, %v3133
      %3135 = vmatprep.mubr.bf16.mxu0 %v1825
      %3136 = vmatmul.mubr.bf16.gmra.mxu0 %v1824
      %v3137 = vpop.f32.mrf.mxu0
      %v3138 = vadd.f32 %v1713, %v3137
      %v3139 = vpop.f32.mrf.mxu0
      %v3140 = vadd.f32 %v1717, %v3139
      %v3141 = vpop.f32.mrf.mxu0
      %v3142 = vadd.f32 %v1713, %v3141
      %v3143 = vpop.f32.mrf.mxu0
      %v3144 = vadd.f32 %v1717, %v3143
      %3145 = vmatprep.mubr.bf16.mxu0 %v1829
      %3146 = vmatmul.mubr.bf16.gmra.mxu0 %v1828
      %v3147 = vpop.f32.mrf.mxu0
      %v3148 = vadd.f32 %v1713, %v3147
      %v3149 = vpop.f32.mrf.mxu0
      %v3150 = vadd.f32 %v1717, %v3149
      %v3151 = vpop.f32.mrf.mxu0
      %v3152 = vadd.f32 %v1713, %v3151
      %v3153 = vpop.f32.mrf.mxu0
      %v3154 = vadd.f32 %v1717, %v3153
      %3155 = vmatprep.mubr.bf16.mxu0 %v1833
      %3156 = vmatmul.mubr.bf16.gmra.mxu0 %v1832
      %v3157 = vpop.f32.mrf.mxu0
      %v3158 = vadd.f32 %v1713, %v3157
      %v3159 = vpop.f32.mrf.mxu0
      %v3160 = vadd.f32 %v1717, %v3159
      %v3161 = vpop.f32.mrf.mxu0
      %v3162 = vadd.f32 %v1713, %v3161
      %v3163 = vpop.f32.mrf.mxu0
      %v3164 = vadd.f32 %v1717, %v3163
      %3165 = vmatprep.mubr.bf16.mxu0 %v1837
      %3166 = vmatmul.mubr.bf16.gmra.mxu0 %v1836
      %v3167 = vpop.f32.mrf.mxu0
      %v3168 = vadd.f32 %v1713, %v3167
      %v3169 = vpop.f32.mrf.mxu0
      %v3170 = vadd.f32 %v1717, %v3169
      %v3171 = vpop.f32.mrf.mxu0
      %v3172 = vadd.f32 %v1713, %v3171
      %v3173 = vpop.f32.mrf.mxu0
      %v3174 = vadd.f32 %v1717, %v3173
      %3175 = vmatprep.mubr.bf16.mxu0 %v1841
      %3176 = vmatmul.mubr.bf16.gmra.mxu0 %v1840
      %v3177 = vpop.f32.mrf.mxu0
      %v3178 = vadd.f32 %v1713, %v3177
      %v3179 = vpop.f32.mrf.mxu0
      %v3180 = vadd.f32 %v1717, %v3179
      %v3181 = vpop.f32.mrf.mxu0
      %v3182 = vadd.f32 %v1713, %v3181
      %v3183 = vpop.f32.mrf.mxu0
      %v3184 = vadd.f32 %v1717, %v3183
      %3185 = vmatprep.mubr.bf16.mxu0 %v1845
      %3186 = vmatmul.mubr.bf16.gmra.mxu0 %v1844
      %v3187 = vpop.f32.mrf.mxu0
      %v3188 = vadd.f32 %v1713, %v3187
      %v3189 = vpop.f32.mrf.mxu0
      %v3190 = vadd.f32 %v1717, %v3189
      %v3191 = vpop.f32.mrf.mxu0
      %v3192 = vadd.f32 %v1713, %v3191
      %v3193 = vpop.f32.mrf.mxu0
      %v3194 = vadd.f32 %v1717, %v3193
      %3195 = vdwg.mxu0
      %3196 = vmatprep.subr.bf16.mxu0 %v3002
      %3197 = vmatpush1.bf16.msra.mxu0 %v3001
      %3198 = vmatprep.subr.bf16.mxu0 %v3000
      %3199 = vmatpush1.bf16.msra.mxu0 %v2999
      %3200 = vmatprep.subr.bf16.mxu0 %v2998
      %3201 = vmatpush1.bf16.msra.mxu0 %v2997
      %3202 = vmatprep.subr.bf16.mxu0 %v2996
      %3203 = vmatpush1.bf16.msra.mxu0 %v2995
      %3204 = vmatprep.subr.bf16.mxu0 %v2994
      %3205 = vmatpush1.bf16.msra.mxu0 %v2993
      %3206 = vmatprep.subr.bf16.mxu0 %v2992
      %3207 = vmatpush1.bf16.msra.mxu0 %v2991
      %3208 = vmatprep.subr.bf16.mxu0 %v2990
      %3209 = vmatpush1.bf16.msra.mxu0 %v2989
      %3210 = vmatprep.subr.bf16.mxu0 %v2988
      %3211 = vmatpush1.bf16.msra.mxu0 %v2987
      %3212 = vmatprep.subr.bf16.mxu0 %v3018
      %3213 = vmatpush2.bf16.msra.mxu0 %v3017
      %3214 = vmatprep.subr.bf16.mxu0 %v3016
      %3215 = vmatpush2.bf16.msra.mxu0 %v3015
      %3216 = vmatprep.subr.bf16.mxu0 %v3014
      %3217 = vmatpush2.bf16.msra.mxu0 %v3013
      %3218 = vmatprep.subr.bf16.mxu0 %v3012
      %3219 = vmatpush2.bf16.msra.mxu0 %v3011
      %3220 = vmatprep.subr.bf16.mxu0 %v3010
      %3221 = vmatpush2.bf16.msra.mxu0 %v3009
      %3222 = vmatprep.subr.bf16.mxu0 %v3008
      %3223 = vmatpush2.bf16.msra.mxu0 %v3007
      %3224 = vmatprep.subr.bf16.mxu0 %v3006
      %3225 = vmatpush2.bf16.msra.mxu0 %v3005
      %3226 = vmatprep.subr.bf16.mxu0 %v3004
      %3227 = vmatpush2.bf16.msra.mxu0 %v3003
      %3228 = vmatprep.mubr.bf16.mxu0 %v1819
      %3229 = vmatmul.mubr.bf16.gmra.mxu0 %v1818
      %v3230 = vpop.f32.mrf.mxu0
      %v3231 = vadd.f32 %v3118, %v3230
      %v3232 = vpop.f32.mrf.mxu0
      %v3233 = vadd.f32 %v3120, %v3232
      %v3234 = vpop.f32.mrf.mxu0
      %v3235 = vadd.f32 %v3122, %v3234
      %v3236 = vpop.f32.mrf.mxu0
      %v3237 = vadd.f32 %v3124, %v3236
      %3238 = vmatprep.mubr.bf16.mxu0 %v1823
      %3239 = vmatmul.mubr.bf16.gmra.mxu0 %v1822
      %v3240 = vpop.f32.mrf.mxu0
      %v3241 = vadd.f32 %v3128, %v3240
      %v3242 = vpop.f32.mrf.mxu0
      %v3243 = vadd.f32 %v3130, %v3242
      %v3244 = vpop.f32.mrf.mxu0
      %v3245 = vadd.f32 %v3132, %v3244
      %v3246 = vpop.f32.mrf.mxu0
      %v3247 = vadd.f32 %v3134, %v3246
      %3248 = vmatprep.mubr.bf16.mxu0 %v1827
      %3249 = vmatmul.mubr.bf16.gmra.mxu0 %v1826
      %v3250 = vpop.f32.mrf.mxu0
      %v3251 = vadd.f32 %v3138, %v3250
      %v3252 = vpop.f32.mrf.mxu0
      %v3253 = vadd.f32 %v3140, %v3252
      %v3254 = vpop.f32.mrf.mxu0
      %v3255 = vadd.f32 %v3142, %v3254
      %v3256 = vpop.f32.mrf.mxu0
      %v3257 = vadd.f32 %v3144, %v3256
      %3258 = vmatprep.mubr.bf16.mxu0 %v1831
      %3259 = vmatmul.mubr.bf16.gmra.mxu0 %v1830
      %v3260 = vpop.f32.mrf.mxu0
      %v3261 = vadd.f32 %v3148, %v3260
      %v3262 = vpop.f32.mrf.mxu0
      %v3263 = vadd.f32 %v3150, %v3262
      %v3264 = vpop.f32.mrf.mxu0
      %v3265 = vadd.f32 %v3152, %v3264
      %v3266 = vpop.f32.mrf.mxu0
      %v3267 = vadd.f32 %v3154, %v3266
      %3268 = vmatprep.mubr.bf16.mxu0 %v1835
      %3269 = vmatmul.mubr.bf16.gmra.mxu0 %v1834
      %v3270 = vpop.f32.mrf.mxu0
      %v3271 = vadd.f32 %v3158, %v3270
      %v3272 = vpop.f32.mrf.mxu0
      %v3273 = vadd.f32 %v3160, %v3272
      %v3274 = vpop.f32.mrf.mxu0
      %v3275 = vadd.f32 %v3162, %v3274
      %v3276 = vpop.f32.mrf.mxu0
      %v3277 = vadd.f32 %v3164, %v3276
      %3278 = vmatprep.mubr.bf16.mxu0 %v1839
      %3279 = vmatmul.mubr.bf16.gmra.mxu0 %v1838
      %v3280 = vpop.f32.mrf.mxu0
      %v3281 = vadd.f32 %v3168, %v3280
      %v3282 = vpop.f32.mrf.mxu0
      %v3283 = vadd.f32 %v3170, %v3282
      %v3284 = vpop.f32.mrf.mxu0
      %v3285 = vadd.f32 %v3172, %v3284
      %v3286 = vpop.f32.mrf.mxu0
      %v3287 = vadd.f32 %v3174, %v3286
      %3288 = vmatprep.mubr.bf16.mxu0 %v1843
      %3289 = vmatmul.mubr.bf16.gmra.mxu0 %v1842
      %v3290 = vpop.f32.mrf.mxu0
      %v3291 = vadd.f32 %v3178, %v3290
      %v3292 = vpop.f32.mrf.mxu0
      %v3293 = vadd.f32 %v3180, %v3292
      %v3294 = vpop.f32.mrf.mxu0
      %v3295 = vadd.f32 %v3182, %v3294
      %v3296 = vpop.f32.mrf.mxu0
      %v3297 = vadd.f32 %v3184, %v3296
      %3298 = vmatprep.mubr.bf16.mxu0 %v1847
      %3299 = vmatmul.mubr.bf16.gmra.mxu0 %v1846
      %v3300 = vpop.f32.mrf.mxu0
      %v3301 = vadd.f32 %v3188, %v3300
      %v3302 = vpop.f32.mrf.mxu0
      %v3303 = vadd.f32 %v3190, %v3302
      %v3304 = vpop.f32.mrf.mxu0
      %v3305 = vadd.f32 %v3192, %v3304
      %v3306 = vpop.f32.mrf.mxu0
      %v3307 = vadd.f32 %v3194, %v3306
      %3308 = vdwg.mxu0
      %v3309 = vmul.f32 %v3231, 0.5
      %v3310 = vmul.f32 %v3233, 0.5
      %v3311 = vmul.f32 %v3235, 0.5
      %v3312 = vmul.f32 %v3237, 0.5
      %v3313 = vmul.f32 %v3241, 0.5
      %v3314 = vmul.f32 %v3243, 0.5
      %v3315 = vmul.f32 %v3245, 0.5
      %v3316 = vmul.f32 %v3247, 0.5
      %v3317 = vmul.f32 %v3251, 0.5
      %v3318 = vmul.f32 %v3253, 0.5
      %v3319 = vmul.f32 %v3255, 0.5
      %v3320 = vmul.f32 %v3257, 0.5
      %v3321 = vmul.f32 %v3261, 0.5
      %v3322 = vmul.f32 %v3263, 0.5
      %v3323 = vmul.f32 %v3265, 0.5
      %v3324 = vmul.f32 %v3267, 0.5
      %v3325 = vmul.f32 %v3271, 0.5
      %v3326 = vmul.f32 %v3273, 0.5
      %v3327 = vmul.f32 %v3275, 0.5
      %v3328 = vmul.f32 %v3277, 0.5
      %v3329 = vmul.f32 %v3281, 0.5
      %v3330 = vmul.f32 %v3283, 0.5
      %v3331 = vmul.f32 %v3285, 0.5
      %v3332 = vmul.f32 %v3287, 0.5
      %v3333 = vmul.f32 %v3291, 0.5
      %v3334 = vmul.f32 %v3293, 0.5
      %v3335 = vmul.f32 %v3295, 0.5
      %v3336 = vmul.f32 %v3297, 0.5
      %v3337 = vmul.f32 %v3301, 0.5
      %v3338 = vmul.f32 %v3303, 0.5
      %v3339 = vmul.f32 %v3305, 0.5
      %v3340 = vmul.f32 %v3307, 0.5
      %v3341 = vmul.f32 %v3231, 0.70710677
      %v3342 = vmul.f32 %v3233, 0.70710677
      %v3343 = vmul.f32 %v3235, 0.70710677
      %v3344 = vmul.f32 %v3237, 0.70710677
      %v3345 = vmul.f32 %v3241, 0.70710677
      %v3346 = vmul.f32 %v3243, 0.70710677
      %v3347 = vmul.f32 %v3245, 0.70710677
      %v3348 = vmul.f32 %v3247, 0.70710677
      %v3349 = vmul.f32 %v3251, 0.70710677
      %v3350 = vmul.f32 %v3253, 0.70710677
      %v3351 = vmul.f32 %v3255, 0.70710677
      %v3352 = vmul.f32 %v3257, 0.70710677
      %v3353 = vmul.f32 %v3261, 0.70710677
      %v3354 = vmul.f32 %v3263, 0.70710677
      %v3355 = vmul.f32 %v3265, 0.70710677
      %v3356 = vmul.f32 %v3267, 0.70710677
      %v3357 = vmul.f32 %v3271, 0.70710677
      %v3358 = vmul.f32 %v3273, 0.70710677
      %v3359 = vmul.f32 %v3275, 0.70710677
      %v3360 = vmul.f32 %v3277, 0.70710677
      %v3361 = vmul.f32 %v3281, 0.70710677
      %v3362 = vmul.f32 %v3283, 0.70710677
      %v3363 = vmul.f32 %v3285, 0.70710677
      %v3364 = vmul.f32 %v3287, 0.70710677
      %v3365 = vmul.f32 %v3291, 0.70710677
      %v3366 = vmul.f32 %v3293, 0.70710677
      %v3367 = vmul.f32 %v3295, 0.70710677
      %v3368 = vmul.f32 %v3297, 0.70710677
      %v3369 = vmul.f32 %v3301, 0.70710677
      %v3370 = vmul.f32 %v3303, 0.70710677
      %v3371 = vmul.f32 %v3305, 0.70710677
      %v3372 = vmul.f32 %v3307, 0.70710677
      %v3373 = verf.f32.pop %v3341
      %v3374 = verf.f32.pop %v3342
      %v3375 = verf.f32.pop %v3343
      %v3376 = verf.f32.pop %v3344
      %v3377 = verf.f32.pop %v3345
      %v3378 = verf.f32.pop %v3346
      %v3379 = verf.f32.pop %v3347
      %v3380 = verf.f32.pop %v3348
      %v3381 = verf.f32.pop %v3349
      %v3382 = verf.f32.pop %v3350
      %v3383 = verf.f32.pop %v3351
      %v3384 = verf.f32.pop %v3352
      %v3385 = verf.f32.pop %v3353
      %v3386 = verf.f32.pop %v3354
      %v3387 = verf.f32.pop %v3355
      %v3388 = verf.f32.pop %v3356
      %v3389 = verf.f32.pop %v3357
      %v3390 = verf.f32.pop %v3358
      %v3391 = verf.f32.pop %v3359
      %v3392 = verf.f32.pop %v3360
      %v3393 = verf.f32.pop %v3361
      %v3394 = verf.f32.pop %v3362
      %v3395 = verf.f32.pop %v3363
      %v3396 = verf.f32.pop %v3364
      %v3397 = verf.f32.pop %v3365
      %v3398 = verf.f32.pop %v3366
      %v3399 = verf.f32.pop %v3367
      %v3400 = verf.f32.pop %v3368
      %v3401 = verf.f32.pop %v3369
      %v3402 = verf.f32.pop %v3370
      %v3403 = verf.f32.pop %v3371
      %v3404 = verf.f32.pop %v3372
      %v3405 = vadd.f32 %v3373, 1.0
      %v3406 = vadd.f32 %v3374, 1.0
      %v3407 = vadd.f32 %v3375, 1.0
      %v3408 = vadd.f32 %v3376, 1.0
      %v3409 = vadd.f32 %v3377, 1.0
      %v3410 = vadd.f32 %v3378, 1.0
      %v3411 = vadd.f32 %v3379, 1.0
      %v3412 = vadd.f32 %v3380, 1.0
      %v3413 = vadd.f32 %v3381, 1.0
      %v3414 = vadd.f32 %v3382, 1.0
      %v3415 = vadd.f32 %v3383, 1.0
      %v3416 = vadd.f32 %v3384, 1.0
      %v3417 = vadd.f32 %v3385, 1.0
      %v3418 = vadd.f32 %v3386, 1.0
      %v3419 = vadd.f32 %v3387, 1.0
      %v3420 = vadd.f32 %v3388, 1.0
      %v3421 = vadd.f32 %v3389, 1.0
      %v3422 = vadd.f32 %v3390, 1.0
      %v3423 = vadd.f32 %v3391, 1.0
      %v3424 = vadd.f32 %v3392, 1.0
      %v3425 = vadd.f32 %v3393, 1.0
      %v3426 = vadd.f32 %v3394, 1.0
      %v3427 = vadd.f32 %v3395, 1.0
      %v3428 = vadd.f32 %v3396, 1.0
      %v3429 = vadd.f32 %v3397, 1.0
      %v3430 = vadd.f32 %v3398, 1.0
      %v3431 = vadd.f32 %v3399, 1.0
      %v3432 = vadd.f32 %v3400, 1.0
      %v3433 = vadd.f32 %v3401, 1.0
      %v3434 = vadd.f32 %v3402, 1.0
      %v3435 = vadd.f32 %v3403, 1.0
      %v3436 = vadd.f32 %v3404, 1.0
      %v3437 = vmul.f32 %v3309, %v3405
      %v3438 = vmul.f32 %v3310, %v3406
      %v3439 = vmul.f32 %v3311, %v3407
      %v3440 = vmul.f32 %v3312, %v3408
      %v3441 = vmul.f32 %v3313, %v3409
      %v3442 = vmul.f32 %v3314, %v3410
      %v3443 = vmul.f32 %v3315, %v3411
      %v3444 = vmul.f32 %v3316, %v3412
      %v3445 = vmul.f32 %v3317, %v3413
      %v3446 = vmul.f32 %v3318, %v3414
      %v3447 = vmul.f32 %v3319, %v3415
      %v3448 = vmul.f32 %v3320, %v3416
      %v3449 = vmul.f32 %v3321, %v3417
      %v3450 = vmul.f32 %v3322, %v3418
      %v3451 = vmul.f32 %v3323, %v3419
      %v3452 = vmul.f32 %v3324, %v3420
      %v3453 = vmul.f32 %v3325, %v3421
      %v3454 = vmul.f32 %v3326, %v3422
      %v3455 = vmul.f32 %v3327, %v3423
      %v3456 = vmul.f32 %v3328, %v3424
      %v3457 = vmul.f32 %v3329, %v3425
      %v3458 = vmul.f32 %v3330, %v3426
      %v3459 = vmul.f32 %v3331, %v3427
      %v3460 = vmul.f32 %v3332, %v3428
      %v3461 = vmul.f32 %v3333, %v3429
      %v3462 = vmul.f32 %v3334, %v3430
      %v3463 = vmul.f32 %v3335, %v3431
      %v3464 = vmul.f32 %v3336, %v3432
      %v3465 = vmul.f32 %v3337, %v3433
      %v3466 = vmul.f32 %v3338, %v3434
      %v3467 = vmul.f32 %v3339, %v3435
      %v3468 = vmul.f32 %v3340, %v3436
      %v3469 = vpack.c.bf16 %v3439, %v3437
      %v3470 = vpack.c.bf16 %v3440, %v3438
      %v3471 = vpack.c.bf16 %v3443, %v3441
      %v3472 = vpack.c.bf16 %v3444, %v3442
      %v3473 = vpack.c.bf16 %v3447, %v3445
      %v3474 = vpack.c.bf16 %v3448, %v3446
      %v3475 = vpack.c.bf16 %v3451, %v3449
      %v3476 = vpack.c.bf16 %v3452, %v3450
      %v3477 = vpack.c.bf16 %v3455, %v3453
      %v3478 = vpack.c.bf16 %v3456, %v3454
      %v3479 = vpack.c.bf16 %v3459, %v3457
      %v3480 = vpack.c.bf16 %v3460, %v3458
      %v3481 = vpack.c.bf16 %v3463, %v3461
      %v3482 = vpack.c.bf16 %v3464, %v3462
      %v3483 = vpack.c.bf16 %v3467, %v3465
      %v3484 = vpack.c.bf16 %v3468, %v3466
      %v3501 = vunpack.c.l.b16 %v3469
      %v3502 = vunpack.c.l.b16 %v3470
      %v3503 = vunpack.c.h.b16 %v3469
      %v3504 = vunpack.c.h.b16 %v3470
      %v3505 = vunpack.c.l.b16 %v3471
      %v3506 = vunpack.c.l.b16 %v3472
      %v3507 = vunpack.c.h.b16 %v3471
      %v3508 = vunpack.c.h.b16 %v3472
      %v3509 = vunpack.c.l.b16 %v3473
      %v3510 = vunpack.c.l.b16 %v3474
      %v3511 = vunpack.c.h.b16 %v3473
      %v3512 = vunpack.c.h.b16 %v3474
      %v3513 = vunpack.c.l.b16 %v3475
      %v3514 = vunpack.c.l.b16 %v3476
      %v3515 = vunpack.c.h.b16 %v3475
      %v3516 = vunpack.c.h.b16 %v3476
      %v3517 = vunpack.c.l.b16 %v3477
      %v3518 = vunpack.c.l.b16 %v3478
      %v3519 = vunpack.c.h.b16 %v3477
      %v3520 = vunpack.c.h.b16 %v3478
      %v3521 = vunpack.c.l.b16 %v3479
      %v3522 = vunpack.c.l.b16 %v3480
      %v3523 = vunpack.c.h.b16 %v3479
      %v3524 = vunpack.c.h.b16 %v3480
      %v3525 = vunpack.c.l.b16 %v3481
      %v3526 = vunpack.c.l.b16 %v3482
      %v3527 = vunpack.c.h.b16 %v3481
      %v3528 = vunpack.c.h.b16 %v3482
      %v3529 = vunpack.c.l.b16 %v3483
      %v3530 = vunpack.c.l.b16 %v3484
      %v3531 = vunpack.c.h.b16 %v3483
      %v3532 = vunpack.c.h.b16 %v3484
      %v3533 = vpack.c.b16 %v3502, %v3501
      %v3534 = vpack.c.b16 %v3504, %v3503
      %v3535 = vpack.c.b16 %v3506, %v3505
      %v3536 = vpack.c.b16 %v3508, %v3507
      %v3537 = vpack.c.b16 %v3510, %v3509
      %v3538 = vpack.c.b16 %v3512, %v3511
      %v3539 = vpack.c.b16 %v3514, %v3513
      %v3540 = vpack.c.b16 %v3516, %v3515
      %v3541 = vpack.c.b16 %v3518, %v3517
      %v3542 = vpack.c.b16 %v3520, %v3519
      %v3543 = vpack.c.b16 %v3522, %v3521
      %v3544 = vpack.c.b16 %v3524, %v3523
      %v3545 = vpack.c.b16 %v3526, %v3525
      %v3546 = vpack.c.b16 %v3528, %v3527
      %v3547 = vpack.c.b16 %v3530, %v3529
      %v3548 = vpack.c.b16 %v3532, %v3531
      %3565 = vst [vmem:[#allocation3 + $0x80] sm:$0xff] %v3533
      %3566 = vst [vmem:[#allocation3 + $0x88] sm:$0xff] %v3534
      %3567 = vst [vmem:[#allocation3 + $0x90] sm:$0xff] %v3535
      %3568 = vst [vmem:[#allocation3 + $0x98] sm:$0xff] %v3536
      %3569 = vst [vmem:[#allocation3 + $0xa0] sm:$0xff] %v3537
      %3570 = vst [vmem:[#allocation3 + $0xa8] sm:$0xff] %v3538
      %3571 = vst [vmem:[#allocation3 + $0xb0] sm:$0xff] %v3539
      %3572 = vst [vmem:[#allocation3 + $0xb8] sm:$0xff] %v3540
      %3573 = vst [vmem:[#allocation3 + $0xc0] sm:$0xff] %v3541
      %3574 = vst [vmem:[#allocation3 + $0xc8] sm:$0xff] %v3542
      %3575 = vst [vmem:[#allocation3 + $0xd0] sm:$0xff] %v3543
      %3576 = vst [vmem:[#allocation3 + $0xd8] sm:$0xff] %v3544
      %3577 = vst [vmem:[#allocation3 + $0xe0] sm:$0xff] %v3545
      %3578 = vst [vmem:[#allocation3 + $0xe8] sm:$0xff] %v3546
      %3579 = vst [vmem:[#allocation3 + $0xf0] sm:$0xff] %v3547
      %3580 = vst [vmem:[#allocation3 + $0xf8] sm:$0xff] %v3548
      %s3581 = scalar_lea.vmem %s3, 1024
      %v3582 = vld [vmem:[%s3581] sm:$0xff]
      %v3583 = vld [vmem:[%s3581 + $0x8] sm:$0xff]
      %v3584 = vld [vmem:[%s3581 + $0x10] sm:$0xff]
      %v3585 = vld [vmem:[%s3581 + $0x18] sm:$0xff]
      %v3586 = vld [vmem:[%s3581 + $0x20] sm:$0xff]
      %v3587 = vld [vmem:[%s3581 + $0x28] sm:$0xff]
      %v3588 = vld [vmem:[%s3581 + $0x30] sm:$0xff]
      %v3589 = vld [vmem:[%s3581 + $0x38] sm:$0xff]
      %v3590 = vld [vmem:[%s3581 + $0x40] sm:$0xff]
      %v3591 = vld [vmem:[%s3581 + $0x48] sm:$0xff]
      %v3592 = vld [vmem:[%s3581 + $0x50] sm:$0xff]
      %v3593 = vld [vmem:[%s3581 + $0x58] sm:$0xff]
      %v3594 = vld [vmem:[%s3581 + $0x60] sm:$0xff]
      %v3595 = vld [vmem:[%s3581 + $0x68] sm:$0xff]
      %v3596 = vld [vmem:[%s3581 + $0x70] sm:$0xff]
      %v3597 = vld [vmem:[%s3581 + $0x78] sm:$0xff]
      %v3598 = vld [vmem:[%s3581 + $0x80] sm:$0xff]
      %v3599 = vld [vmem:[%s3581 + $0x88] sm:$0xff]
      %v3600 = vld [vmem:[%s3581 + $0x90] sm:$0xff]
      %v3601 = vld [vmem:[%s3581 + $0x98] sm:$0xff]
      %v3602 = vld [vmem:[%s3581 + $0xa0] sm:$0xff]
      %v3603 = vld [vmem:[%s3581 + $0xa8] sm:$0xff]
      %v3604 = vld [vmem:[%s3581 + $0xb0] sm:$0xff]
      %v3605 = vld [vmem:[%s3581 + $0xb8] sm:$0xff]
      %v3606 = vld [vmem:[%s3581 + $0xc0] sm:$0xff]
      %v3607 = vld [vmem:[%s3581 + $0xc8] sm:$0xff]
      %v3608 = vld [vmem:[%s3581 + $0xd0] sm:$0xff]
      %v3609 = vld [vmem:[%s3581 + $0xd8] sm:$0xff]
      %v3610 = vld [vmem:[%s3581 + $0xe0] sm:$0xff]
      %v3611 = vld [vmem:[%s3581 + $0xe8] sm:$0xff]
      %v3612 = vld [vmem:[%s3581 + $0xf0] sm:$0xff]
      %v3613 = vld [vmem:[%s3581 + $0xf8] sm:$0xff]
      %v3614 = vld [vmem:[%s3581 + $0x100] sm:$0xff]
      %v3615 = vld [vmem:[%s3581 + $0x108] sm:$0xff]
      %v3616 = vld [vmem:[%s3581 + $0x110] sm:$0xff]
      %v3617 = vld [vmem:[%s3581 + $0x118] sm:$0xff]
      %v3618 = vld [vmem:[%s3581 + $0x120] sm:$0xff]
      %v3619 = vld [vmem:[%s3581 + $0x128] sm:$0xff]
      %v3620 = vld [vmem:[%s3581 + $0x130] sm:$0xff]
      %v3621 = vld [vmem:[%s3581 + $0x138] sm:$0xff]
      %v3622 = vld [vmem:[%s3581 + $0x140] sm:$0xff]
      %v3623 = vld [vmem:[%s3581 + $0x148] sm:$0xff]
      %v3624 = vld [vmem:[%s3581 + $0x150] sm:$0xff]
      %v3625 = vld [vmem:[%s3581 + $0x158] sm:$0xff]
      %v3626 = vld [vmem:[%s3581 + $0x160] sm:$0xff]
      %v3627 = vld [vmem:[%s3581 + $0x168] sm:$0xff]
      %v3628 = vld [vmem:[%s3581 + $0x170] sm:$0xff]
      %v3629 = vld [vmem:[%s3581 + $0x178] sm:$0xff]
      %v3630 = vld [vmem:[%s3581 + $0x180] sm:$0xff]
      %v3631 = vld [vmem:[%s3581 + $0x188] sm:$0xff]
      %v3632 = vld [vmem:[%s3581 + $0x190] sm:$0xff]
      %v3633 = vld [vmem:[%s3581 + $0x198] sm:$0xff]
      %v3634 = vld [vmem:[%s3581 + $0x1a0] sm:$0xff]
      %v3635 = vld [vmem:[%s3581 + $0x1a8] sm:$0xff]
      %v3636 = vld [vmem:[%s3581 + $0x1b0] sm:$0xff]
      %v3637 = vld [vmem:[%s3581 + $0x1b8] sm:$0xff]
      %v3638 = vld [vmem:[%s3581 + $0x1c0] sm:$0xff]
      %v3639 = vld [vmem:[%s3581 + $0x1c8] sm:$0xff]
      %v3640 = vld [vmem:[%s3581 + $0x1d0] sm:$0xff]
      %v3641 = vld [vmem:[%s3581 + $0x1d8] sm:$0xff]
      %v3642 = vld [vmem:[%s3581 + $0x1e0] sm:$0xff]
      %v3643 = vld [vmem:[%s3581 + $0x1e8] sm:$0xff]
      %v3644 = vld [vmem:[%s3581 + $0x1f0] sm:$0xff]
      %v3645 = vld [vmem:[%s3581 + $0x1f8] sm:$0xff]
      %v3710 = vunpack.c.l.b16 %v3582
      %v3711 = vunpack.c.h.b16 %v3582
      %v3712 = vunpack.c.l.b16 %v3583
      %v3713 = vunpack.c.h.b16 %v3583
      %v3714 = vunpack.c.l.b16 %v3584
      %v3715 = vunpack.c.h.b16 %v3584
      %v3716 = vunpack.c.l.b16 %v3585
      %v3717 = vunpack.c.h.b16 %v3585
      %v3718 = vunpack.c.l.b16 %v3586
      %v3719 = vunpack.c.h.b16 %v3586
      %v3720 = vunpack.c.l.b16 %v3587
      %v3721 = vunpack.c.h.b16 %v3587
      %v3722 = vunpack.c.l.b16 %v3588
      %v3723 = vunpack.c.h.b16 %v3588
      %v3724 = vunpack.c.l.b16 %v3589
      %v3725 = vunpack.c.h.b16 %v3589
      %v3726 = vunpack.c.l.b16 %v3590
      %v3727 = vunpack.c.h.b16 %v3590
      %v3728 = vunpack.c.l.b16 %v3591
      %v3729 = vunpack.c.h.b16 %v3591
      %v3730 = vunpack.c.l.b16 %v3592
      %v3731 = vunpack.c.h.b16 %v3592
      %v3732 = vunpack.c.l.b16 %v3593
      %v3733 = vunpack.c.h.b16 %v3593
      %v3734 = vunpack.c.l.b16 %v3594
      %v3735 = vunpack.c.h.b16 %v3594
      %v3736 = vunpack.c.l.b16 %v3595
      %v3737 = vunpack.c.h.b16 %v3595
      %v3738 = vunpack.c.l.b16 %v3596
      %v3739 = vunpack.c.h.b16 %v3596
      %v3740 = vunpack.c.l.b16 %v3597
      %v3741 = vunpack.c.h.b16 %v3597
      %v3742 = vunpack.c.l.b16 %v3598
      %v3743 = vunpack.c.h.b16 %v3598
      %v3744 = vunpack.c.l.b16 %v3599
      %v3745 = vunpack.c.h.b16 %v3599
      %v3746 = vunpack.c.l.b16 %v3600
      %v3747 = vunpack.c.h.b16 %v3600
      %v3748 = vunpack.c.l.b16 %v3601
      %v3749 = vunpack.c.h.b16 %v3601
      %v3750 = vunpack.c.l.b16 %v3602
      %v3751 = vunpack.c.h.b16 %v3602
      %v3752 = vunpack.c.l.b16 %v3603
      %v3753 = vunpack.c.h.b16 %v3603
      %v3754 = vunpack.c.l.b16 %v3604
      %v3755 = vunpack.c.h.b16 %v3604
      %v3756 = vunpack.c.l.b16 %v3605
      %v3757 = vunpack.c.h.b16 %v3605
      %v3758 = vunpack.c.l.b16 %v3606
      %v3759 = vunpack.c.h.b16 %v3606
      %v3760 = vunpack.c.l.b16 %v3607
      %v3761 = vunpack.c.h.b16 %v3607
      %v3762 = vunpack.c.l.b16 %v3608
      %v3763 = vunpack.c.h.b16 %v3608
      %v3764 = vunpack.c.l.b16 %v3609
      %v3765 = vunpack.c.h.b16 %v3609
      %v3766 = vunpack.c.l.b16 %v3610
      %v3767 = vunpack.c.h.b16 %v3610
      %v3768 = vunpack.c.l.b16 %v3611
      %v3769 = vunpack.c.h.b16 %v3611
      %v3770 = vunpack.c.l.b16 %v3612
      %v3771 = vunpack.c.h.b16 %v3612
      %v3772 = vunpack.c.l.b16 %v3613
      %v3773 = vunpack.c.h.b16 %v3613
      %v3774 = vunpack.c.l.b16 %v3614
      %v3775 = vunpack.c.h.b16 %v3614
      %v3776 = vunpack.c.l.b16 %v3615
      %v3777 = vunpack.c.h.b16 %v3615
      %v3778 = vunpack.c.l.b16 %v3616
      %v3779 = vunpack.c.h.b16 %v3616
      %v3780 = vunpack.c.l.b16 %v3617
      %v3781 = vunpack.c.h.b16 %v3617
      %v3782 = vunpack.c.l.b16 %v3618
      %v3783 = vunpack.c.h.b16 %v3618
      %v3784 = vunpack.c.l.b16 %v3619
      %v3785 = vunpack.c.h.b16 %v3619
      %v3786 = vunpack.c.l.b16 %v3620
      %v3787 = vunpack.c.h.b16 %v3620
      %v3788 = vunpack.c.l.b16 %v3621
      %v3789 = vunpack.c.h.b16 %v3621
      %v3790 = vunpack.c.l.b16 %v3622
      %v3791 = vunpack.c.h.b16 %v3622
      %v3792 = vunpack.c.l.b16 %v3623
      %v3793 = vunpack.c.h.b16 %v3623
      %v3794 = vunpack.c.l.b16 %v3624
      %v3795 = vunpack.c.h.b16 %v3624
      %v3796 = vunpack.c.l.b16 %v3625
      %v3797 = vunpack.c.h.b16 %v3625
      %v3798 = vunpack.c.l.b16 %v3626
      %v3799 = vunpack.c.h.b16 %v3626
      %v3800 = vunpack.c.l.b16 %v3627
      %v3801 = vunpack.c.h.b16 %v3627
      %v3802 = vunpack.c.l.b16 %v3628
      %v3803 = vunpack.c.h.b16 %v3628
      %v3804 = vunpack.c.l.b16 %v3629
      %v3805 = vunpack.c.h.b16 %v3629
      %v3806 = vunpack.c.l.b16 %v3630
      %v3807 = vunpack.c.h.b16 %v3630
      %v3808 = vunpack.c.l.b16 %v3631
      %v3809 = vunpack.c.h.b16 %v3631
      %v3810 = vunpack.c.l.b16 %v3632
      %v3811 = vunpack.c.h.b16 %v3632
      %v3812 = vunpack.c.l.b16 %v3633
      %v3813 = vunpack.c.h.b16 %v3633
      %v3814 = vunpack.c.l.b16 %v3634
      %v3815 = vunpack.c.h.b16 %v3634
      %v3816 = vunpack.c.l.b16 %v3635
      %v3817 = vunpack.c.h.b16 %v3635
      %v3818 = vunpack.c.l.b16 %v3636
      %v3819 = vunpack.c.h.b16 %v3636
      %v3820 = vunpack.c.l.b16 %v3637
      %v3821 = vunpack.c.h.b16 %v3637
      %v3822 = vunpack.c.l.b16 %v3638
      %v3823 = vunpack.c.h.b16 %v3638
      %v3824 = vunpack.c.l.b16 %v3639
      %v3825 = vunpack.c.h.b16 %v3639
      %v3826 = vunpack.c.l.b16 %v3640
      %v3827 = vunpack.c.h.b16 %v3640
      %v3828 = vunpack.c.l.b16 %v3641
      %v3829 = vunpack.c.h.b16 %v3641
      %v3830 = vunpack.c.l.b16 %v3642
      %v3831 = vunpack.c.h.b16 %v3642
      %v3832 = vunpack.c.l.b16 %v3643
      %v3833 = vunpack.c.h.b16 %v3643
      %v3834 = vunpack.c.l.b16 %v3644
      %v3835 = vunpack.c.h.b16 %v3644
      %v3836 = vunpack.c.l.b16 %v3645
      %v3837 = vunpack.c.h.b16 %v3645
      %v3838 = vpack.c.b16 %v3712, %v3710
      %v3839 = vpack.c.b16 %v3713, %v3711
      %v3840 = vpack.c.b16 %v3716, %v3714
      %v3841 = vpack.c.b16 %v3717, %v3715
      %v3842 = vpack.c.b16 %v3720, %v3718
      %v3843 = vpack.c.b16 %v3721, %v3719
      %v3844 = vpack.c.b16 %v3724, %v3722
      %v3845 = vpack.c.b16 %v3725, %v3723
      %v3846 = vpack.c.b16 %v3728, %v3726
      %v3847 = vpack.c.b16 %v3729, %v3727
      %v3848 = vpack.c.b16 %v3732, %v3730
      %v3849 = vpack.c.b16 %v3733, %v3731
      %v3850 = vpack.c.b16 %v3736, %v3734
      %v3851 = vpack.c.b16 %v3737, %v3735
      %v3852 = vpack.c.b16 %v3740, %v3738
      %v3853 = vpack.c.b16 %v3741, %v3739
      %v3854 = vpack.c.b16 %v3744, %v3742
      %v3855 = vpack.c.b16 %v3745, %v3743
      %v3856 = vpack.c.b16 %v3748, %v3746
      %v3857 = vpack.c.b16 %v3749, %v3747
      %v3858 = vpack.c.b16 %v3752, %v3750
      %v3859 = vpack.c.b16 %v3753, %v3751
      %v3860 = vpack.c.b16 %v3756, %v3754
      %v3861 = vpack.c.b16 %v3757, %v3755
      %v3862 = vpack.c.b16 %v3760, %v3758
      %v3863 = vpack.c.b16 %v3761, %v3759
      %v3864 = vpack.c.b16 %v3764, %v3762
      %v3865 = vpack.c.b16 %v3765, %v3763
      %v3866 = vpack.c.b16 %v3768, %v3766
      %v3867 = vpack.c.b16 %v3769, %v3767
      %v3868 = vpack.c.b16 %v3772, %v3770
      %v3869 = vpack.c.b16 %v3773, %v3771
      %v3870 = vpack.c.b16 %v3776, %v3774
      %v3871 = vpack.c.b16 %v3777, %v3775
      %v3872 = vpack.c.b16 %v3780, %v3778
      %v3873 = vpack.c.b16 %v3781, %v3779
      %v3874 = vpack.c.b16 %v3784, %v3782
      %v3875 = vpack.c.b16 %v3785, %v3783
      %v3876 = vpack.c.b16 %v3788, %v3786
      %v3877 = vpack.c.b16 %v3789, %v3787
      %v3878 = vpack.c.b16 %v3792, %v3790
      %v3879 = vpack.c.b16 %v3793, %v3791
      %v3880 = vpack.c.b16 %v3796, %v3794
      %v3881 = vpack.c.b16 %v3797, %v3795
      %v3882 = vpack.c.b16 %v3800, %v3798
      %v3883 = vpack.c.b16 %v3801, %v3799
      %v3884 = vpack.c.b16 %v3804, %v3802
      %v3885 = vpack.c.b16 %v3805, %v3803
      %v3886 = vpack.c.b16 %v3808, %v3806
      %v3887 = vpack.c.b16 %v3809, %v3807
      %v3888 = vpack.c.b16 %v3812, %v3810
      %v3889 = vpack.c.b16 %v3813, %v3811
      %v3890 = vpack.c.b16 %v3816, %v3814
      %v3891 = vpack.c.b16 %v3817, %v3815
      %v3892 = vpack.c.b16 %v3820, %v3818
      %v3893 = vpack.c.b16 %v3821, %v3819
      %v3894 = vpack.c.b16 %v3824, %v3822
      %v3895 = vpack.c.b16 %v3825, %v3823
      %v3896 = vpack.c.b16 %v3828, %v3826
      %v3897 = vpack.c.b16 %v3829, %v3827
      %v3898 = vpack.c.b16 %v3832, %v3830
      %v3899 = vpack.c.b16 %v3833, %v3831
      %v3900 = vpack.c.b16 %v3836, %v3834
      %v3901 = vpack.c.b16 %v3837, %v3835
      %3966 = vmatprep.subr.bf16.mxu0 %v3853
      %3967 = vmatpush1.bf16.msra.mxu0 %v3852
      %3968 = vmatprep.subr.bf16.mxu0 %v3851
      %3969 = vmatpush1.bf16.msra.mxu0 %v3850
      %3970 = vmatprep.subr.bf16.mxu0 %v3849
      %3971 = vmatpush1.bf16.msra.mxu0 %v3848
      %3972 = vmatprep.subr.bf16.mxu0 %v3847
      %3973 = vmatpush1.bf16.msra.mxu0 %v3846
      %3974 = vmatprep.subr.bf16.mxu0 %v3845
      %3975 = vmatpush1.bf16.msra.mxu0 %v3844
      %3976 = vmatprep.subr.bf16.mxu0 %v3843
      %3977 = vmatpush1.bf16.msra.mxu0 %v3842
      %3978 = vmatprep.subr.bf16.mxu0 %v3841
      %3979 = vmatpush1.bf16.msra.mxu0 %v3840
      %3980 = vmatprep.subr.bf16.mxu0 %v3839
      %3981 = vmatpush1.bf16.msra.mxu0 %v3838
      %3982 = vmatprep.subr.bf16.mxu0 %v3869
      %3983 = vmatpush2.bf16.msra.mxu0 %v3868
      %3984 = vmatprep.subr.bf16.mxu0 %v3867
      %3985 = vmatpush2.bf16.msra.mxu0 %v3866
      %3986 = vmatprep.subr.bf16.mxu0 %v3865
      %3987 = vmatpush2.bf16.msra.mxu0 %v3864
      %3988 = vmatprep.subr.bf16.mxu0 %v3863
      %3989 = vmatpush2.bf16.msra.mxu0 %v3862
      %3990 = vmatprep.subr.bf16.mxu0 %v3861
      %3991 = vmatpush2.bf16.msra.mxu0 %v3860
      %3992 = vmatprep.subr.bf16.mxu0 %v3859
      %3993 = vmatpush2.bf16.msra.mxu0 %v3858
      %3994 = vmatprep.subr.bf16.mxu0 %v3857
      %3995 = vmatpush2.bf16.msra.mxu0 %v3856
      %3996 = vmatprep.subr.bf16.mxu0 %v3855
      %3997 = vmatpush2.bf16.msra.mxu0 %v3854
      %3998 = vmatprep.mubr.bf16.mxu0 %v1817
      %3999 = vmatmul.mubr.bf16.gmra.mxu0 %v1816
      %v4000 = vpop.f32.mrf.mxu0
      %v4001 = vadd.f32 %v1713, %v4000
      %v4002 = vpop.f32.mrf.mxu0
      %v4003 = vadd.f32 %v1717, %v4002
      %v4004 = vpop.f32.mrf.mxu0
      %v4005 = vadd.f32 %v1713, %v4004
      %v4006 = vpop.f32.mrf.mxu0
      %v4007 = vadd.f32 %v1717, %v4006
      %4008 = vmatprep.mubr.bf16.mxu0 %v1821
      %4009 = vmatmul.mubr.bf16.gmra.mxu0 %v1820
      %v4010 = vpop.f32.mrf.mxu0
      %v4011 = vadd.f32 %v1713, %v4010
      %v4012 = vpop.f32.mrf.mxu0
      %v4013 = vadd.f32 %v1717, %v4012
      %v4014 = vpop.f32.mrf.mxu0
      %v4015 = vadd.f32 %v1713, %v4014
      %v4016 = vpop.f32.mrf.mxu0
      %v4017 = vadd.f32 %v1717, %v4016
      %4018 = vmatprep.mubr.bf16.mxu0 %v1825
      %4019 = vmatmul.mubr.bf16.gmra.mxu0 %v1824
      %v4020 = vpop.f32.mrf.mxu0
      %v4021 = vadd.f32 %v1713, %v4020
      %v4022 = vpop.f32.mrf.mxu0
      %v4023 = vadd.f32 %v1717, %v4022
      %v4024 = vpop.f32.mrf.mxu0
      %v4025 = vadd.f32 %v1713, %v4024
      %v4026 = vpop.f32.mrf.mxu0
      %v4027 = vadd.f32 %v1717, %v4026
      %4028 = vmatprep.mubr.bf16.mxu0 %v1829
      %4029 = vmatmul.mubr.bf16.gmra.mxu0 %v1828
      %v4030 = vpop.f32.mrf.mxu0
      %v4031 = vadd.f32 %v1713, %v4030
      %v4032 = vpop.f32.mrf.mxu0
      %v4033 = vadd.f32 %v1717, %v4032
      %v4034 = vpop.f32.mrf.mxu0
      %v4035 = vadd.f32 %v1713, %v4034
      %v4036 = vpop.f32.mrf.mxu0
      %v4037 = vadd.f32 %v1717, %v4036
      %4038 = vmatprep.mubr.bf16.mxu0 %v1833
      %4039 = vmatmul.mubr.bf16.gmra.mxu0 %v1832
      %v4040 = vpop.f32.mrf.mxu0
      %v4041 = vadd.f32 %v1713, %v4040
      %v4042 = vpop.f32.mrf.mxu0
      %v4043 = vadd.f32 %v1717, %v4042
      %v4044 = vpop.f32.mrf.mxu0
      %v4045 = vadd.f32 %v1713, %v4044
      %v4046 = vpop.f32.mrf.mxu0
      %v4047 = vadd.f32 %v1717, %v4046
      %4048 = vmatprep.mubr.bf16.mxu0 %v1837
      %4049 = vmatmul.mubr.bf16.gmra.mxu0 %v1836
      %v4050 = vpop.f32.mrf.mxu0
      %v4051 = vadd.f32 %v1713, %v4050
      %v4052 = vpop.f32.mrf.mxu0
      %v4053 = vadd.f32 %v1717, %v4052
      %v4054 = vpop.f32.mrf.mxu0
      %v4055 = vadd.f32 %v1713, %v4054
      %v4056 = vpop.f32.mrf.mxu0
      %v4057 = vadd.f32 %v1717, %v4056
      %4058 = vmatprep.mubr.bf16.mxu0 %v1841
      %4059 = vmatmul.mubr.bf16.gmra.mxu0 %v1840
      %v4060 = vpop.f32.mrf.mxu0
      %v4061 = vadd.f32 %v1713, %v4060
      %v4062 = vpop.f32.mrf.mxu0
      %v4063 = vadd.f32 %v1717, %v4062
      %v4064 = vpop.f32.mrf.mxu0
      %v4065 = vadd.f32 %v1713, %v4064
      %v4066 = vpop.f32.mrf.mxu0
      %v4067 = vadd.f32 %v1717, %v4066
      %4068 = vmatprep.mubr.bf16.mxu0 %v1845
      %4069 = vmatmul.mubr.bf16.gmra.mxu0 %v1844
      %v4070 = vpop.f32.mrf.mxu0
      %v4071 = vadd.f32 %v1713, %v4070
      %v4072 = vpop.f32.mrf.mxu0
      %v4073 = vadd.f32 %v1717, %v4072
      %v4074 = vpop.f32.mrf.mxu0
      %v4075 = vadd.f32 %v1713, %v4074
      %v4076 = vpop.f32.mrf.mxu0
      %v4077 = vadd.f32 %v1717, %v4076
      %4078 = vdwg.mxu0
      %4079 = vmatprep.subr.bf16.mxu0 %v3885
      %4080 = vmatpush1.bf16.msra.mxu0 %v3884
      %4081 = vmatprep.subr.bf16.mxu0 %v3883
      %4082 = vmatpush1.bf16.msra.mxu0 %v3882
      %4083 = vmatprep.subr.bf16.mxu0 %v3881
      %4084 = vmatpush1.bf16.msra.mxu0 %v3880
      %4085 = vmatprep.subr.bf16.mxu0 %v3879
      %4086 = vmatpush1.bf16.msra.mxu0 %v3878
      %4087 = vmatprep.subr.bf16.mxu0 %v3877
      %4088 = vmatpush1.bf16.msra.mxu0 %v3876
      %4089 = vmatprep.subr.bf16.mxu0 %v3875
      %4090 = vmatpush1.bf16.msra.mxu0 %v3874
      %4091 = vmatprep.subr.bf16.mxu0 %v3873
      %4092 = vmatpush1.bf16.msra.mxu0 %v3872
      %4093 = vmatprep.subr.bf16.mxu0 %v3871
      %4094 = vmatpush1.bf16.msra.mxu0 %v3870
      %4095 = vmatprep.subr.bf16.mxu0 %v3901
      %4096 = vmatpush2.bf16.msra.mxu0 %v3900
      %4097 = vmatprep.subr.bf16.mxu0 %v3899
      %4098 = vmatpush2.bf16.msra.mxu0 %v3898
      %4099 = vmatprep.subr.bf16.mxu0 %v3897
      %4100 = vmatpush2.bf16.msra.mxu0 %v3896
      %4101 = vmatprep.subr.bf16.mxu0 %v3895
      %4102 = vmatpush2.bf16.msra.mxu0 %v3894
      %4103 = vmatprep.subr.bf16.mxu0 %v3893
      %4104 = vmatpush2.bf16.msra.mxu0 %v3892
      %4105 = vmatprep.subr.bf16.mxu0 %v3891
      %4106 = vmatpush2.bf16.msra.mxu0 %v3890
      %4107 = vmatprep.subr.bf16.mxu0 %v3889
      %4108 = vmatpush2.bf16.msra.mxu0 %v3888
      %4109 = vmatprep.subr.bf16.mxu0 %v3887
      %4110 = vmatpush2.bf16.msra.mxu0 %v3886
      %4111 = vmatprep.mubr.bf16.mxu0 %v1819
      %4112 = vmatmul.mubr.bf16.gmra.mxu0 %v1818
      %v4113 = vpop.f32.mrf.mxu0
      %v4114 = vadd.f32 %v4001, %v4113
      %v4115 = vpop.f32.mrf.mxu0
      %v4116 = vadd.f32 %v4003, %v4115
      %v4117 = vpop.f32.mrf.mxu0
      %v4118 = vadd.f32 %v4005, %v4117
      %v4119 = vpop.f32.mrf.mxu0
      %v4120 = vadd.f32 %v4007, %v4119
      %4121 = vmatprep.mubr.bf16.mxu0 %v1823
      %4122 = vmatmul.mubr.bf16.gmra.mxu0 %v1822
      %v4123 = vpop.f32.mrf.mxu0
      %v4124 = vadd.f32 %v4011, %v4123
      %v4125 = vpop.f32.mrf.mxu0
      %v4126 = vadd.f32 %v4013, %v4125
      %v4127 = vpop.f32.mrf.mxu0
      %v4128 = vadd.f32 %v4015, %v4127
      %v4129 = vpop.f32.mrf.mxu0
      %v4130 = vadd.f32 %v4017, %v4129
      %4131 = vmatprep.mubr.bf16.mxu0 %v1827
      %4132 = vmatmul.mubr.bf16.gmra.mxu0 %v1826
      %v4133 = vpop.f32.mrf.mxu0
      %v4134 = vadd.f32 %v4021, %v4133
      %v4135 = vpop.f32.mrf.mxu0
      %v4136 = vadd.f32 %v4023, %v4135
      %v4137 = vpop.f32.mrf.mxu0
      %v4138 = vadd.f32 %v4025, %v4137
      %v4139 = vpop.f32.mrf.mxu0
      %v4140 = vadd.f32 %v4027, %v4139
      %4141 = vmatprep.mubr.bf16.mxu0 %v1831
      %4142 = vmatmul.mubr.bf16.gmra.mxu0 %v1830
      %v4143 = vpop.f32.mrf.mxu0
      %v4144 = vadd.f32 %v4031, %v4143
      %v4145 = vpop.f32.mrf.mxu0
      %v4146 = vadd.f32 %v4033, %v4145
      %v4147 = vpop.f32.mrf.mxu0
      %v4148 = vadd.f32 %v4035, %v4147
      %v4149 = vpop.f32.mrf.mxu0
      %v4150 = vadd.f32 %v4037, %v4149
      %4151 = vmatprep.mubr.bf16.mxu0 %v1835
      %4152 = vmatmul.mubr.bf16.gmra.mxu0 %v1834
      %v4153 = vpop.f32.mrf.mxu0
      %v4154 = vadd.f32 %v4041, %v4153
      %v4155 = vpop.f32.mrf.mxu0
      %v4156 = vadd.f32 %v4043, %v4155
      %v4157 = vpop.f32.mrf.mxu0
      %v4158 = vadd.f32 %v4045, %v4157
      %v4159 = vpop.f32.mrf.mxu0
      %v4160 = vadd.f32 %v4047, %v4159
      %4161 = vmatprep.mubr.bf16.mxu0 %v1839
      %4162 = vmatmul.mubr.bf16.gmra.mxu0 %v1838
      %v4163 = vpop.f32.mrf.mxu0
      %v4164 = vadd.f32 %v4051, %v4163
      %v4165 = vpop.f32.mrf.mxu0
      %v4166 = vadd.f32 %v4053, %v4165
      %v4167 = vpop.f32.mrf.mxu0
      %v4168 = vadd.f32 %v4055, %v4167
      %v4169 = vpop.f32.mrf.mxu0
      %v4170 = vadd.f32 %v4057, %v4169
      %4171 = vmatprep.mubr.bf16.mxu0 %v1843
      %4172 = vmatmul.mubr.bf16.gmra.mxu0 %v1842
      %v4173 = vpop.f32.mrf.mxu0
      %v4174 = vadd.f32 %v4061, %v4173
      %v4175 = vpop.f32.mrf.mxu0
      %v4176 = vadd.f32 %v4063, %v4175
      %v4177 = vpop.f32.mrf.mxu0
      %v4178 = vadd.f32 %v4065, %v4177
      %v4179 = vpop.f32.mrf.mxu0
      %v4180 = vadd.f32 %v4067, %v4179
      %4181 = vmatprep.mubr.bf16.mxu0 %v1847
      %4182 = vmatmul.mubr.bf16.gmra.mxu0 %v1846
      %v4183 = vpop.f32.mrf.mxu0
      %v4184 = vadd.f32 %v4071, %v4183
      %v4185 = vpop.f32.mrf.mxu0
      %v4186 = vadd.f32 %v4073, %v4185
      %v4187 = vpop.f32.mrf.mxu0
      %v4188 = vadd.f32 %v4075, %v4187
      %v4189 = vpop.f32.mrf.mxu0
      %v4190 = vadd.f32 %v4077, %v4189
      %4191 = vdwg.mxu0
      %v4192 = vmul.f32 %v4114, 0.5
      %v4193 = vmul.f32 %v4116, 0.5
      %v4194 = vmul.f32 %v4118, 0.5
      %v4195 = vmul.f32 %v4120, 0.5
      %v4196 = vmul.f32 %v4124, 0.5
      %v4197 = vmul.f32 %v4126, 0.5
      %v4198 = vmul.f32 %v4128, 0.5
      %v4199 = vmul.f32 %v4130, 0.5
      %v4200 = vmul.f32 %v4134, 0.5
      %v4201 = vmul.f32 %v4136, 0.5
      %v4202 = vmul.f32 %v4138, 0.5
      %v4203 = vmul.f32 %v4140, 0.5
      %v4204 = vmul.f32 %v4144, 0.5
      %v4205 = vmul.f32 %v4146, 0.5
      %v4206 = vmul.f32 %v4148, 0.5
      %v4207 = vmul.f32 %v4150, 0.5
      %v4208 = vmul.f32 %v4154, 0.5
      %v4209 = vmul.f32 %v4156, 0.5
      %v4210 = vmul.f32 %v4158, 0.5
      %v4211 = vmul.f32 %v4160, 0.5
      %v4212 = vmul.f32 %v4164, 0.5
      %v4213 = vmul.f32 %v4166, 0.5
      %v4214 = vmul.f32 %v4168, 0.5
      %v4215 = vmul.f32 %v4170, 0.5
      %v4216 = vmul.f32 %v4174, 0.5
      %v4217 = vmul.f32 %v4176, 0.5
      %v4218 = vmul.f32 %v4178, 0.5
      %v4219 = vmul.f32 %v4180, 0.5
      %v4220 = vmul.f32 %v4184, 0.5
      %v4221 = vmul.f32 %v4186, 0.5
      %v4222 = vmul.f32 %v4188, 0.5
      %v4223 = vmul.f32 %v4190, 0.5
      %v4224 = vmul.f32 %v4114, 0.70710677
      %v4225 = vmul.f32 %v4116, 0.70710677
      %v4226 = vmul.f32 %v4118, 0.70710677
      %v4227 = vmul.f32 %v4120, 0.70710677
      %v4228 = vmul.f32 %v4124, 0.70710677
      %v4229 = vmul.f32 %v4126, 0.70710677
      %v4230 = vmul.f32 %v4128, 0.70710677
      %v4231 = vmul.f32 %v4130, 0.70710677
      %v4232 = vmul.f32 %v4134, 0.70710677
      %v4233 = vmul.f32 %v4136, 0.70710677
      %v4234 = vmul.f32 %v4138, 0.70710677
      %v4235 = vmul.f32 %v4140, 0.70710677
      %v4236 = vmul.f32 %v4144, 0.70710677
      %v4237 = vmul.f32 %v4146, 0.70710677
      %v4238 = vmul.f32 %v4148, 0.70710677
      %v4239 = vmul.f32 %v4150, 0.70710677
      %v4240 = vmul.f32 %v4154, 0.70710677
      %v4241 = vmul.f32 %v4156, 0.70710677
      %v4242 = vmul.f32 %v4158, 0.70710677
      %v4243 = vmul.f32 %v4160, 0.70710677
      %v4244 = vmul.f32 %v4164, 0.70710677
      %v4245 = vmul.f32 %v4166, 0.70710677
      %v4246 = vmul.f32 %v4168, 0.70710677
      %v4247 = vmul.f32 %v4170, 0.70710677
      %v4248 = vmul.f32 %v4174, 0.70710677
      %v4249 = vmul.f32 %v4176, 0.70710677
      %v4250 = vmul.f32 %v4178, 0.70710677
      %v4251 = vmul.f32 %v4180, 0.70710677
      %v4252 = vmul.f32 %v4184, 0.70710677
      %v4253 = vmul.f32 %v4186, 0.70710677
      %v4254 = vmul.f32 %v4188, 0.70710677
      %v4255 = vmul.f32 %v4190, 0.70710677
      %v4256 = verf.f32.pop %v4224
      %v4257 = verf.f32.pop %v4225
      %v4258 = verf.f32.pop %v4226
      %v4259 = verf.f32.pop %v4227
      %v4260 = verf.f32.pop %v4228
      %v4261 = verf.f32.pop %v4229
      %v4262 = verf.f32.pop %v4230
      %v4263 = verf.f32.pop %v4231
      %v4264 = verf.f32.pop %v4232
      %v4265 = verf.f32.pop %v4233
      %v4266 = verf.f32.pop %v4234
      %v4267 = verf.f32.pop %v4235
      %v4268 = verf.f32.pop %v4236
      %v4269 = verf.f32.pop %v4237
      %v4270 = verf.f32.pop %v4238
      %v4271 = verf.f32.pop %v4239
      %v4272 = verf.f32.pop %v4240
      %v4273 = verf.f32.pop %v4241
      %v4274 = verf.f32.pop %v4242
      %v4275 = verf.f32.pop %v4243
      %v4276 = verf.f32.pop %v4244
      %v4277 = verf.f32.pop %v4245
      %v4278 = verf.f32.pop %v4246
      %v4279 = verf.f32.pop %v4247
      %v4280 = verf.f32.pop %v4248
      %v4281 = verf.f32.pop %v4249
      %v4282 = verf.f32.pop %v4250
      %v4283 = verf.f32.pop %v4251
      %v4284 = verf.f32.pop %v4252
      %v4285 = verf.f32.pop %v4253
      %v4286 = verf.f32.pop %v4254
      %v4287 = verf.f32.pop %v4255
      %v4288 = vadd.f32 %v4256, 1.0
      %v4289 = vadd.f32 %v4257, 1.0
      %v4290 = vadd.f32 %v4258, 1.0
      %v4291 = vadd.f32 %v4259, 1.0
      %v4292 = vadd.f32 %v4260, 1.0
      %v4293 = vadd.f32 %v4261, 1.0
      %v4294 = vadd.f32 %v4262, 1.0
      %v4295 = vadd.f32 %v4263, 1.0
      %v4296 = vadd.f32 %v4264, 1.0
      %v4297 = vadd.f32 %v4265, 1.0
      %v4298 = vadd.f32 %v4266, 1.0
      %v4299 = vadd.f32 %v4267, 1.0
      %v4300 = vadd.f32 %v4268, 1.0
      %v4301 = vadd.f32 %v4269, 1.0
      %v4302 = vadd.f32 %v4270, 1.0
      %v4303 = vadd.f32 %v4271, 1.0
      %v4304 = vadd.f32 %v4272, 1.0
      %v4305 = vadd.f32 %v4273, 1.0
      %v4306 = vadd.f32 %v4274, 1.0
      %v4307 = vadd.f32 %v4275, 1.0
      %v4308 = vadd.f32 %v4276, 1.0
      %v4309 = vadd.f32 %v4277, 1.0
      %v4310 = vadd.f32 %v4278, 1.0
      %v4311 = vadd.f32 %v4279, 1.0
      %v4312 = vadd.f32 %v4280, 1.0
      %v4313 = vadd.f32 %v4281, 1.0
      %v4314 = vadd.f32 %v4282, 1.0
      %v4315 = vadd.f32 %v4283, 1.0
      %v4316 = vadd.f32 %v4284, 1.0
      %v4317 = vadd.f32 %v4285, 1.0
      %v4318 = vadd.f32 %v4286, 1.0
      %v4319 = vadd.f32 %v4287, 1.0
      %v4320 = vmul.f32 %v4192, %v4288
      %v4321 = vmul.f32 %v4193, %v4289
      %v4322 = vmul.f32 %v4194, %v4290
      %v4323 = vmul.f32 %v4195, %v4291
      %v4324 = vmul.f32 %v4196, %v4292
      %v4325 = vmul.f32 %v4197, %v4293
      %v4326 = vmul.f32 %v4198, %v4294
      %v4327 = vmul.f32 %v4199, %v4295
      %v4328 = vmul.f32 %v4200, %v4296
      %v4329 = vmul.f32 %v4201, %v4297
      %v4330 = vmul.f32 %v4202, %v4298
      %v4331 = vmul.f32 %v4203, %v4299
      %v4332 = vmul.f32 %v4204, %v4300
      %v4333 = vmul.f32 %v4205, %v4301
      %v4334 = vmul.f32 %v4206, %v4302
      %v4335 = vmul.f32 %v4207, %v4303
      %v4336 = vmul.f32 %v4208, %v4304
      %v4337 = vmul.f32 %v4209, %v4305
      %v4338 = vmul.f32 %v4210, %v4306
      %v4339 = vmul.f32 %v4211, %v4307
      %v4340 = vmul.f32 %v4212, %v4308
      %v4341 = vmul.f32 %v4213, %v4309
      %v4342 = vmul.f32 %v4214, %v4310
      %v4343 = vmul.f32 %v4215, %v4311
      %v4344 = vmul.f32 %v4216, %v4312
      %v4345 = vmul.f32 %v4217, %v4313
      %v4346 = vmul.f32 %v4218, %v4314
      %v4347 = vmul.f32 %v4219, %v4315
      %v4348 = vmul.f32 %v4220, %v4316
      %v4349 = vmul.f32 %v4221, %v4317
      %v4350 = vmul.f32 %v4222, %v4318
      %v4351 = vmul.f32 %v4223, %v4319
      %v4352 = vpack.c.bf16 %v4322, %v4320
      %v4353 = vpack.c.bf16 %v4323, %v4321
      %v4354 = vpack.c.bf16 %v4326, %v4324
      %v4355 = vpack.c.bf16 %v4327, %v4325
      %v4356 = vpack.c.bf16 %v4330, %v4328
      %v4357 = vpack.c.bf16 %v4331, %v4329
      %v4358 = vpack.c.bf16 %v4334, %v4332
      %v4359 = vpack.c.bf16 %v4335, %v4333
      %v4360 = vpack.c.bf16 %v4338, %v4336
      %v4361 = vpack.c.bf16 %v4339, %v4337
      %v4362 = vpack.c.bf16 %v4342, %v4340
      %v4363 = vpack.c.bf16 %v4343, %v4341
      %v4364 = vpack.c.bf16 %v4346, %v4344
      %v4365 = vpack.c.bf16 %v4347, %v4345
      %v4366 = vpack.c.bf16 %v4350, %v4348
      %v4367 = vpack.c.bf16 %v4351, %v4349
      %v4384 = vunpack.c.l.b16 %v4352
      %v4385 = vunpack.c.l.b16 %v4353
      %v4386 = vunpack.c.h.b16 %v4352
      %v4387 = vunpack.c.h.b16 %v4353
      %v4388 = vunpack.c.l.b16 %v4354
      %v4389 = vunpack.c.l.b16 %v4355
      %v4390 = vunpack.c.h.b16 %v4354
      %v4391 = vunpack.c.h.b16 %v4355
      %v4392 = vunpack.c.l.b16 %v4356
      %v4393 = vunpack.c.l.b16 %v4357
      %v4394 = vunpack.c.h.b16 %v4356
      %v4395 = vunpack.c.h.b16 %v4357
      %v4396 = vunpack.c.l.b16 %v4358
      %v4397 = vunpack.c.l.b16 %v4359
      %v4398 = vunpack.c.h.b16 %v4358
      %v4399 = vunpack.c.h.b16 %v4359
      %v4400 = vunpack.c.l.b16 %v4360
      %v4401 = vunpack.c.l.b16 %v4361
      %v4402 = vunpack.c.h.b16 %v4360
      %v4403 = vunpack.c.h.b16 %v4361
      %v4404 = vunpack.c.l.b16 %v4362
      %v4405 = vunpack.c.l.b16 %v4363
      %v4406 = vunpack.c.h.b16 %v4362
      %v4407 = vunpack.c.h.b16 %v4363
      %v4408 = vunpack.c.l.b16 %v4364
      %v4409 = vunpack.c.l.b16 %v4365
      %v4410 = vunpack.c.h.b16 %v4364
      %v4411 = vunpack.c.h.b16 %v4365
      %v4412 = vunpack.c.l.b16 %v4366
      %v4413 = vunpack.c.l.b16 %v4367
      %v4414 = vunpack.c.h.b16 %v4366
      %v4415 = vunpack.c.h.b16 %v4367
      %v4416 = vpack.c.b16 %v4385, %v4384
      %v4417 = vpack.c.b16 %v4387, %v4386
      %v4418 = vpack.c.b16 %v4389, %v4388
      %v4419 = vpack.c.b16 %v4391, %v4390
      %v4420 = vpack.c.b16 %v4393, %v4392
      %v4421 = vpack.c.b16 %v4395, %v4394
      %v4422 = vpack.c.b16 %v4397, %v4396
      %v4423 = vpack.c.b16 %v4399, %v4398
      %v4424 = vpack.c.b16 %v4401, %v4400
      %v4425 = vpack.c.b16 %v4403, %v4402
      %v4426 = vpack.c.b16 %v4405, %v4404
      %v4427 = vpack.c.b16 %v4407, %v4406
      %v4428 = vpack.c.b16 %v4409, %v4408
      %v4429 = vpack.c.b16 %v4411, %v4410
      %v4430 = vpack.c.b16 %v4413, %v4412
      %v4431 = vpack.c.b16 %v4415, %v4414
      %4448 = vst [vmem:[#allocation3 + $0x100] sm:$0xff] %v4416
      %4449 = vst [vmem:[#allocation3 + $0x108] sm:$0xff] %v4417
      %4450 = vst [vmem:[#allocation3 + $0x110] sm:$0xff] %v4418
      %4451 = vst [vmem:[#allocation3 + $0x118] sm:$0xff] %v4419
      %4452 = vst [vmem:[#allocation3 + $0x120] sm:$0xff] %v4420
      %4453 = vst [vmem:[#allocation3 + $0x128] sm:$0xff] %v4421
      %4454 = vst [vmem:[#allocation3 + $0x130] sm:$0xff] %v4422
      %4455 = vst [vmem:[#allocation3 + $0x138] sm:$0xff] %v4423
      %4456 = vst [vmem:[#allocation3 + $0x140] sm:$0xff] %v4424
      %4457 = vst [vmem:[#allocation3 + $0x148] sm:$0xff] %v4425
      %4458 = vst [vmem:[#allocation3 + $0x150] sm:$0xff] %v4426
      %4459 = vst [vmem:[#allocation3 + $0x158] sm:$0xff] %v4427
      %4460 = vst [vmem:[#allocation3 + $0x160] sm:$0xff] %v4428
      %4461 = vst [vmem:[#allocation3 + $0x168] sm:$0xff] %v4429
      %4462 = vst [vmem:[#allocation3 + $0x170] sm:$0xff] %v4430
      %4463 = vst [vmem:[#allocation3 + $0x178] sm:$0xff] %v4431
      %s4464 = scalar_lea.vmem %s3, 1536
      %v4465 = vld [vmem:[%s4464] sm:$0xff]
      %v4466 = vld [vmem:[%s4464 + $0x8] sm:$0xff]
      %v4467 = vld [vmem:[%s4464 + $0x10] sm:$0xff]
      %v4468 = vld [vmem:[%s4464 + $0x18] sm:$0xff]
      %v4469 = vld [vmem:[%s4464 + $0x20] sm:$0xff]
      %v4470 = vld [vmem:[%s4464 + $0x28] sm:$0xff]
      %v4471 = vld [vmem:[%s4464 + $0x30] sm:$0xff]
      %v4472 = vld [vmem:[%s4464 + $0x38] sm:$0xff]
      %v4473 = vld [vmem:[%s4464 + $0x40] sm:$0xff]
      %v4474 = vld [vmem:[%s4464 + $0x48] sm:$0xff]
      %v4475 = vld [vmem:[%s4464 + $0x50] sm:$0xff]
      %v4476 = vld [vmem:[%s4464 + $0x58] sm:$0xff]
      %v4477 = vld [vmem:[%s4464 + $0x60] sm:$0xff]
      %v4478 = vld [vmem:[%s4464 + $0x68] sm:$0xff]
      %v4479 = vld [vmem:[%s4464 + $0x70] sm:$0xff]
      %v4480 = vld [vmem:[%s4464 + $0x78] sm:$0xff]
      %v4481 = vld [vmem:[%s4464 + $0x80] sm:$0xff]
      %v4482 = vld [vmem:[%s4464 + $0x88] sm:$0xff]
      %v4483 = vld [vmem:[%s4464 + $0x90] sm:$0xff]
      %v4484 = vld [vmem:[%s4464 + $0x98] sm:$0xff]
      %v4485 = vld [vmem:[%s4464 + $0xa0] sm:$0xff]
      %v4486 = vld [vmem:[%s4464 + $0xa8] sm:$0xff]
      %v4487 = vld [vmem:[%s4464 + $0xb0] sm:$0xff]
      %v4488 = vld [vmem:[%s4464 + $0xb8] sm:$0xff]
      %v4489 = vld [vmem:[%s4464 + $0xc0] sm:$0xff]
      %v4490 = vld [vmem:[%s4464 + $0xc8] sm:$0xff]
      %v4491 = vld [vmem:[%s4464 + $0xd0] sm:$0xff]
      %v4492 = vld [vmem:[%s4464 + $0xd8] sm:$0xff]
      %v4493 = vld [vmem:[%s4464 + $0xe0] sm:$0xff]
      %v4494 = vld [vmem:[%s4464 + $0xe8] sm:$0xff]
      %v4495 = vld [vmem:[%s4464 + $0xf0] sm:$0xff]
      %v4496 = vld [vmem:[%s4464 + $0xf8] sm:$0xff]
      %v4497 = vld [vmem:[%s4464 + $0x100] sm:$0xff]
      %v4498 = vld [vmem:[%s4464 + $0x108] sm:$0xff]
      %v4499 = vld [vmem:[%s4464 + $0x110] sm:$0xff]
      %v4500 = vld [vmem:[%s4464 + $0x118] sm:$0xff]
      %v4501 = vld [vmem:[%s4464 + $0x120] sm:$0xff]
      %v4502 = vld [vmem:[%s4464 + $0x128] sm:$0xff]
      %v4503 = vld [vmem:[%s4464 + $0x130] sm:$0xff]
      %v4504 = vld [vmem:[%s4464 + $0x138] sm:$0xff]
      %v4505 = vld [vmem:[%s4464 + $0x140] sm:$0xff]
      %v4506 = vld [vmem:[%s4464 + $0x148] sm:$0xff]
      %v4507 = vld [vmem:[%s4464 + $0x150] sm:$0xff]
      %v4508 = vld [vmem:[%s4464 + $0x158] sm:$0xff]
      %v4509 = vld [vmem:[%s4464 + $0x160] sm:$0xff]
      %v4510 = vld [vmem:[%s4464 + $0x168] sm:$0xff]
      %v4511 = vld [vmem:[%s4464 + $0x170] sm:$0xff]
      %v4512 = vld [vmem:[%s4464 + $0x178] sm:$0xff]
      %v4513 = vld [vmem:[%s4464 + $0x180] sm:$0xff]
      %v4514 = vld [vmem:[%s4464 + $0x188] sm:$0xff]
      %v4515 = vld [vmem:[%s4464 + $0x190] sm:$0xff]
      %v4516 = vld [vmem:[%s4464 + $0x198] sm:$0xff]
      %v4517 = vld [vmem:[%s4464 + $0x1a0] sm:$0xff]
      %v4518 = vld [vmem:[%s4464 + $0x1a8] sm:$0xff]
      %v4519 = vld [vmem:[%s4464 + $0x1b0] sm:$0xff]
      %v4520 = vld [vmem:[%s4464 + $0x1b8] sm:$0xff]
      %v4521 = vld [vmem:[%s4464 + $0x1c0] sm:$0xff]
      %v4522 = vld [vmem:[%s4464 + $0x1c8] sm:$0xff]
      %v4523 = vld [vmem:[%s4464 + $0x1d0] sm:$0xff]
      %v4524 = vld [vmem:[%s4464 + $0x1d8] sm:$0xff]
      %v4525 = vld [vmem:[%s4464 + $0x1e0] sm:$0xff]
      %v4526 = vld [vmem:[%s4464 + $0x1e8] sm:$0xff]
      %v4527 = vld [vmem:[%s4464 + $0x1f0] sm:$0xff]
      %v4528 = vld [vmem:[%s4464 + $0x1f8] sm:$0xff]
      %v4593 = vunpack.c.l.b16 %v4465
      %v4594 = vunpack.c.h.b16 %v4465
      %v4595 = vunpack.c.l.b16 %v4466
      %v4596 = vunpack.c.h.b16 %v4466
      %v4597 = vunpack.c.l.b16 %v4467
      %v4598 = vunpack.c.h.b16 %v4467
      %v4599 = vunpack.c.l.b16 %v4468
      %v4600 = vunpack.c.h.b16 %v4468
      %v4601 = vunpack.c.l.b16 %v4469
      %v4602 = vunpack.c.h.b16 %v4469
      %v4603 = vunpack.c.l.b16 %v4470
      %v4604 = vunpack.c.h.b16 %v4470
      %v4605 = vunpack.c.l.b16 %v4471
      %v4606 = vunpack.c.h.b16 %v4471
      %v4607 = vunpack.c.l.b16 %v4472
      %v4608 = vunpack.c.h.b16 %v4472
      %v4609 = vunpack.c.l.b16 %v4473
      %v4610 = vunpack.c.h.b16 %v4473
      %v4611 = vunpack.c.l.b16 %v4474
      %v4612 = vunpack.c.h.b16 %v4474
      %v4613 = vunpack.c.l.b16 %v4475
      %v4614 = vunpack.c.h.b16 %v4475
      %v4615 = vunpack.c.l.b16 %v4476
      %v4616 = vunpack.c.h.b16 %v4476
      %v4617 = vunpack.c.l.b16 %v4477
      %v4618 = vunpack.c.h.b16 %v4477
      %v4619 = vunpack.c.l.b16 %v4478
      %v4620 = vunpack.c.h.b16 %v4478
      %v4621 = vunpack.c.l.b16 %v4479
      %v4622 = vunpack.c.h.b16 %v4479
      %v4623 = vunpack.c.l.b16 %v4480
      %v4624 = vunpack.c.h.b16 %v4480
      %v4625 = vunpack.c.l.b16 %v4481
      %v4626 = vunpack.c.h.b16 %v4481
      %v4627 = vunpack.c.l.b16 %v4482
      %v4628 = vunpack.c.h.b16 %v4482
      %v4629 = vunpack.c.l.b16 %v4483
      %v4630 = vunpack.c.h.b16 %v4483
      %v4631 = vunpack.c.l.b16 %v4484
      %v4632 = vunpack.c.h.b16 %v4484
      %v4633 = vunpack.c.l.b16 %v4485
      %v4634 = vunpack.c.h.b16 %v4485
      %v4635 = vunpack.c.l.b16 %v4486
      %v4636 = vunpack.c.h.b16 %v4486
      %v4637 = vunpack.c.l.b16 %v4487
      %v4638 = vunpack.c.h.b16 %v4487
      %v4639 = vunpack.c.l.b16 %v4488
      %v4640 = vunpack.c.h.b16 %v4488
      %v4641 = vunpack.c.l.b16 %v4489
      %v4642 = vunpack.c.h.b16 %v4489
      %v4643 = vunpack.c.l.b16 %v4490
      %v4644 = vunpack.c.h.b16 %v4490
      %v4645 = vunpack.c.l.b16 %v4491
      %v4646 = vunpack.c.h.b16 %v4491
      %v4647 = vunpack.c.l.b16 %v4492
      %v4648 = vunpack.c.h.b16 %v4492
      %v4649 = vunpack.c.l.b16 %v4493
      %v4650 = vunpack.c.h.b16 %v4493
      %v4651 = vunpack.c.l.b16 %v4494
      %v4652 = vunpack.c.h.b16 %v4494
      %v4653 = vunpack.c.l.b16 %v4495
      %v4654 = vunpack.c.h.b16 %v4495
      %v4655 = vunpack.c.l.b16 %v4496
      %v4656 = vunpack.c.h.b16 %v4496
      %v4657 = vunpack.c.l.b16 %v4497
      %v4658 = vunpack.c.h.b16 %v4497
      %v4659 = vunpack.c.l.b16 %v4498
      %v4660 = vunpack.c.h.b16 %v4498
      %v4661 = vunpack.c.l.b16 %v4499
      %v4662 = vunpack.c.h.b16 %v4499
      %v4663 = vunpack.c.l.b16 %v4500
      %v4664 = vunpack.c.h.b16 %v4500
      %v4665 = vunpack.c.l.b16 %v4501
      %v4666 = vunpack.c.h.b16 %v4501
      %v4667 = vunpack.c.l.b16 %v4502
      %v4668 = vunpack.c.h.b16 %v4502
      %v4669 = vunpack.c.l.b16 %v4503
      %v4670 = vunpack.c.h.b16 %v4503
      %v4671 = vunpack.c.l.b16 %v4504
      %v4672 = vunpack.c.h.b16 %v4504
      %v4673 = vunpack.c.l.b16 %v4505
      %v4674 = vunpack.c.h.b16 %v4505
      %v4675 = vunpack.c.l.b16 %v4506
      %v4676 = vunpack.c.h.b16 %v4506
      %v4677 = vunpack.c.l.b16 %v4507
      %v4678 = vunpack.c.h.b16 %v4507
      %v4679 = vunpack.c.l.b16 %v4508
      %v4680 = vunpack.c.h.b16 %v4508
      %v4681 = vunpack.c.l.b16 %v4509
      %v4682 = vunpack.c.h.b16 %v4509
      %v4683 = vunpack.c.l.b16 %v4510
      %v4684 = vunpack.c.h.b16 %v4510
      %v4685 = vunpack.c.l.b16 %v4511
      %v4686 = vunpack.c.h.b16 %v4511
      %v4687 = vunpack.c.l.b16 %v4512
      %v4688 = vunpack.c.h.b16 %v4512
      %v4689 = vunpack.c.l.b16 %v4513
      %v4690 = vunpack.c.h.b16 %v4513
      %v4691 = vunpack.c.l.b16 %v4514
      %v4692 = vunpack.c.h.b16 %v4514
      %v4693 = vunpack.c.l.b16 %v4515
      %v4694 = vunpack.c.h.b16 %v4515
      %v4695 = vunpack.c.l.b16 %v4516
      %v4696 = vunpack.c.h.b16 %v4516
      %v4697 = vunpack.c.l.b16 %v4517
      %v4698 = vunpack.c.h.b16 %v4517
      %v4699 = vunpack.c.l.b16 %v4518
      %v4700 = vunpack.c.h.b16 %v4518
      %v4701 = vunpack.c.l.b16 %v4519
      %v4702 = vunpack.c.h.b16 %v4519
      %v4703 = vunpack.c.l.b16 %v4520
      %v4704 = vunpack.c.h.b16 %v4520
      %v4705 = vunpack.c.l.b16 %v4521
      %v4706 = vunpack.c.h.b16 %v4521
      %v4707 = vunpack.c.l.b16 %v4522
      %v4708 = vunpack.c.h.b16 %v4522
      %v4709 = vunpack.c.l.b16 %v4523
      %v4710 = vunpack.c.h.b16 %v4523
      %v4711 = vunpack.c.l.b16 %v4524
      %v4712 = vunpack.c.h.b16 %v4524
      %v4713 = vunpack.c.l.b16 %v4525
      %v4714 = vunpack.c.h.b16 %v4525
      %v4715 = vunpack.c.l.b16 %v4526
      %v4716 = vunpack.c.h.b16 %v4526
      %v4717 = vunpack.c.l.b16 %v4527
      %v4718 = vunpack.c.h.b16 %v4527
      %v4719 = vunpack.c.l.b16 %v4528
      %v4720 = vunpack.c.h.b16 %v4528
      %v4721 = vpack.c.b16 %v4595, %v4593
      %v4722 = vpack.c.b16 %v4596, %v4594
      %v4723 = vpack.c.b16 %v4599, %v4597
      %v4724 = vpack.c.b16 %v4600, %v4598
      %v4725 = vpack.c.b16 %v4603, %v4601
      %v4726 = vpack.c.b16 %v4604, %v4602
      %v4727 = vpack.c.b16 %v4607, %v4605
      %v4728 = vpack.c.b16 %v4608, %v4606
      %v4729 = vpack.c.b16 %v4611, %v4609
      %v4730 = vpack.c.b16 %v4612, %v4610
      %v4731 = vpack.c.b16 %v4615, %v4613
      %v4732 = vpack.c.b16 %v4616, %v4614
      %v4733 = vpack.c.b16 %v4619, %v4617
      %v4734 = vpack.c.b16 %v4620, %v4618
      %v4735 = vpack.c.b16 %v4623, %v4621
      %v4736 = vpack.c.b16 %v4624, %v4622
      %v4737 = vpack.c.b16 %v4627, %v4625
      %v4738 = vpack.c.b16 %v4628, %v4626
      %v4739 = vpack.c.b16 %v4631, %v4629
      %v4740 = vpack.c.b16 %v4632, %v4630
      %v4741 = vpack.c.b16 %v4635, %v4633
      %v4742 = vpack.c.b16 %v4636, %v4634
      %v4743 = vpack.c.b16 %v4639, %v4637
      %v4744 = vpack.c.b16 %v4640, %v4638
      %v4745 = vpack.c.b16 %v4643, %v4641
      %v4746 = vpack.c.b16 %v4644, %v4642
      %v4747 = vpack.c.b16 %v4647, %v4645
      %v4748 = vpack.c.b16 %v4648, %v4646
      %v4749 = vpack.c.b16 %v4651, %v4649
      %v4750 = vpack.c.b16 %v4652, %v4650
      %v4751 = vpack.c.b16 %v4655, %v4653
      %v4752 = vpack.c.b16 %v4656, %v4654
      %v4753 = vpack.c.b16 %v4659, %v4657
      %v4754 = vpack.c.b16 %v4660, %v4658
      %v4755 = vpack.c.b16 %v4663, %v4661
      %v4756 = vpack.c.b16 %v4664, %v4662
      %v4757 = vpack.c.b16 %v4667, %v4665
      %v4758 = vpack.c.b16 %v4668, %v4666
      %v4759 = vpack.c.b16 %v4671, %v4669
      %v4760 = vpack.c.b16 %v4672, %v4670
      %v4761 = vpack.c.b16 %v4675, %v4673
      %v4762 = vpack.c.b16 %v4676, %v4674
      %v4763 = vpack.c.b16 %v4679, %v4677
      %v4764 = vpack.c.b16 %v4680, %v4678
      %v4765 = vpack.c.b16 %v4683, %v4681
      %v4766 = vpack.c.b16 %v4684, %v4682
      %v4767 = vpack.c.b16 %v4687, %v4685
      %v4768 = vpack.c.b16 %v4688, %v4686
      %v4769 = vpack.c.b16 %v4691, %v4689
      %v4770 = vpack.c.b16 %v4692, %v4690
      %v4771 = vpack.c.b16 %v4695, %v4693
      %v4772 = vpack.c.b16 %v4696, %v4694
      %v4773 = vpack.c.b16 %v4699, %v4697
      %v4774 = vpack.c.b16 %v4700, %v4698
      %v4775 = vpack.c.b16 %v4703, %v4701
      %v4776 = vpack.c.b16 %v4704, %v4702
      %v4777 = vpack.c.b16 %v4707, %v4705
      %v4778 = vpack.c.b16 %v4708, %v4706
      %v4779 = vpack.c.b16 %v4711, %v4709
      %v4780 = vpack.c.b16 %v4712, %v4710
      %v4781 = vpack.c.b16 %v4715, %v4713
      %v4782 = vpack.c.b16 %v4716, %v4714
      %v4783 = vpack.c.b16 %v4719, %v4717
      %v4784 = vpack.c.b16 %v4720, %v4718
      %4849 = vmatprep.subr.bf16.mxu0 %v4736
      %4850 = vmatpush1.bf16.msra.mxu0 %v4735
      %4851 = vmatprep.subr.bf16.mxu0 %v4734
      %4852 = vmatpush1.bf16.msra.mxu0 %v4733
      %4853 = vmatprep.subr.bf16.mxu0 %v4732
      %4854 = vmatpush1.bf16.msra.mxu0 %v4731
      %4855 = vmatprep.subr.bf16.mxu0 %v4730
      %4856 = vmatpush1.bf16.msra.mxu0 %v4729
      %4857 = vmatprep.subr.bf16.mxu0 %v4728
      %4858 = vmatpush1.bf16.msra.mxu0 %v4727
      %4859 = vmatprep.subr.bf16.mxu0 %v4726
      %4860 = vmatpush1.bf16.msra.mxu0 %v4725
      %4861 = vmatprep.subr.bf16.mxu0 %v4724
      %4862 = vmatpush1.bf16.msra.mxu0 %v4723
      %4863 = vmatprep.subr.bf16.mxu0 %v4722
      %4864 = vmatpush1.bf16.msra.mxu0 %v4721
      %4865 = vmatprep.subr.bf16.mxu0 %v4752
      %4866 = vmatpush2.bf16.msra.mxu0 %v4751
      %4867 = vmatprep.subr.bf16.mxu0 %v4750
      %4868 = vmatpush2.bf16.msra.mxu0 %v4749
      %4869 = vmatprep.subr.bf16.mxu0 %v4748
      %4870 = vmatpush2.bf16.msra.mxu0 %v4747
      %4871 = vmatprep.subr.bf16.mxu0 %v4746
      %4872 = vmatpush2.bf16.msra.mxu0 %v4745
      %4873 = vmatprep.subr.bf16.mxu0 %v4744
      %4874 = vmatpush2.bf16.msra.mxu0 %v4743
      %4875 = vmatprep.subr.bf16.mxu0 %v4742
      %4876 = vmatpush2.bf16.msra.mxu0 %v4741
      %4877 = vmatprep.subr.bf16.mxu0 %v4740
      %4878 = vmatpush2.bf16.msra.mxu0 %v4739
      %4879 = vmatprep.subr.bf16.mxu0 %v4738
      %4880 = vmatpush2.bf16.msra.mxu0 %v4737
      %4881 = vmatprep.mubr.bf16.mxu0 %v1817
      %4882 = vmatmul.mubr.bf16.gmra.mxu0 %v1816
      %v4883 = vpop.f32.mrf.mxu0
      %v4884 = vadd.f32 %v1713, %v4883
      %v4885 = vpop.f32.mrf.mxu0
      %v4886 = vadd.f32 %v1717, %v4885
      %v4887 = vpop.f32.mrf.mxu0
      %v4888 = vadd.f32 %v1713, %v4887
      %v4889 = vpop.f32.mrf.mxu0
      %v4890 = vadd.f32 %v1717, %v4889
      %4891 = vmatprep.mubr.bf16.mxu0 %v1821
      %4892 = vmatmul.mubr.bf16.gmra.mxu0 %v1820
      %v4893 = vpop.f32.mrf.mxu0
      %v4894 = vadd.f32 %v1713, %v4893
      %v4895 = vpop.f32.mrf.mxu0
      %v4896 = vadd.f32 %v1717, %v4895
      %v4897 = vpop.f32.mrf.mxu0
      %v4898 = vadd.f32 %v1713, %v4897
      %v4899 = vpop.f32.mrf.mxu0
      %v4900 = vadd.f32 %v1717, %v4899
      %4901 = vmatprep.mubr.bf16.mxu0 %v1825
      %4902 = vmatmul.mubr.bf16.gmra.mxu0 %v1824
      %v4903 = vpop.f32.mrf.mxu0
      %v4904 = vadd.f32 %v1713, %v4903
      %v4905 = vpop.f32.mrf.mxu0
      %v4906 = vadd.f32 %v1717, %v4905
      %v4907 = vpop.f32.mrf.mxu0
      %v4908 = vadd.f32 %v1713, %v4907
      %v4909 = vpop.f32.mrf.mxu0
      %v4910 = vadd.f32 %v1717, %v4909
      %4911 = vmatprep.mubr.bf16.mxu0 %v1829
      %4912 = vmatmul.mubr.bf16.gmra.mxu0 %v1828
      %v4913 = vpop.f32.mrf.mxu0
      %v4914 = vadd.f32 %v1713, %v4913
      %v4915 = vpop.f32.mrf.mxu0
      %v4916 = vadd.f32 %v1717, %v4915
      %v4917 = vpop.f32.mrf.mxu0
      %v4918 = vadd.f32 %v1713, %v4917
      %v4919 = vpop.f32.mrf.mxu0
      %v4920 = vadd.f32 %v1717, %v4919
      %4921 = vmatprep.mubr.bf16.mxu0 %v1833
      %4922 = vmatmul.mubr.bf16.gmra.mxu0 %v1832
      %v4923 = vpop.f32.mrf.mxu0
      %v4924 = vadd.f32 %v1713, %v4923
      %v4925 = vpop.f32.mrf.mxu0
      %v4926 = vadd.f32 %v1717, %v4925
      %v4927 = vpop.f32.mrf.mxu0
      %v4928 = vadd.f32 %v1713, %v4927
      %v4929 = vpop.f32.mrf.mxu0
      %v4930 = vadd.f32 %v1717, %v4929
      %4931 = vmatprep.mubr.bf16.mxu0 %v1837
      %4932 = vmatmul.mubr.bf16.gmra.mxu0 %v1836
      %v4933 = vpop.f32.mrf.mxu0
      %v4934 = vadd.f32 %v1713, %v4933
      %v4935 = vpop.f32.mrf.mxu0
      %v4936 = vadd.f32 %v1717, %v4935
      %v4937 = vpop.f32.mrf.mxu0
      %v4938 = vadd.f32 %v1713, %v4937
      %v4939 = vpop.f32.mrf.mxu0
      %v4940 = vadd.f32 %v1717, %v4939
      %4941 = vmatprep.mubr.bf16.mxu0 %v1841
      %4942 = vmatmul.mubr.bf16.gmra.mxu0 %v1840
      %v4943 = vpop.f32.mrf.mxu0
      %v4944 = vadd.f32 %v1713, %v4943
      %v4945 = vpop.f32.mrf.mxu0
      %v4946 = vadd.f32 %v1717, %v4945
      %v4947 = vpop.f32.mrf.mxu0
      %v4948 = vadd.f32 %v1713, %v4947
      %v4949 = vpop.f32.mrf.mxu0
      %v4950 = vadd.f32 %v1717, %v4949
      %4951 = vmatprep.mubr.bf16.mxu0 %v1845
      %4952 = vmatmul.mubr.bf16.gmra.mxu0 %v1844
      %v4953 = vpop.f32.mrf.mxu0
      %v4954 = vadd.f32 %v1713, %v4953
      %v4955 = vpop.f32.mrf.mxu0
      %v4956 = vadd.f32 %v1717, %v4955
      %v4957 = vpop.f32.mrf.mxu0
      %v4958 = vadd.f32 %v1713, %v4957
      %v4959 = vpop.f32.mrf.mxu0
      %v4960 = vadd.f32 %v1717, %v4959
      %4961 = vdwg.mxu0
      %4962 = vmatprep.subr.bf16.mxu0 %v4768
      %4963 = vmatpush1.bf16.msra.mxu0 %v4767
      %4964 = vmatprep.subr.bf16.mxu0 %v4766
      %4965 = vmatpush1.bf16.msra.mxu0 %v4765
      %4966 = vmatprep.subr.bf16.mxu0 %v4764
      %4967 = vmatpush1.bf16.msra.mxu0 %v4763
      %4968 = vmatprep.subr.bf16.mxu0 %v4762
      %4969 = vmatpush1.bf16.msra.mxu0 %v4761
      %4970 = vmatprep.subr.bf16.mxu0 %v4760
      %4971 = vmatpush1.bf16.msra.mxu0 %v4759
      %4972 = vmatprep.subr.bf16.mxu0 %v4758
      %4973 = vmatpush1.bf16.msra.mxu0 %v4757
      %4974 = vmatprep.subr.bf16.mxu0 %v4756
      %4975 = vmatpush1.bf16.msra.mxu0 %v4755
      %4976 = vmatprep.subr.bf16.mxu0 %v4754
      %4977 = vmatpush1.bf16.msra.mxu0 %v4753
      %4978 = vmatprep.subr.bf16.mxu0 %v4784
      %4979 = vmatpush2.bf16.msra.mxu0 %v4783
      %4980 = vmatprep.subr.bf16.mxu0 %v4782
      %4981 = vmatpush2.bf16.msra.mxu0 %v4781
      %4982 = vmatprep.subr.bf16.mxu0 %v4780
      %4983 = vmatpush2.bf16.msra.mxu0 %v4779
      %4984 = vmatprep.subr.bf16.mxu0 %v4778
      %4985 = vmatpush2.bf16.msra.mxu0 %v4777
      %4986 = vmatprep.subr.bf16.mxu0 %v4776
      %4987 = vmatpush2.bf16.msra.mxu0 %v4775
      %4988 = vmatprep.subr.bf16.mxu0 %v4774
      %4989 = vmatpush2.bf16.msra.mxu0 %v4773
      %4990 = vmatprep.subr.bf16.mxu0 %v4772
      %4991 = vmatpush2.bf16.msra.mxu0 %v4771
      %4992 = vmatprep.subr.bf16.mxu0 %v4770
      %4993 = vmatpush2.bf16.msra.mxu0 %v4769
      %4994 = vmatprep.mubr.bf16.mxu0 %v1819
      %4995 = vmatmul.mubr.bf16.gmra.mxu0 %v1818
      %v4996 = vpop.f32.mrf.mxu0
      %v4997 = vadd.f32 %v4884, %v4996
      %v4998 = vpop.f32.mrf.mxu0
      %v4999 = vadd.f32 %v4886, %v4998
      %v5000 = vpop.f32.mrf.mxu0
      %v5001 = vadd.f32 %v4888, %v5000
      %v5002 = vpop.f32.mrf.mxu0
      %v5003 = vadd.f32 %v4890, %v5002
      %5004 = vmatprep.mubr.bf16.mxu0 %v1823
      %5005 = vmatmul.mubr.bf16.gmra.mxu0 %v1822
      %v5006 = vpop.f32.mrf.mxu0
      %v5007 = vadd.f32 %v4894, %v5006
      %v5008 = vpop.f32.mrf.mxu0
      %v5009 = vadd.f32 %v4896, %v5008
      %v5010 = vpop.f32.mrf.mxu0
      %v5011 = vadd.f32 %v4898, %v5010
      %v5012 = vpop.f32.mrf.mxu0
      %v5013 = vadd.f32 %v4900, %v5012
      %5014 = vmatprep.mubr.bf16.mxu0 %v1827
      %5015 = vmatmul.mubr.bf16.gmra.mxu0 %v1826
      %v5016 = vpop.f32.mrf.mxu0
      %v5017 = vadd.f32 %v4904, %v5016
      %v5018 = vpop.f32.mrf.mxu0
      %v5019 = vadd.f32 %v4906, %v5018
      %v5020 = vpop.f32.mrf.mxu0
      %v5021 = vadd.f32 %v4908, %v5020
      %v5022 = vpop.f32.mrf.mxu0
      %v5023 = vadd.f32 %v4910, %v5022
      %5024 = vmatprep.mubr.bf16.mxu0 %v1831
      %5025 = vmatmul.mubr.bf16.gmra.mxu0 %v1830
      %v5026 = vpop.f32.mrf.mxu0
      %v5027 = vadd.f32 %v4914, %v5026
      %v5028 = vpop.f32.mrf.mxu0
      %v5029 = vadd.f32 %v4916, %v5028
      %v5030 = vpop.f32.mrf.mxu0
      %v5031 = vadd.f32 %v4918, %v5030
      %v5032 = vpop.f32.mrf.mxu0
      %v5033 = vadd.f32 %v4920, %v5032
      %5034 = vmatprep.mubr.bf16.mxu0 %v1835
      %5035 = vmatmul.mubr.bf16.gmra.mxu0 %v1834
      %v5036 = vpop.f32.mrf.mxu0
      %v5037 = vadd.f32 %v4924, %v5036
      %v5038 = vpop.f32.mrf.mxu0
      %v5039 = vadd.f32 %v4926, %v5038
      %v5040 = vpop.f32.mrf.mxu0
      %v5041 = vadd.f32 %v4928, %v5040
      %v5042 = vpop.f32.mrf.mxu0
      %v5043 = vadd.f32 %v4930, %v5042
      %5044 = vmatprep.mubr.bf16.mxu0 %v1839
      %5045 = vmatmul.mubr.bf16.gmra.mxu0 %v1838
      %v5046 = vpop.f32.mrf.mxu0
      %v5047 = vadd.f32 %v4934, %v5046
      %v5048 = vpop.f32.mrf.mxu0
      %v5049 = vadd.f32 %v4936, %v5048
      %v5050 = vpop.f32.mrf.mxu0
      %v5051 = vadd.f32 %v4938, %v5050
      %v5052 = vpop.f32.mrf.mxu0
      %v5053 = vadd.f32 %v4940, %v5052
      %5054 = vmatprep.mubr.bf16.mxu0 %v1843
      %5055 = vmatmul.mubr.bf16.gmra.mxu0 %v1842
      %v5056 = vpop.f32.mrf.mxu0
      %v5057 = vadd.f32 %v4944, %v5056
      %v5058 = vpop.f32.mrf.mxu0
      %v5059 = vadd.f32 %v4946, %v5058
      %v5060 = vpop.f32.mrf.mxu0
      %v5061 = vadd.f32 %v4948, %v5060
      %v5062 = vpop.f32.mrf.mxu0
      %v5063 = vadd.f32 %v4950, %v5062
      %5064 = vmatprep.mubr.bf16.mxu0 %v1847
      %5065 = vmatmul.mubr.bf16.gmra.mxu0 %v1846
      %v5066 = vpop.f32.mrf.mxu0
      %v5067 = vadd.f32 %v4954, %v5066
      %v5068 = vpop.f32.mrf.mxu0
      %v5069 = vadd.f32 %v4956, %v5068
      %v5070 = vpop.f32.mrf.mxu0
      %v5071 = vadd.f32 %v4958, %v5070
      %v5072 = vpop.f32.mrf.mxu0
      %v5073 = vadd.f32 %v4960, %v5072
      %5074 = vdwg.mxu0
      %v5075 = vmul.f32 %v4997, 0.5
      %v5076 = vmul.f32 %v4999, 0.5
      %v5077 = vmul.f32 %v5001, 0.5
      %v5078 = vmul.f32 %v5003, 0.5
      %v5079 = vmul.f32 %v5007, 0.5
      %v5080 = vmul.f32 %v5009, 0.5
      %v5081 = vmul.f32 %v5011, 0.5
      %v5082 = vmul.f32 %v5013, 0.5
      %v5083 = vmul.f32 %v5017, 0.5
      %v5084 = vmul.f32 %v5019, 0.5
      %v5085 = vmul.f32 %v5021, 0.5
      %v5086 = vmul.f32 %v5023, 0.5
      %v5087 = vmul.f32 %v5027, 0.5
      %v5088 = vmul.f32 %v5029, 0.5
      %v5089 = vmul.f32 %v5031, 0.5
      %v5090 = vmul.f32 %v5033, 0.5
      %v5091 = vmul.f32 %v5037, 0.5
      %v5092 = vmul.f32 %v5039, 0.5
      %v5093 = vmul.f32 %v5041, 0.5
      %v5094 = vmul.f32 %v5043, 0.5
      %v5095 = vmul.f32 %v5047, 0.5
      %v5096 = vmul.f32 %v5049, 0.5
      %v5097 = vmul.f32 %v5051, 0.5
      %v5098 = vmul.f32 %v5053, 0.5
      %v5099 = vmul.f32 %v5057, 0.5
      %v5100 = vmul.f32 %v5059, 0.5
      %v5101 = vmul.f32 %v5061, 0.5
      %v5102 = vmul.f32 %v5063, 0.5
      %v5103 = vmul.f32 %v5067, 0.5
      %v5104 = vmul.f32 %v5069, 0.5
      %v5105 = vmul.f32 %v5071, 0.5
      %v5106 = vmul.f32 %v5073, 0.5
      %v5107 = vmul.f32 %v4997, 0.70710677
      %v5108 = vmul.f32 %v4999, 0.70710677
      %v5109 = vmul.f32 %v5001, 0.70710677
      %v5110 = vmul.f32 %v5003, 0.70710677
      %v5111 = vmul.f32 %v5007, 0.70710677
      %v5112 = vmul.f32 %v5009, 0.70710677
      %v5113 = vmul.f32 %v5011, 0.70710677
      %v5114 = vmul.f32 %v5013, 0.70710677
      %v5115 = vmul.f32 %v5017, 0.70710677
      %v5116 = vmul.f32 %v5019, 0.70710677
      %v5117 = vmul.f32 %v5021, 0.70710677
      %v5118 = vmul.f32 %v5023, 0.70710677
      %v5119 = vmul.f32 %v5027, 0.70710677
      %v5120 = vmul.f32 %v5029, 0.70710677
      %v5121 = vmul.f32 %v5031, 0.70710677
      %v5122 = vmul.f32 %v5033, 0.70710677
      %v5123 = vmul.f32 %v5037, 0.70710677
      %v5124 = vmul.f32 %v5039, 0.70710677
      %v5125 = vmul.f32 %v5041, 0.70710677
      %v5126 = vmul.f32 %v5043, 0.70710677
      %v5127 = vmul.f32 %v5047, 0.70710677
      %v5128 = vmul.f32 %v5049, 0.70710677
      %v5129 = vmul.f32 %v5051, 0.70710677
      %v5130 = vmul.f32 %v5053, 0.70710677
      %v5131 = vmul.f32 %v5057, 0.70710677
      %v5132 = vmul.f32 %v5059, 0.70710677
      %v5133 = vmul.f32 %v5061, 0.70710677
      %v5134 = vmul.f32 %v5063, 0.70710677
      %v5135 = vmul.f32 %v5067, 0.70710677
      %v5136 = vmul.f32 %v5069, 0.70710677
      %v5137 = vmul.f32 %v5071, 0.70710677
      %v5138 = vmul.f32 %v5073, 0.70710677
      %v5139 = verf.f32.pop %v5107
      %v5140 = verf.f32.pop %v5108
      %v5141 = verf.f32.pop %v5109
      %v5142 = verf.f32.pop %v5110
      %v5143 = verf.f32.pop %v5111
      %v5144 = verf.f32.pop %v5112
      %v5145 = verf.f32.pop %v5113
      %v5146 = verf.f32.pop %v5114
      %v5147 = verf.f32.pop %v5115
      %v5148 = verf.f32.pop %v5116
      %v5149 = verf.f32.pop %v5117
      %v5150 = verf.f32.pop %v5118
      %v5151 = verf.f32.pop %v5119
      %v5152 = verf.f32.pop %v5120
      %v5153 = verf.f32.pop %v5121
      %v5154 = verf.f32.pop %v5122
      %v5155 = verf.f32.pop %v5123
      %v5156 = verf.f32.pop %v5124
      %v5157 = verf.f32.pop %v5125
      %v5158 = verf.f32.pop %v5126
      %v5159 = verf.f32.pop %v5127
      %v5160 = verf.f32.pop %v5128
      %v5161 = verf.f32.pop %v5129
      %v5162 = verf.f32.pop %v5130
      %v5163 = verf.f32.pop %v5131
      %v5164 = verf.f32.pop %v5132
      %v5165 = verf.f32.pop %v5133
      %v5166 = verf.f32.pop %v5134
      %v5167 = verf.f32.pop %v5135
      %v5168 = verf.f32.pop %v5136
      %v5169 = verf.f32.pop %v5137
      %v5170 = verf.f32.pop %v5138
      %v5171 = vadd.f32 %v5139, 1.0
      %v5172 = vadd.f32 %v5140, 1.0
      %v5173 = vadd.f32 %v5141, 1.0
      %v5174 = vadd.f32 %v5142, 1.0
      %v5175 = vadd.f32 %v5143, 1.0
      %v5176 = vadd.f32 %v5144, 1.0
      %v5177 = vadd.f32 %v5145, 1.0
      %v5178 = vadd.f32 %v5146, 1.0
      %v5179 = vadd.f32 %v5147, 1.0
      %v5180 = vadd.f32 %v5148, 1.0
      %v5181 = vadd.f32 %v5149, 1.0
      %v5182 = vadd.f32 %v5150, 1.0
      %v5183 = vadd.f32 %v5151, 1.0
      %v5184 = vadd.f32 %v5152, 1.0
      %v5185 = vadd.f32 %v5153, 1.0
      %v5186 = vadd.f32 %v5154, 1.0
      %v5187 = vadd.f32 %v5155, 1.0
      %v5188 = vadd.f32 %v5156, 1.0
      %v5189 = vadd.f32 %v5157, 1.0
      %v5190 = vadd.f32 %v5158, 1.0
      %v5191 = vadd.f32 %v5159, 1.0
      %v5192 = vadd.f32 %v5160, 1.0
      %v5193 = vadd.f32 %v5161, 1.0
      %v5194 = vadd.f32 %v5162, 1.0
      %v5195 = vadd.f32 %v5163, 1.0
      %v5196 = vadd.f32 %v5164, 1.0
      %v5197 = vadd.f32 %v5165, 1.0
      %v5198 = vadd.f32 %v5166, 1.0
      %v5199 = vadd.f32 %v5167, 1.0
      %v5200 = vadd.f32 %v5168, 1.0
      %v5201 = vadd.f32 %v5169, 1.0
      %v5202 = vadd.f32 %v5170, 1.0
      %v5203 = vmul.f32 %v5075, %v5171
      %v5204 = vmul.f32 %v5076, %v5172
      %v5205 = vmul.f32 %v5077, %v5173
      %v5206 = vmul.f32 %v5078, %v5174
      %v5207 = vmul.f32 %v5079, %v5175
      %v5208 = vmul.f32 %v5080, %v5176
      %v5209 = vmul.f32 %v5081, %v5177
      %v5210 = vmul.f32 %v5082, %v5178
      %v5211 = vmul.f32 %v5083, %v5179
      %v5212 = vmul.f32 %v5084, %v5180
      %v5213 = vmul.f32 %v5085, %v5181
      %v5214 = vmul.f32 %v5086, %v5182
      %v5215 = vmul.f32 %v5087, %v5183
      %v5216 = vmul.f32 %v5088, %v5184
      %v5217 = vmul.f32 %v5089, %v5185
      %v5218 = vmul.f32 %v5090, %v5186
      %v5219 = vmul.f32 %v5091, %v5187
      %v5220 = vmul.f32 %v5092, %v5188
      %v5221 = vmul.f32 %v5093, %v5189
      %v5222 = vmul.f32 %v5094, %v5190
      %v5223 = vmul.f32 %v5095, %v5191
      %v5224 = vmul.f32 %v5096, %v5192
      %v5225 = vmul.f32 %v5097, %v5193
      %v5226 = vmul.f32 %v5098, %v5194
      %v5227 = vmul.f32 %v5099, %v5195
      %v5228 = vmul.f32 %v5100, %v5196
      %v5229 = vmul.f32 %v5101, %v5197
      %v5230 = vmul.f32 %v5102, %v5198
      %v5231 = vmul.f32 %v5103, %v5199
      %v5232 = vmul.f32 %v5104, %v5200
      %v5233 = vmul.f32 %v5105, %v5201
      %v5234 = vmul.f32 %v5106, %v5202
      %v5235 = vpack.c.bf16 %v5205, %v5203
      %v5236 = vpack.c.bf16 %v5206, %v5204
      %v5237 = vpack.c.bf16 %v5209, %v5207
      %v5238 = vpack.c.bf16 %v5210, %v5208
      %v5239 = vpack.c.bf16 %v5213, %v5211
      %v5240 = vpack.c.bf16 %v5214, %v5212
      %v5241 = vpack.c.bf16 %v5217, %v5215
      %v5242 = vpack.c.bf16 %v5218, %v5216
      %v5243 = vpack.c.bf16 %v5221, %v5219
      %v5244 = vpack.c.bf16 %v5222, %v5220
      %v5245 = vpack.c.bf16 %v5225, %v5223
      %v5246 = vpack.c.bf16 %v5226, %v5224
      %v5247 = vpack.c.bf16 %v5229, %v5227
      %v5248 = vpack.c.bf16 %v5230, %v5228
      %v5249 = vpack.c.bf16 %v5233, %v5231
      %v5250 = vpack.c.bf16 %v5234, %v5232
      %v5267 = vunpack.c.l.b16 %v5235
      %v5268 = vunpack.c.l.b16 %v5236
      %v5269 = vunpack.c.h.b16 %v5235
      %v5270 = vunpack.c.h.b16 %v5236
      %v5271 = vunpack.c.l.b16 %v5237
      %v5272 = vunpack.c.l.b16 %v5238
      %v5273 = vunpack.c.h.b16 %v5237
      %v5274 = vunpack.c.h.b16 %v5238
      %v5275 = vunpack.c.l.b16 %v5239
      %v5276 = vunpack.c.l.b16 %v5240
      %v5277 = vunpack.c.h.b16 %v5239
      %v5278 = vunpack.c.h.b16 %v5240
      %v5279 = vunpack.c.l.b16 %v5241
      %v5280 = vunpack.c.l.b16 %v5242
      %v5281 = vunpack.c.h.b16 %v5241
      %v5282 = vunpack.c.h.b16 %v5242
      %v5283 = vunpack.c.l.b16 %v5243
      %v5284 = vunpack.c.l.b16 %v5244
      %v5285 = vunpack.c.h.b16 %v5243
      %v5286 = vunpack.c.h.b16 %v5244
      %v5287 = vunpack.c.l.b16 %v5245
      %v5288 = vunpack.c.l.b16 %v5246
      %v5289 = vunpack.c.h.b16 %v5245
      %v5290 = vunpack.c.h.b16 %v5246
      %v5291 = vunpack.c.l.b16 %v5247
      %v5292 = vunpack.c.l.b16 %v5248
      %v5293 = vunpack.c.h.b16 %v5247
      %v5294 = vunpack.c.h.b16 %v5248
      %v5295 = vunpack.c.l.b16 %v5249
      %v5296 = vunpack.c.l.b16 %v5250
      %v5297 = vunpack.c.h.b16 %v5249
      %v5298 = vunpack.c.h.b16 %v5250
      %v5299 = vpack.c.b16 %v5268, %v5267
      %v5300 = vpack.c.b16 %v5270, %v5269
      %v5301 = vpack.c.b16 %v5272, %v5271
      %v5302 = vpack.c.b16 %v5274, %v5273
      %v5303 = vpack.c.b16 %v5276, %v5275
      %v5304 = vpack.c.b16 %v5278, %v5277
      %v5305 = vpack.c.b16 %v5280, %v5279
      %v5306 = vpack.c.b16 %v5282, %v5281
      %v5307 = vpack.c.b16 %v5284, %v5283
      %v5308 = vpack.c.b16 %v5286, %v5285
      %v5309 = vpack.c.b16 %v5288, %v5287
      %v5310 = vpack.c.b16 %v5290, %v5289
      %v5311 = vpack.c.b16 %v5292, %v5291
      %v5312 = vpack.c.b16 %v5294, %v5293
      %v5313 = vpack.c.b16 %v5296, %v5295
      %v5314 = vpack.c.b16 %v5298, %v5297
      %5331 = vst [vmem:[#allocation3 + $0x180] sm:$0xff] %v5299
      %5332 = vst [vmem:[#allocation3 + $0x188] sm:$0xff] %v5300
      %5333 = vst [vmem:[#allocation3 + $0x190] sm:$0xff] %v5301
      %5334 = vst [vmem:[#allocation3 + $0x198] sm:$0xff] %v5302
      %5335 = vst [vmem:[#allocation3 + $0x1a0] sm:$0xff] %v5303
      %5336 = vst [vmem:[#allocation3 + $0x1a8] sm:$0xff] %v5304
      %5337 = vst [vmem:[#allocation3 + $0x1b0] sm:$0xff] %v5305
      %5338 = vst [vmem:[#allocation3 + $0x1b8] sm:$0xff] %v5306
      %5339 = vst [vmem:[#allocation3 + $0x1c0] sm:$0xff] %v5307
      %5340 = vst [vmem:[#allocation3 + $0x1c8] sm:$0xff] %v5308
      %5341 = vst [vmem:[#allocation3 + $0x1d0] sm:$0xff] %v5309
      %5342 = vst [vmem:[#allocation3 + $0x1d8] sm:$0xff] %v5310
      %5343 = vst [vmem:[#allocation3 + $0x1e0] sm:$0xff] %v5311
      %5344 = vst [vmem:[#allocation3 + $0x1e8] sm:$0xff] %v5312
      %5345 = vst [vmem:[#allocation3 + $0x1f0] sm:$0xff] %v5313
      %5346 = vst [vmem:[#allocation3 + $0x1f8] sm:$0xff] %v5314
      %v5347 = vld [vmem:[#allocation3] sm:$0xff]
      %v5348 = vld [vmem:[#allocation3 + $0x8] sm:$0xff]
      %v5349 = vld [vmem:[#allocation3 + $0x10] sm:$0xff]
      %v5350 = vld [vmem:[#allocation3 + $0x18] sm:$0xff]
      %v5351 = vld [vmem:[#allocation3 + $0x20] sm:$0xff]
      %v5352 = vld [vmem:[#allocation3 + $0x28] sm:$0xff]
      %v5353 = vld [vmem:[#allocation3 + $0x30] sm:$0xff]
      %v5354 = vld [vmem:[#allocation3 + $0x38] sm:$0xff]
      %v5355 = vld [vmem:[#allocation3 + $0x40] sm:$0xff]
      %v5356 = vld [vmem:[#allocation3 + $0x48] sm:$0xff]
      %v5357 = vld [vmem:[#allocation3 + $0x50] sm:$0xff]
      %v5358 = vld [vmem:[#allocation3 + $0x58] sm:$0xff]
      %v5359 = vld [vmem:[#allocation3 + $0x60] sm:$0xff]
      %v5360 = vld [vmem:[#allocation3 + $0x68] sm:$0xff]
      %v5361 = vld [vmem:[#allocation3 + $0x70] sm:$0xff]
      %v5362 = vld [vmem:[#allocation3 + $0x78] sm:$0xff]
      %v5363 = vld [vmem:[#allocation3 + $0x80] sm:$0xff]
      %v5364 = vld [vmem:[#allocation3 + $0x88] sm:$0xff]
      %v5365 = vld [vmem:[#allocation3 + $0x90] sm:$0xff]
      %v5366 = vld [vmem:[#allocation3 + $0x98] sm:$0xff]
      %v5367 = vld [vmem:[#allocation3 + $0xa0] sm:$0xff]
      %v5368 = vld [vmem:[#allocation3 + $0xa8] sm:$0xff]
      %v5369 = vld [vmem:[#allocation3 + $0xb0] sm:$0xff]
      %v5370 = vld [vmem:[#allocation3 + $0xb8] sm:$0xff]
      %v5371 = vld [vmem:[#allocation3 + $0xc0] sm:$0xff]
      %v5372 = vld [vmem:[#allocation3 + $0xc8] sm:$0xff]
      %v5373 = vld [vmem:[#allocation3 + $0xd0] sm:$0xff]
      %v5374 = vld [vmem:[#allocation3 + $0xd8] sm:$0xff]
      %v5375 = vld [vmem:[#allocation3 + $0xe0] sm:$0xff]
      %v5376 = vld [vmem:[#allocation3 + $0xe8] sm:$0xff]
      %v5377 = vld [vmem:[#allocation3 + $0xf0] sm:$0xff]
      %v5378 = vld [vmem:[#allocation3 + $0xf8] sm:$0xff]
      %v5379 = vld [vmem:[#allocation3 + $0x100] sm:$0xff]
      %v5380 = vld [vmem:[#allocation3 + $0x108] sm:$0xff]
      %v5381 = vld [vmem:[#allocation3 + $0x110] sm:$0xff]
      %v5382 = vld [vmem:[#allocation3 + $0x118] sm:$0xff]
      %v5383 = vld [vmem:[#allocation3 + $0x120] sm:$0xff]
      %v5384 = vld [vmem:[#allocation3 + $0x128] sm:$0xff]
      %v5385 = vld [vmem:[#allocation3 + $0x130] sm:$0xff]
      %v5386 = vld [vmem:[#allocation3 + $0x138] sm:$0xff]
      %v5387 = vld [vmem:[#allocation3 + $0x140] sm:$0xff]
      %v5388 = vld [vmem:[#allocation3 + $0x148] sm:$0xff]
      %v5389 = vld [vmem:[#allocation3 + $0x150] sm:$0xff]
      %v5390 = vld [vmem:[#allocation3 + $0x158] sm:$0xff]
      %v5391 = vld [vmem:[#allocation3 + $0x160] sm:$0xff]
      %v5392 = vld [vmem:[#allocation3 + $0x168] sm:$0xff]
      %v5393 = vld [vmem:[#allocation3 + $0x170] sm:$0xff]
      %v5394 = vld [vmem:[#allocation3 + $0x178] sm:$0xff]
      %v5395 = vld [vmem:[#allocation3 + $0x180] sm:$0xff]
      %v5396 = vld [vmem:[#allocation3 + $0x188] sm:$0xff]
      %v5397 = vld [vmem:[#allocation3 + $0x190] sm:$0xff]
      %v5398 = vld [vmem:[#allocation3 + $0x198] sm:$0xff]
      %v5399 = vld [vmem:[#allocation3 + $0x1a0] sm:$0xff]
      %v5400 = vld [vmem:[#allocation3 + $0x1a8] sm:$0xff]
      %v5401 = vld [vmem:[#allocation3 + $0x1b0] sm:$0xff]
      %v5402 = vld [vmem:[#allocation3 + $0x1b8] sm:$0xff]
      %v5403 = vld [vmem:[#allocation3 + $0x1c0] sm:$0xff]
      %v5404 = vld [vmem:[#allocation3 + $0x1c8] sm:$0xff]
      %v5405 = vld [vmem:[#allocation3 + $0x1d0] sm:$0xff]
      %v5406 = vld [vmem:[#allocation3 + $0x1d8] sm:$0xff]
      %v5407 = vld [vmem:[#allocation3 + $0x1e0] sm:$0xff]
      %v5408 = vld [vmem:[#allocation3 + $0x1e8] sm:$0xff]
      %v5409 = vld [vmem:[#allocation3 + $0x1f0] sm:$0xff]
      %v5410 = vld [vmem:[#allocation3 + $0x1f8] sm:$0xff]
      %v5411 = vld [vmem:[%s6] sm:$0x3]
      %v5412 = vld [vmem:[%s5] sm:$0xff]
      %v5413 = vld [vmem:[%s5 + $0x8] sm:$0xff]
      %v5414 = vld [vmem:[%s5 + $0x10] sm:$0xff]
      %v5415 = vld [vmem:[%s5 + $0x18] sm:$0xff]
      %v5416 = vld [vmem:[%s5 + $0x20] sm:$0xff]
      %v5417 = vld [vmem:[%s5 + $0x28] sm:$0xff]
      %v5418 = vld [vmem:[%s5 + $0x30] sm:$0xff]
      %v5419 = vld [vmem:[%s5 + $0x38] sm:$0xff]
      %v5420 = vld [vmem:[%s5 + $0x40] sm:$0xff]
      %v5421 = vld [vmem:[%s5 + $0x48] sm:$0xff]
      %v5422 = vld [vmem:[%s5 + $0x50] sm:$0xff]
      %v5423 = vld [vmem:[%s5 + $0x58] sm:$0xff]
      %v5424 = vld [vmem:[%s5 + $0x60] sm:$0xff]
      %v5425 = vld [vmem:[%s5 + $0x68] sm:$0xff]
      %v5426 = vld [vmem:[%s5 + $0x70] sm:$0xff]
      %v5427 = vld [vmem:[%s5 + $0x78] sm:$0xff]
      %v5428 = vld [vmem:[%s5 + $0x80] sm:$0xff]
      %v5429 = vld [vmem:[%s5 + $0x88] sm:$0xff]
      %v5430 = vld [vmem:[%s5 + $0x90] sm:$0xff]
      %v5431 = vld [vmem:[%s5 + $0x98] sm:$0xff]
      %v5432 = vld [vmem:[%s5 + $0xa0] sm:$0xff]
      %v5433 = vld [vmem:[%s5 + $0xa8] sm:$0xff]
      %v5434 = vld [vmem:[%s5 + $0xb0] sm:$0xff]
      %v5435 = vld [vmem:[%s5 + $0xb8] sm:$0xff]
      %v5436 = vld [vmem:[%s5 + $0xc0] sm:$0xff]
      %v5437 = vld [vmem:[%s5 + $0xc8] sm:$0xff]
      %v5438 = vld [vmem:[%s5 + $0xd0] sm:$0xff]
      %v5439 = vld [vmem:[%s5 + $0xd8] sm:$0xff]
      %v5440 = vld [vmem:[%s5 + $0xe0] sm:$0xff]
      %v5441 = vld [vmem:[%s5 + $0xe8] sm:$0xff]
      %v5442 = vld [vmem:[%s5 + $0xf0] sm:$0xff]
      %v5443 = vld [vmem:[%s5 + $0xf8] sm:$0xff]
      %v5445 = vlaneseq
      %v5446 = vshrl.u32 %v5445, 7
      %v5447 = vsub.s32 0, %v5446
      %v5448 = vrot.slane %v5411, %v5447
      %v5449 = vlaneseq
      %v5450 = vshrl.u32 %v5449, 7
      %v5451 = vsub.s32 1, %v5450
      %v5452 = vrot.slane %v5411, %v5451
      %v5519 = vunpack.c.l.b16 %v5347
      %v5520 = vunpack.c.h.b16 %v5347
      %v5521 = vunpack.c.l.b16 %v5348
      %v5522 = vunpack.c.h.b16 %v5348
      %v5523 = vunpack.c.l.b16 %v5349
      %v5524 = vunpack.c.h.b16 %v5349
      %v5525 = vunpack.c.l.b16 %v5350
      %v5526 = vunpack.c.h.b16 %v5350
      %v5527 = vunpack.c.l.b16 %v5351
      %v5528 = vunpack.c.h.b16 %v5351
      %v5529 = vunpack.c.l.b16 %v5352
      %v5530 = vunpack.c.h.b16 %v5352
      %v5531 = vunpack.c.l.b16 %v5353
      %v5532 = vunpack.c.h.b16 %v5353
      %v5533 = vunpack.c.l.b16 %v5354
      %v5534 = vunpack.c.h.b16 %v5354
      %v5535 = vunpack.c.l.b16 %v5355
      %v5536 = vunpack.c.h.b16 %v5355
      %v5537 = vunpack.c.l.b16 %v5356
      %v5538 = vunpack.c.h.b16 %v5356
      %v5539 = vunpack.c.l.b16 %v5357
      %v5540 = vunpack.c.h.b16 %v5357
      %v5541 = vunpack.c.l.b16 %v5358
      %v5542 = vunpack.c.h.b16 %v5358
      %v5543 = vunpack.c.l.b16 %v5359
      %v5544 = vunpack.c.h.b16 %v5359
      %v5545 = vunpack.c.l.b16 %v5360
      %v5546 = vunpack.c.h.b16 %v5360
      %v5547 = vunpack.c.l.b16 %v5361
      %v5548 = vunpack.c.h.b16 %v5361
      %v5549 = vunpack.c.l.b16 %v5362
      %v5550 = vunpack.c.h.b16 %v5362
      %v5551 = vunpack.c.l.b16 %v5363
      %v5552 = vunpack.c.h.b16 %v5363
      %v5553 = vunpack.c.l.b16 %v5364
      %v5554 = vunpack.c.h.b16 %v5364
      %v5555 = vunpack.c.l.b16 %v5365
      %v5556 = vunpack.c.h.b16 %v5365
      %v5557 = vunpack.c.l.b16 %v5366
      %v5558 = vunpack.c.h.b16 %v5366
      %v5559 = vunpack.c.l.b16 %v5367
      %v5560 = vunpack.c.h.b16 %v5367
      %v5561 = vunpack.c.l.b16 %v5368
      %v5562 = vunpack.c.h.b16 %v5368
      %v5563 = vunpack.c.l.b16 %v5369
      %v5564 = vunpack.c.h.b16 %v5369
      %v5565 = vunpack.c.l.b16 %v5370
      %v5566 = vunpack.c.h.b16 %v5370
      %v5567 = vunpack.c.l.b16 %v5371
      %v5568 = vunpack.c.h.b16 %v5371
      %v5569 = vunpack.c.l.b16 %v5372
      %v5570 = vunpack.c.h.b16 %v5372
      %v5571 = vunpack.c.l.b16 %v5373
      %v5572 = vunpack.c.h.b16 %v5373
      %v5573 = vunpack.c.l.b16 %v5374
      %v5574 = vunpack.c.h.b16 %v5374
      %v5575 = vunpack.c.l.b16 %v5375
      %v5576 = vunpack.c.h.b16 %v5375
      %v5577 = vunpack.c.l.b16 %v5376
      %v5578 = vunpack.c.h.b16 %v5376
      %v5579 = vunpack.c.l.b16 %v5377
      %v5580 = vunpack.c.h.b16 %v5377
      %v5581 = vunpack.c.l.b16 %v5378
      %v5582 = vunpack.c.h.b16 %v5378
      %v5583 = vunpack.c.l.b16 %v5379
      %v5584 = vunpack.c.h.b16 %v5379
      %v5585 = vunpack.c.l.b16 %v5380
      %v5586 = vunpack.c.h.b16 %v5380
      %v5587 = vunpack.c.l.b16 %v5381
      %v5588 = vunpack.c.h.b16 %v5381
      %v5589 = vunpack.c.l.b16 %v5382
      %v5590 = vunpack.c.h.b16 %v5382
      %v5591 = vunpack.c.l.b16 %v5383
      %v5592 = vunpack.c.h.b16 %v5383
      %v5593 = vunpack.c.l.b16 %v5384
      %v5594 = vunpack.c.h.b16 %v5384
      %v5595 = vunpack.c.l.b16 %v5385
      %v5596 = vunpack.c.h.b16 %v5385
      %v5597 = vunpack.c.l.b16 %v5386
      %v5598 = vunpack.c.h.b16 %v5386
      %v5599 = vunpack.c.l.b16 %v5387
      %v5600 = vunpack.c.h.b16 %v5387
      %v5601 = vunpack.c.l.b16 %v5388
      %v5602 = vunpack.c.h.b16 %v5388
      %v5603 = vunpack.c.l.b16 %v5389
      %v5604 = vunpack.c.h.b16 %v5389
      %v5605 = vunpack.c.l.b16 %v5390
      %v5606 = vunpack.c.h.b16 %v5390
      %v5607 = vunpack.c.l.b16 %v5391
      %v5608 = vunpack.c.h.b16 %v5391
      %v5609 = vunpack.c.l.b16 %v5392
      %v5610 = vunpack.c.h.b16 %v5392
      %v5611 = vunpack.c.l.b16 %v5393
      %v5612 = vunpack.c.h.b16 %v5393
      %v5613 = vunpack.c.l.b16 %v5394
      %v5614 = vunpack.c.h.b16 %v5394
      %v5615 = vunpack.c.l.b16 %v5395
      %v5616 = vunpack.c.h.b16 %v5395
      %v5617 = vunpack.c.l.b16 %v5396
      %v5618 = vunpack.c.h.b16 %v5396
      %v5619 = vunpack.c.l.b16 %v5397
      %v5620 = vunpack.c.h.b16 %v5397
      %v5621 = vunpack.c.l.b16 %v5398
      %v5622 = vunpack.c.h.b16 %v5398
      %v5623 = vunpack.c.l.b16 %v5399
      %v5624 = vunpack.c.h.b16 %v5399
      %v5625 = vunpack.c.l.b16 %v5400
      %v5626 = vunpack.c.h.b16 %v5400
      %v5627 = vunpack.c.l.b16 %v5401
      %v5628 = vunpack.c.h.b16 %v5401
      %v5629 = vunpack.c.l.b16 %v5402
      %v5630 = vunpack.c.h.b16 %v5402
      %v5631 = vunpack.c.l.b16 %v5403
      %v5632 = vunpack.c.h.b16 %v5403
      %v5633 = vunpack.c.l.b16 %v5404
      %v5634 = vunpack.c.h.b16 %v5404
      %v5635 = vunpack.c.l.b16 %v5405
      %v5636 = vunpack.c.h.b16 %v5405
      %v5637 = vunpack.c.l.b16 %v5406
      %v5638 = vunpack.c.h.b16 %v5406
      %v5639 = vunpack.c.l.b16 %v5407
      %v5640 = vunpack.c.h.b16 %v5407
      %v5641 = vunpack.c.l.b16 %v5408
      %v5642 = vunpack.c.h.b16 %v5408
      %v5643 = vunpack.c.l.b16 %v5409
      %v5644 = vunpack.c.h.b16 %v5409
      %v5645 = vunpack.c.l.b16 %v5410
      %v5646 = vunpack.c.h.b16 %v5410
      %v5647 = vpack.c.b16 %v5521, %v5519
      %v5648 = vpack.c.b16 %v5522, %v5520
      %v5649 = vpack.c.b16 %v5525, %v5523
      %v5650 = vpack.c.b16 %v5526, %v5524
      %v5651 = vpack.c.b16 %v5529, %v5527
      %v5652 = vpack.c.b16 %v5530, %v5528
      %v5653 = vpack.c.b16 %v5533, %v5531
      %v5654 = vpack.c.b16 %v5534, %v5532
      %v5655 = vpack.c.b16 %v5537, %v5535
      %v5656 = vpack.c.b16 %v5538, %v5536
      %v5657 = vpack.c.b16 %v5541, %v5539
      %v5658 = vpack.c.b16 %v5542, %v5540
      %v5659 = vpack.c.b16 %v5545, %v5543
      %v5660 = vpack.c.b16 %v5546, %v5544
      %v5661 = vpack.c.b16 %v5549, %v5547
      %v5662 = vpack.c.b16 %v5550, %v5548
      %v5663 = vpack.c.b16 %v5553, %v5551
      %v5664 = vpack.c.b16 %v5554, %v5552
      %v5665 = vpack.c.b16 %v5557, %v5555
      %v5666 = vpack.c.b16 %v5558, %v5556
      %v5667 = vpack.c.b16 %v5561, %v5559
      %v5668 = vpack.c.b16 %v5562, %v5560
      %v5669 = vpack.c.b16 %v5565, %v5563
      %v5670 = vpack.c.b16 %v5566, %v5564
      %v5671 = vpack.c.b16 %v5569, %v5567
      %v5672 = vpack.c.b16 %v5570, %v5568
      %v5673 = vpack.c.b16 %v5573, %v5571
      %v5674 = vpack.c.b16 %v5574, %v5572
      %v5675 = vpack.c.b16 %v5577, %v5575
      %v5676 = vpack.c.b16 %v5578, %v5576
      %v5677 = vpack.c.b16 %v5581, %v5579
      %v5678 = vpack.c.b16 %v5582, %v5580
      %v5679 = vpack.c.b16 %v5585, %v5583
      %v5680 = vpack.c.b16 %v5586, %v5584
      %v5681 = vpack.c.b16 %v5589, %v5587
      %v5682 = vpack.c.b16 %v5590, %v5588
      %v5683 = vpack.c.b16 %v5593, %v5591
      %v5684 = vpack.c.b16 %v5594, %v5592
      %v5685 = vpack.c.b16 %v5597, %v5595
      %v5686 = vpack.c.b16 %v5598, %v5596
      %v5687 = vpack.c.b16 %v5601, %v5599
      %v5688 = vpack.c.b16 %v5602, %v5600
      %v5689 = vpack.c.b16 %v5605, %v5603
      %v5690 = vpack.c.b16 %v5606, %v5604
      %v5691 = vpack.c.b16 %v5609, %v5607
      %v5692 = vpack.c.b16 %v5610, %v5608
      %v5693 = vpack.c.b16 %v5613, %v5611
      %v5694 = vpack.c.b16 %v5614, %v5612
      %v5695 = vpack.c.b16 %v5617, %v5615
      %v5696 = vpack.c.b16 %v5618, %v5616
      %v5697 = vpack.c.b16 %v5621, %v5619
      %v5698 = vpack.c.b16 %v5622, %v5620
      %v5699 = vpack.c.b16 %v5625, %v5623
      %v5700 = vpack.c.b16 %v5626, %v5624
      %v5701 = vpack.c.b16 %v5629, %v5627
      %v5702 = vpack.c.b16 %v5630, %v5628
      %v5703 = vpack.c.b16 %v5633, %v5631
      %v5704 = vpack.c.b16 %v5634, %v5632
      %v5705 = vpack.c.b16 %v5637, %v5635
      %v5706 = vpack.c.b16 %v5638, %v5636
      %v5707 = vpack.c.b16 %v5641, %v5639
      %v5708 = vpack.c.b16 %v5642, %v5640
      %v5709 = vpack.c.b16 %v5645, %v5643
      %v5710 = vpack.c.b16 %v5646, %v5644
      %v5807 = vunpack.c.l.b16 %v5412
      %v5808 = vunpack.c.h.b16 %v5412
      %v5809 = vunpack.c.l.b16 %v5413
      %v5810 = vunpack.c.h.b16 %v5413
      %v5811 = vunpack.c.l.b16 %v5414
      %v5812 = vunpack.c.h.b16 %v5414
      %v5813 = vunpack.c.l.b16 %v5415
      %v5814 = vunpack.c.h.b16 %v5415
      %v5815 = vunpack.c.l.b16 %v5416
      %v5816 = vunpack.c.h.b16 %v5416
      %v5817 = vunpack.c.l.b16 %v5417
      %v5818 = vunpack.c.h.b16 %v5417
      %v5819 = vunpack.c.l.b16 %v5418
      %v5820 = vunpack.c.h.b16 %v5418
      %v5821 = vunpack.c.l.b16 %v5419
      %v5822 = vunpack.c.h.b16 %v5419
      %v5823 = vunpack.c.l.b16 %v5420
      %v5824 = vunpack.c.h.b16 %v5420
      %v5825 = vunpack.c.l.b16 %v5421
      %v5826 = vunpack.c.h.b16 %v5421
      %v5827 = vunpack.c.l.b16 %v5422
      %v5828 = vunpack.c.h.b16 %v5422
      %v5829 = vunpack.c.l.b16 %v5423
      %v5830 = vunpack.c.h.b16 %v5423
      %v5831 = vunpack.c.l.b16 %v5424
      %v5832 = vunpack.c.h.b16 %v5424
      %v5833 = vunpack.c.l.b16 %v5425
      %v5834 = vunpack.c.h.b16 %v5425
      %v5835 = vunpack.c.l.b16 %v5426
      %v5836 = vunpack.c.h.b16 %v5426
      %v5837 = vunpack.c.l.b16 %v5427
      %v5838 = vunpack.c.h.b16 %v5427
      %v5839 = vunpack.c.l.b16 %v5428
      %v5840 = vunpack.c.h.b16 %v5428
      %v5841 = vunpack.c.l.b16 %v5429
      %v5842 = vunpack.c.h.b16 %v5429
      %v5843 = vunpack.c.l.b16 %v5430
      %v5844 = vunpack.c.h.b16 %v5430
      %v5845 = vunpack.c.l.b16 %v5431
      %v5846 = vunpack.c.h.b16 %v5431
      %v5847 = vunpack.c.l.b16 %v5432
      %v5848 = vunpack.c.h.b16 %v5432
      %v5849 = vunpack.c.l.b16 %v5433
      %v5850 = vunpack.c.h.b16 %v5433
      %v5851 = vunpack.c.l.b16 %v5434
      %v5852 = vunpack.c.h.b16 %v5434
      %v5853 = vunpack.c.l.b16 %v5435
      %v5854 = vunpack.c.h.b16 %v5435
      %v5855 = vunpack.c.l.b16 %v5436
      %v5856 = vunpack.c.h.b16 %v5436
      %v5857 = vunpack.c.l.b16 %v5437
      %v5858 = vunpack.c.h.b16 %v5437
      %v5859 = vunpack.c.l.b16 %v5438
      %v5860 = vunpack.c.h.b16 %v5438
      %v5861 = vunpack.c.l.b16 %v5439
      %v5862 = vunpack.c.h.b16 %v5439
      %v5863 = vunpack.c.l.b16 %v5440
      %v5864 = vunpack.c.h.b16 %v5440
      %v5865 = vunpack.c.l.b16 %v5441
      %v5866 = vunpack.c.h.b16 %v5441
      %v5867 = vunpack.c.l.b16 %v5442
      %v5868 = vunpack.c.h.b16 %v5442
      %v5869 = vunpack.c.l.b16 %v5443
      %v5870 = vunpack.c.h.b16 %v5443
      %v5871 = vpack.c.b16 %v5809, %v5807
      %v5872 = vpack.c.b16 %v5810, %v5808
      %v5873 = vpack.c.b16 %v5813, %v5811
      %v5874 = vpack.c.b16 %v5814, %v5812
      %v5875 = vpack.c.b16 %v5817, %v5815
      %v5876 = vpack.c.b16 %v5818, %v5816
      %v5877 = vpack.c.b16 %v5821, %v5819
      %v5878 = vpack.c.b16 %v5822, %v5820
      %v5879 = vpack.c.b16 %v5825, %v5823
      %v5880 = vpack.c.b16 %v5826, %v5824
      %v5881 = vpack.c.b16 %v5829, %v5827
      %v5882 = vpack.c.b16 %v5830, %v5828
      %v5883 = vpack.c.b16 %v5833, %v5831
      %v5884 = vpack.c.b16 %v5834, %v5832
      %v5885 = vpack.c.b16 %v5837, %v5835
      %v5886 = vpack.c.b16 %v5838, %v5836
      %v5887 = vpack.c.b16 %v5841, %v5839
      %v5888 = vpack.c.b16 %v5842, %v5840
      %v5889 = vpack.c.b16 %v5845, %v5843
      %v5890 = vpack.c.b16 %v5846, %v5844
      %v5891 = vpack.c.b16 %v5849, %v5847
      %v5892 = vpack.c.b16 %v5850, %v5848
      %v5893 = vpack.c.b16 %v5853, %v5851
      %v5894 = vpack.c.b16 %v5854, %v5852
      %v5895 = vpack.c.b16 %v5857, %v5855
      %v5896 = vpack.c.b16 %v5858, %v5856
      %v5897 = vpack.c.b16 %v5861, %v5859
      %v5898 = vpack.c.b16 %v5862, %v5860
      %v5899 = vpack.c.b16 %v5865, %v5863
      %v5900 = vpack.c.b16 %v5866, %v5864
      %v5901 = vpack.c.b16 %v5869, %v5867
      %v5902 = vpack.c.b16 %v5870, %v5868
      %5935 = vmatprep.subr.bf16.mxu0 %v5886
      %5936 = vmatpush1.bf16.msra.mxu0 %v5885
      %5937 = vmatprep.subr.bf16.mxu0 %v5884
      %5938 = vmatpush1.bf16.msra.mxu0 %v5883
      %5939 = vmatprep.subr.bf16.mxu0 %v5882
      %5940 = vmatpush1.bf16.msra.mxu0 %v5881
      %5941 = vmatprep.subr.bf16.mxu0 %v5880
      %5942 = vmatpush1.bf16.msra.mxu0 %v5879
      %5943 = vmatprep.subr.bf16.mxu0 %v5878
      %5944 = vmatpush1.bf16.msra.mxu0 %v5877
      %5945 = vmatprep.subr.bf16.mxu0 %v5876
      %5946 = vmatpush1.bf16.msra.mxu0 %v5875
      %5947 = vmatprep.subr.bf16.mxu0 %v5874
      %5948 = vmatpush1.bf16.msra.mxu0 %v5873
      %5949 = vmatprep.subr.bf16.mxu0 %v5872
      %5950 = vmatpush1.bf16.msra.mxu0 %v5871
      %5951 = vmatprep.subr.bf16.mxu0 %v5902
      %5952 = vmatpush2.bf16.msra.mxu0 %v5901
      %5953 = vmatprep.subr.bf16.mxu0 %v5900
      %5954 = vmatpush2.bf16.msra.mxu0 %v5899
      %5955 = vmatprep.subr.bf16.mxu0 %v5898
      %5956 = vmatpush2.bf16.msra.mxu0 %v5897
      %5957 = vmatprep.subr.bf16.mxu0 %v5896
      %5958 = vmatpush2.bf16.msra.mxu0 %v5895
      %5959 = vmatprep.subr.bf16.mxu0 %v5894
      %5960 = vmatpush2.bf16.msra.mxu0 %v5893
      %5961 = vmatprep.subr.bf16.mxu0 %v5892
      %5962 = vmatpush2.bf16.msra.mxu0 %v5891
      %5963 = vmatprep.subr.bf16.mxu0 %v5890
      %5964 = vmatpush2.bf16.msra.mxu0 %v5889
      %5965 = vmatprep.subr.bf16.mxu0 %v5888
      %5966 = vmatpush2.bf16.msra.mxu0 %v5887
      %5967 = vmatprep.mubr.bf16.mxu0 %v5648
      %5968 = vmatmul.mubr.bf16.gmra.mxu0 %v5647
      %v5969 = vpop.f32.mrf.mxu0
      %v5970 = vadd.f32 %v5448, %v5969
      %v5971 = vpop.f32.mrf.mxu0
      %v5972 = vadd.f32 %v5452, %v5971
      %v5973 = vpop.f32.mrf.mxu0
      %v5974 = vadd.f32 %v5448, %v5973
      %v5975 = vpop.f32.mrf.mxu0
      %v5976 = vadd.f32 %v5452, %v5975
      %5977 = vmatprep.mubr.bf16.mxu0 %v5650
      %5978 = vmatmul.mubr.bf16.gmra.mxu0 %v5649
      %v5979 = vpop.f32.mrf.mxu0
      %v5980 = vadd.f32 %v5448, %v5979
      %v5981 = vpop.f32.mrf.mxu0
      %v5982 = vadd.f32 %v5452, %v5981
      %v5983 = vpop.f32.mrf.mxu0
      %v5984 = vadd.f32 %v5448, %v5983
      %v5985 = vpop.f32.mrf.mxu0
      %v5986 = vadd.f32 %v5452, %v5985
      %5987 = vmatprep.mubr.bf16.mxu0 %v5652
      %5988 = vmatmul.mubr.bf16.gmra.mxu0 %v5651
      %v5989 = vpop.f32.mrf.mxu0
      %v5990 = vadd.f32 %v5448, %v5989
      %v5991 = vpop.f32.mrf.mxu0
      %v5992 = vadd.f32 %v5452, %v5991
      %v5993 = vpop.f32.mrf.mxu0
      %v5994 = vadd.f32 %v5448, %v5993
      %v5995 = vpop.f32.mrf.mxu0
      %v5996 = vadd.f32 %v5452, %v5995
      %5997 = vmatprep.mubr.bf16.mxu0 %v5654
      %5998 = vmatmul.mubr.bf16.gmra.mxu0 %v5653
      %v5999 = vpop.f32.mrf.mxu0
      %v6000 = vadd.f32 %v5448, %v5999
      %v6001 = vpop.f32.mrf.mxu0
      %v6002 = vadd.f32 %v5452, %v6001
      %v6003 = vpop.f32.mrf.mxu0
      %v6004 = vadd.f32 %v5448, %v6003
      %v6005 = vpop.f32.mrf.mxu0
      %v6006 = vadd.f32 %v5452, %v6005
      %6007 = vmatprep.mubr.bf16.mxu0 %v5656
      %6008 = vmatmul.mubr.bf16.gmra.mxu0 %v5655
      %v6009 = vpop.f32.mrf.mxu0
      %v6010 = vadd.f32 %v5448, %v6009
      %v6011 = vpop.f32.mrf.mxu0
      %v6012 = vadd.f32 %v5452, %v6011
      %v6013 = vpop.f32.mrf.mxu0
      %v6014 = vadd.f32 %v5448, %v6013
      %v6015 = vpop.f32.mrf.mxu0
      %v6016 = vadd.f32 %v5452, %v6015
      %6017 = vmatprep.mubr.bf16.mxu0 %v5658
      %6018 = vmatmul.mubr.bf16.gmra.mxu0 %v5657
      %v6019 = vpop.f32.mrf.mxu0
      %v6020 = vadd.f32 %v5448, %v6019
      %v6021 = vpop.f32.mrf.mxu0
      %v6022 = vadd.f32 %v5452, %v6021
      %v6023 = vpop.f32.mrf.mxu0
      %v6024 = vadd.f32 %v5448, %v6023
      %v6025 = vpop.f32.mrf.mxu0
      %v6026 = vadd.f32 %v5452, %v6025
      %6027 = vmatprep.mubr.bf16.mxu0 %v5660
      %6028 = vmatmul.mubr.bf16.gmra.mxu0 %v5659
      %v6029 = vpop.f32.mrf.mxu0
      %v6030 = vadd.f32 %v5448, %v6029
      %v6031 = vpop.f32.mrf.mxu0
      %v6032 = vadd.f32 %v5452, %v6031
      %v6033 = vpop.f32.mrf.mxu0
      %v6034 = vadd.f32 %v5448, %v6033
      %v6035 = vpop.f32.mrf.mxu0
      %v6036 = vadd.f32 %v5452, %v6035
      %6037 = vmatprep.mubr.bf16.mxu0 %v5662
      %6038 = vmatmul.mubr.bf16.gmra.mxu0 %v5661
      %v6039 = vpop.f32.mrf.mxu0
      %v6040 = vadd.f32 %v5448, %v6039
      %v6041 = vpop.f32.mrf.mxu0
      %v6042 = vadd.f32 %v5452, %v6041
      %v6043 = vpop.f32.mrf.mxu0
      %v6044 = vadd.f32 %v5448, %v6043
      %v6045 = vpop.f32.mrf.mxu0
      %v6046 = vadd.f32 %v5452, %v6045
      %6047 = vmatprep.mubr.bf16.mxu0 %v5664
      %6048 = vmatmul.mubr.bf16.gmra.mxu0 %v5663
      %v6049 = vpop.f32.mrf.mxu0
      %v6050 = vadd.f32 %v5448, %v6049
      %v6051 = vpop.f32.mrf.mxu0
      %v6052 = vadd.f32 %v5452, %v6051
      %v6053 = vpop.f32.mrf.mxu0
      %v6054 = vadd.f32 %v5448, %v6053
      %v6055 = vpop.f32.mrf.mxu0
      %v6056 = vadd.f32 %v5452, %v6055
      %6057 = vmatprep.mubr.bf16.mxu0 %v5666
      %6058 = vmatmul.mubr.bf16.gmra.mxu0 %v5665
      %v6059 = vpop.f32.mrf.mxu0
      %v6060 = vadd.f32 %v5448, %v6059
      %v6061 = vpop.f32.mrf.mxu0
      %v6062 = vadd.f32 %v5452, %v6061
      %v6063 = vpop.f32.mrf.mxu0
      %v6064 = vadd.f32 %v5448, %v6063
      %v6065 = vpop.f32.mrf.mxu0
      %v6066 = vadd.f32 %v5452, %v6065
      %6067 = vmatprep.mubr.bf16.mxu0 %v5668
      %6068 = vmatmul.mubr.bf16.gmra.mxu0 %v5667
      %v6069 = vpop.f32.mrf.mxu0
      %v6070 = vadd.f32 %v5448, %v6069
      %v6071 = vpop.f32.mrf.mxu0
      %v6072 = vadd.f32 %v5452, %v6071
      %v6073 = vpop.f32.mrf.mxu0
      %v6074 = vadd.f32 %v5448, %v6073
      %v6075 = vpop.f32.mrf.mxu0
      %v6076 = vadd.f32 %v5452, %v6075
      %6077 = vmatprep.mubr.bf16.mxu0 %v5670
      %6078 = vmatmul.mubr.bf16.gmra.mxu0 %v5669
      %v6079 = vpop.f32.mrf.mxu0
      %v6080 = vadd.f32 %v5448, %v6079
      %v6081 = vpop.f32.mrf.mxu0
      %v6082 = vadd.f32 %v5452, %v6081
      %v6083 = vpop.f32.mrf.mxu0
      %v6084 = vadd.f32 %v5448, %v6083
      %v6085 = vpop.f32.mrf.mxu0
      %v6086 = vadd.f32 %v5452, %v6085
      %6087 = vmatprep.mubr.bf16.mxu0 %v5672
      %6088 = vmatmul.mubr.bf16.gmra.mxu0 %v5671
      %v6089 = vpop.f32.mrf.mxu0
      %v6090 = vadd.f32 %v5448, %v6089
      %v6091 = vpop.f32.mrf.mxu0
      %v6092 = vadd.f32 %v5452, %v6091
      %v6093 = vpop.f32.mrf.mxu0
      %v6094 = vadd.f32 %v5448, %v6093
      %v6095 = vpop.f32.mrf.mxu0
      %v6096 = vadd.f32 %v5452, %v6095
      %6097 = vmatprep.mubr.bf16.mxu0 %v5674
      %6098 = vmatmul.mubr.bf16.gmra.mxu0 %v5673
      %v6099 = vpop.f32.mrf.mxu0
      %v6100 = vadd.f32 %v5448, %v6099
      %v6101 = vpop.f32.mrf.mxu0
      %v6102 = vadd.f32 %v5452, %v6101
      %v6103 = vpop.f32.mrf.mxu0
      %v6104 = vadd.f32 %v5448, %v6103
      %v6105 = vpop.f32.mrf.mxu0
      %v6106 = vadd.f32 %v5452, %v6105
      %6107 = vmatprep.mubr.bf16.mxu0 %v5676
      %6108 = vmatmul.mubr.bf16.gmra.mxu0 %v5675
      %v6109 = vpop.f32.mrf.mxu0
      %v6110 = vadd.f32 %v5448, %v6109
      %v6111 = vpop.f32.mrf.mxu0
      %v6112 = vadd.f32 %v5452, %v6111
      %v6113 = vpop.f32.mrf.mxu0
      %v6114 = vadd.f32 %v5448, %v6113
      %v6115 = vpop.f32.mrf.mxu0
      %v6116 = vadd.f32 %v5452, %v6115
      %6117 = vmatprep.mubr.bf16.mxu0 %v5678
      %6118 = vmatmul.mubr.bf16.gmra.mxu0 %v5677
      %v6119 = vpop.f32.mrf.mxu0
      %v6120 = vadd.f32 %v5448, %v6119
      %v6121 = vpop.f32.mrf.mxu0
      %v6122 = vadd.f32 %v5452, %v6121
      %v6123 = vpop.f32.mrf.mxu0
      %v6124 = vadd.f32 %v5448, %v6123
      %v6125 = vpop.f32.mrf.mxu0
      %v6126 = vadd.f32 %v5452, %v6125
      %6127 = vmatprep.mubr.bf16.mxu0 %v5680
      %6128 = vmatmul.mubr.bf16.gmra.mxu0 %v5679
      %v6129 = vpop.f32.mrf.mxu0
      %v6130 = vadd.f32 %v5448, %v6129
      %v6131 = vpop.f32.mrf.mxu0
      %v6132 = vadd.f32 %v5452, %v6131
      %v6133 = vpop.f32.mrf.mxu0
      %v6134 = vadd.f32 %v5448, %v6133
      %v6135 = vpop.f32.mrf.mxu0
      %v6136 = vadd.f32 %v5452, %v6135
      %6137 = vmatprep.mubr.bf16.mxu0 %v5682
      %6138 = vmatmul.mubr.bf16.gmra.mxu0 %v5681
      %v6139 = vpop.f32.mrf.mxu0
      %v6140 = vadd.f32 %v5448, %v6139
      %v6141 = vpop.f32.mrf.mxu0
      %v6142 = vadd.f32 %v5452, %v6141
      %v6143 = vpop.f32.mrf.mxu0
      %v6144 = vadd.f32 %v5448, %v6143
      %v6145 = vpop.f32.mrf.mxu0
      %v6146 = vadd.f32 %v5452, %v6145
      %6147 = vmatprep.mubr.bf16.mxu0 %v5684
      %6148 = vmatmul.mubr.bf16.gmra.mxu0 %v5683
      %v6149 = vpop.f32.mrf.mxu0
      %v6150 = vadd.f32 %v5448, %v6149
      %v6151 = vpop.f32.mrf.mxu0
      %v6152 = vadd.f32 %v5452, %v6151
      %v6153 = vpop.f32.mrf.mxu0
      %v6154 = vadd.f32 %v5448, %v6153
      %v6155 = vpop.f32.mrf.mxu0
      %v6156 = vadd.f32 %v5452, %v6155
      %6157 = vmatprep.mubr.bf16.mxu0 %v5686
      %6158 = vmatmul.mubr.bf16.gmra.mxu0 %v5685
      %v6159 = vpop.f32.mrf.mxu0
      %v6160 = vadd.f32 %v5448, %v6159
      %v6161 = vpop.f32.mrf.mxu0
      %v6162 = vadd.f32 %v5452, %v6161
      %v6163 = vpop.f32.mrf.mxu0
      %v6164 = vadd.f32 %v5448, %v6163
      %v6165 = vpop.f32.mrf.mxu0
      %v6166 = vadd.f32 %v5452, %v6165
      %6167 = vmatprep.mubr.bf16.mxu0 %v5688
      %6168 = vmatmul.mubr.bf16.gmra.mxu0 %v5687
      %v6169 = vpop.f32.mrf.mxu0
      %v6170 = vadd.f32 %v5448, %v6169
      %v6171 = vpop.f32.mrf.mxu0
      %v6172 = vadd.f32 %v5452, %v6171
      %v6173 = vpop.f32.mrf.mxu0
      %v6174 = vadd.f32 %v5448, %v6173
      %v6175 = vpop.f32.mrf.mxu0
      %v6176 = vadd.f32 %v5452, %v6175
      %6177 = vmatprep.mubr.bf16.mxu0 %v5690
      %6178 = vmatmul.mubr.bf16.gmra.mxu0 %v5689
      %v6179 = vpop.f32.mrf.mxu0
      %v6180 = vadd.f32 %v5448, %v6179
      %v6181 = vpop.f32.mrf.mxu0
      %v6182 = vadd.f32 %v5452, %v6181
      %v6183 = vpop.f32.mrf.mxu0
      %v6184 = vadd.f32 %v5448, %v6183
      %v6185 = vpop.f32.mrf.mxu0
      %v6186 = vadd.f32 %v5452, %v6185
      %6187 = vmatprep.mubr.bf16.mxu0 %v5692
      %6188 = vmatmul.mubr.bf16.gmra.mxu0 %v5691
      %v6189 = vpop.f32.mrf.mxu0
      %v6190 = vadd.f32 %v5448, %v6189
      %v6191 = vpop.f32.mrf.mxu0
      %v6192 = vadd.f32 %v5452, %v6191
      %v6193 = vpop.f32.mrf.mxu0
      %v6194 = vadd.f32 %v5448, %v6193
      %v6195 = vpop.f32.mrf.mxu0
      %v6196 = vadd.f32 %v5452, %v6195
      %6197 = vmatprep.mubr.bf16.mxu0 %v5694
      %6198 = vmatmul.mubr.bf16.gmra.mxu0 %v5693
      %v6199 = vpop.f32.mrf.mxu0
      %v6200 = vadd.f32 %v5448, %v6199
      %v6201 = vpop.f32.mrf.mxu0
      %v6202 = vadd.f32 %v5452, %v6201
      %v6203 = vpop.f32.mrf.mxu0
      %v6204 = vadd.f32 %v5448, %v6203
      %v6205 = vpop.f32.mrf.mxu0
      %v6206 = vadd.f32 %v5452, %v6205
      %6207 = vmatprep.mubr.bf16.mxu0 %v5696
      %6208 = vmatmul.mubr.bf16.gmra.mxu0 %v5695
      %v6209 = vpop.f32.mrf.mxu0
      %v6210 = vadd.f32 %v5448, %v6209
      %v6211 = vpop.f32.mrf.mxu0
      %v6212 = vadd.f32 %v5452, %v6211
      %v6213 = vpop.f32.mrf.mxu0
      %v6214 = vadd.f32 %v5448, %v6213
      %v6215 = vpop.f32.mrf.mxu0
      %v6216 = vadd.f32 %v5452, %v6215
      %6217 = vmatprep.mubr.bf16.mxu0 %v5698
      %6218 = vmatmul.mubr.bf16.gmra.mxu0 %v5697
      %v6219 = vpop.f32.mrf.mxu0
      %v6220 = vadd.f32 %v5448, %v6219
      %v6221 = vpop.f32.mrf.mxu0
      %v6222 = vadd.f32 %v5452, %v6221
      %v6223 = vpop.f32.mrf.mxu0
      %v6224 = vadd.f32 %v5448, %v6223
      %v6225 = vpop.f32.mrf.mxu0
      %v6226 = vadd.f32 %v5452, %v6225
      %6227 = vmatprep.mubr.bf16.mxu0 %v5700
      %6228 = vmatmul.mubr.bf16.gmra.mxu0 %v5699
      %v6229 = vpop.f32.mrf.mxu0
      %v6230 = vadd.f32 %v5448, %v6229
      %v6231 = vpop.f32.mrf.mxu0
      %v6232 = vadd.f32 %v5452, %v6231
      %v6233 = vpop.f32.mrf.mxu0
      %v6234 = vadd.f32 %v5448, %v6233
      %v6235 = vpop.f32.mrf.mxu0
      %v6236 = vadd.f32 %v5452, %v6235
      %6237 = vmatprep.mubr.bf16.mxu0 %v5702
      %6238 = vmatmul.mubr.bf16.gmra.mxu0 %v5701
      %v6239 = vpop.f32.mrf.mxu0
      %v6240 = vadd.f32 %v5448, %v6239
      %v6241 = vpop.f32.mrf.mxu0
      %v6242 = vadd.f32 %v5452, %v6241
      %v6243 = vpop.f32.mrf.mxu0
      %v6244 = vadd.f32 %v5448, %v6243
      %v6245 = vpop.f32.mrf.mxu0
      %v6246 = vadd.f32 %v5452, %v6245
      %6247 = vmatprep.mubr.bf16.mxu0 %v5704
      %6248 = vmatmul.mubr.bf16.gmra.mxu0 %v5703
      %v6249 = vpop.f32.mrf.mxu0
      %v6250 = vadd.f32 %v5448, %v6249
      %v6251 = vpop.f32.mrf.mxu0
      %v6252 = vadd.f32 %v5452, %v6251
      %v6253 = vpop.f32.mrf.mxu0
      %v6254 = vadd.f32 %v5448, %v6253
      %v6255 = vpop.f32.mrf.mxu0
      %v6256 = vadd.f32 %v5452, %v6255
      %6257 = vmatprep.mubr.bf16.mxu0 %v5706
      %6258 = vmatmul.mubr.bf16.gmra.mxu0 %v5705
      %v6259 = vpop.f32.mrf.mxu0
      %v6260 = vadd.f32 %v5448, %v6259
      %v6261 = vpop.f32.mrf.mxu0
      %v6262 = vadd.f32 %v5452, %v6261
      %v6263 = vpop.f32.mrf.mxu0
      %v6264 = vadd.f32 %v5448, %v6263
      %v6265 = vpop.f32.mrf.mxu0
      %v6266 = vadd.f32 %v5452, %v6265
      %6267 = vmatprep.mubr.bf16.mxu0 %v5708
      %6268 = vmatmul.mubr.bf16.gmra.mxu0 %v5707
      %v6269 = vpop.f32.mrf.mxu0
      %v6270 = vadd.f32 %v5448, %v6269
      %v6271 = vpop.f32.mrf.mxu0
      %v6272 = vadd.f32 %v5452, %v6271
      %v6273 = vpop.f32.mrf.mxu0
      %v6274 = vadd.f32 %v5448, %v6273
      %v6275 = vpop.f32.mrf.mxu0
      %v6276 = vadd.f32 %v5452, %v6275
      %6277 = vmatprep.mubr.bf16.mxu0 %v5710
      %6278 = vmatmul.mubr.bf16.gmra.mxu0 %v5709
      %v6279 = vpop.f32.mrf.mxu0
      %v6280 = vadd.f32 %v5448, %v6279
      %v6281 = vpop.f32.mrf.mxu0
      %v6282 = vadd.f32 %v5452, %v6281
      %v6283 = vpop.f32.mrf.mxu0
      %v6284 = vadd.f32 %v5448, %v6283
      %v6285 = vpop.f32.mrf.mxu0
      %v6286 = vadd.f32 %v5452, %v6285
      %6287 = vdwg.mxu0
      %v6288 = vmul.f32 %v5970, 0.5
      %v6289 = vmul.f32 %v5972, 0.5
      %v6290 = vmul.f32 %v5974, 0.5
      %v6291 = vmul.f32 %v5976, 0.5
      %v6292 = vmul.f32 %v5980, 0.5
      %v6293 = vmul.f32 %v5982, 0.5
      %v6294 = vmul.f32 %v5984, 0.5
      %v6295 = vmul.f32 %v5986, 0.5
      %v6296 = vmul.f32 %v5990, 0.5
      %v6297 = vmul.f32 %v5992, 0.5
      %v6298 = vmul.f32 %v5994, 0.5
      %v6299 = vmul.f32 %v5996, 0.5
      %v6300 = vmul.f32 %v6000, 0.5
      %v6301 = vmul.f32 %v6002, 0.5
      %v6302 = vmul.f32 %v6004, 0.5
      %v6303 = vmul.f32 %v6006, 0.5
      %v6304 = vmul.f32 %v6010, 0.5
      %v6305 = vmul.f32 %v6012, 0.5
      %v6306 = vmul.f32 %v6014, 0.5
      %v6307 = vmul.f32 %v6016, 0.5
      %v6308 = vmul.f32 %v6020, 0.5
      %v6309 = vmul.f32 %v6022, 0.5
      %v6310 = vmul.f32 %v6024, 0.5
      %v6311 = vmul.f32 %v6026, 0.5
      %v6312 = vmul.f32 %v6030, 0.5
      %v6313 = vmul.f32 %v6032, 0.5
      %v6314 = vmul.f32 %v6034, 0.5
      %v6315 = vmul.f32 %v6036, 0.5
      %v6316 = vmul.f32 %v6040, 0.5
      %v6317 = vmul.f32 %v6042, 0.5
      %v6318 = vmul.f32 %v6044, 0.5
      %v6319 = vmul.f32 %v6046, 0.5
      %v6320 = vmul.f32 %v6050, 0.5
      %v6321 = vmul.f32 %v6052, 0.5
      %v6322 = vmul.f32 %v6054, 0.5
      %v6323 = vmul.f32 %v6056, 0.5
      %v6324 = vmul.f32 %v6060, 0.5
      %v6325 = vmul.f32 %v6062, 0.5
      %v6326 = vmul.f32 %v6064, 0.5
      %v6327 = vmul.f32 %v6066, 0.5
      %v6328 = vmul.f32 %v6070, 0.5
      %v6329 = vmul.f32 %v6072, 0.5
      %v6330 = vmul.f32 %v6074, 0.5
      %v6331 = vmul.f32 %v6076, 0.5
      %v6332 = vmul.f32 %v6080, 0.5
      %v6333 = vmul.f32 %v6082, 0.5
      %v6334 = vmul.f32 %v6084, 0.5
      %v6335 = vmul.f32 %v6086, 0.5
      %v6336 = vmul.f32 %v6090, 0.5
      %v6337 = vmul.f32 %v6092, 0.5
      %v6338 = vmul.f32 %v6094, 0.5
      %v6339 = vmul.f32 %v6096, 0.5
      %v6340 = vmul.f32 %v6100, 0.5
      %v6341 = vmul.f32 %v6102, 0.5
      %v6342 = vmul.f32 %v6104, 0.5
      %v6343 = vmul.f32 %v6106, 0.5
      %v6344 = vmul.f32 %v6110, 0.5
      %v6345 = vmul.f32 %v6112, 0.5
      %v6346 = vmul.f32 %v6114, 0.5
      %v6347 = vmul.f32 %v6116, 0.5
      %v6348 = vmul.f32 %v6120, 0.5
      %v6349 = vmul.f32 %v6122, 0.5
      %v6350 = vmul.f32 %v6124, 0.5
      %v6351 = vmul.f32 %v6126, 0.5
      %v6352 = vmul.f32 %v6130, 0.5
      %v6353 = vmul.f32 %v6132, 0.5
      %v6354 = vmul.f32 %v6134, 0.5
      %v6355 = vmul.f32 %v6136, 0.5
      %v6356 = vmul.f32 %v6140, 0.5
      %v6357 = vmul.f32 %v6142, 0.5
      %v6358 = vmul.f32 %v6144, 0.5
      %v6359 = vmul.f32 %v6146, 0.5
      %v6360 = vmul.f32 %v6150, 0.5
      %v6361 = vmul.f32 %v6152, 0.5
      %v6362 = vmul.f32 %v6154, 0.5
      %v6363 = vmul.f32 %v6156, 0.5
      %v6364 = vmul.f32 %v6160, 0.5
      %v6365 = vmul.f32 %v6162, 0.5
      %v6366 = vmul.f32 %v6164, 0.5
      %v6367 = vmul.f32 %v6166, 0.5
      %v6368 = vmul.f32 %v6170, 0.5
      %v6369 = vmul.f32 %v6172, 0.5
      %v6370 = vmul.f32 %v6174, 0.5
      %v6371 = vmul.f32 %v6176, 0.5
      %v6372 = vmul.f32 %v6180, 0.5
      %v6373 = vmul.f32 %v6182, 0.5
      %v6374 = vmul.f32 %v6184, 0.5
      %v6375 = vmul.f32 %v6186, 0.5
      %v6376 = vmul.f32 %v6190, 0.5
      %v6377 = vmul.f32 %v6192, 0.5
      %v6378 = vmul.f32 %v6194, 0.5
      %v6379 = vmul.f32 %v6196, 0.5
      %v6380 = vmul.f32 %v6200, 0.5
      %v6381 = vmul.f32 %v6202, 0.5
      %v6382 = vmul.f32 %v6204, 0.5
      %v6383 = vmul.f32 %v6206, 0.5
      %v6384 = vmul.f32 %v6210, 0.5
      %v6385 = vmul.f32 %v6212, 0.5
      %v6386 = vmul.f32 %v6214, 0.5
      %v6387 = vmul.f32 %v6216, 0.5
      %v6388 = vmul.f32 %v6220, 0.5
      %v6389 = vmul.f32 %v6222, 0.5
      %v6390 = vmul.f32 %v6224, 0.5
      %v6391 = vmul.f32 %v6226, 0.5
      %v6392 = vmul.f32 %v6230, 0.5
      %v6393 = vmul.f32 %v6232, 0.5
      %v6394 = vmul.f32 %v6234, 0.5
      %v6395 = vmul.f32 %v6236, 0.5
      %v6396 = vmul.f32 %v6240, 0.5
      %v6397 = vmul.f32 %v6242, 0.5
      %v6398 = vmul.f32 %v6244, 0.5
      %v6399 = vmul.f32 %v6246, 0.5
      %v6400 = vmul.f32 %v6250, 0.5
      %v6401 = vmul.f32 %v6252, 0.5
      %v6402 = vmul.f32 %v6254, 0.5
      %v6403 = vmul.f32 %v6256, 0.5
      %v6404 = vmul.f32 %v6260, 0.5
      %v6405 = vmul.f32 %v6262, 0.5
      %v6406 = vmul.f32 %v6264, 0.5
      %v6407 = vmul.f32 %v6266, 0.5
      %v6408 = vmul.f32 %v6270, 0.5
      %v6409 = vmul.f32 %v6272, 0.5
      %v6410 = vmul.f32 %v6274, 0.5
      %v6411 = vmul.f32 %v6276, 0.5
      %v6412 = vmul.f32 %v6280, 0.5
      %v6413 = vmul.f32 %v6282, 0.5
      %v6414 = vmul.f32 %v6284, 0.5
      %v6415 = vmul.f32 %v6286, 0.5
      %v6416 = vmul.f32 %v5970, 0.70710677
      %v6417 = vmul.f32 %v5972, 0.70710677
      %v6418 = vmul.f32 %v5974, 0.70710677
      %v6419 = vmul.f32 %v5976, 0.70710677
      %v6420 = vmul.f32 %v5980, 0.70710677
      %v6421 = vmul.f32 %v5982, 0.70710677
      %v6422 = vmul.f32 %v5984, 0.70710677
      %v6423 = vmul.f32 %v5986, 0.70710677
      %v6424 = vmul.f32 %v5990, 0.70710677
      %v6425 = vmul.f32 %v5992, 0.70710677
      %v6426 = vmul.f32 %v5994, 0.70710677
      %v6427 = vmul.f32 %v5996, 0.70710677
      %v6428 = vmul.f32 %v6000, 0.70710677
      %v6429 = vmul.f32 %v6002, 0.70710677
      %v6430 = vmul.f32 %v6004, 0.70710677
      %v6431 = vmul.f32 %v6006, 0.70710677
      %v6432 = vmul.f32 %v6010, 0.70710677
      %v6433 = vmul.f32 %v6012, 0.70710677
      %v6434 = vmul.f32 %v6014, 0.70710677
      %v6435 = vmul.f32 %v6016, 0.70710677
      %v6436 = vmul.f32 %v6020, 0.70710677
      %v6437 = vmul.f32 %v6022, 0.70710677
      %v6438 = vmul.f32 %v6024, 0.70710677
      %v6439 = vmul.f32 %v6026, 0.70710677
      %v6440 = vmul.f32 %v6030, 0.70710677
      %v6441 = vmul.f32 %v6032, 0.70710677
      %v6442 = vmul.f32 %v6034, 0.70710677
      %v6443 = vmul.f32 %v6036, 0.70710677
      %v6444 = vmul.f32 %v6040, 0.70710677
      %v6445 = vmul.f32 %v6042, 0.70710677
      %v6446 = vmul.f32 %v6044, 0.70710677
      %v6447 = vmul.f32 %v6046, 0.70710677
      %v6448 = vmul.f32 %v6050, 0.70710677
      %v6449 = vmul.f32 %v6052, 0.70710677
      %v6450 = vmul.f32 %v6054, 0.70710677
      %v6451 = vmul.f32 %v6056, 0.70710677
      %v6452 = vmul.f32 %v6060, 0.70710677
      %v6453 = vmul.f32 %v6062, 0.70710677
      %v6454 = vmul.f32 %v6064, 0.70710677
      %v6455 = vmul.f32 %v6066, 0.70710677
      %v6456 = vmul.f32 %v6070, 0.70710677
      %v6457 = vmul.f32 %v6072, 0.70710677
      %v6458 = vmul.f32 %v6074, 0.70710677
      %v6459 = vmul.f32 %v6076, 0.70710677
      %v6460 = vmul.f32 %v6080, 0.70710677
      %v6461 = vmul.f32 %v6082, 0.70710677
      %v6462 = vmul.f32 %v6084, 0.70710677
      %v6463 = vmul.f32 %v6086, 0.70710677
      %v6464 = vmul.f32 %v6090, 0.70710677
      %v6465 = vmul.f32 %v6092, 0.70710677
      %v6466 = vmul.f32 %v6094, 0.70710677
      %v6467 = vmul.f32 %v6096, 0.70710677
      %v6468 = vmul.f32 %v6100, 0.70710677
      %v6469 = vmul.f32 %v6102, 0.70710677
      %v6470 = vmul.f32 %v6104, 0.70710677
      %v6471 = vmul.f32 %v6106, 0.70710677
      %v6472 = vmul.f32 %v6110, 0.70710677
      %v6473 = vmul.f32 %v6112, 0.70710677
      %v6474 = vmul.f32 %v6114, 0.70710677
      %v6475 = vmul.f32 %v6116, 0.70710677
      %v6476 = vmul.f32 %v6120, 0.70710677
      %v6477 = vmul.f32 %v6122, 0.70710677
      %v6478 = vmul.f32 %v6124, 0.70710677
      %v6479 = vmul.f32 %v6126, 0.70710677
      %v6480 = vmul.f32 %v6130, 0.70710677
      %v6481 = vmul.f32 %v6132, 0.70710677
      %v6482 = vmul.f32 %v6134, 0.70710677
      %v6483 = vmul.f32 %v6136, 0.70710677
      %v6484 = vmul.f32 %v6140, 0.70710677
      %v6485 = vmul.f32 %v6142, 0.70710677
      %v6486 = vmul.f32 %v6144, 0.70710677
      %v6487 = vmul.f32 %v6146, 0.70710677
      %v6488 = vmul.f32 %v6150, 0.70710677
      %v6489 = vmul.f32 %v6152, 0.70710677
      %v6490 = vmul.f32 %v6154, 0.70710677
      %v6491 = vmul.f32 %v6156, 0.70710677
      %v6492 = vmul.f32 %v6160, 0.70710677
      %v6493 = vmul.f32 %v6162, 0.70710677
      %v6494 = vmul.f32 %v6164, 0.70710677
      %v6495 = vmul.f32 %v6166, 0.70710677
      %v6496 = vmul.f32 %v6170, 0.70710677
      %v6497 = vmul.f32 %v6172, 0.70710677
      %v6498 = vmul.f32 %v6174, 0.70710677
      %v6499 = vmul.f32 %v6176, 0.70710677
      %v6500 = vmul.f32 %v6180, 0.70710677
      %v6501 = vmul.f32 %v6182, 0.70710677
      %v6502 = vmul.f32 %v6184, 0.70710677
      %v6503 = vmul.f32 %v6186, 0.70710677
      %v6504 = vmul.f32 %v6190, 0.70710677
      %v6505 = vmul.f32 %v6192, 0.70710677
      %v6506 = vmul.f32 %v6194, 0.70710677
      %v6507 = vmul.f32 %v6196, 0.70710677
      %v6508 = vmul.f32 %v6200, 0.70710677
      %v6509 = vmul.f32 %v6202, 0.70710677
      %v6510 = vmul.f32 %v6204, 0.70710677
      %v6511 = vmul.f32 %v6206, 0.70710677
      %v6512 = vmul.f32 %v6210, 0.70710677
      %v6513 = vmul.f32 %v6212, 0.70710677
      %v6514 = vmul.f32 %v6214, 0.70710677
      %v6515 = vmul.f32 %v6216, 0.70710677
      %v6516 = vmul.f32 %v6220, 0.70710677
      %v6517 = vmul.f32 %v6222, 0.70710677
      %v6518 = vmul.f32 %v6224, 0.70710677
      %v6519 = vmul.f32 %v6226, 0.70710677
      %v6520 = vmul.f32 %v6230, 0.70710677
      %v6521 = vmul.f32 %v6232, 0.70710677
      %v6522 = vmul.f32 %v6234, 0.70710677
      %v6523 = vmul.f32 %v6236, 0.70710677
      %v6524 = vmul.f32 %v6240, 0.70710677
      %v6525 = vmul.f32 %v6242, 0.70710677
      %v6526 = vmul.f32 %v6244, 0.70710677
      %v6527 = vmul.f32 %v6246, 0.70710677
      %v6528 = vmul.f32 %v6250, 0.70710677
      %v6529 = vmul.f32 %v6252, 0.70710677
      %v6530 = vmul.f32 %v6254, 0.70710677
      %v6531 = vmul.f32 %v6256, 0.70710677
      %v6532 = vmul.f32 %v6260, 0.70710677
      %v6533 = vmul.f32 %v6262, 0.70710677
      %v6534 = vmul.f32 %v6264, 0.70710677
      %v6535 = vmul.f32 %v6266, 0.70710677
      %v6536 = vmul.f32 %v6270, 0.70710677
      %v6537 = vmul.f32 %v6272, 0.70710677
      %v6538 = vmul.f32 %v6274, 0.70710677
      %v6539 = vmul.f32 %v6276, 0.70710677
      %v6540 = vmul.f32 %v6280, 0.70710677
      %v6541 = vmul.f32 %v6282, 0.70710677
      %v6542 = vmul.f32 %v6284, 0.70710677
      %v6543 = vmul.f32 %v6286, 0.70710677
      %v6544 = verf.f32.pop %v6416
      %v6545 = verf.f32.pop %v6417
      %v6546 = verf.f32.pop %v6418
      %v6547 = verf.f32.pop %v6419
      %v6548 = verf.f32.pop %v6420
      %v6549 = verf.f32.pop %v6421
      %v6550 = verf.f32.pop %v6422
      %v6551 = verf.f32.pop %v6423
      %v6552 = verf.f32.pop %v6424
      %v6553 = verf.f32.pop %v6425
      %v6554 = verf.f32.pop %v6426
      %v6555 = verf.f32.pop %v6427
      %v6556 = verf.f32.pop %v6428
      %v6557 = verf.f32.pop %v6429
      %v6558 = verf.f32.pop %v6430
      %v6559 = verf.f32.pop %v6431
      %v6560 = verf.f32.pop %v6432
      %v6561 = verf.f32.pop %v6433
      %v6562 = verf.f32.pop %v6434
      %v6563 = verf.f32.pop %v6435
      %v6564 = verf.f32.pop %v6436
      %v6565 = verf.f32.pop %v6437
      %v6566 = verf.f32.pop %v6438
      %v6567 = verf.f32.pop %v6439
      %v6568 = verf.f32.pop %v6440
      %v6569 = verf.f32.pop %v6441
      %v6570 = verf.f32.pop %v6442
      %v6571 = verf.f32.pop %v6443
      %v6572 = verf.f32.pop %v6444
      %v6573 = verf.f32.pop %v6445
      %v6574 = verf.f32.pop %v6446
      %v6575 = verf.f32.pop %v6447
      %v6576 = verf.f32.pop %v6448
      %v6577 = verf.f32.pop %v6449
      %v6578 = verf.f32.pop %v6450
      %v6579 = verf.f32.pop %v6451
      %v6580 = verf.f32.pop %v6452
      %v6581 = verf.f32.pop %v6453
      %v6582 = verf.f32.pop %v6454
      %v6583 = verf.f32.pop %v6455
      %v6584 = verf.f32.pop %v6456
      %v6585 = verf.f32.pop %v6457
      %v6586 = verf.f32.pop %v6458
      %v6587 = verf.f32.pop %v6459
      %v6588 = verf.f32.pop %v6460
      %v6589 = verf.f32.pop %v6461
      %v6590 = verf.f32.pop %v6462
      %v6591 = verf.f32.pop %v6463
      %v6592 = verf.f32.pop %v6464
      %v6593 = verf.f32.pop %v6465
      %v6594 = verf.f32.pop %v6466
      %v6595 = verf.f32.pop %v6467
      %v6596 = verf.f32.pop %v6468
      %v6597 = verf.f32.pop %v6469
      %v6598 = verf.f32.pop %v6470
      %v6599 = verf.f32.pop %v6471
      %v6600 = verf.f32.pop %v6472
      %v6601 = verf.f32.pop %v6473
      %v6602 = verf.f32.pop %v6474
      %v6603 = verf.f32.pop %v6475
      %v6604 = verf.f32.pop %v6476
      %v6605 = verf.f32.pop %v6477
      %v6606 = verf.f32.pop %v6478
      %v6607 = verf.f32.pop %v6479
      %v6608 = verf.f32.pop %v6480
      %v6609 = verf.f32.pop %v6481
      %v6610 = verf.f32.pop %v6482
      %v6611 = verf.f32.pop %v6483
      %v6612 = verf.f32.pop %v6484
      %v6613 = verf.f32.pop %v6485
      %v6614 = verf.f32.pop %v6486
      %v6615 = verf.f32.pop %v6487
      %v6616 = verf.f32.pop %v6488
      %v6617 = verf.f32.pop %v6489
      %v6618 = verf.f32.pop %v6490
      %v6619 = verf.f32.pop %v6491
      %v6620 = verf.f32.pop %v6492
      %v6621 = verf.f32.pop %v6493
      %v6622 = verf.f32.pop %v6494
      %v6623 = verf.f32.pop %v6495
      %v6624 = verf.f32.pop %v6496
      %v6625 = verf.f32.pop %v6497
      %v6626 = verf.f32.pop %v6498
      %v6627 = verf.f32.pop %v6499
      %v6628 = verf.f32.pop %v6500
      %v6629 = verf.f32.pop %v6501
      %v6630 = verf.f32.pop %v6502
      %v6631 = verf.f32.pop %v6503
      %v6632 = verf.f32.pop %v6504
      %v6633 = verf.f32.pop %v6505
      %v6634 = verf.f32.pop %v6506
      %v6635 = verf.f32.pop %v6507
      %v6636 = verf.f32.pop %v6508
      %v6637 = verf.f32.pop %v6509
      %v6638 = verf.f32.pop %v6510
      %v6639 = verf.f32.pop %v6511
      %v6640 = verf.f32.pop %v6512
      %v6641 = verf.f32.pop %v6513
      %v6642 = verf.f32.pop %v6514
      %v6643 = verf.f32.pop %v6515
      %v6644 = verf.f32.pop %v6516
      %v6645 = verf.f32.pop %v6517
      %v6646 = verf.f32.pop %v6518
      %v6647 = verf.f32.pop %v6519
      %v6648 = verf.f32.pop %v6520
      %v6649 = verf.f32.pop %v6521
      %v6650 = verf.f32.pop %v6522
      %v6651 = verf.f32.pop %v6523
      %v6652 = verf.f32.pop %v6524
      %v6653 = verf.f32.pop %v6525
      %v6654 = verf.f32.pop %v6526
      %v6655 = verf.f32.pop %v6527
      %v6656 = verf.f32.pop %v6528
      %v6657 = verf.f32.pop %v6529
      %v6658 = verf.f32.pop %v6530
      %v6659 = verf.f32.pop %v6531
      %v6660 = verf.f32.pop %v6532
      %v6661 = verf.f32.pop %v6533
      %v6662 = verf.f32.pop %v6534
      %v6663 = verf.f32.pop %v6535
      %v6664 = verf.f32.pop %v6536
      %v6665 = verf.f32.pop %v6537
      %v6666 = verf.f32.pop %v6538
      %v6667 = verf.f32.pop %v6539
      %v6668 = verf.f32.pop %v6540
      %v6669 = verf.f32.pop %v6541
      %v6670 = verf.f32.pop %v6542
      %v6671 = verf.f32.pop %v6543
      %v6672 = vadd.f32 %v6544, 1.0
      %v6673 = vadd.f32 %v6545, 1.0
      %v6674 = vadd.f32 %v6546, 1.0
      %v6675 = vadd.f32 %v6547, 1.0
      %v6676 = vadd.f32 %v6548, 1.0
      %v6677 = vadd.f32 %v6549, 1.0
      %v6678 = vadd.f32 %v6550, 1.0
      %v6679 = vadd.f32 %v6551, 1.0
      %v6680 = vadd.f32 %v6552, 1.0
      %v6681 = vadd.f32 %v6553, 1.0
      %v6682 = vadd.f32 %v6554, 1.0
      %v6683 = vadd.f32 %v6555, 1.0
      %v6684 = vadd.f32 %v6556, 1.0
      %v6685 = vadd.f32 %v6557, 1.0
      %v6686 = vadd.f32 %v6558, 1.0
      %v6687 = vadd.f32 %v6559, 1.0
      %v6688 = vadd.f32 %v6560, 1.0
      %v6689 = vadd.f32 %v6561, 1.0
      %v6690 = vadd.f32 %v6562, 1.0
      %v6691 = vadd.f32 %v6563, 1.0
      %v6692 = vadd.f32 %v6564, 1.0
      %v6693 = vadd.f32 %v6565, 1.0
      %v6694 = vadd.f32 %v6566, 1.0
      %v6695 = vadd.f32 %v6567, 1.0
      %v6696 = vadd.f32 %v6568, 1.0
      %v6697 = vadd.f32 %v6569, 1.0
      %v6698 = vadd.f32 %v6570, 1.0
      %v6699 = vadd.f32 %v6571, 1.0
      %v6700 = vadd.f32 %v6572, 1.0
      %v6701 = vadd.f32 %v6573, 1.0
      %v6702 = vadd.f32 %v6574, 1.0
      %v6703 = vadd.f32 %v6575, 1.0
      %v6704 = vadd.f32 %v6576, 1.0
      %v6705 = vadd.f32 %v6577, 1.0
      %v6706 = vadd.f32 %v6578, 1.0
      %v6707 = vadd.f32 %v6579, 1.0
      %v6708 = vadd.f32 %v6580, 1.0
      %v6709 = vadd.f32 %v6581, 1.0
      %v6710 = vadd.f32 %v6582, 1.0
      %v6711 = vadd.f32 %v6583, 1.0
      %v6712 = vadd.f32 %v6584, 1.0
      %v6713 = vadd.f32 %v6585, 1.0
      %v6714 = vadd.f32 %v6586, 1.0
      %v6715 = vadd.f32 %v6587, 1.0
      %v6716 = vadd.f32 %v6588, 1.0
      %v6717 = vadd.f32 %v6589, 1.0
      %v6718 = vadd.f32 %v6590, 1.0
      %v6719 = vadd.f32 %v6591, 1.0
      %v6720 = vadd.f32 %v6592, 1.0
      %v6721 = vadd.f32 %v6593, 1.0
      %v6722 = vadd.f32 %v6594, 1.0
      %v6723 = vadd.f32 %v6595, 1.0
      %v6724 = vadd.f32 %v6596, 1.0
      %v6725 = vadd.f32 %v6597, 1.0
      %v6726 = vadd.f32 %v6598, 1.0
      %v6727 = vadd.f32 %v6599, 1.0
      %v6728 = vadd.f32 %v6600, 1.0
      %v6729 = vadd.f32 %v6601, 1.0
      %v6730 = vadd.f32 %v6602, 1.0
      %v6731 = vadd.f32 %v6603, 1.0
      %v6732 = vadd.f32 %v6604, 1.0
      %v6733 = vadd.f32 %v6605, 1.0
      %v6734 = vadd.f32 %v6606, 1.0
      %v6735 = vadd.f32 %v6607, 1.0
      %v6736 = vadd.f32 %v6608, 1.0
      %v6737 = vadd.f32 %v6609, 1.0
      %v6738 = vadd.f32 %v6610, 1.0
      %v6739 = vadd.f32 %v6611, 1.0
      %v6740 = vadd.f32 %v6612, 1.0
      %v6741 = vadd.f32 %v6613, 1.0
      %v6742 = vadd.f32 %v6614, 1.0
      %v6743 = vadd.f32 %v6615, 1.0
      %v6744 = vadd.f32 %v6616, 1.0
      %v6745 = vadd.f32 %v6617, 1.0
      %v6746 = vadd.f32 %v6618, 1.0
      %v6747 = vadd.f32 %v6619, 1.0
      %v6748 = vadd.f32 %v6620, 1.0
      %v6749 = vadd.f32 %v6621, 1.0
      %v6750 = vadd.f32 %v6622, 1.0
      %v6751 = vadd.f32 %v6623, 1.0
      %v6752 = vadd.f32 %v6624, 1.0
      %v6753 = vadd.f32 %v6625, 1.0
      %v6754 = vadd.f32 %v6626, 1.0
      %v6755 = vadd.f32 %v6627, 1.0
      %v6756 = vadd.f32 %v6628, 1.0
      %v6757 = vadd.f32 %v6629, 1.0
      %v6758 = vadd.f32 %v6630, 1.0
      %v6759 = vadd.f32 %v6631, 1.0
      %v6760 = vadd.f32 %v6632, 1.0
      %v6761 = vadd.f32 %v6633, 1.0
      %v6762 = vadd.f32 %v6634, 1.0
      %v6763 = vadd.f32 %v6635, 1.0
      %v6764 = vadd.f32 %v6636, 1.0
      %v6765 = vadd.f32 %v6637, 1.0
      %v6766 = vadd.f32 %v6638, 1.0
      %v6767 = vadd.f32 %v6639, 1.0
      %v6768 = vadd.f32 %v6640, 1.0
      %v6769 = vadd.f32 %v6641, 1.0
      %v6770 = vadd.f32 %v6642, 1.0
      %v6771 = vadd.f32 %v6643, 1.0
      %v6772 = vadd.f32 %v6644, 1.0
      %v6773 = vadd.f32 %v6645, 1.0
      %v6774 = vadd.f32 %v6646, 1.0
      %v6775 = vadd.f32 %v6647, 1.0
      %v6776 = vadd.f32 %v6648, 1.0
      %v6777 = vadd.f32 %v6649, 1.0
      %v6778 = vadd.f32 %v6650, 1.0
      %v6779 = vadd.f32 %v6651, 1.0
      %v6780 = vadd.f32 %v6652, 1.0
      %v6781 = vadd.f32 %v6653, 1.0
      %v6782 = vadd.f32 %v6654, 1.0
      %v6783 = vadd.f32 %v6655, 1.0
      %v6784 = vadd.f32 %v6656, 1.0
      %v6785 = vadd.f32 %v6657, 1.0
      %v6786 = vadd.f32 %v6658, 1.0
      %v6787 = vadd.f32 %v6659, 1.0
      %v6788 = vadd.f32 %v6660, 1.0
      %v6789 = vadd.f32 %v6661, 1.0
      %v6790 = vadd.f32 %v6662, 1.0
      %v6791 = vadd.f32 %v6663, 1.0
      %v6792 = vadd.f32 %v6664, 1.0
      %v6793 = vadd.f32 %v6665, 1.0
      %v6794 = vadd.f32 %v6666, 1.0
      %v6795 = vadd.f32 %v6667, 1.0
      %v6796 = vadd.f32 %v6668, 1.0
      %v6797 = vadd.f32 %v6669, 1.0
      %v6798 = vadd.f32 %v6670, 1.0
      %v6799 = vadd.f32 %v6671, 1.0
      %v6800 = vmul.f32 %v6288, %v6672
      %v6801 = vmul.f32 %v6289, %v6673
      %v6802 = vmul.f32 %v6290, %v6674
      %v6803 = vmul.f32 %v6291, %v6675
      %v6804 = vmul.f32 %v6292, %v6676
      %v6805 = vmul.f32 %v6293, %v6677
      %v6806 = vmul.f32 %v6294, %v6678
      %v6807 = vmul.f32 %v6295, %v6679
      %v6808 = vmul.f32 %v6296, %v6680
      %v6809 = vmul.f32 %v6297, %v6681
      %v6810 = vmul.f32 %v6298, %v6682
      %v6811 = vmul.f32 %v6299, %v6683
      %v6812 = vmul.f32 %v6300, %v6684
      %v6813 = vmul.f32 %v6301, %v6685
      %v6814 = vmul.f32 %v6302, %v6686
      %v6815 = vmul.f32 %v6303, %v6687
      %v6816 = vmul.f32 %v6304, %v6688
      %v6817 = vmul.f32 %v6305, %v6689
      %v6818 = vmul.f32 %v6306, %v6690
      %v6819 = vmul.f32 %v6307, %v6691
      %v6820 = vmul.f32 %v6308, %v6692
      %v6821 = vmul.f32 %v6309, %v6693
      %v6822 = vmul.f32 %v6310, %v6694
      %v6823 = vmul.f32 %v6311, %v6695
      %v6824 = vmul.f32 %v6312, %v6696
      %v6825 = vmul.f32 %v6313, %v6697
      %v6826 = vmul.f32 %v6314, %v6698
      %v6827 = vmul.f32 %v6315, %v6699
      %v6828 = vmul.f32 %v6316, %v6700
      %v6829 = vmul.f32 %v6317, %v6701
      %v6830 = vmul.f32 %v6318, %v6702
      %v6831 = vmul.f32 %v6319, %v6703
      %v6832 = vmul.f32 %v6320, %v6704
      %v6833 = vmul.f32 %v6321, %v6705
      %v6834 = vmul.f32 %v6322, %v6706
      %v6835 = vmul.f32 %v6323, %v6707
      %v6836 = vmul.f32 %v6324, %v6708
      %v6837 = vmul.f32 %v6325, %v6709
      %v6838 = vmul.f32 %v6326, %v6710
      %v6839 = vmul.f32 %v6327, %v6711
      %v6840 = vmul.f32 %v6328, %v6712
      %v6841 = vmul.f32 %v6329, %v6713
      %v6842 = vmul.f32 %v6330, %v6714
      %v6843 = vmul.f32 %v6331, %v6715
      %v6844 = vmul.f32 %v6332, %v6716
      %v6845 = vmul.f32 %v6333, %v6717
      %v6846 = vmul.f32 %v6334, %v6718
      %v6847 = vmul.f32 %v6335, %v6719
      %v6848 = vmul.f32 %v6336, %v6720
      %v6849 = vmul.f32 %v6337, %v6721
      %v6850 = vmul.f32 %v6338, %v6722
      %v6851 = vmul.f32 %v6339, %v6723
      %v6852 = vmul.f32 %v6340, %v6724
      %v6853 = vmul.f32 %v6341, %v6725
      %v6854 = vmul.f32 %v6342, %v6726
      %v6855 = vmul.f32 %v6343, %v6727
      %v6856 = vmul.f32 %v6344, %v6728
      %v6857 = vmul.f32 %v6345, %v6729
      %v6858 = vmul.f32 %v6346, %v6730
      %v6859 = vmul.f32 %v6347, %v6731
      %v6860 = vmul.f32 %v6348, %v6732
      %v6861 = vmul.f32 %v6349, %v6733
      %v6862 = vmul.f32 %v6350, %v6734
      %v6863 = vmul.f32 %v6351, %v6735
      %v6864 = vmul.f32 %v6352, %v6736
      %v6865 = vmul.f32 %v6353, %v6737
      %v6866 = vmul.f32 %v6354, %v6738
      %v6867 = vmul.f32 %v6355, %v6739
      %v6868 = vmul.f32 %v6356, %v6740
      %v6869 = vmul.f32 %v6357, %v6741
      %v6870 = vmul.f32 %v6358, %v6742
      %v6871 = vmul.f32 %v6359, %v6743
      %v6872 = vmul.f32 %v6360, %v6744
      %v6873 = vmul.f32 %v6361, %v6745
      %v6874 = vmul.f32 %v6362, %v6746
      %v6875 = vmul.f32 %v6363, %v6747
      %v6876 = vmul.f32 %v6364, %v6748
      %v6877 = vmul.f32 %v6365, %v6749
      %v6878 = vmul.f32 %v6366, %v6750
      %v6879 = vmul.f32 %v6367, %v6751
      %v6880 = vmul.f32 %v6368, %v6752
      %v6881 = vmul.f32 %v6369, %v6753
      %v6882 = vmul.f32 %v6370, %v6754
      %v6883 = vmul.f32 %v6371, %v6755
      %v6884 = vmul.f32 %v6372, %v6756
      %v6885 = vmul.f32 %v6373, %v6757
      %v6886 = vmul.f32 %v6374, %v6758
      %v6887 = vmul.f32 %v6375, %v6759
      %v6888 = vmul.f32 %v6376, %v6760
      %v6889 = vmul.f32 %v6377, %v6761
      %v6890 = vmul.f32 %v6378, %v6762
      %v6891 = vmul.f32 %v6379, %v6763
      %v6892 = vmul.f32 %v6380, %v6764
      %v6893 = vmul.f32 %v6381, %v6765
      %v6894 = vmul.f32 %v6382, %v6766
      %v6895 = vmul.f32 %v6383, %v6767
      %v6896 = vmul.f32 %v6384, %v6768
      %v6897 = vmul.f32 %v6385, %v6769
      %v6898 = vmul.f32 %v6386, %v6770
      %v6899 = vmul.f32 %v6387, %v6771
      %v6900 = vmul.f32 %v6388, %v6772
      %v6901 = vmul.f32 %v6389, %v6773
      %v6902 = vmul.f32 %v6390, %v6774
      %v6903 = vmul.f32 %v6391, %v6775
      %v6904 = vmul.f32 %v6392, %v6776
      %v6905 = vmul.f32 %v6393, %v6777
      %v6906 = vmul.f32 %v6394, %v6778
      %v6907 = vmul.f32 %v6395, %v6779
      %v6908 = vmul.f32 %v6396, %v6780
      %v6909 = vmul.f32 %v6397, %v6781
      %v6910 = vmul.f32 %v6398, %v6782
      %v6911 = vmul.f32 %v6399, %v6783
      %v6912 = vmul.f32 %v6400, %v6784
      %v6913 = vmul.f32 %v6401, %v6785
      %v6914 = vmul.f32 %v6402, %v6786
      %v6915 = vmul.f32 %v6403, %v6787
      %v6916 = vmul.f32 %v6404, %v6788
      %v6917 = vmul.f32 %v6405, %v6789
      %v6918 = vmul.f32 %v6406, %v6790
      %v6919 = vmul.f32 %v6407, %v6791
      %v6920 = vmul.f32 %v6408, %v6792
      %v6921 = vmul.f32 %v6409, %v6793
      %v6922 = vmul.f32 %v6410, %v6794
      %v6923 = vmul.f32 %v6411, %v6795
      %v6924 = vmul.f32 %v6412, %v6796
      %v6925 = vmul.f32 %v6413, %v6797
      %v6926 = vmul.f32 %v6414, %v6798
      %v6927 = vmul.f32 %v6415, %v6799
      %v6928 = vpack.c.bf16 %v6802, %v6800
      %v6929 = vpack.c.bf16 %v6803, %v6801
      %v6930 = vpack.c.bf16 %v6806, %v6804
      %v6931 = vpack.c.bf16 %v6807, %v6805
      %v6932 = vpack.c.bf16 %v6810, %v6808
      %v6933 = vpack.c.bf16 %v6811, %v6809
      %v6934 = vpack.c.bf16 %v6814, %v6812
      %v6935 = vpack.c.bf16 %v6815, %v6813
      %v6936 = vpack.c.bf16 %v6818, %v6816
      %v6937 = vpack.c.bf16 %v6819, %v6817
      %v6938 = vpack.c.bf16 %v6822, %v6820
      %v6939 = vpack.c.bf16 %v6823, %v6821
      %v6940 = vpack.c.bf16 %v6826, %v6824
      %v6941 = vpack.c.bf16 %v6827, %v6825
      %v6942 = vpack.c.bf16 %v6830, %v6828
      %v6943 = vpack.c.bf16 %v6831, %v6829
      %v6944 = vpack.c.bf16 %v6834, %v6832
      %v6945 = vpack.c.bf16 %v6835, %v6833
      %v6946 = vpack.c.bf16 %v6838, %v6836
      %v6947 = vpack.c.bf16 %v6839, %v6837
      %v6948 = vpack.c.bf16 %v6842, %v6840
      %v6949 = vpack.c.bf16 %v6843, %v6841
      %v6950 = vpack.c.bf16 %v6846, %v6844
      %v6951 = vpack.c.bf16 %v6847, %v6845
      %v6952 = vpack.c.bf16 %v6850, %v6848
      %v6953 = vpack.c.bf16 %v6851, %v6849
      %v6954 = vpack.c.bf16 %v6854, %v6852
      %v6955 = vpack.c.bf16 %v6855, %v6853
      %v6956 = vpack.c.bf16 %v6858, %v6856
      %v6957 = vpack.c.bf16 %v6859, %v6857
      %v6958 = vpack.c.bf16 %v6862, %v6860
      %v6959 = vpack.c.bf16 %v6863, %v6861
      %v6960 = vpack.c.bf16 %v6866, %v6864
      %v6961 = vpack.c.bf16 %v6867, %v6865
      %v6962 = vpack.c.bf16 %v6870, %v6868
      %v6963 = vpack.c.bf16 %v6871, %v6869
      %v6964 = vpack.c.bf16 %v6874, %v6872
      %v6965 = vpack.c.bf16 %v6875, %v6873
      %v6966 = vpack.c.bf16 %v6878, %v6876
      %v6967 = vpack.c.bf16 %v6879, %v6877
      %v6968 = vpack.c.bf16 %v6882, %v6880
      %v6969 = vpack.c.bf16 %v6883, %v6881
      %v6970 = vpack.c.bf16 %v6886, %v6884
      %v6971 = vpack.c.bf16 %v6887, %v6885
      %v6972 = vpack.c.bf16 %v6890, %v6888
      %v6973 = vpack.c.bf16 %v6891, %v6889
      %v6974 = vpack.c.bf16 %v6894, %v6892
      %v6975 = vpack.c.bf16 %v6895, %v6893
      %v6976 = vpack.c.bf16 %v6898, %v6896
      %v6977 = vpack.c.bf16 %v6899, %v6897
      %v6978 = vpack.c.bf16 %v6902, %v6900
      %v6979 = vpack.c.bf16 %v6903, %v6901
      %v6980 = vpack.c.bf16 %v6906, %v6904
      %v6981 = vpack.c.bf16 %v6907, %v6905
      %v6982 = vpack.c.bf16 %v6910, %v6908
      %v6983 = vpack.c.bf16 %v6911, %v6909
      %v6984 = vpack.c.bf16 %v6914, %v6912
      %v6985 = vpack.c.bf16 %v6915, %v6913
      %v6986 = vpack.c.bf16 %v6918, %v6916
      %v6987 = vpack.c.bf16 %v6919, %v6917
      %v6988 = vpack.c.bf16 %v6922, %v6920
      %v6989 = vpack.c.bf16 %v6923, %v6921
      %v6990 = vpack.c.bf16 %v6926, %v6924
      %v6991 = vpack.c.bf16 %v6927, %v6925
      %v7024 = vunpack.c.l.b16 %v6928
      %v7025 = vunpack.c.h.b16 %v6928
      %v7026 = vunpack.c.l.b16 %v6930
      %v7027 = vunpack.c.h.b16 %v6930
      %v7028 = vunpack.c.l.b16 %v6932
      %v7029 = vunpack.c.h.b16 %v6932
      %v7030 = vunpack.c.l.b16 %v6934
      %v7031 = vunpack.c.h.b16 %v6934
      %v7032 = vunpack.c.l.b16 %v6936
      %v7033 = vunpack.c.h.b16 %v6936
      %v7034 = vunpack.c.l.b16 %v6938
      %v7035 = vunpack.c.h.b16 %v6938
      %v7036 = vunpack.c.l.b16 %v6940
      %v7037 = vunpack.c.h.b16 %v6940
      %v7038 = vunpack.c.l.b16 %v6942
      %v7039 = vunpack.c.h.b16 %v6942
      %v7040 = vunpack.c.l.b16 %v6944
      %v7041 = vunpack.c.h.b16 %v6944
      %v7042 = vunpack.c.l.b16 %v6946
      %v7043 = vunpack.c.h.b16 %v6946
      %v7044 = vunpack.c.l.b16 %v6948
      %v7045 = vunpack.c.h.b16 %v6948
      %v7046 = vunpack.c.l.b16 %v6950
      %v7047 = vunpack.c.h.b16 %v6950
      %v7048 = vunpack.c.l.b16 %v6952
      %v7049 = vunpack.c.h.b16 %v6952
      %v7050 = vunpack.c.l.b16 %v6954
      %v7051 = vunpack.c.h.b16 %v6954
      %v7052 = vunpack.c.l.b16 %v6956
      %v7053 = vunpack.c.h.b16 %v6956
      %v7054 = vunpack.c.l.b16 %v6958
      %v7055 = vunpack.c.h.b16 %v6958
      %v7056 = vunpack.c.l.b16 %v6960
      %v7057 = vunpack.c.h.b16 %v6960
      %v7058 = vunpack.c.l.b16 %v6962
      %v7059 = vunpack.c.h.b16 %v6962
      %v7060 = vunpack.c.l.b16 %v6964
      %v7061 = vunpack.c.h.b16 %v6964
      %v7062 = vunpack.c.l.b16 %v6966
      %v7063 = vunpack.c.h.b16 %v6966
      %v7064 = vunpack.c.l.b16 %v6968
      %v7065 = vunpack.c.h.b16 %v6968
      %v7066 = vunpack.c.l.b16 %v6970
      %v7067 = vunpack.c.h.b16 %v6970
      %v7068 = vunpack.c.l.b16 %v6972
      %v7069 = vunpack.c.h.b16 %v6972
      %v7070 = vunpack.c.l.b16 %v6974
      %v7071 = vunpack.c.h.b16 %v6974
      %v7072 = vunpack.c.l.b16 %v6976
      %v7073 = vunpack.c.h.b16 %v6976
      %v7074 = vunpack.c.l.b16 %v6978
      %v7075 = vunpack.c.h.b16 %v6978
      %v7076 = vunpack.c.l.b16 %v6980
      %v7077 = vunpack.c.h.b16 %v6980
      %v7078 = vunpack.c.l.b16 %v6982
      %v7079 = vunpack.c.h.b16 %v6982
      %v7080 = vunpack.c.l.b16 %v6984
      %v7081 = vunpack.c.h.b16 %v6984
      %v7082 = vunpack.c.l.b16 %v6986
      %v7083 = vunpack.c.h.b16 %v6986
      %v7084 = vunpack.c.l.b16 %v6988
      %v7085 = vunpack.c.h.b16 %v6988
      %v7086 = vunpack.c.l.b16 %v6990
      %v7087 = vunpack.c.h.b16 %v6990
      %v7088 = vpack.c.b16 %v7024, %v7024
      %v7089 = vpack.c.b16 %v7025, %v7025
      %v7090 = vpack.c.b16 %v7026, %v7026
      %v7091 = vpack.c.b16 %v7027, %v7027
      %v7092 = vpack.c.b16 %v7028, %v7028
      %v7093 = vpack.c.b16 %v7029, %v7029
      %v7094 = vpack.c.b16 %v7030, %v7030
      %v7095 = vpack.c.b16 %v7031, %v7031
      %v7096 = vpack.c.b16 %v7032, %v7032
      %v7097 = vpack.c.b16 %v7033, %v7033
      %v7098 = vpack.c.b16 %v7034, %v7034
      %v7099 = vpack.c.b16 %v7035, %v7035
      %v7100 = vpack.c.b16 %v7036, %v7036
      %v7101 = vpack.c.b16 %v7037, %v7037
      %v7102 = vpack.c.b16 %v7038, %v7038
      %v7103 = vpack.c.b16 %v7039, %v7039
      %v7104 = vpack.c.b16 %v7040, %v7040
      %v7105 = vpack.c.b16 %v7041, %v7041
      %v7106 = vpack.c.b16 %v7042, %v7042
      %v7107 = vpack.c.b16 %v7043, %v7043
      %v7108 = vpack.c.b16 %v7044, %v7044
      %v7109 = vpack.c.b16 %v7045, %v7045
      %v7110 = vpack.c.b16 %v7046, %v7046
      %v7111 = vpack.c.b16 %v7047, %v7047
      %v7112 = vpack.c.b16 %v7048, %v7048
      %v7113 = vpack.c.b16 %v7049, %v7049
      %v7114 = vpack.c.b16 %v7050, %v7050
      %v7115 = vpack.c.b16 %v7051, %v7051
      %v7116 = vpack.c.b16 %v7052, %v7052
      %v7117 = vpack.c.b16 %v7053, %v7053
      %v7118 = vpack.c.b16 %v7054, %v7054
      %v7119 = vpack.c.b16 %v7055, %v7055
      %v7120 = vpack.c.b16 %v7056, %v7056
      %v7121 = vpack.c.b16 %v7057, %v7057
      %v7122 = vpack.c.b16 %v7058, %v7058
      %v7123 = vpack.c.b16 %v7059, %v7059
      %v7124 = vpack.c.b16 %v7060, %v7060
      %v7125 = vpack.c.b16 %v7061, %v7061
      %v7126 = vpack.c.b16 %v7062, %v7062
      %v7127 = vpack.c.b16 %v7063, %v7063
      %v7128 = vpack.c.b16 %v7064, %v7064
      %v7129 = vpack.c.b16 %v7065, %v7065
      %v7130 = vpack.c.b16 %v7066, %v7066
      %v7131 = vpack.c.b16 %v7067, %v7067
      %v7132 = vpack.c.b16 %v7068, %v7068
      %v7133 = vpack.c.b16 %v7069, %v7069
      %v7134 = vpack.c.b16 %v7070, %v7070
      %v7135 = vpack.c.b16 %v7071, %v7071
      %v7136 = vpack.c.b16 %v7072, %v7072
      %v7137 = vpack.c.b16 %v7073, %v7073
      %v7138 = vpack.c.b16 %v7074, %v7074
      %v7139 = vpack.c.b16 %v7075, %v7075
      %v7140 = vpack.c.b16 %v7076, %v7076
      %v7141 = vpack.c.b16 %v7077, %v7077
      %v7142 = vpack.c.b16 %v7078, %v7078
      %v7143 = vpack.c.b16 %v7079, %v7079
      %v7144 = vpack.c.b16 %v7080, %v7080
      %v7145 = vpack.c.b16 %v7081, %v7081
      %v7146 = vpack.c.b16 %v7082, %v7082
      %v7147 = vpack.c.b16 %v7083, %v7083
      %v7148 = vpack.c.b16 %v7084, %v7084
      %v7149 = vpack.c.b16 %v7085, %v7085
      %v7150 = vpack.c.b16 %v7086, %v7086
      %v7151 = vpack.c.b16 %v7087, %v7087
      %7216 = vst [vmem:[#allocation4] sm:$0xf] %v7088
      %7217 = vst [vmem:[#allocation4 + $0x4] sm:$0xf] %v7089
      %7218 = vst [vmem:[#allocation4 + $0x8] sm:$0xf] %v7090
      %7219 = vst [vmem:[#allocation4 + $0xc] sm:$0xf] %v7091
      %7220 = vst [vmem:[#allocation4 + $0x10] sm:$0xf] %v7092
      %7221 = vst [vmem:[#allocation4 + $0x14] sm:$0xf] %v7093
      %7222 = vst [vmem:[#allocation4 + $0x18] sm:$0xf] %v7094
      %7223 = vst [vmem:[#allocation4 + $0x1c] sm:$0xf] %v7095
      %7224 = vst [vmem:[#allocation4 + $0x20] sm:$0xf] %v7096
      %7225 = vst [vmem:[#allocation4 + $0x24] sm:$0xf] %v7097
      %7226 = vst [vmem:[#allocation4 + $0x28] sm:$0xf] %v7098
      %7227 = vst [vmem:[#allocation4 + $0x2c] sm:$0xf] %v7099
      %7228 = vst [vmem:[#allocation4 + $0x30] sm:$0xf] %v7100
      %7229 = vst [vmem:[#allocation4 + $0x34] sm:$0xf] %v7101
      %7230 = vst [vmem:[#allocation4 + $0x38] sm:$0xf] %v7102
      %7231 = vst [vmem:[#allocation4 + $0x3c] sm:$0xf] %v7103
      %7232 = vst [vmem:[#allocation4 + $0x40] sm:$0xf] %v7104
      %7233 = vst [vmem:[#allocation4 + $0x44] sm:$0xf] %v7105
      %7234 = vst [vmem:[#allocation4 + $0x48] sm:$0xf] %v7106
      %7235 = vst [vmem:[#allocation4 + $0x4c] sm:$0xf] %v7107
      %7236 = vst [vmem:[#allocation4 + $0x50] sm:$0xf] %v7108
      %7237 = vst [vmem:[#allocation4 + $0x54] sm:$0xf] %v7109
      %7238 = vst [vmem:[#allocation4 + $0x58] sm:$0xf] %v7110
      %7239 = vst [vmem:[#allocation4 + $0x5c] sm:$0xf] %v7111
      %7240 = vst [vmem:[#allocation4 + $0x60] sm:$0xf] %v7112
      %7241 = vst [vmem:[#allocation4 + $0x64] sm:$0xf] %v7113
      %7242 = vst [vmem:[#allocation4 + $0x68] sm:$0xf] %v7114
      %7243 = vst [vmem:[#allocation4 + $0x6c] sm:$0xf] %v7115
      %7244 = vst [vmem:[#allocation4 + $0x70] sm:$0xf] %v7116
      %7245 = vst [vmem:[#allocation4 + $0x74] sm:$0xf] %v7117
      %7246 = vst [vmem:[#allocation4 + $0x78] sm:$0xf] %v7118
      %7247 = vst [vmem:[#allocation4 + $0x7c] sm:$0xf] %v7119
      %7248 = vst [vmem:[#allocation4 + $0x80] sm:$0xf] %v7120
      %7249 = vst [vmem:[#allocation4 + $0x84] sm:$0xf] %v7121
      %7250 = vst [vmem:[#allocation4 + $0x88] sm:$0xf] %v7122
      %7251 = vst [vmem:[#allocation4 + $0x8c] sm:$0xf] %v7123
      %7252 = vst [vmem:[#allocation4 + $0x90] sm:$0xf] %v7124
      %7253 = vst [vmem:[#allocation4 + $0x94] sm:$0xf] %v7125
      %7254 = vst [vmem:[#allocation4 + $0x98] sm:$0xf] %v7126
      %7255 = vst [vmem:[#allocation4 + $0x9c] sm:$0xf] %v7127
      %7256 = vst [vmem:[#allocation4 + $0xa0] sm:$0xf] %v7128
      %7257 = vst [vmem:[#allocation4 + $0xa4] sm:$0xf] %v7129
      %7258 = vst [vmem:[#allocation4 + $0xa8] sm:$0xf] %v7130
      %7259 = vst [vmem:[#allocation4 + $0xac] sm:$0xf] %v7131
      %7260 = vst [vmem:[#allocation4 + $0xb0] sm:$0xf] %v7132
      %7261 = vst [vmem:[#allocation4 + $0xb4] sm:$0xf] %v7133
      %7262 = vst [vmem:[#allocation4 + $0xb8] sm:$0xf] %v7134
      %7263 = vst [vmem:[#allocation4 + $0xbc] sm:$0xf] %v7135
      %7264 = vst [vmem:[#allocation4 + $0xc0] sm:$0xf] %v7136
      %7265 = vst [vmem:[#allocation4 + $0xc4] sm:$0xf] %v7137
      %7266 = vst [vmem:[#allocation4 + $0xc8] sm:$0xf] %v7138
      %7267 = vst [vmem:[#allocation4 + $0xcc] sm:$0xf] %v7139
      %7268 = vst [vmem:[#allocation4 + $0xd0] sm:$0xf] %v7140
      %7269 = vst [vmem:[#allocation4 + $0xd4] sm:$0xf] %v7141
      %7270 = vst [vmem:[#allocation4 + $0xd8] sm:$0xf] %v7142
      %7271 = vst [vmem:[#allocation4 + $0xdc] sm:$0xf] %v7143
      %7272 = vst [vmem:[#allocation4 + $0xe0] sm:$0xf] %v7144
      %7273 = vst [vmem:[#allocation4 + $0xe4] sm:$0xf] %v7145
      %7274 = vst [vmem:[#allocation4 + $0xe8] sm:$0xf] %v7146
      %7275 = vst [vmem:[#allocation4 + $0xec] sm:$0xf] %v7147
      %7276 = vst [vmem:[#allocation4 + $0xf0] sm:$0xf] %v7148
      %7277 = vst [vmem:[#allocation4 + $0xf4] sm:$0xf] %v7149
      %7278 = vst [vmem:[#allocation4 + $0xf8] sm:$0xf] %v7150
      %7279 = vst [vmem:[#allocation4 + $0xfc] sm:$0xf] %v7151
      %v7312 = vunpack.c.l.b16 %v6929
      %v7313 = vunpack.c.h.b16 %v6929
      %v7314 = vunpack.c.l.b16 %v6931
      %v7315 = vunpack.c.h.b16 %v6931
      %v7316 = vunpack.c.l.b16 %v6933
      %v7317 = vunpack.c.h.b16 %v6933
      %v7318 = vunpack.c.l.b16 %v6935
      %v7319 = vunpack.c.h.b16 %v6935
      %v7320 = vunpack.c.l.b16 %v6937
      %v7321 = vunpack.c.h.b16 %v6937
      %v7322 = vunpack.c.l.b16 %v6939
      %v7323 = vunpack.c.h.b16 %v6939
      %v7324 = vunpack.c.l.b16 %v6941
      %v7325 = vunpack.c.h.b16 %v6941
      %v7326 = vunpack.c.l.b16 %v6943
      %v7327 = vunpack.c.h.b16 %v6943
      %v7328 = vunpack.c.l.b16 %v6945
      %v7329 = vunpack.c.h.b16 %v6945
      %v7330 = vunpack.c.l.b16 %v6947
      %v7331 = vunpack.c.h.b16 %v6947
      %v7332 = vunpack.c.l.b16 %v6949
      %v7333 = vunpack.c.h.b16 %v6949
      %v7334 = vunpack.c.l.b16 %v6951
      %v7335 = vunpack.c.h.b16 %v6951
      %v7336 = vunpack.c.l.b16 %v6953
      %v7337 = vunpack.c.h.b16 %v6953
      %v7338 = vunpack.c.l.b16 %v6955
      %v7339 = vunpack.c.h.b16 %v6955
      %v7340 = vunpack.c.l.b16 %v6957
      %v7341 = vunpack.c.h.b16 %v6957
      %v7342 = vunpack.c.l.b16 %v6959
      %v7343 = vunpack.c.h.b16 %v6959
      %v7344 = vunpack.c.l.b16 %v6961
      %v7345 = vunpack.c.h.b16 %v6961
      %v7346 = vunpack.c.l.b16 %v6963
      %v7347 = vunpack.c.h.b16 %v6963
      %v7348 = vunpack.c.l.b16 %v6965
      %v7349 = vunpack.c.h.b16 %v6965
      %v7350 = vunpack.c.l.b16 %v6967
      %v7351 = vunpack.c.h.b16 %v6967
      %v7352 = vunpack.c.l.b16 %v6969
      %v7353 = vunpack.c.h.b16 %v6969
      %v7354 = vunpack.c.l.b16 %v6971
      %v7355 = vunpack.c.h.b16 %v6971
      %v7356 = vunpack.c.l.b16 %v6973
      %v7357 = vunpack.c.h.b16 %v6973
      %v7358 = vunpack.c.l.b16 %v6975
      %v7359 = vunpack.c.h.b16 %v6975
      %v7360 = vunpack.c.l.b16 %v6977
      %v7361 = vunpack.c.h.b16 %v6977
      %v7362 = vunpack.c.l.b16 %v6979
      %v7363 = vunpack.c.h.b16 %v6979
      %v7364 = vunpack.c.l.b16 %v6981
      %v7365 = vunpack.c.h.b16 %v6981
      %v7366 = vunpack.c.l.b16 %v6983
      %v7367 = vunpack.c.h.b16 %v6983
      %v7368 = vunpack.c.l.b16 %v6985
      %v7369 = vunpack.c.h.b16 %v6985
      %v7370 = vunpack.c.l.b16 %v6987
      %v7371 = vunpack.c.h.b16 %v6987
      %v7372 = vunpack.c.l.b16 %v6989
      %v7373 = vunpack.c.h.b16 %v6989
      %v7374 = vunpack.c.l.b16 %v6991
      %v7375 = vunpack.c.h.b16 %v6991
      %v7376 = vpack.c.b16 %v7312, %v7312
      %v7377 = vpack.c.b16 %v7313, %v7313
      %v7378 = vpack.c.b16 %v7314, %v7314
      %v7379 = vpack.c.b16 %v7315, %v7315
      %v7380 = vpack.c.b16 %v7316, %v7316
      %v7381 = vpack.c.b16 %v7317, %v7317
      %v7382 = vpack.c.b16 %v7318, %v7318
      %v7383 = vpack.c.b16 %v7319, %v7319
      %v7384 = vpack.c.b16 %v7320, %v7320
      %v7385 = vpack.c.b16 %v7321, %v7321
      %v7386 = vpack.c.b16 %v7322, %v7322
      %v7387 = vpack.c.b16 %v7323, %v7323
      %v7388 = vpack.c.b16 %v7324, %v7324
      %v7389 = vpack.c.b16 %v7325, %v7325
      %v7390 = vpack.c.b16 %v7326, %v7326
      %v7391 = vpack.c.b16 %v7327, %v7327
      %v7392 = vpack.c.b16 %v7328, %v7328
      %v7393 = vpack.c.b16 %v7329, %v7329
      %v7394 = vpack.c.b16 %v7330, %v7330
      %v7395 = vpack.c.b16 %v7331, %v7331
      %v7396 = vpack.c.b16 %v7332, %v7332
      %v7397 = vpack.c.b16 %v7333, %v7333
      %v7398 = vpack.c.b16 %v7334, %v7334
      %v7399 = vpack.c.b16 %v7335, %v7335
      %v7400 = vpack.c.b16 %v7336, %v7336
      %v7401 = vpack.c.b16 %v7337, %v7337
      %v7402 = vpack.c.b16 %v7338, %v7338
      %v7403 = vpack.c.b16 %v7339, %v7339
      %v7404 = vpack.c.b16 %v7340, %v7340
      %v7405 = vpack.c.b16 %v7341, %v7341
      %v7406 = vpack.c.b16 %v7342, %v7342
      %v7407 = vpack.c.b16 %v7343, %v7343
      %v7408 = vpack.c.b16 %v7344, %v7344
      %v7409 = vpack.c.b16 %v7345, %v7345
      %v7410 = vpack.c.b16 %v7346, %v7346
      %v7411 = vpack.c.b16 %v7347, %v7347
      %v7412 = vpack.c.b16 %v7348, %v7348
      %v7413 = vpack.c.b16 %v7349, %v7349
      %v7414 = vpack.c.b16 %v7350, %v7350
      %v7415 = vpack.c.b16 %v7351, %v7351
      %v7416 = vpack.c.b16 %v7352, %v7352
      %v7417 = vpack.c.b16 %v7353, %v7353
      %v7418 = vpack.c.b16 %v7354, %v7354
      %v7419 = vpack.c.b16 %v7355, %v7355
      %v7420 = vpack.c.b16 %v7356, %v7356
      %v7421 = vpack.c.b16 %v7357, %v7357
      %v7422 = vpack.c.b16 %v7358, %v7358
      %v7423 = vpack.c.b16 %v7359, %v7359
      %v7424 = vpack.c.b16 %v7360, %v7360
      %v7425 = vpack.c.b16 %v7361, %v7361
      %v7426 = vpack.c.b16 %v7362, %v7362
      %v7427 = vpack.c.b16 %v7363, %v7363
      %v7428 = vpack.c.b16 %v7364, %v7364
      %v7429 = vpack.c.b16 %v7365, %v7365
      %v7430 = vpack.c.b16 %v7366, %v7366
      %v7431 = vpack.c.b16 %v7367, %v7367
      %v7432 = vpack.c.b16 %v7368, %v7368
      %v7433 = vpack.c.b16 %v7369, %v7369
      %v7434 = vpack.c.b16 %v7370, %v7370
      %v7435 = vpack.c.b16 %v7371, %v7371
      %v7436 = vpack.c.b16 %v7372, %v7372
      %v7437 = vpack.c.b16 %v7373, %v7373
      %v7438 = vpack.c.b16 %v7374, %v7374
      %v7439 = vpack.c.b16 %v7375, %v7375
      %7504 = vst [vmem:[#allocation4 + $0x100] sm:$0xf] %v7376
      %7505 = vst [vmem:[#allocation4 + $0x104] sm:$0xf] %v7377
      %7506 = vst [vmem:[#allocation4 + $0x108] sm:$0xf] %v7378
      %7507 = vst [vmem:[#allocation4 + $0x10c] sm:$0xf] %v7379
      %7508 = vst [vmem:[#allocation4 + $0x110] sm:$0xf] %v7380
      %7509 = vst [vmem:[#allocation4 + $0x114] sm:$0xf] %v7381
      %7510 = vst [vmem:[#allocation4 + $0x118] sm:$0xf] %v7382
      %7511 = vst [vmem:[#allocation4 + $0x11c] sm:$0xf] %v7383
      %7512 = vst [vmem:[#allocation4 + $0x120] sm:$0xf] %v7384
      %7513 = vst [vmem:[#allocation4 + $0x124] sm:$0xf] %v7385
      %7514 = vst [vmem:[#allocation4 + $0x128] sm:$0xf] %v7386
      %7515 = vst [vmem:[#allocation4 + $0x12c] sm:$0xf] %v7387
      %7516 = vst [vmem:[#allocation4 + $0x130] sm:$0xf] %v7388
      %7517 = vst [vmem:[#allocation4 + $0x134] sm:$0xf] %v7389
      %7518 = vst [vmem:[#allocation4 + $0x138] sm:$0xf] %v7390
      %7519 = vst [vmem:[#allocation4 + $0x13c] sm:$0xf] %v7391
      %7520 = vst [vmem:[#allocation4 + $0x140] sm:$0xf] %v7392
      %7521 = vst [vmem:[#allocation4 + $0x144] sm:$0xf] %v7393
      %7522 = vst [vmem:[#allocation4 + $0x148] sm:$0xf] %v7394
      %7523 = vst [vmem:[#allocation4 + $0x14c] sm:$0xf] %v7395
      %7524 = vst [vmem:[#allocation4 + $0x150] sm:$0xf] %v7396
      %7525 = vst [vmem:[#allocation4 + $0x154] sm:$0xf] %v7397
      %7526 = vst [vmem:[#allocation4 + $0x158] sm:$0xf] %v7398
      %7527 = vst [vmem:[#allocation4 + $0x15c] sm:$0xf] %v7399
      %7528 = vst [vmem:[#allocation4 + $0x160] sm:$0xf] %v7400
      %7529 = vst [vmem:[#allocation4 + $0x164] sm:$0xf] %v7401
      %7530 = vst [vmem:[#allocation4 + $0x168] sm:$0xf] %v7402
      %7531 = vst [vmem:[#allocation4 + $0x16c] sm:$0xf] %v7403
      %7532 = vst [vmem:[#allocation4 + $0x170] sm:$0xf] %v7404
      %7533 = vst [vmem:[#allocation4 + $0x174] sm:$0xf] %v7405
      %7534 = vst [vmem:[#allocation4 + $0x178] sm:$0xf] %v7406
      %7535 = vst [vmem:[#allocation4 + $0x17c] sm:$0xf] %v7407
      %7536 = vst [vmem:[#allocation4 + $0x180] sm:$0xf] %v7408
      %7537 = vst [vmem:[#allocation4 + $0x184] sm:$0xf] %v7409
      %7538 = vst [vmem:[#allocation4 + $0x188] sm:$0xf] %v7410
      %7539 = vst [vmem:[#allocation4 + $0x18c] sm:$0xf] %v7411
      %7540 = vst [vmem:[#allocation4 + $0x190] sm:$0xf] %v7412
      %7541 = vst [vmem:[#allocation4 + $0x194] sm:$0xf] %v7413
      %7542 = vst [vmem:[#allocation4 + $0x198] sm:$0xf] %v7414
      %7543 = vst [vmem:[#allocation4 + $0x19c] sm:$0xf] %v7415
      %7544 = vst [vmem:[#allocation4 + $0x1a0] sm:$0xf] %v7416
      %7545 = vst [vmem:[#allocation4 + $0x1a4] sm:$0xf] %v7417
      %7546 = vst [vmem:[#allocation4 + $0x1a8] sm:$0xf] %v7418
      %7547 = vst [vmem:[#allocation4 + $0x1ac] sm:$0xf] %v7419
      %7548 = vst [vmem:[#allocation4 + $0x1b0] sm:$0xf] %v7420
      %7549 = vst [vmem:[#allocation4 + $0x1b4] sm:$0xf] %v7421
      %7550 = vst [vmem:[#allocation4 + $0x1b8] sm:$0xf] %v7422
      %7551 = vst [vmem:[#allocation4 + $0x1bc] sm:$0xf] %v7423
      %7552 = vst [vmem:[#allocation4 + $0x1c0] sm:$0xf] %v7424
      %7553 = vst [vmem:[#allocation4 + $0x1c4] sm:$0xf] %v7425
      %7554 = vst [vmem:[#allocation4 + $0x1c8] sm:$0xf] %v7426
      %7555 = vst [vmem:[#allocation4 + $0x1cc] sm:$0xf] %v7427
      %7556 = vst [vmem:[#allocation4 + $0x1d0] sm:$0xf] %v7428
      %7557 = vst [vmem:[#allocation4 + $0x1d4] sm:$0xf] %v7429
      %7558 = vst [vmem:[#allocation4 + $0x1d8] sm:$0xf] %v7430
      %7559 = vst [vmem:[#allocation4 + $0x1dc] sm:$0xf] %v7431
      %7560 = vst [vmem:[#allocation4 + $0x1e0] sm:$0xf] %v7432
      %7561 = vst [vmem:[#allocation4 + $0x1e4] sm:$0xf] %v7433
      %7562 = vst [vmem:[#allocation4 + $0x1e8] sm:$0xf] %v7434
      %7563 = vst [vmem:[#allocation4 + $0x1ec] sm:$0xf] %v7435
      %7564 = vst [vmem:[#allocation4 + $0x1f0] sm:$0xf] %v7436
      %7565 = vst [vmem:[#allocation4 + $0x1f4] sm:$0xf] %v7437
      %7566 = vst [vmem:[#allocation4 + $0x1f8] sm:$0xf] %v7438
      %7567 = vst [vmem:[#allocation4 + $0x1fc] sm:$0xf] %v7439
      %s7568 = scalar_lea.vmem %s5, 256
      %v7569 = vld [vmem:[%s7568] sm:$0xff]
      %v7570 = vld [vmem:[%s7568 + $0x8] sm:$0xff]
      %v7571 = vld [vmem:[%s7568 + $0x10] sm:$0xff]
      %v7572 = vld [vmem:[%s7568 + $0x18] sm:$0xff]
      %v7573 = vld [vmem:[%s7568 + $0x20] sm:$0xff]
      %v7574 = vld [vmem:[%s7568 + $0x28] sm:$0xff]
      %v7575 = vld [vmem:[%s7568 + $0x30] sm:$0xff]
      %v7576 = vld [vmem:[%s7568 + $0x38] sm:$0xff]
      %v7577 = vld [vmem:[%s7568 + $0x40] sm:$0xff]
      %v7578 = vld [vmem:[%s7568 + $0x48] sm:$0xff]
      %v7579 = vld [vmem:[%s7568 + $0x50] sm:$0xff]
      %v7580 = vld [vmem:[%s7568 + $0x58] sm:$0xff]
      %v7581 = vld [vmem:[%s7568 + $0x60] sm:$0xff]
      %v7582 = vld [vmem:[%s7568 + $0x68] sm:$0xff]
      %v7583 = vld [vmem:[%s7568 + $0x70] sm:$0xff]
      %v7584 = vld [vmem:[%s7568 + $0x78] sm:$0xff]
      %v7585 = vld [vmem:[%s7568 + $0x80] sm:$0xff]
      %v7586 = vld [vmem:[%s7568 + $0x88] sm:$0xff]
      %v7587 = vld [vmem:[%s7568 + $0x90] sm:$0xff]
      %v7588 = vld [vmem:[%s7568 + $0x98] sm:$0xff]
      %v7589 = vld [vmem:[%s7568 + $0xa0] sm:$0xff]
      %v7590 = vld [vmem:[%s7568 + $0xa8] sm:$0xff]
      %v7591 = vld [vmem:[%s7568 + $0xb0] sm:$0xff]
      %v7592 = vld [vmem:[%s7568 + $0xb8] sm:$0xff]
      %v7593 = vld [vmem:[%s7568 + $0xc0] sm:$0xff]
      %v7594 = vld [vmem:[%s7568 + $0xc8] sm:$0xff]
      %v7595 = vld [vmem:[%s7568 + $0xd0] sm:$0xff]
      %v7596 = vld [vmem:[%s7568 + $0xd8] sm:$0xff]
      %v7597 = vld [vmem:[%s7568 + $0xe0] sm:$0xff]
      %v7598 = vld [vmem:[%s7568 + $0xe8] sm:$0xff]
      %v7599 = vld [vmem:[%s7568 + $0xf0] sm:$0xff]
      %v7600 = vld [vmem:[%s7568 + $0xf8] sm:$0xff]
      %v7633 = vunpack.c.l.b16 %v7569
      %v7634 = vunpack.c.h.b16 %v7569
      %v7635 = vunpack.c.l.b16 %v7570
      %v7636 = vunpack.c.h.b16 %v7570
      %v7637 = vunpack.c.l.b16 %v7571
      %v7638 = vunpack.c.h.b16 %v7571
      %v7639 = vunpack.c.l.b16 %v7572
      %v7640 = vunpack.c.h.b16 %v7572
      %v7641 = vunpack.c.l.b16 %v7573
      %v7642 = vunpack.c.h.b16 %v7573
      %v7643 = vunpack.c.l.b16 %v7574
      %v7644 = vunpack.c.h.b16 %v7574
      %v7645 = vunpack.c.l.b16 %v7575
      %v7646 = vunpack.c.h.b16 %v7575
      %v7647 = vunpack.c.l.b16 %v7576
      %v7648 = vunpack.c.h.b16 %v7576
      %v7649 = vunpack.c.l.b16 %v7577
      %v7650 = vunpack.c.h.b16 %v7577
      %v7651 = vunpack.c.l.b16 %v7578
      %v7652 = vunpack.c.h.b16 %v7578
      %v7653 = vunpack.c.l.b16 %v7579
      %v7654 = vunpack.c.h.b16 %v7579
      %v7655 = vunpack.c.l.b16 %v7580
      %v7656 = vunpack.c.h.b16 %v7580
      %v7657 = vunpack.c.l.b16 %v7581
      %v7658 = vunpack.c.h.b16 %v7581
      %v7659 = vunpack.c.l.b16 %v7582
      %v7660 = vunpack.c.h.b16 %v7582
      %v7661 = vunpack.c.l.b16 %v7583
      %v7662 = vunpack.c.h.b16 %v7583
      %v7663 = vunpack.c.l.b16 %v7584
      %v7664 = vunpack.c.h.b16 %v7584
      %v7665 = vunpack.c.l.b16 %v7585
      %v7666 = vunpack.c.h.b16 %v7585
      %v7667 = vunpack.c.l.b16 %v7586
      %v7668 = vunpack.c.h.b16 %v7586
      %v7669 = vunpack.c.l.b16 %v7587
      %v7670 = vunpack.c.h.b16 %v7587
      %v7671 = vunpack.c.l.b16 %v7588
      %v7672 = vunpack.c.h.b16 %v7588
      %v7673 = vunpack.c.l.b16 %v7589
      %v7674 = vunpack.c.h.b16 %v7589
      %v7675 = vunpack.c.l.b16 %v7590
      %v7676 = vunpack.c.h.b16 %v7590
      %v7677 = vunpack.c.l.b16 %v7591
      %v7678 = vunpack.c.h.b16 %v7591
      %v7679 = vunpack.c.l.b16 %v7592
      %v7680 = vunpack.c.h.b16 %v7592
      %v7681 = vunpack.c.l.b16 %v7593
      %v7682 = vunpack.c.h.b16 %v7593
      %v7683 = vunpack.c.l.b16 %v7594
      %v7684 = vunpack.c.h.b16 %v7594
      %v7685 = vunpack.c.l.b16 %v7595
      %v7686 = vunpack.c.h.b16 %v7595
      %v7687 = vunpack.c.l.b16 %v7596
      %v7688 = vunpack.c.h.b16 %v7596
      %v7689 = vunpack.c.l.b16 %v7597
      %v7690 = vunpack.c.h.b16 %v7597
      %v7691 = vunpack.c.l.b16 %v7598
      %v7692 = vunpack.c.h.b16 %v7598
      %v7693 = vunpack.c.l.b16 %v7599
      %v7694 = vunpack.c.h.b16 %v7599
      %v7695 = vunpack.c.l.b16 %v7600
      %v7696 = vunpack.c.h.b16 %v7600
      %v7697 = vpack.c.b16 %v7635, %v7633
      %v7698 = vpack.c.b16 %v7636, %v7634
      %v7699 = vpack.c.b16 %v7639, %v7637
      %v7700 = vpack.c.b16 %v7640, %v7638
      %v7701 = vpack.c.b16 %v7643, %v7641
      %v7702 = vpack.c.b16 %v7644, %v7642
      %v7703 = vpack.c.b16 %v7647, %v7645
      %v7704 = vpack.c.b16 %v7648, %v7646
      %v7705 = vpack.c.b16 %v7651, %v7649
      %v7706 = vpack.c.b16 %v7652, %v7650
      %v7707 = vpack.c.b16 %v7655, %v7653
      %v7708 = vpack.c.b16 %v7656, %v7654
      %v7709 = vpack.c.b16 %v7659, %v7657
      %v7710 = vpack.c.b16 %v7660, %v7658
      %v7711 = vpack.c.b16 %v7663, %v7661
      %v7712 = vpack.c.b16 %v7664, %v7662
      %v7713 = vpack.c.b16 %v7667, %v7665
      %v7714 = vpack.c.b16 %v7668, %v7666
      %v7715 = vpack.c.b16 %v7671, %v7669
      %v7716 = vpack.c.b16 %v7672, %v7670
      %v7717 = vpack.c.b16 %v7675, %v7673
      %v7718 = vpack.c.b16 %v7676, %v7674
      %v7719 = vpack.c.b16 %v7679, %v7677
      %v7720 = vpack.c.b16 %v7680, %v7678
      %v7721 = vpack.c.b16 %v7683, %v7681
      %v7722 = vpack.c.b16 %v7684, %v7682
      %v7723 = vpack.c.b16 %v7687, %v7685
      %v7724 = vpack.c.b16 %v7688, %v7686
      %v7725 = vpack.c.b16 %v7691, %v7689
      %v7726 = vpack.c.b16 %v7692, %v7690
      %v7727 = vpack.c.b16 %v7695, %v7693
      %v7728 = vpack.c.b16 %v7696, %v7694
      %7761 = vmatprep.subr.bf16.mxu0 %v7712
      %7762 = vmatpush1.bf16.msra.mxu0 %v7711
      %7763 = vmatprep.subr.bf16.mxu0 %v7710
      %7764 = vmatpush1.bf16.msra.mxu0 %v7709
      %7765 = vmatprep.subr.bf16.mxu0 %v7708
      %7766 = vmatpush1.bf16.msra.mxu0 %v7707
      %7767 = vmatprep.subr.bf16.mxu0 %v7706
      %7768 = vmatpush1.bf16.msra.mxu0 %v7705
      %7769 = vmatprep.subr.bf16.mxu0 %v7704
      %7770 = vmatpush1.bf16.msra.mxu0 %v7703
      %7771 = vmatprep.subr.bf16.mxu0 %v7702
      %7772 = vmatpush1.bf16.msra.mxu0 %v7701
      %7773 = vmatprep.subr.bf16.mxu0 %v7700
      %7774 = vmatpush1.bf16.msra.mxu0 %v7699
      %7775 = vmatprep.subr.bf16.mxu0 %v7698
      %7776 = vmatpush1.bf16.msra.mxu0 %v7697
      %7777 = vmatprep.subr.bf16.mxu0 %v7728
      %7778 = vmatpush2.bf16.msra.mxu0 %v7727
      %7779 = vmatprep.subr.bf16.mxu0 %v7726
      %7780 = vmatpush2.bf16.msra.mxu0 %v7725
      %7781 = vmatprep.subr.bf16.mxu0 %v7724
      %7782 = vmatpush2.bf16.msra.mxu0 %v7723
      %7783 = vmatprep.subr.bf16.mxu0 %v7722
      %7784 = vmatpush2.bf16.msra.mxu0 %v7721
      %7785 = vmatprep.subr.bf16.mxu0 %v7720
      %7786 = vmatpush2.bf16.msra.mxu0 %v7719
      %7787 = vmatprep.subr.bf16.mxu0 %v7718
      %7788 = vmatpush2.bf16.msra.mxu0 %v7717
      %7789 = vmatprep.subr.bf16.mxu0 %v7716
      %7790 = vmatpush2.bf16.msra.mxu0 %v7715
      %7791 = vmatprep.subr.bf16.mxu0 %v7714
      %7792 = vmatpush2.bf16.msra.mxu0 %v7713
      %7793 = vmatprep.mubr.bf16.mxu0 %v5648
      %7794 = vmatmul.mubr.bf16.gmra.mxu0 %v5647
      %v7795 = vpop.f32.mrf.mxu0
      %v7796 = vadd.f32 %v5448, %v7795
      %v7797 = vpop.f32.mrf.mxu0
      %v7798 = vadd.f32 %v5452, %v7797
      %v7799 = vpop.f32.mrf.mxu0
      %v7800 = vadd.f32 %v5448, %v7799
      %v7801 = vpop.f32.mrf.mxu0
      %v7802 = vadd.f32 %v5452, %v7801
      %7803 = vmatprep.mubr.bf16.mxu0 %v5650
      %7804 = vmatmul.mubr.bf16.gmra.mxu0 %v5649
      %v7805 = vpop.f32.mrf.mxu0
      %v7806 = vadd.f32 %v5448, %v7805
      %v7807 = vpop.f32.mrf.mxu0
      %v7808 = vadd.f32 %v5452, %v7807
      %v7809 = vpop.f32.mrf.mxu0
      %v7810 = vadd.f32 %v5448, %v7809
      %v7811 = vpop.f32.mrf.mxu0
      %v7812 = vadd.f32 %v5452, %v7811
      %7813 = vmatprep.mubr.bf16.mxu0 %v5652
      %7814 = vmatmul.mubr.bf16.gmra.mxu0 %v5651
      %v7815 = vpop.f32.mrf.mxu0
      %v7816 = vadd.f32 %v5448, %v7815
      %v7817 = vpop.f32.mrf.mxu0
      %v7818 = vadd.f32 %v5452, %v7817
      %v7819 = vpop.f32.mrf.mxu0
      %v7820 = vadd.f32 %v5448, %v7819
      %v7821 = vpop.f32.mrf.mxu0
      %v7822 = vadd.f32 %v5452, %v7821
      %7823 = vmatprep.mubr.bf16.mxu0 %v5654
      %7824 = vmatmul.mubr.bf16.gmra.mxu0 %v5653
      %v7825 = vpop.f32.mrf.mxu0
      %v7826 = vadd.f32 %v5448, %v7825
      %v7827 = vpop.f32.mrf.mxu0
      %v7828 = vadd.f32 %v5452, %v7827
      %v7829 = vpop.f32.mrf.mxu0
      %v7830 = vadd.f32 %v5448, %v7829
      %v7831 = vpop.f32.mrf.mxu0
      %v7832 = vadd.f32 %v5452, %v7831
      %7833 = vmatprep.mubr.bf16.mxu0 %v5656
      %7834 = vmatmul.mubr.bf16.gmra.mxu0 %v5655
      %v7835 = vpop.f32.mrf.mxu0
      %v7836 = vadd.f32 %v5448, %v7835
      %v7837 = vpop.f32.mrf.mxu0
      %v7838 = vadd.f32 %v5452, %v7837
      %v7839 = vpop.f32.mrf.mxu0
      %v7840 = vadd.f32 %v5448, %v7839
      %v7841 = vpop.f32.mrf.mxu0
      %v7842 = vadd.f32 %v5452, %v7841
      %7843 = vmatprep.mubr.bf16.mxu0 %v5658
      %7844 = vmatmul.mubr.bf16.gmra.mxu0 %v5657
      %v7845 = vpop.f32.mrf.mxu0
      %v7846 = vadd.f32 %v5448, %v7845
      %v7847 = vpop.f32.mrf.mxu0
      %v7848 = vadd.f32 %v5452, %v7847
      %v7849 = vpop.f32.mrf.mxu0
      %v7850 = vadd.f32 %v5448, %v7849
      %v7851 = vpop.f32.mrf.mxu0
      %v7852 = vadd.f32 %v5452, %v7851
      %7853 = vmatprep.mubr.bf16.mxu0 %v5660
      %7854 = vmatmul.mubr.bf16.gmra.mxu0 %v5659
      %v7855 = vpop.f32.mrf.mxu0
      %v7856 = vadd.f32 %v5448, %v7855
      %v7857 = vpop.f32.mrf.mxu0
      %v7858 = vadd.f32 %v5452, %v7857
      %v7859 = vpop.f32.mrf.mxu0
      %v7860 = vadd.f32 %v5448, %v7859
      %v7861 = vpop.f32.mrf.mxu0
      %v7862 = vadd.f32 %v5452, %v7861
      %7863 = vmatprep.mubr.bf16.mxu0 %v5662
      %7864 = vmatmul.mubr.bf16.gmra.mxu0 %v5661
      %v7865 = vpop.f32.mrf.mxu0
      %v7866 = vadd.f32 %v5448, %v7865
      %v7867 = vpop.f32.mrf.mxu0
      %v7868 = vadd.f32 %v5452, %v7867
      %v7869 = vpop.f32.mrf.mxu0
      %v7870 = vadd.f32 %v5448, %v7869
      %v7871 = vpop.f32.mrf.mxu0
      %v7872 = vadd.f32 %v5452, %v7871
      %7873 = vmatprep.mubr.bf16.mxu0 %v5664
      %7874 = vmatmul.mubr.bf16.gmra.mxu0 %v5663
      %v7875 = vpop.f32.mrf.mxu0
      %v7876 = vadd.f32 %v5448, %v7875
      %v7877 = vpop.f32.mrf.mxu0
      %v7878 = vadd.f32 %v5452, %v7877
      %v7879 = vpop.f32.mrf.mxu0
      %v7880 = vadd.f32 %v5448, %v7879
      %v7881 = vpop.f32.mrf.mxu0
      %v7882 = vadd.f32 %v5452, %v7881
      %7883 = vmatprep.mubr.bf16.mxu0 %v5666
      %7884 = vmatmul.mubr.bf16.gmra.mxu0 %v5665
      %v7885 = vpop.f32.mrf.mxu0
      %v7886 = vadd.f32 %v5448, %v7885
      %v7887 = vpop.f32.mrf.mxu0
      %v7888 = vadd.f32 %v5452, %v7887
      %v7889 = vpop.f32.mrf.mxu0
      %v7890 = vadd.f32 %v5448, %v7889
      %v7891 = vpop.f32.mrf.mxu0
      %v7892 = vadd.f32 %v5452, %v7891
      %7893 = vmatprep.mubr.bf16.mxu0 %v5668
      %7894 = vmatmul.mubr.bf16.gmra.mxu0 %v5667
      %v7895 = vpop.f32.mrf.mxu0
      %v7896 = vadd.f32 %v5448, %v7895
      %v7897 = vpop.f32.mrf.mxu0
      %v7898 = vadd.f32 %v5452, %v7897
      %v7899 = vpop.f32.mrf.mxu0
      %v7900 = vadd.f32 %v5448, %v7899
      %v7901 = vpop.f32.mrf.mxu0
      %v7902 = vadd.f32 %v5452, %v7901
      %7903 = vmatprep.mubr.bf16.mxu0 %v5670
      %7904 = vmatmul.mubr.bf16.gmra.mxu0 %v5669
      %v7905 = vpop.f32.mrf.mxu0
      %v7906 = vadd.f32 %v5448, %v7905
      %v7907 = vpop.f32.mrf.mxu0
      %v7908 = vadd.f32 %v5452, %v7907
      %v7909 = vpop.f32.mrf.mxu0
      %v7910 = vadd.f32 %v5448, %v7909
      %v7911 = vpop.f32.mrf.mxu0
      %v7912 = vadd.f32 %v5452, %v7911
      %7913 = vmatprep.mubr.bf16.mxu0 %v5672
      %7914 = vmatmul.mubr.bf16.gmra.mxu0 %v5671
      %v7915 = vpop.f32.mrf.mxu0
      %v7916 = vadd.f32 %v5448, %v7915
      %v7917 = vpop.f32.mrf.mxu0
      %v7918 = vadd.f32 %v5452, %v7917
      %v7919 = vpop.f32.mrf.mxu0
      %v7920 = vadd.f32 %v5448, %v7919
      %v7921 = vpop.f32.mrf.mxu0
      %v7922 = vadd.f32 %v5452, %v7921
      %7923 = vmatprep.mubr.bf16.mxu0 %v5674
      %7924 = vmatmul.mubr.bf16.gmra.mxu0 %v5673
      %v7925 = vpop.f32.mrf.mxu0
      %v7926 = vadd.f32 %v5448, %v7925
      %v7927 = vpop.f32.mrf.mxu0
      %v7928 = vadd.f32 %v5452, %v7927
      %v7929 = vpop.f32.mrf.mxu0
      %v7930 = vadd.f32 %v5448, %v7929
      %v7931 = vpop.f32.mrf.mxu0
      %v7932 = vadd.f32 %v5452, %v7931
      %7933 = vmatprep.mubr.bf16.mxu0 %v5676
      %7934 = vmatmul.mubr.bf16.gmra.mxu0 %v5675
      %v7935 = vpop.f32.mrf.mxu0
      %v7936 = vadd.f32 %v5448, %v7935
      %v7937 = vpop.f32.mrf.mxu0
      %v7938 = vadd.f32 %v5452, %v7937
      %v7939 = vpop.f32.mrf.mxu0
      %v7940 = vadd.f32 %v5448, %v7939
      %v7941 = vpop.f32.mrf.mxu0
      %v7942 = vadd.f32 %v5452, %v7941
      %7943 = vmatprep.mubr.bf16.mxu0 %v5678
      %7944 = vmatmul.mubr.bf16.gmra.mxu0 %v5677
      %v7945 = vpop.f32.mrf.mxu0
      %v7946 = vadd.f32 %v5448, %v7945
      %v7947 = vpop.f32.mrf.mxu0
      %v7948 = vadd.f32 %v5452, %v7947
      %v7949 = vpop.f32.mrf.mxu0
      %v7950 = vadd.f32 %v5448, %v7949
      %v7951 = vpop.f32.mrf.mxu0
      %v7952 = vadd.f32 %v5452, %v7951
      %7953 = vmatprep.mubr.bf16.mxu0 %v5680
      %7954 = vmatmul.mubr.bf16.gmra.mxu0 %v5679
      %v7955 = vpop.f32.mrf.mxu0
      %v7956 = vadd.f32 %v5448, %v7955
      %v7957 = vpop.f32.mrf.mxu0
      %v7958 = vadd.f32 %v5452, %v7957
      %v7959 = vpop.f32.mrf.mxu0
      %v7960 = vadd.f32 %v5448, %v7959
      %v7961 = vpop.f32.mrf.mxu0
      %v7962 = vadd.f32 %v5452, %v7961
      %7963 = vmatprep.mubr.bf16.mxu0 %v5682
      %7964 = vmatmul.mubr.bf16.gmra.mxu0 %v5681
      %v7965 = vpop.f32.mrf.mxu0
      %v7966 = vadd.f32 %v5448, %v7965
      %v7967 = vpop.f32.mrf.mxu0
      %v7968 = vadd.f32 %v5452, %v7967
      %v7969 = vpop.f32.mrf.mxu0
      %v7970 = vadd.f32 %v5448, %v7969
      %v7971 = vpop.f32.mrf.mxu0
      %v7972 = vadd.f32 %v5452, %v7971
      %7973 = vmatprep.mubr.bf16.mxu0 %v5684
      %7974 = vmatmul.mubr.bf16.gmra.mxu0 %v5683
      %v7975 = vpop.f32.mrf.mxu0
      %v7976 = vadd.f32 %v5448, %v7975
      %v7977 = vpop.f32.mrf.mxu0
      %v7978 = vadd.f32 %v5452, %v7977
      %v7979 = vpop.f32.mrf.mxu0
      %v7980 = vadd.f32 %v5448, %v7979
      %v7981 = vpop.f32.mrf.mxu0
      %v7982 = vadd.f32 %v5452, %v7981
      %7983 = vmatprep.mubr.bf16.mxu0 %v5686
      %7984 = vmatmul.mubr.bf16.gmra.mxu0 %v5685
      %v7985 = vpop.f32.mrf.mxu0
      %v7986 = vadd.f32 %v5448, %v7985
      %v7987 = vpop.f32.mrf.mxu0
      %v7988 = vadd.f32 %v5452, %v7987
      %v7989 = vpop.f32.mrf.mxu0
      %v7990 = vadd.f32 %v5448, %v7989
      %v7991 = vpop.f32.mrf.mxu0
      %v7992 = vadd.f32 %v5452, %v7991
      %7993 = vmatprep.mubr.bf16.mxu0 %v5688
      %7994 = vmatmul.mubr.bf16.gmra.mxu0 %v5687
      %v7995 = vpop.f32.mrf.mxu0
      %v7996 = vadd.f32 %v5448, %v7995
      %v7997 = vpop.f32.mrf.mxu0
      %v7998 = vadd.f32 %v5452, %v7997
      %v7999 = vpop.f32.mrf.mxu0
      %v8000 = vadd.f32 %v5448, %v7999
      %v8001 = vpop.f32.mrf.mxu0
      %v8002 = vadd.f32 %v5452, %v8001
      %8003 = vmatprep.mubr.bf16.mxu0 %v5690
      %8004 = vmatmul.mubr.bf16.gmra.mxu0 %v5689
      %v8005 = vpop.f32.mrf.mxu0
      %v8006 = vadd.f32 %v5448, %v8005
      %v8007 = vpop.f32.mrf.mxu0
      %v8008 = vadd.f32 %v5452, %v8007
      %v8009 = vpop.f32.mrf.mxu0
      %v8010 = vadd.f32 %v5448, %v8009
      %v8011 = vpop.f32.mrf.mxu0
      %v8012 = vadd.f32 %v5452, %v8011
      %8013 = vmatprep.mubr.bf16.mxu0 %v5692
      %8014 = vmatmul.mubr.bf16.gmra.mxu0 %v5691
      %v8015 = vpop.f32.mrf.mxu0
      %v8016 = vadd.f32 %v5448, %v8015
      %v8017 = vpop.f32.mrf.mxu0
      %v8018 = vadd.f32 %v5452, %v8017
      %v8019 = vpop.f32.mrf.mxu0
      %v8020 = vadd.f32 %v5448, %v8019
      %v8021 = vpop.f32.mrf.mxu0
      %v8022 = vadd.f32 %v5452, %v8021
      %8023 = vmatprep.mubr.bf16.mxu0 %v5694
      %8024 = vmatmul.mubr.bf16.gmra.mxu0 %v5693
      %v8025 = vpop.f32.mrf.mxu0
      %v8026 = vadd.f32 %v5448, %v8025
      %v8027 = vpop.f32.mrf.mxu0
      %v8028 = vadd.f32 %v5452, %v8027
      %v8029 = vpop.f32.mrf.mxu0
      %v8030 = vadd.f32 %v5448, %v8029
      %v8031 = vpop.f32.mrf.mxu0
      %v8032 = vadd.f32 %v5452, %v8031
      %8033 = vmatprep.mubr.bf16.mxu0 %v5696
      %8034 = vmatmul.mubr.bf16.gmra.mxu0 %v5695
      %v8035 = vpop.f32.mrf.mxu0
      %v8036 = vadd.f32 %v5448, %v8035
      %v8037 = vpop.f32.mrf.mxu0
      %v8038 = vadd.f32 %v5452, %v8037
      %v8039 = vpop.f32.mrf.mxu0
      %v8040 = vadd.f32 %v5448, %v8039
      %v8041 = vpop.f32.mrf.mxu0
      %v8042 = vadd.f32 %v5452, %v8041
      %8043 = vmatprep.mubr.bf16.mxu0 %v5698
      %8044 = vmatmul.mubr.bf16.gmra.mxu0 %v5697
      %v8045 = vpop.f32.mrf.mxu0
      %v8046 = vadd.f32 %v5448, %v8045
      %v8047 = vpop.f32.mrf.mxu0
      %v8048 = vadd.f32 %v5452, %v8047
      %v8049 = vpop.f32.mrf.mxu0
      %v8050 = vadd.f32 %v5448, %v8049
      %v8051 = vpop.f32.mrf.mxu0
      %v8052 = vadd.f32 %v5452, %v8051
      %8053 = vmatprep.mubr.bf16.mxu0 %v5700
      %8054 = vmatmul.mubr.bf16.gmra.mxu0 %v5699
      %v8055 = vpop.f32.mrf.mxu0
      %v8056 = vadd.f32 %v5448, %v8055
      %v8057 = vpop.f32.mrf.mxu0
      %v8058 = vadd.f32 %v5452, %v8057
      %v8059 = vpop.f32.mrf.mxu0
      %v8060 = vadd.f32 %v5448, %v8059
      %v8061 = vpop.f32.mrf.mxu0
      %v8062 = vadd.f32 %v5452, %v8061
      %8063 = vmatprep.mubr.bf16.mxu0 %v5702
      %8064 = vmatmul.mubr.bf16.gmra.mxu0 %v5701
      %v8065 = vpop.f32.mrf.mxu0
      %v8066 = vadd.f32 %v5448, %v8065
      %v8067 = vpop.f32.mrf.mxu0
      %v8068 = vadd.f32 %v5452, %v8067
      %v8069 = vpop.f32.mrf.mxu0
      %v8070 = vadd.f32 %v5448, %v8069
      %v8071 = vpop.f32.mrf.mxu0
      %v8072 = vadd.f32 %v5452, %v8071
      %8073 = vmatprep.mubr.bf16.mxu0 %v5704
      %8074 = vmatmul.mubr.bf16.gmra.mxu0 %v5703
      %v8075 = vpop.f32.mrf.mxu0
      %v8076 = vadd.f32 %v5448, %v8075
      %v8077 = vpop.f32.mrf.mxu0
      %v8078 = vadd.f32 %v5452, %v8077
      %v8079 = vpop.f32.mrf.mxu0
      %v8080 = vadd.f32 %v5448, %v8079
      %v8081 = vpop.f32.mrf.mxu0
      %v8082 = vadd.f32 %v5452, %v8081
      %8083 = vmatprep.mubr.bf16.mxu0 %v5706
      %8084 = vmatmul.mubr.bf16.gmra.mxu0 %v5705
      %v8085 = vpop.f32.mrf.mxu0
      %v8086 = vadd.f32 %v5448, %v8085
      %v8087 = vpop.f32.mrf.mxu0
      %v8088 = vadd.f32 %v5452, %v8087
      %v8089 = vpop.f32.mrf.mxu0
      %v8090 = vadd.f32 %v5448, %v8089
      %v8091 = vpop.f32.mrf.mxu0
      %v8092 = vadd.f32 %v5452, %v8091
      %8093 = vmatprep.mubr.bf16.mxu0 %v5708
      %8094 = vmatmul.mubr.bf16.gmra.mxu0 %v5707
      %v8095 = vpop.f32.mrf.mxu0
      %v8096 = vadd.f32 %v5448, %v8095
      %v8097 = vpop.f32.mrf.mxu0
      %v8098 = vadd.f32 %v5452, %v8097
      %v8099 = vpop.f32.mrf.mxu0
      %v8100 = vadd.f32 %v5448, %v8099
      %v8101 = vpop.f32.mrf.mxu0
      %v8102 = vadd.f32 %v5452, %v8101
      %8103 = vmatprep.mubr.bf16.mxu0 %v5710
      %8104 = vmatmul.mubr.bf16.gmra.mxu0 %v5709
      %v8105 = vpop.f32.mrf.mxu0
      %v8106 = vadd.f32 %v5448, %v8105
      %v8107 = vpop.f32.mrf.mxu0
      %v8108 = vadd.f32 %v5452, %v8107
      %v8109 = vpop.f32.mrf.mxu0
      %v8110 = vadd.f32 %v5448, %v8109
      %v8111 = vpop.f32.mrf.mxu0
      %v8112 = vadd.f32 %v5452, %v8111
      %8113 = vdwg.mxu0
      %v8114 = vmul.f32 %v7796, 0.5
      %v8115 = vmul.f32 %v7798, 0.5
      %v8116 = vmul.f32 %v7800, 0.5
      %v8117 = vmul.f32 %v7802, 0.5
      %v8118 = vmul.f32 %v7806, 0.5
      %v8119 = vmul.f32 %v7808, 0.5
      %v8120 = vmul.f32 %v7810, 0.5
      %v8121 = vmul.f32 %v7812, 0.5
      %v8122 = vmul.f32 %v7816, 0.5
      %v8123 = vmul.f32 %v7818, 0.5
      %v8124 = vmul.f32 %v7820, 0.5
      %v8125 = vmul.f32 %v7822, 0.5
      %v8126 = vmul.f32 %v7826, 0.5
      %v8127 = vmul.f32 %v7828, 0.5
      %v8128 = vmul.f32 %v7830, 0.5
      %v8129 = vmul.f32 %v7832, 0.5
      %v8130 = vmul.f32 %v7836, 0.5
      %v8131 = vmul.f32 %v7838, 0.5
      %v8132 = vmul.f32 %v7840, 0.5
      %v8133 = vmul.f32 %v7842, 0.5
      %v8134 = vmul.f32 %v7846, 0.5
      %v8135 = vmul.f32 %v7848, 0.5
      %v8136 = vmul.f32 %v7850, 0.5
      %v8137 = vmul.f32 %v7852, 0.5
      %v8138 = vmul.f32 %v7856, 0.5
      %v8139 = vmul.f32 %v7858, 0.5
      %v8140 = vmul.f32 %v7860, 0.5
      %v8141 = vmul.f32 %v7862, 0.5
      %v8142 = vmul.f32 %v7866, 0.5
      %v8143 = vmul.f32 %v7868, 0.5
      %v8144 = vmul.f32 %v7870, 0.5
      %v8145 = vmul.f32 %v7872, 0.5
      %v8146 = vmul.f32 %v7876, 0.5
      %v8147 = vmul.f32 %v7878, 0.5
      %v8148 = vmul.f32 %v7880, 0.5
      %v8149 = vmul.f32 %v7882, 0.5
      %v8150 = vmul.f32 %v7886, 0.5
      %v8151 = vmul.f32 %v7888, 0.5
      %v8152 = vmul.f32 %v7890, 0.5
      %v8153 = vmul.f32 %v7892, 0.5
      %v8154 = vmul.f32 %v7896, 0.5
      %v8155 = vmul.f32 %v7898, 0.5
      %v8156 = vmul.f32 %v7900, 0.5
      %v8157 = vmul.f32 %v7902, 0.5
      %v8158 = vmul.f32 %v7906, 0.5
      %v8159 = vmul.f32 %v7908, 0.5
      %v8160 = vmul.f32 %v7910, 0.5
      %v8161 = vmul.f32 %v7912, 0.5
      %v8162 = vmul.f32 %v7916, 0.5
      %v8163 = vmul.f32 %v7918, 0.5
      %v8164 = vmul.f32 %v7920, 0.5
      %v8165 = vmul.f32 %v7922, 0.5
      %v8166 = vmul.f32 %v7926, 0.5
      %v8167 = vmul.f32 %v7928, 0.5
      %v8168 = vmul.f32 %v7930, 0.5
      %v8169 = vmul.f32 %v7932, 0.5
      %v8170 = vmul.f32 %v7936, 0.5
      %v8171 = vmul.f32 %v7938, 0.5
      %v8172 = vmul.f32 %v7940, 0.5
      %v8173 = vmul.f32 %v7942, 0.5
      %v8174 = vmul.f32 %v7946, 0.5
      %v8175 = vmul.f32 %v7948, 0.5
      %v8176 = vmul.f32 %v7950, 0.5
      %v8177 = vmul.f32 %v7952, 0.5
      %v8178 = vmul.f32 %v7956, 0.5
      %v8179 = vmul.f32 %v7958, 0.5
      %v8180 = vmul.f32 %v7960, 0.5
      %v8181 = vmul.f32 %v7962, 0.5
      %v8182 = vmul.f32 %v7966, 0.5
      %v8183 = vmul.f32 %v7968, 0.5
      %v8184 = vmul.f32 %v7970, 0.5
      %v8185 = vmul.f32 %v7972, 0.5
      %v8186 = vmul.f32 %v7976, 0.5
      %v8187 = vmul.f32 %v7978, 0.5
      %v8188 = vmul.f32 %v7980, 0.5
      %v8189 = vmul.f32 %v7982, 0.5
      %v8190 = vmul.f32 %v7986, 0.5
      %v8191 = vmul.f32 %v7988, 0.5
      %v8192 = vmul.f32 %v7990, 0.5
      %v8193 = vmul.f32 %v7992, 0.5
      %v8194 = vmul.f32 %v7996, 0.5
      %v8195 = vmul.f32 %v7998, 0.5
      %v8196 = vmul.f32 %v8000, 0.5
      %v8197 = vmul.f32 %v8002, 0.5
      %v8198 = vmul.f32 %v8006, 0.5
      %v8199 = vmul.f32 %v8008, 0.5
      %v8200 = vmul.f32 %v8010, 0.5
      %v8201 = vmul.f32 %v8012, 0.5
      %v8202 = vmul.f32 %v8016, 0.5
      %v8203 = vmul.f32 %v8018, 0.5
      %v8204 = vmul.f32 %v8020, 0.5
      %v8205 = vmul.f32 %v8022, 0.5
      %v8206 = vmul.f32 %v8026, 0.5
      %v8207 = vmul.f32 %v8028, 0.5
      %v8208 = vmul.f32 %v8030, 0.5
      %v8209 = vmul.f32 %v8032, 0.5
      %v8210 = vmul.f32 %v8036, 0.5
      %v8211 = vmul.f32 %v8038, 0.5
      %v8212 = vmul.f32 %v8040, 0.5
      %v8213 = vmul.f32 %v8042, 0.5
      %v8214 = vmul.f32 %v8046, 0.5
      %v8215 = vmul.f32 %v8048, 0.5
      %v8216 = vmul.f32 %v8050, 0.5
      %v8217 = vmul.f32 %v8052, 0.5
      %v8218 = vmul.f32 %v8056, 0.5
      %v8219 = vmul.f32 %v8058, 0.5
      %v8220 = vmul.f32 %v8060, 0.5
      %v8221 = vmul.f32 %v8062, 0.5
      %v8222 = vmul.f32 %v8066, 0.5
      %v8223 = vmul.f32 %v8068, 0.5
      %v8224 = vmul.f32 %v8070, 0.5
      %v8225 = vmul.f32 %v8072, 0.5
      %v8226 = vmul.f32 %v8076, 0.5
      %v8227 = vmul.f32 %v8078, 0.5
      %v8228 = vmul.f32 %v8080, 0.5
      %v8229 = vmul.f32 %v8082, 0.5
      %v8230 = vmul.f32 %v8086, 0.5
      %v8231 = vmul.f32 %v8088, 0.5
      %v8232 = vmul.f32 %v8090, 0.5
      %v8233 = vmul.f32 %v8092, 0.5
      %v8234 = vmul.f32 %v8096, 0.5
      %v8235 = vmul.f32 %v8098, 0.5
      %v8236 = vmul.f32 %v8100, 0.5
      %v8237 = vmul.f32 %v8102, 0.5
      %v8238 = vmul.f32 %v8106, 0.5
      %v8239 = vmul.f32 %v8108, 0.5
      %v8240 = vmul.f32 %v8110, 0.5
      %v8241 = vmul.f32 %v8112, 0.5
      %v8242 = vmul.f32 %v7796, 0.70710677
      %v8243 = vmul.f32 %v7798, 0.70710677
      %v8244 = vmul.f32 %v7800, 0.70710677
      %v8245 = vmul.f32 %v7802, 0.70710677
      %v8246 = vmul.f32 %v7806, 0.70710677
      %v8247 = vmul.f32 %v7808, 0.70710677
      %v8248 = vmul.f32 %v7810, 0.70710677
      %v8249 = vmul.f32 %v7812, 0.70710677
      %v8250 = vmul.f32 %v7816, 0.70710677
      %v8251 = vmul.f32 %v7818, 0.70710677
      %v8252 = vmul.f32 %v7820, 0.70710677
      %v8253 = vmul.f32 %v7822, 0.70710677
      %v8254 = vmul.f32 %v7826, 0.70710677
      %v8255 = vmul.f32 %v7828, 0.70710677
      %v8256 = vmul.f32 %v7830, 0.70710677
      %v8257 = vmul.f32 %v7832, 0.70710677
      %v8258 = vmul.f32 %v7836, 0.70710677
      %v8259 = vmul.f32 %v7838, 0.70710677
      %v8260 = vmul.f32 %v7840, 0.70710677
      %v8261 = vmul.f32 %v7842, 0.70710677
      %v8262 = vmul.f32 %v7846, 0.70710677
      %v8263 = vmul.f32 %v7848, 0.70710677
      %v8264 = vmul.f32 %v7850, 0.70710677
      %v8265 = vmul.f32 %v7852, 0.70710677
      %v8266 = vmul.f32 %v7856, 0.70710677
      %v8267 = vmul.f32 %v7858, 0.70710677
      %v8268 = vmul.f32 %v7860, 0.70710677
      %v8269 = vmul.f32 %v7862, 0.70710677
      %v8270 = vmul.f32 %v7866, 0.70710677
      %v8271 = vmul.f32 %v7868, 0.70710677
      %v8272 = vmul.f32 %v7870, 0.70710677
      %v8273 = vmul.f32 %v7872, 0.70710677
      %v8274 = vmul.f32 %v7876, 0.70710677
      %v8275 = vmul.f32 %v7878, 0.70710677
      %v8276 = vmul.f32 %v7880, 0.70710677
      %v8277 = vmul.f32 %v7882, 0.70710677
      %v8278 = vmul.f32 %v7886, 0.70710677
      %v8279 = vmul.f32 %v7888, 0.70710677
      %v8280 = vmul.f32 %v7890, 0.70710677
      %v8281 = vmul.f32 %v7892, 0.70710677
      %v8282 = vmul.f32 %v7896, 0.70710677
      %v8283 = vmul.f32 %v7898, 0.70710677
      %v8284 = vmul.f32 %v7900, 0.70710677
      %v8285 = vmul.f32 %v7902, 0.70710677
      %v8286 = vmul.f32 %v7906, 0.70710677
      %v8287 = vmul.f32 %v7908, 0.70710677
      %v8288 = vmul.f32 %v7910, 0.70710677
      %v8289 = vmul.f32 %v7912, 0.70710677
      %v8290 = vmul.f32 %v7916, 0.70710677
      %v8291 = vmul.f32 %v7918, 0.70710677
      %v8292 = vmul.f32 %v7920, 0.70710677
      %v8293 = vmul.f32 %v7922, 0.70710677
      %v8294 = vmul.f32 %v7926, 0.70710677
      %v8295 = vmul.f32 %v7928, 0.70710677
      %v8296 = vmul.f32 %v7930, 0.70710677
      %v8297 = vmul.f32 %v7932, 0.70710677
      %v8298 = vmul.f32 %v7936, 0.70710677
      %v8299 = vmul.f32 %v7938, 0.70710677
      %v8300 = vmul.f32 %v7940, 0.70710677
      %v8301 = vmul.f32 %v7942, 0.70710677
      %v8302 = vmul.f32 %v7946, 0.70710677
      %v8303 = vmul.f32 %v7948, 0.70710677
      %v8304 = vmul.f32 %v7950, 0.70710677
      %v8305 = vmul.f32 %v7952, 0.70710677
      %v8306 = vmul.f32 %v7956, 0.70710677
      %v8307 = vmul.f32 %v7958, 0.70710677
      %v8308 = vmul.f32 %v7960, 0.70710677
      %v8309 = vmul.f32 %v7962, 0.70710677
      %v8310 = vmul.f32 %v7966, 0.70710677
      %v8311 = vmul.f32 %v7968, 0.70710677
      %v8312 = vmul.f32 %v7970, 0.70710677
      %v8313 = vmul.f32 %v7972, 0.70710677
      %v8314 = vmul.f32 %v7976, 0.70710677
      %v8315 = vmul.f32 %v7978, 0.70710677
      %v8316 = vmul.f32 %v7980, 0.70710677
      %v8317 = vmul.f32 %v7982, 0.70710677
      %v8318 = vmul.f32 %v7986, 0.70710677
      %v8319 = vmul.f32 %v7988, 0.70710677
      %v8320 = vmul.f32 %v7990, 0.70710677
      %v8321 = vmul.f32 %v7992, 0.70710677
      %v8322 = vmul.f32 %v7996, 0.70710677
      %v8323 = vmul.f32 %v7998, 0.70710677
      %v8324 = vmul.f32 %v8000, 0.70710677
      %v8325 = vmul.f32 %v8002, 0.70710677
      %v8326 = vmul.f32 %v8006, 0.70710677
      %v8327 = vmul.f32 %v8008, 0.70710677
      %v8328 = vmul.f32 %v8010, 0.70710677
      %v8329 = vmul.f32 %v8012, 0.70710677
      %v8330 = vmul.f32 %v8016, 0.70710677
      %v8331 = vmul.f32 %v8018, 0.70710677
      %v8332 = vmul.f32 %v8020, 0.70710677
      %v8333 = vmul.f32 %v8022, 0.70710677
      %v8334 = vmul.f32 %v8026, 0.70710677
      %v8335 = vmul.f32 %v8028, 0.70710677
      %v8336 = vmul.f32 %v8030, 0.70710677
      %v8337 = vmul.f32 %v8032, 0.70710677
      %v8338 = vmul.f32 %v8036, 0.70710677
      %v8339 = vmul.f32 %v8038, 0.70710677
      %v8340 = vmul.f32 %v8040, 0.70710677
      %v8341 = vmul.f32 %v8042, 0.70710677
      %v8342 = vmul.f32 %v8046, 0.70710677
      %v8343 = vmul.f32 %v8048, 0.70710677
      %v8344 = vmul.f32 %v8050, 0.70710677
      %v8345 = vmul.f32 %v8052, 0.70710677
      %v8346 = vmul.f32 %v8056, 0.70710677
      %v8347 = vmul.f32 %v8058, 0.70710677
      %v8348 = vmul.f32 %v8060, 0.70710677
      %v8349 = vmul.f32 %v8062, 0.70710677
      %v8350 = vmul.f32 %v8066, 0.70710677
      %v8351 = vmul.f32 %v8068, 0.70710677
      %v8352 = vmul.f32 %v8070, 0.70710677
      %v8353 = vmul.f32 %v8072, 0.70710677
      %v8354 = vmul.f32 %v8076, 0.70710677
      %v8355 = vmul.f32 %v8078, 0.70710677
      %v8356 = vmul.f32 %v8080, 0.70710677
      %v8357 = vmul.f32 %v8082, 0.70710677
      %v8358 = vmul.f32 %v8086, 0.70710677
      %v8359 = vmul.f32 %v8088, 0.70710677
      %v8360 = vmul.f32 %v8090, 0.70710677
      %v8361 = vmul.f32 %v8092, 0.70710677
      %v8362 = vmul.f32 %v8096, 0.70710677
      %v8363 = vmul.f32 %v8098, 0.70710677
      %v8364 = vmul.f32 %v8100, 0.70710677
      %v8365 = vmul.f32 %v8102, 0.70710677
      %v8366 = vmul.f32 %v8106, 0.70710677
      %v8367 = vmul.f32 %v8108, 0.70710677
      %v8368 = vmul.f32 %v8110, 0.70710677
      %v8369 = vmul.f32 %v8112, 0.70710677
      %v8370 = verf.f32.pop %v8242
      %v8371 = verf.f32.pop %v8243
      %v8372 = verf.f32.pop %v8244
      %v8373 = verf.f32.pop %v8245
      %v8374 = verf.f32.pop %v8246
      %v8375 = verf.f32.pop %v8247
      %v8376 = verf.f32.pop %v8248
      %v8377 = verf.f32.pop %v8249
      %v8378 = verf.f32.pop %v8250
      %v8379 = verf.f32.pop %v8251
      %v8380 = verf.f32.pop %v8252
      %v8381 = verf.f32.pop %v8253
      %v8382 = verf.f32.pop %v8254
      %v8383 = verf.f32.pop %v8255
      %v8384 = verf.f32.pop %v8256
      %v8385 = verf.f32.pop %v8257
      %v8386 = verf.f32.pop %v8258
      %v8387 = verf.f32.pop %v8259
      %v8388 = verf.f32.pop %v8260
      %v8389 = verf.f32.pop %v8261
      %v8390 = verf.f32.pop %v8262
      %v8391 = verf.f32.pop %v8263
      %v8392 = verf.f32.pop %v8264
      %v8393 = verf.f32.pop %v8265
      %v8394 = verf.f32.pop %v8266
      %v8395 = verf.f32.pop %v8267
      %v8396 = verf.f32.pop %v8268
      %v8397 = verf.f32.pop %v8269
      %v8398 = verf.f32.pop %v8270
      %v8399 = verf.f32.pop %v8271
      %v8400 = verf.f32.pop %v8272
      %v8401 = verf.f32.pop %v8273
      %v8402 = verf.f32.pop %v8274
      %v8403 = verf.f32.pop %v8275
      %v8404 = verf.f32.pop %v8276
      %v8405 = verf.f32.pop %v8277
      %v8406 = verf.f32.pop %v8278
      %v8407 = verf.f32.pop %v8279
      %v8408 = verf.f32.pop %v8280
      %v8409 = verf.f32.pop %v8281
      %v8410 = verf.f32.pop %v8282
      %v8411 = verf.f32.pop %v8283
      %v8412 = verf.f32.pop %v8284
      %v8413 = verf.f32.pop %v8285
      %v8414 = verf.f32.pop %v8286
      %v8415 = verf.f32.pop %v8287
      %v8416 = verf.f32.pop %v8288
      %v8417 = verf.f32.pop %v8289
      %v8418 = verf.f32.pop %v8290
      %v8419 = verf.f32.pop %v8291
      %v8420 = verf.f32.pop %v8292
      %v8421 = verf.f32.pop %v8293
      %v8422 = verf.f32.pop %v8294
      %v8423 = verf.f32.pop %v8295
      %v8424 = verf.f32.pop %v8296
      %v8425 = verf.f32.pop %v8297
      %v8426 = verf.f32.pop %v8298
      %v8427 = verf.f32.pop %v8299
      %v8428 = verf.f32.pop %v8300
      %v8429 = verf.f32.pop %v8301
      %v8430 = verf.f32.pop %v8302
      %v8431 = verf.f32.pop %v8303
      %v8432 = verf.f32.pop %v8304
      %v8433 = verf.f32.pop %v8305
      %v8434 = verf.f32.pop %v8306
      %v8435 = verf.f32.pop %v8307
      %v8436 = verf.f32.pop %v8308
      %v8437 = verf.f32.pop %v8309
      %v8438 = verf.f32.pop %v8310
      %v8439 = verf.f32.pop %v8311
      %v8440 = verf.f32.pop %v8312
      %v8441 = verf.f32.pop %v8313
      %v8442 = verf.f32.pop %v8314
      %v8443 = verf.f32.pop %v8315
      %v8444 = verf.f32.pop %v8316
      %v8445 = verf.f32.pop %v8317
      %v8446 = verf.f32.pop %v8318
      %v8447 = verf.f32.pop %v8319
      %v8448 = verf.f32.pop %v8320
      %v8449 = verf.f32.pop %v8321
      %v8450 = verf.f32.pop %v8322
      %v8451 = verf.f32.pop %v8323
      %v8452 = verf.f32.pop %v8324
      %v8453 = verf.f32.pop %v8325
      %v8454 = verf.f32.pop %v8326
      %v8455 = verf.f32.pop %v8327
      %v8456 = verf.f32.pop %v8328
      %v8457 = verf.f32.pop %v8329
      %v8458 = verf.f32.pop %v8330
      %v8459 = verf.f32.pop %v8331
      %v8460 = verf.f32.pop %v8332
      %v8461 = verf.f32.pop %v8333
      %v8462 = verf.f32.pop %v8334
      %v8463 = verf.f32.pop %v8335
      %v8464 = verf.f32.pop %v8336
      %v8465 = verf.f32.pop %v8337
      %v8466 = verf.f32.pop %v8338
      %v8467 = verf.f32.pop %v8339
      %v8468 = verf.f32.pop %v8340
      %v8469 = verf.f32.pop %v8341
      %v8470 = verf.f32.pop %v8342
      %v8471 = verf.f32.pop %v8343
      %v8472 = verf.f32.pop %v8344
      %v8473 = verf.f32.pop %v8345
      %v8474 = verf.f32.pop %v8346
      %v8475 = verf.f32.pop %v8347
      %v8476 = verf.f32.pop %v8348
      %v8477 = verf.f32.pop %v8349
      %v8478 = verf.f32.pop %v8350
      %v8479 = verf.f32.pop %v8351
      %v8480 = verf.f32.pop %v8352
      %v8481 = verf.f32.pop %v8353
      %v8482 = verf.f32.pop %v8354
      %v8483 = verf.f32.pop %v8355
      %v8484 = verf.f32.pop %v8356
      %v8485 = verf.f32.pop %v8357
      %v8486 = verf.f32.pop %v8358
      %v8487 = verf.f32.pop %v8359
      %v8488 = verf.f32.pop %v8360
      %v8489 = verf.f32.pop %v8361
      %v8490 = verf.f32.pop %v8362
      %v8491 = verf.f32.pop %v8363
      %v8492 = verf.f32.pop %v8364
      %v8493 = verf.f32.pop %v8365
      %v8494 = verf.f32.pop %v8366
      %v8495 = verf.f32.pop %v8367
      %v8496 = verf.f32.pop %v8368
      %v8497 = verf.f32.pop %v8369
      %v8498 = vadd.f32 %v8370, 1.0
      %v8499 = vadd.f32 %v8371, 1.0
      %v8500 = vadd.f32 %v8372, 1.0
      %v8501 = vadd.f32 %v8373, 1.0
      %v8502 = vadd.f32 %v8374, 1.0
      %v8503 = vadd.f32 %v8375, 1.0
      %v8504 = vadd.f32 %v8376, 1.0
      %v8505 = vadd.f32 %v8377, 1.0
      %v8506 = vadd.f32 %v8378, 1.0
      %v8507 = vadd.f32 %v8379, 1.0
      %v8508 = vadd.f32 %v8380, 1.0
      %v8509 = vadd.f32 %v8381, 1.0
      %v8510 = vadd.f32 %v8382, 1.0
      %v8511 = vadd.f32 %v8383, 1.0
      %v8512 = vadd.f32 %v8384, 1.0
      %v8513 = vadd.f32 %v8385, 1.0
      %v8514 = vadd.f32 %v8386, 1.0
      %v8515 = vadd.f32 %v8387, 1.0
      %v8516 = vadd.f32 %v8388, 1.0
      %v8517 = vadd.f32 %v8389, 1.0
      %v8518 = vadd.f32 %v8390, 1.0
      %v8519 = vadd.f32 %v8391, 1.0
      %v8520 = vadd.f32 %v8392, 1.0
      %v8521 = vadd.f32 %v8393, 1.0
      %v8522 = vadd.f32 %v8394, 1.0
      %v8523 = vadd.f32 %v8395, 1.0
      %v8524 = vadd.f32 %v8396, 1.0
      %v8525 = vadd.f32 %v8397, 1.0
      %v8526 = vadd.f32 %v8398, 1.0
      %v8527 = vadd.f32 %v8399, 1.0
      %v8528 = vadd.f32 %v8400, 1.0
      %v8529 = vadd.f32 %v8401, 1.0
      %v8530 = vadd.f32 %v8402, 1.0
      %v8531 = vadd.f32 %v8403, 1.0
      %v8532 = vadd.f32 %v8404, 1.0
      %v8533 = vadd.f32 %v8405, 1.0
      %v8534 = vadd.f32 %v8406, 1.0
      %v8535 = vadd.f32 %v8407, 1.0
      %v8536 = vadd.f32 %v8408, 1.0
      %v8537 = vadd.f32 %v8409, 1.0
      %v8538 = vadd.f32 %v8410, 1.0
      %v8539 = vadd.f32 %v8411, 1.0
      %v8540 = vadd.f32 %v8412, 1.0
      %v8541 = vadd.f32 %v8413, 1.0
      %v8542 = vadd.f32 %v8414, 1.0
      %v8543 = vadd.f32 %v8415, 1.0
      %v8544 = vadd.f32 %v8416, 1.0
      %v8545 = vadd.f32 %v8417, 1.0
      %v8546 = vadd.f32 %v8418, 1.0
      %v8547 = vadd.f32 %v8419, 1.0
      %v8548 = vadd.f32 %v8420, 1.0
      %v8549 = vadd.f32 %v8421, 1.0
      %v8550 = vadd.f32 %v8422, 1.0
      %v8551 = vadd.f32 %v8423, 1.0
      %v8552 = vadd.f32 %v8424, 1.0
      %v8553 = vadd.f32 %v8425, 1.0
      %v8554 = vadd.f32 %v8426, 1.0
      %v8555 = vadd.f32 %v8427, 1.0
      %v8556 = vadd.f32 %v8428, 1.0
      %v8557 = vadd.f32 %v8429, 1.0
      %v8558 = vadd.f32 %v8430, 1.0
      %v8559 = vadd.f32 %v8431, 1.0
      %v8560 = vadd.f32 %v8432, 1.0
      %v8561 = vadd.f32 %v8433, 1.0
      %v8562 = vadd.f32 %v8434, 1.0
      %v8563 = vadd.f32 %v8435, 1.0
      %v8564 = vadd.f32 %v8436, 1.0
      %v8565 = vadd.f32 %v8437, 1.0
      %v8566 = vadd.f32 %v8438, 1.0
      %v8567 = vadd.f32 %v8439, 1.0
      %v8568 = vadd.f32 %v8440, 1.0
      %v8569 = vadd.f32 %v8441, 1.0
      %v8570 = vadd.f32 %v8442, 1.0
      %v8571 = vadd.f32 %v8443, 1.0
      %v8572 = vadd.f32 %v8444, 1.0
      %v8573 = vadd.f32 %v8445, 1.0
      %v8574 = vadd.f32 %v8446, 1.0
      %v8575 = vadd.f32 %v8447, 1.0
      %v8576 = vadd.f32 %v8448, 1.0
      %v8577 = vadd.f32 %v8449, 1.0
      %v8578 = vadd.f32 %v8450, 1.0
      %v8579 = vadd.f32 %v8451, 1.0
      %v8580 = vadd.f32 %v8452, 1.0
      %v8581 = vadd.f32 %v8453, 1.0
      %v8582 = vadd.f32 %v8454, 1.0
      %v8583 = vadd.f32 %v8455, 1.0
      %v8584 = vadd.f32 %v8456, 1.0
      %v8585 = vadd.f32 %v8457, 1.0
      %v8586 = vadd.f32 %v8458, 1.0
      %v8587 = vadd.f32 %v8459, 1.0
      %v8588 = vadd.f32 %v8460, 1.0
      %v8589 = vadd.f32 %v8461, 1.0
      %v8590 = vadd.f32 %v8462, 1.0
      %v8591 = vadd.f32 %v8463, 1.0
      %v8592 = vadd.f32 %v8464, 1.0
      %v8593 = vadd.f32 %v8465, 1.0
      %v8594 = vadd.f32 %v8466, 1.0
      %v8595 = vadd.f32 %v8467, 1.0
      %v8596 = vadd.f32 %v8468, 1.0
      %v8597 = vadd.f32 %v8469, 1.0
      %v8598 = vadd.f32 %v8470, 1.0
      %v8599 = vadd.f32 %v8471, 1.0
      %v8600 = vadd.f32 %v8472, 1.0
      %v8601 = vadd.f32 %v8473, 1.0
      %v8602 = vadd.f32 %v8474, 1.0
      %v8603 = vadd.f32 %v8475, 1.0
      %v8604 = vadd.f32 %v8476, 1.0
      %v8605 = vadd.f32 %v8477, 1.0
      %v8606 = vadd.f32 %v8478, 1.0
      %v8607 = vadd.f32 %v8479, 1.0
      %v8608 = vadd.f32 %v8480, 1.0
      %v8609 = vadd.f32 %v8481, 1.0
      %v8610 = vadd.f32 %v8482, 1.0
      %v8611 = vadd.f32 %v8483, 1.0
      %v8612 = vadd.f32 %v8484, 1.0
      %v8613 = vadd.f32 %v8485, 1.0
      %v8614 = vadd.f32 %v8486, 1.0
      %v8615 = vadd.f32 %v8487, 1.0
      %v8616 = vadd.f32 %v8488, 1.0
      %v8617 = vadd.f32 %v8489, 1.0
      %v8618 = vadd.f32 %v8490, 1.0
      %v8619 = vadd.f32 %v8491, 1.0
      %v8620 = vadd.f32 %v8492, 1.0
      %v8621 = vadd.f32 %v8493, 1.0
      %v8622 = vadd.f32 %v8494, 1.0
      %v8623 = vadd.f32 %v8495, 1.0
      %v8624 = vadd.f32 %v8496, 1.0
      %v8625 = vadd.f32 %v8497, 1.0
      %v8626 = vmul.f32 %v8114, %v8498
      %v8627 = vmul.f32 %v8115, %v8499
      %v8628 = vmul.f32 %v8116, %v8500
      %v8629 = vmul.f32 %v8117, %v8501
      %v8630 = vmul.f32 %v8118, %v8502
      %v8631 = vmul.f32 %v8119, %v8503
      %v8632 = vmul.f32 %v8120, %v8504
      %v8633 = vmul.f32 %v8121, %v8505
      %v8634 = vmul.f32 %v8122, %v8506
      %v8635 = vmul.f32 %v8123, %v8507
      %v8636 = vmul.f32 %v8124, %v8508
      %v8637 = vmul.f32 %v8125, %v8509
      %v8638 = vmul.f32 %v8126, %v8510
      %v8639 = vmul.f32 %v8127, %v8511
      %v8640 = vmul.f32 %v8128, %v8512
      %v8641 = vmul.f32 %v8129, %v8513
      %v8642 = vmul.f32 %v8130, %v8514
      %v8643 = vmul.f32 %v8131, %v8515
      %v8644 = vmul.f32 %v8132, %v8516
      %v8645 = vmul.f32 %v8133, %v8517
      %v8646 = vmul.f32 %v8134, %v8518
      %v8647 = vmul.f32 %v8135, %v8519
      %v8648 = vmul.f32 %v8136, %v8520
      %v8649 = vmul.f32 %v8137, %v8521
      %v8650 = vmul.f32 %v8138, %v8522
      %v8651 = vmul.f32 %v8139, %v8523
      %v8652 = vmul.f32 %v8140, %v8524
      %v8653 = vmul.f32 %v8141, %v8525
      %v8654 = vmul.f32 %v8142, %v8526
      %v8655 = vmul.f32 %v8143, %v8527
      %v8656 = vmul.f32 %v8144, %v8528
      %v8657 = vmul.f32 %v8145, %v8529
      %v8658 = vmul.f32 %v8146, %v8530
      %v8659 = vmul.f32 %v8147, %v8531
      %v8660 = vmul.f32 %v8148, %v8532
      %v8661 = vmul.f32 %v8149, %v8533
      %v8662 = vmul.f32 %v8150, %v8534
      %v8663 = vmul.f32 %v8151, %v8535
      %v8664 = vmul.f32 %v8152, %v8536
      %v8665 = vmul.f32 %v8153, %v8537
      %v8666 = vmul.f32 %v8154, %v8538
      %v8667 = vmul.f32 %v8155, %v8539
      %v8668 = vmul.f32 %v8156, %v8540
      %v8669 = vmul.f32 %v8157, %v8541
      %v8670 = vmul.f32 %v8158, %v8542
      %v8671 = vmul.f32 %v8159, %v8543
      %v8672 = vmul.f32 %v8160, %v8544
      %v8673 = vmul.f32 %v8161, %v8545
      %v8674 = vmul.f32 %v8162, %v8546
      %v8675 = vmul.f32 %v8163, %v8547
      %v8676 = vmul.f32 %v8164, %v8548
      %v8677 = vmul.f32 %v8165, %v8549
      %v8678 = vmul.f32 %v8166, %v8550
      %v8679 = vmul.f32 %v8167, %v8551
      %v8680 = vmul.f32 %v8168, %v8552
      %v8681 = vmul.f32 %v8169, %v8553
      %v8682 = vmul.f32 %v8170, %v8554
      %v8683 = vmul.f32 %v8171, %v8555
      %v8684 = vmul.f32 %v8172, %v8556
      %v8685 = vmul.f32 %v8173, %v8557
      %v8686 = vmul.f32 %v8174, %v8558
      %v8687 = vmul.f32 %v8175, %v8559
      %v8688 = vmul.f32 %v8176, %v8560
      %v8689 = vmul.f32 %v8177, %v8561
      %v8690 = vmul.f32 %v8178, %v8562
      %v8691 = vmul.f32 %v8179, %v8563
      %v8692 = vmul.f32 %v8180, %v8564
      %v8693 = vmul.f32 %v8181, %v8565
      %v8694 = vmul.f32 %v8182, %v8566
      %v8695 = vmul.f32 %v8183, %v8567
      %v8696 = vmul.f32 %v8184, %v8568
      %v8697 = vmul.f32 %v8185, %v8569
      %v8698 = vmul.f32 %v8186, %v8570
      %v8699 = vmul.f32 %v8187, %v8571
      %v8700 = vmul.f32 %v8188, %v8572
      %v8701 = vmul.f32 %v8189, %v8573
      %v8702 = vmul.f32 %v8190, %v8574
      %v8703 = vmul.f32 %v8191, %v8575
      %v8704 = vmul.f32 %v8192, %v8576
      %v8705 = vmul.f32 %v8193, %v8577
      %v8706 = vmul.f32 %v8194, %v8578
      %v8707 = vmul.f32 %v8195, %v8579
      %v8708 = vmul.f32 %v8196, %v8580
      %v8709 = vmul.f32 %v8197, %v8581
      %v8710 = vmul.f32 %v8198, %v8582
      %v8711 = vmul.f32 %v8199, %v8583
      %v8712 = vmul.f32 %v8200, %v8584
      %v8713 = vmul.f32 %v8201, %v8585
      %v8714 = vmul.f32 %v8202, %v8586
      %v8715 = vmul.f32 %v8203, %v8587
      %v8716 = vmul.f32 %v8204, %v8588
      %v8717 = vmul.f32 %v8205, %v8589
      %v8718 = vmul.f32 %v8206, %v8590
      %v8719 = vmul.f32 %v8207, %v8591
      %v8720 = vmul.f32 %v8208, %v8592
      %v8721 = vmul.f32 %v8209, %v8593
      %v8722 = vmul.f32 %v8210, %v8594
      %v8723 = vmul.f32 %v8211, %v8595
      %v8724 = vmul.f32 %v8212, %v8596
      %v8725 = vmul.f32 %v8213, %v8597
      %v8726 = vmul.f32 %v8214, %v8598
      %v8727 = vmul.f32 %v8215, %v8599
      %v8728 = vmul.f32 %v8216, %v8600
      %v8729 = vmul.f32 %v8217, %v8601
      %v8730 = vmul.f32 %v8218, %v8602
      %v8731 = vmul.f32 %v8219, %v8603
      %v8732 = vmul.f32 %v8220, %v8604
      %v8733 = vmul.f32 %v8221, %v8605
      %v8734 = vmul.f32 %v8222, %v8606
      %v8735 = vmul.f32 %v8223, %v8607
      %v8736 = vmul.f32 %v8224, %v8608
      %v8737 = vmul.f32 %v8225, %v8609
      %v8738 = vmul.f32 %v8226, %v8610
      %v8739 = vmul.f32 %v8227, %v8611
      %v8740 = vmul.f32 %v8228, %v8612
      %v8741 = vmul.f32 %v8229, %v8613
      %v8742 = vmul.f32 %v8230, %v8614
      %v8743 = vmul.f32 %v8231, %v8615
      %v8744 = vmul.f32 %v8232, %v8616
      %v8745 = vmul.f32 %v8233, %v8617
      %v8746 = vmul.f32 %v8234, %v8618
      %v8747 = vmul.f32 %v8235, %v8619
      %v8748 = vmul.f32 %v8236, %v8620
      %v8749 = vmul.f32 %v8237, %v8621
      %v8750 = vmul.f32 %v8238, %v8622
      %v8751 = vmul.f32 %v8239, %v8623
      %v8752 = vmul.f32 %v8240, %v8624
      %v8753 = vmul.f32 %v8241, %v8625
      %v8754 = vpack.c.bf16 %v8628, %v8626
      %v8755 = vpack.c.bf16 %v8629, %v8627
      %v8756 = vpack.c.bf16 %v8632, %v8630
      %v8757 = vpack.c.bf16 %v8633, %v8631
      %v8758 = vpack.c.bf16 %v8636, %v8634
      %v8759 = vpack.c.bf16 %v8637, %v8635
      %v8760 = vpack.c.bf16 %v8640, %v8638
      %v8761 = vpack.c.bf16 %v8641, %v8639
      %v8762 = vpack.c.bf16 %v8644, %v8642
      %v8763 = vpack.c.bf16 %v8645, %v8643
      %v8764 = vpack.c.bf16 %v8648, %v8646
      %v8765 = vpack.c.bf16 %v8649, %v8647
      %v8766 = vpack.c.bf16 %v8652, %v8650
      %v8767 = vpack.c.bf16 %v8653, %v8651
      %v8768 = vpack.c.bf16 %v8656, %v8654
      %v8769 = vpack.c.bf16 %v8657, %v8655
      %v8770 = vpack.c.bf16 %v8660, %v8658
      %v8771 = vpack.c.bf16 %v8661, %v8659
      %v8772 = vpack.c.bf16 %v8664, %v8662
      %v8773 = vpack.c.bf16 %v8665, %v8663
      %v8774 = vpack.c.bf16 %v8668, %v8666
      %v8775 = vpack.c.bf16 %v8669, %v8667
      %v8776 = vpack.c.bf16 %v8672, %v8670
      %v8777 = vpack.c.bf16 %v8673, %v8671
      %v8778 = vpack.c.bf16 %v8676, %v8674
      %v8779 = vpack.c.bf16 %v8677, %v8675
      %v8780 = vpack.c.bf16 %v8680, %v8678
      %v8781 = vpack.c.bf16 %v8681, %v8679
      %v8782 = vpack.c.bf16 %v8684, %v8682
      %v8783 = vpack.c.bf16 %v8685, %v8683
      %v8784 = vpack.c.bf16 %v8688, %v8686
      %v8785 = vpack.c.bf16 %v8689, %v8687
      %v8786 = vpack.c.bf16 %v8692, %v8690
      %v8787 = vpack.c.bf16 %v8693, %v8691
      %v8788 = vpack.c.bf16 %v8696, %v8694
      %v8789 = vpack.c.bf16 %v8697, %v8695
      %v8790 = vpack.c.bf16 %v8700, %v8698
      %v8791 = vpack.c.bf16 %v8701, %v8699
      %v8792 = vpack.c.bf16 %v8704, %v8702
      %v8793 = vpack.c.bf16 %v8705, %v8703
      %v8794 = vpack.c.bf16 %v8708, %v8706
      %v8795 = vpack.c.bf16 %v8709, %v8707
      %v8796 = vpack.c.bf16 %v8712, %v8710
      %v8797 = vpack.c.bf16 %v8713, %v8711
      %v8798 = vpack.c.bf16 %v8716, %v8714
      %v8799 = vpack.c.bf16 %v8717, %v8715
      %v8800 = vpack.c.bf16 %v8720, %v8718
      %v8801 = vpack.c.bf16 %v8721, %v8719
      %v8802 = vpack.c.bf16 %v8724, %v8722
      %v8803 = vpack.c.bf16 %v8725, %v8723
      %v8804 = vpack.c.bf16 %v8728, %v8726
      %v8805 = vpack.c.bf16 %v8729, %v8727
      %v8806 = vpack.c.bf16 %v8732, %v8730
      %v8807 = vpack.c.bf16 %v8733, %v8731
      %v8808 = vpack.c.bf16 %v8736, %v8734
      %v8809 = vpack.c.bf16 %v8737, %v8735
      %v8810 = vpack.c.bf16 %v8740, %v8738
      %v8811 = vpack.c.bf16 %v8741, %v8739
      %v8812 = vpack.c.bf16 %v8744, %v8742
      %v8813 = vpack.c.bf16 %v8745, %v8743
      %v8814 = vpack.c.bf16 %v8748, %v8746
      %v8815 = vpack.c.bf16 %v8749, %v8747
      %v8816 = vpack.c.bf16 %v8752, %v8750
      %v8817 = vpack.c.bf16 %v8753, %v8751
      %v8850 = vunpack.c.l.b16 %v8754
      %v8851 = vunpack.c.h.b16 %v8754
      %v8852 = vunpack.c.l.b16 %v8756
      %v8853 = vunpack.c.h.b16 %v8756
      %v8854 = vunpack.c.l.b16 %v8758
      %v8855 = vunpack.c.h.b16 %v8758
      %v8856 = vunpack.c.l.b16 %v8760
      %v8857 = vunpack.c.h.b16 %v8760
      %v8858 = vunpack.c.l.b16 %v8762
      %v8859 = vunpack.c.h.b16 %v8762
      %v8860 = vunpack.c.l.b16 %v8764
      %v8861 = vunpack.c.h.b16 %v8764
      %v8862 = vunpack.c.l.b16 %v8766
      %v8863 = vunpack.c.h.b16 %v8766
      %v8864 = vunpack.c.l.b16 %v8768
      %v8865 = vunpack.c.h.b16 %v8768
      %v8866 = vunpack.c.l.b16 %v8770
      %v8867 = vunpack.c.h.b16 %v8770
      %v8868 = vunpack.c.l.b16 %v8772
      %v8869 = vunpack.c.h.b16 %v8772
      %v8870 = vunpack.c.l.b16 %v8774
      %v8871 = vunpack.c.h.b16 %v8774
      %v8872 = vunpack.c.l.b16 %v8776
      %v8873 = vunpack.c.h.b16 %v8776
      %v8874 = vunpack.c.l.b16 %v8778
      %v8875 = vunpack.c.h.b16 %v8778
      %v8876 = vunpack.c.l.b16 %v8780
      %v8877 = vunpack.c.h.b16 %v8780
      %v8878 = vunpack.c.l.b16 %v8782
      %v8879 = vunpack.c.h.b16 %v8782
      %v8880 = vunpack.c.l.b16 %v8784
      %v8881 = vunpack.c.h.b16 %v8784
      %v8882 = vunpack.c.l.b16 %v8786
      %v8883 = vunpack.c.h.b16 %v8786
      %v8884 = vunpack.c.l.b16 %v8788
      %v8885 = vunpack.c.h.b16 %v8788
      %v8886 = vunpack.c.l.b16 %v8790
      %v8887 = vunpack.c.h.b16 %v8790
      %v8888 = vunpack.c.l.b16 %v8792
      %v8889 = vunpack.c.h.b16 %v8792
      %v8890 = vunpack.c.l.b16 %v8794
      %v8891 = vunpack.c.h.b16 %v8794
      %v8892 = vunpack.c.l.b16 %v8796
      %v8893 = vunpack.c.h.b16 %v8796
      %v8894 = vunpack.c.l.b16 %v8798
      %v8895 = vunpack.c.h.b16 %v8798
      %v8896 = vunpack.c.l.b16 %v8800
      %v8897 = vunpack.c.h.b16 %v8800
      %v8898 = vunpack.c.l.b16 %v8802
      %v8899 = vunpack.c.h.b16 %v8802
      %v8900 = vunpack.c.l.b16 %v8804
      %v8901 = vunpack.c.h.b16 %v8804
      %v8902 = vunpack.c.l.b16 %v8806
      %v8903 = vunpack.c.h.b16 %v8806
      %v8904 = vunpack.c.l.b16 %v8808
      %v8905 = vunpack.c.h.b16 %v8808
      %v8906 = vunpack.c.l.b16 %v8810
      %v8907 = vunpack.c.h.b16 %v8810
      %v8908 = vunpack.c.l.b16 %v8812
      %v8909 = vunpack.c.h.b16 %v8812
      %v8910 = vunpack.c.l.b16 %v8814
      %v8911 = vunpack.c.h.b16 %v8814
      %v8912 = vunpack.c.l.b16 %v8816
      %v8913 = vunpack.c.h.b16 %v8816
      %v8914 = vpack.c.b16 %v8850, %v8850
      %v8915 = vpack.c.b16 %v8851, %v8851
      %v8916 = vpack.c.b16 %v8852, %v8852
      %v8917 = vpack.c.b16 %v8853, %v8853
      %v8918 = vpack.c.b16 %v8854, %v8854
      %v8919 = vpack.c.b16 %v8855, %v8855
      %v8920 = vpack.c.b16 %v8856, %v8856
      %v8921 = vpack.c.b16 %v8857, %v8857
      %v8922 = vpack.c.b16 %v8858, %v8858
      %v8923 = vpack.c.b16 %v8859, %v8859
      %v8924 = vpack.c.b16 %v8860, %v8860
      %v8925 = vpack.c.b16 %v8861, %v8861
      %v8926 = vpack.c.b16 %v8862, %v8862
      %v8927 = vpack.c.b16 %v8863, %v8863
      %v8928 = vpack.c.b16 %v8864, %v8864
      %v8929 = vpack.c.b16 %v8865, %v8865
      %v8930 = vpack.c.b16 %v8866, %v8866
      %v8931 = vpack.c.b16 %v8867, %v8867
      %v8932 = vpack.c.b16 %v8868, %v8868
      %v8933 = vpack.c.b16 %v8869, %v8869
      %v8934 = vpack.c.b16 %v8870, %v8870
      %v8935 = vpack.c.b16 %v8871, %v8871
      %v8936 = vpack.c.b16 %v8872, %v8872
      %v8937 = vpack.c.b16 %v8873, %v8873
      %v8938 = vpack.c.b16 %v8874, %v8874
      %v8939 = vpack.c.b16 %v8875, %v8875
      %v8940 = vpack.c.b16 %v8876, %v8876
      %v8941 = vpack.c.b16 %v8877, %v8877
      %v8942 = vpack.c.b16 %v8878, %v8878
      %v8943 = vpack.c.b16 %v8879, %v8879
      %v8944 = vpack.c.b16 %v8880, %v8880
      %v8945 = vpack.c.b16 %v8881, %v8881
      %v8946 = vpack.c.b16 %v8882, %v8882
      %v8947 = vpack.c.b16 %v8883, %v8883
      %v8948 = vpack.c.b16 %v8884, %v8884
      %v8949 = vpack.c.b16 %v8885, %v8885
      %v8950 = vpack.c.b16 %v8886, %v8886
      %v8951 = vpack.c.b16 %v8887, %v8887
      %v8952 = vpack.c.b16 %v8888, %v8888
      %v8953 = vpack.c.b16 %v8889, %v8889
      %v8954 = vpack.c.b16 %v8890, %v8890
      %v8955 = vpack.c.b16 %v8891, %v8891
      %v8956 = vpack.c.b16 %v8892, %v8892
      %v8957 = vpack.c.b16 %v8893, %v8893
      %v8958 = vpack.c.b16 %v8894, %v8894
      %v8959 = vpack.c.b16 %v8895, %v8895
      %v8960 = vpack.c.b16 %v8896, %v8896
      %v8961 = vpack.c.b16 %v8897, %v8897
      %v8962 = vpack.c.b16 %v8898, %v8898
      %v8963 = vpack.c.b16 %v8899, %v8899
      %v8964 = vpack.c.b16 %v8900, %v8900
      %v8965 = vpack.c.b16 %v8901, %v8901
      %v8966 = vpack.c.b16 %v8902, %v8902
      %v8967 = vpack.c.b16 %v8903, %v8903
      %v8968 = vpack.c.b16 %v8904, %v8904
      %v8969 = vpack.c.b16 %v8905, %v8905
      %v8970 = vpack.c.b16 %v8906, %v8906
      %v8971 = vpack.c.b16 %v8907, %v8907
      %v8972 = vpack.c.b16 %v8908, %v8908
      %v8973 = vpack.c.b16 %v8909, %v8909
      %v8974 = vpack.c.b16 %v8910, %v8910
      %v8975 = vpack.c.b16 %v8911, %v8911
      %v8976 = vpack.c.b16 %v8912, %v8912
      %v8977 = vpack.c.b16 %v8913, %v8913
      %9042 = vst [vmem:[#allocation4 + $0x200] sm:$0xf] %v8914
      %9043 = vst [vmem:[#allocation4 + $0x204] sm:$0xf] %v8915
      %9044 = vst [vmem:[#allocation4 + $0x208] sm:$0xf] %v8916
      %9045 = vst [vmem:[#allocation4 + $0x20c] sm:$0xf] %v8917
      %9046 = vst [vmem:[#allocation4 + $0x210] sm:$0xf] %v8918
      %9047 = vst [vmem:[#allocation4 + $0x214] sm:$0xf] %v8919
      %9048 = vst [vmem:[#allocation4 + $0x218] sm:$0xf] %v8920
      %9049 = vst [vmem:[#allocation4 + $0x21c] sm:$0xf] %v8921
      %9050 = vst [vmem:[#allocation4 + $0x220] sm:$0xf] %v8922
      %9051 = vst [vmem:[#allocation4 + $0x224] sm:$0xf] %v8923
      %9052 = vst [vmem:[#allocation4 + $0x228] sm:$0xf] %v8924
      %9053 = vst [vmem:[#allocation4 + $0x22c] sm:$0xf] %v8925
      %9054 = vst [vmem:[#allocation4 + $0x230] sm:$0xf] %v8926
      %9055 = vst [vmem:[#allocation4 + $0x234] sm:$0xf] %v8927
      %9056 = vst [vmem:[#allocation4 + $0x238] sm:$0xf] %v8928
      %9057 = vst [vmem:[#allocation4 + $0x23c] sm:$0xf] %v8929
      %9058 = vst [vmem:[#allocation4 + $0x240] sm:$0xf] %v8930
      %9059 = vst [vmem:[#allocation4 + $0x244] sm:$0xf] %v8931
      %9060 = vst [vmem:[#allocation4 + $0x248] sm:$0xf] %v8932
      %9061 = vst [vmem:[#allocation4 + $0x24c] sm:$0xf] %v8933
      %9062 = vst [vmem:[#allocation4 + $0x250] sm:$0xf] %v8934
      %9063 = vst [vmem:[#allocation4 + $0x254] sm:$0xf] %v8935
      %9064 = vst [vmem:[#allocation4 + $0x258] sm:$0xf] %v8936
      %9065 = vst [vmem:[#allocation4 + $0x25c] sm:$0xf] %v8937
      %9066 = vst [vmem:[#allocation4 + $0x260] sm:$0xf] %v8938
      %9067 = vst [vmem:[#allocation4 + $0x264] sm:$0xf] %v8939
      %9068 = vst [vmem:[#allocation4 + $0x268] sm:$0xf] %v8940
      %9069 = vst [vmem:[#allocation4 + $0x26c] sm:$0xf] %v8941
      %9070 = vst [vmem:[#allocation4 + $0x270] sm:$0xf] %v8942
      %9071 = vst [vmem:[#allocation4 + $0x274] sm:$0xf] %v8943
      %9072 = vst [vmem:[#allocation4 + $0x278] sm:$0xf] %v8944
      %9073 = vst [vmem:[#allocation4 + $0x27c] sm:$0xf] %v8945
      %9074 = vst [vmem:[#allocation4 + $0x280] sm:$0xf] %v8946
      %9075 = vst [vmem:[#allocation4 + $0x284] sm:$0xf] %v8947
      %9076 = vst [vmem:[#allocation4 + $0x288] sm:$0xf] %v8948
      %9077 = vst [vmem:[#allocation4 + $0x28c] sm:$0xf] %v8949
      %9078 = vst [vmem:[#allocation4 + $0x290] sm:$0xf] %v8950
      %9079 = vst [vmem:[#allocation4 + $0x294] sm:$0xf] %v8951
      %9080 = vst [vmem:[#allocation4 + $0x298] sm:$0xf] %v8952
      %9081 = vst [vmem:[#allocation4 + $0x29c] sm:$0xf] %v8953
      %9082 = vst [vmem:[#allocation4 + $0x2a0] sm:$0xf] %v8954
      %9083 = vst [vmem:[#allocation4 + $0x2a4] sm:$0xf] %v8955
      %9084 = vst [vmem:[#allocation4 + $0x2a8] sm:$0xf] %v8956
      %9085 = vst [vmem:[#allocation4 + $0x2ac] sm:$0xf] %v8957
      %9086 = vst [vmem:[#allocation4 + $0x2b0] sm:$0xf] %v8958
      %9087 = vst [vmem:[#allocation4 + $0x2b4] sm:$0xf] %v8959
      %9088 = vst [vmem:[#allocation4 + $0x2b8] sm:$0xf] %v8960
      %9089 = vst [vmem:[#allocation4 + $0x2bc] sm:$0xf] %v8961
      %9090 = vst [vmem:[#allocation4 + $0x2c0] sm:$0xf] %v8962
      %9091 = vst [vmem:[#allocation4 + $0x2c4] sm:$0xf] %v8963
      %9092 = vst [vmem:[#allocation4 + $0x2c8] sm:$0xf] %v8964
      %9093 = vst [vmem:[#allocation4 + $0x2cc] sm:$0xf] %v8965
      %9094 = vst [vmem:[#allocation4 + $0x2d0] sm:$0xf] %v8966
      %9095 = vst [vmem:[#allocation4 + $0x2d4] sm:$0xf] %v8967
      %9096 = vst [vmem:[#allocation4 + $0x2d8] sm:$0xf] %v8968
      %9097 = vst [vmem:[#allocation4 + $0x2dc] sm:$0xf] %v8969
      %9098 = vst [vmem:[#allocation4 + $0x2e0] sm:$0xf] %v8970
      %9099 = vst [vmem:[#allocation4 + $0x2e4] sm:$0xf] %v8971
      %9100 = vst [vmem:[#allocation4 + $0x2e8] sm:$0xf] %v8972
      %9101 = vst [vmem:[#allocation4 + $0x2ec] sm:$0xf] %v8973
      %9102 = vst [vmem:[#allocation4 + $0x2f0] sm:$0xf] %v8974
      %9103 = vst [vmem:[#allocation4 + $0x2f4] sm:$0xf] %v8975
      %9104 = vst [vmem:[#allocation4 + $0x2f8] sm:$0xf] %v8976
      %9105 = vst [vmem:[#allocation4 + $0x2fc] sm:$0xf] %v8977
      %v9138 = vunpack.c.l.b16 %v8755
      %v9139 = vunpack.c.h.b16 %v8755
      %v9140 = vunpack.c.l.b16 %v8757
      %v9141 = vunpack.c.h.b16 %v8757
      %v9142 = vunpack.c.l.b16 %v8759
      %v9143 = vunpack.c.h.b16 %v8759
      %v9144 = vunpack.c.l.b16 %v8761
      %v9145 = vunpack.c.h.b16 %v8761
      %v9146 = vunpack.c.l.b16 %v8763
      %v9147 = vunpack.c.h.b16 %v8763
      %v9148 = vunpack.c.l.b16 %v8765
      %v9149 = vunpack.c.h.b16 %v8765
      %v9150 = vunpack.c.l.b16 %v8767
      %v9151 = vunpack.c.h.b16 %v8767
      %v9152 = vunpack.c.l.b16 %v8769
      %v9153 = vunpack.c.h.b16 %v8769
      %v9154 = vunpack.c.l.b16 %v8771
      %v9155 = vunpack.c.h.b16 %v8771
      %v9156 = vunpack.c.l.b16 %v8773
      %v9157 = vunpack.c.h.b16 %v8773
      %v9158 = vunpack.c.l.b16 %v8775
      %v9159 = vunpack.c.h.b16 %v8775
      %v9160 = vunpack.c.l.b16 %v8777
      %v9161 = vunpack.c.h.b16 %v8777
      %v9162 = vunpack.c.l.b16 %v8779
      %v9163 = vunpack.c.h.b16 %v8779
      %v9164 = vunpack.c.l.b16 %v8781
      %v9165 = vunpack.c.h.b16 %v8781
      %v9166 = vunpack.c.l.b16 %v8783
      %v9167 = vunpack.c.h.b16 %v8783
      %v9168 = vunpack.c.l.b16 %v8785
      %v9169 = vunpack.c.h.b16 %v8785
      %v9170 = vunpack.c.l.b16 %v8787
      %v9171 = vunpack.c.h.b16 %v8787
      %v9172 = vunpack.c.l.b16 %v8789
      %v9173 = vunpack.c.h.b16 %v8789
      %v9174 = vunpack.c.l.b16 %v8791
      %v9175 = vunpack.c.h.b16 %v8791
      %v9176 = vunpack.c.l.b16 %v8793
      %v9177 = vunpack.c.h.b16 %v8793
      %v9178 = vunpack.c.l.b16 %v8795
      %v9179 = vunpack.c.h.b16 %v8795
      %v9180 = vunpack.c.l.b16 %v8797
      %v9181 = vunpack.c.h.b16 %v8797
      %v9182 = vunpack.c.l.b16 %v8799
      %v9183 = vunpack.c.h.b16 %v8799
      %v9184 = vunpack.c.l.b16 %v8801
      %v9185 = vunpack.c.h.b16 %v8801
      %v9186 = vunpack.c.l.b16 %v8803
      %v9187 = vunpack.c.h.b16 %v8803
      %v9188 = vunpack.c.l.b16 %v8805
      %v9189 = vunpack.c.h.b16 %v8805
      %v9190 = vunpack.c.l.b16 %v8807
      %v9191 = vunpack.c.h.b16 %v8807
      %v9192 = vunpack.c.l.b16 %v8809
      %v9193 = vunpack.c.h.b16 %v8809
      %v9194 = vunpack.c.l.b16 %v8811
      %v9195 = vunpack.c.h.b16 %v8811
      %v9196 = vunpack.c.l.b16 %v8813
      %v9197 = vunpack.c.h.b16 %v8813
      %v9198 = vunpack.c.l.b16 %v8815
      %v9199 = vunpack.c.h.b16 %v8815
      %v9200 = vunpack.c.l.b16 %v8817
      %v9201 = vunpack.c.h.b16 %v8817
      %v9202 = vpack.c.b16 %v9138, %v9138
      %v9203 = vpack.c.b16 %v9139, %v9139
      %v9204 = vpack.c.b16 %v9140, %v9140
      %v9205 = vpack.c.b16 %v9141, %v9141
      %v9206 = vpack.c.b16 %v9142, %v9142
      %v9207 = vpack.c.b16 %v9143, %v9143
      %v9208 = vpack.c.b16 %v9144, %v9144
      %v9209 = vpack.c.b16 %v9145, %v9145
      %v9210 = vpack.c.b16 %v9146, %v9146
      %v9211 = vpack.c.b16 %v9147, %v9147
      %v9212 = vpack.c.b16 %v9148, %v9148
      %v9213 = vpack.c.b16 %v9149, %v9149
      %v9214 = vpack.c.b16 %v9150, %v9150
      %v9215 = vpack.c.b16 %v9151, %v9151
      %v9216 = vpack.c.b16 %v9152, %v9152
      %v9217 = vpack.c.b16 %v9153, %v9153
      %v9218 = vpack.c.b16 %v9154, %v9154
      %v9219 = vpack.c.b16 %v9155, %v9155
      %v9220 = vpack.c.b16 %v9156, %v9156
      %v9221 = vpack.c.b16 %v9157, %v9157
      %v9222 = vpack.c.b16 %v9158, %v9158
      %v9223 = vpack.c.b16 %v9159, %v9159
      %v9224 = vpack.c.b16 %v9160, %v9160
      %v9225 = vpack.c.b16 %v9161, %v9161
      %v9226 = vpack.c.b16 %v9162, %v9162
      %v9227 = vpack.c.b16 %v9163, %v9163
      %v9228 = vpack.c.b16 %v9164, %v9164
      %v9229 = vpack.c.b16 %v9165, %v9165
      %v9230 = vpack.c.b16 %v9166, %v9166
      %v9231 = vpack.c.b16 %v9167, %v9167
      %v9232 = vpack.c.b16 %v9168, %v9168
      %v9233 = vpack.c.b16 %v9169, %v9169
      %v9234 = vpack.c.b16 %v9170, %v9170
      %v9235 = vpack.c.b16 %v9171, %v9171
      %v9236 = vpack.c.b16 %v9172, %v9172
      %v9237 = vpack.c.b16 %v9173, %v9173
      %v9238 = vpack.c.b16 %v9174, %v9174
      %v9239 = vpack.c.b16 %v9175, %v9175
      %v9240 = vpack.c.b16 %v9176, %v9176
      %v9241 = vpack.c.b16 %v9177, %v9177
      %v9242 = vpack.c.b16 %v9178, %v9178
      %v9243 = vpack.c.b16 %v9179, %v9179
      %v9244 = vpack.c.b16 %v9180, %v9180
      %v9245 = vpack.c.b16 %v9181, %v9181
      %v9246 = vpack.c.b16 %v9182, %v9182
      %v9247 = vpack.c.b16 %v9183, %v9183
      %v9248 = vpack.c.b16 %v9184, %v9184
      %v9249 = vpack.c.b16 %v9185, %v9185
      %v9250 = vpack.c.b16 %v9186, %v9186
      %v9251 = vpack.c.b16 %v9187, %v9187
      %v9252 = vpack.c.b16 %v9188, %v9188
      %v9253 = vpack.c.b16 %v9189, %v9189
      %v9254 = vpack.c.b16 %v9190, %v9190
      %v9255 = vpack.c.b16 %v9191, %v9191
      %v9256 = vpack.c.b16 %v9192, %v9192
      %v9257 = vpack.c.b16 %v9193, %v9193
      %v9258 = vpack.c.b16 %v9194, %v9194
      %v9259 = vpack.c.b16 %v9195, %v9195
      %v9260 = vpack.c.b16 %v9196, %v9196
      %v9261 = vpack.c.b16 %v9197, %v9197
      %v9262 = vpack.c.b16 %v9198, %v9198
      %v9263 = vpack.c.b16 %v9199, %v9199
      %v9264 = vpack.c.b16 %v9200, %v9200
      %v9265 = vpack.c.b16 %v9201, %v9201
      %9330 = vst [vmem:[#allocation4 + $0x300] sm:$0xf] %v9202
      %9331 = vst [vmem:[#allocation4 + $0x304] sm:$0xf] %v9203
      %9332 = vst [vmem:[#allocation4 + $0x308] sm:$0xf] %v9204
      %9333 = vst [vmem:[#allocation4 + $0x30c] sm:$0xf] %v9205
      %9334 = vst [vmem:[#allocation4 + $0x310] sm:$0xf] %v9206
      %9335 = vst [vmem:[#allocation4 + $0x314] sm:$0xf] %v9207
      %9336 = vst [vmem:[#allocation4 + $0x318] sm:$0xf] %v9208
      %9337 = vst [vmem:[#allocation4 + $0x31c] sm:$0xf] %v9209
      %9338 = vst [vmem:[#allocation4 + $0x320] sm:$0xf] %v9210
      %9339 = vst [vmem:[#allocation4 + $0x324] sm:$0xf] %v9211
      %9340 = vst [vmem:[#allocation4 + $0x328] sm:$0xf] %v9212
      %9341 = vst [vmem:[#allocation4 + $0x32c] sm:$0xf] %v9213
      %9342 = vst [vmem:[#allocation4 + $0x330] sm:$0xf] %v9214
      %9343 = vst [vmem:[#allocation4 + $0x334] sm:$0xf] %v9215
      %9344 = vst [vmem:[#allocation4 + $0x338] sm:$0xf] %v9216
      %9345 = vst [vmem:[#allocation4 + $0x33c] sm:$0xf] %v9217
      %9346 = vst [vmem:[#allocation4 + $0x340] sm:$0xf] %v9218
      %9347 = vst [vmem:[#allocation4 + $0x344] sm:$0xf] %v9219
      %9348 = vst [vmem:[#allocation4 + $0x348] sm:$0xf] %v9220
      %9349 = vst [vmem:[#allocation4 + $0x34c] sm:$0xf] %v9221
      %9350 = vst [vmem:[#allocation4 + $0x350] sm:$0xf] %v9222
      %9351 = vst [vmem:[#allocation4 + $0x354] sm:$0xf] %v9223
      %9352 = vst [vmem:[#allocation4 + $0x358] sm:$0xf] %v9224
      %9353 = vst [vmem:[#allocation4 + $0x35c] sm:$0xf] %v9225
      %9354 = vst [vmem:[#allocation4 + $0x360] sm:$0xf] %v9226
      %9355 = vst [vmem:[#allocation4 + $0x364] sm:$0xf] %v9227
      %9356 = vst [vmem:[#allocation4 + $0x368] sm:$0xf] %v9228
      %9357 = vst [vmem:[#allocation4 + $0x36c] sm:$0xf] %v9229
      %9358 = vst [vmem:[#allocation4 + $0x370] sm:$0xf] %v9230
      %9359 = vst [vmem:[#allocation4 + $0x374] sm:$0xf] %v9231
      %9360 = vst [vmem:[#allocation4 + $0x378] sm:$0xf] %v9232
      %9361 = vst [vmem:[#allocation4 + $0x37c] sm:$0xf] %v9233
      %9362 = vst [vmem:[#allocation4 + $0x380] sm:$0xf] %v9234
      %9363 = vst [vmem:[#allocation4 + $0x384] sm:$0xf] %v9235
      %9364 = vst [vmem:[#allocation4 + $0x388] sm:$0xf] %v9236
      %9365 = vst [vmem:[#allocation4 + $0x38c] sm:$0xf] %v9237
      %9366 = vst [vmem:[#allocation4 + $0x390] sm:$0xf] %v9238
      %9367 = vst [vmem:[#allocation4 + $0x394] sm:$0xf] %v9239
      %9368 = vst [vmem:[#allocation4 + $0x398] sm:$0xf] %v9240
      %9369 = vst [vmem:[#allocation4 + $0x39c] sm:$0xf] %v9241
      %9370 = vst [vmem:[#allocation4 + $0x3a0] sm:$0xf] %v9242
      %9371 = vst [vmem:[#allocation4 + $0x3a4] sm:$0xf] %v9243
      %9372 = vst [vmem:[#allocation4 + $0x3a8] sm:$0xf] %v9244
      %9373 = vst [vmem:[#allocation4 + $0x3ac] sm:$0xf] %v9245
      %9374 = vst [vmem:[#allocation4 + $0x3b0] sm:$0xf] %v9246
      %9375 = vst [vmem:[#allocation4 + $0x3b4] sm:$0xf] %v9247
      %9376 = vst [vmem:[#allocation4 + $0x3b8] sm:$0xf] %v9248
      %9377 = vst [vmem:[#allocation4 + $0x3bc] sm:$0xf] %v9249
      %9378 = vst [vmem:[#allocation4 + $0x3c0] sm:$0xf] %v9250
      %9379 = vst [vmem:[#allocation4 + $0x3c4] sm:$0xf] %v9251
      %9380 = vst [vmem:[#allocation4 + $0x3c8] sm:$0xf] %v9252
      %9381 = vst [vmem:[#allocation4 + $0x3cc] sm:$0xf] %v9253
      %9382 = vst [vmem:[#allocation4 + $0x3d0] sm:$0xf] %v9254
      %9383 = vst [vmem:[#allocation4 + $0x3d4] sm:$0xf] %v9255
      %9384 = vst [vmem:[#allocation4 + $0x3d8] sm:$0xf] %v9256
      %9385 = vst [vmem:[#allocation4 + $0x3dc] sm:$0xf] %v9257
      %9386 = vst [vmem:[#allocation4 + $0x3e0] sm:$0xf] %v9258
      %9387 = vst [vmem:[#allocation4 + $0x3e4] sm:$0xf] %v9259
      %9388 = vst [vmem:[#allocation4 + $0x3e8] sm:$0xf] %v9260
      %9389 = vst [vmem:[#allocation4 + $0x3ec] sm:$0xf] %v9261
      %9390 = vst [vmem:[#allocation4 + $0x3f0] sm:$0xf] %v9262
      %9391 = vst [vmem:[#allocation4 + $0x3f4] sm:$0xf] %v9263
      %9392 = vst [vmem:[#allocation4 + $0x3f8] sm:$0xf] %v9264
      %9393 = vst [vmem:[#allocation4 + $0x3fc] sm:$0xf] %v9265
      %v9394 = vld [vmem:[#allocation4] sm:$0xf]
      %v9395 = vld [vmem:[#allocation4 + $0x4] sm:$0xf]
      %v9396 = vld [vmem:[#allocation4 + $0x8] sm:$0xf]
      %v9397 = vld [vmem:[#allocation4 + $0xc] sm:$0xf]
      %v9398 = vld [vmem:[#allocation4 + $0x10] sm:$0xf]
      %v9399 = vld [vmem:[#allocation4 + $0x14] sm:$0xf]
      %v9400 = vld [vmem:[#allocation4 + $0x18] sm:$0xf]
      %v9401 = vld [vmem:[#allocation4 + $0x1c] sm:$0xf]
      %v9402 = vld [vmem:[#allocation4 + $0x20] sm:$0xf]
      %v9403 = vld [vmem:[#allocation4 + $0x24] sm:$0xf]
      %v9404 = vld [vmem:[#allocation4 + $0x28] sm:$0xf]
      %v9405 = vld [vmem:[#allocation4 + $0x2c] sm:$0xf]
      %v9406 = vld [vmem:[#allocation4 + $0x30] sm:$0xf]
      %v9407 = vld [vmem:[#allocation4 + $0x34] sm:$0xf]
      %v9408 = vld [vmem:[#allocation4 + $0x38] sm:$0xf]
      %v9409 = vld [vmem:[#allocation4 + $0x3c] sm:$0xf]
      %v9410 = vld [vmem:[#allocation4 + $0x40] sm:$0xf]
      %v9411 = vld [vmem:[#allocation4 + $0x44] sm:$0xf]
      %v9412 = vld [vmem:[#allocation4 + $0x48] sm:$0xf]
      %v9413 = vld [vmem:[#allocation4 + $0x4c] sm:$0xf]
      %v9414 = vld [vmem:[#allocation4 + $0x50] sm:$0xf]
      %v9415 = vld [vmem:[#allocation4 + $0x54] sm:$0xf]
      %v9416 = vld [vmem:[#allocation4 + $0x58] sm:$0xf]
      %v9417 = vld [vmem:[#allocation4 + $0x5c] sm:$0xf]
      %v9418 = vld [vmem:[#allocation4 + $0x60] sm:$0xf]
      %v9419 = vld [vmem:[#allocation4 + $0x64] sm:$0xf]
      %v9420 = vld [vmem:[#allocation4 + $0x68] sm:$0xf]
      %v9421 = vld [vmem:[#allocation4 + $0x6c] sm:$0xf]
      %v9422 = vld [vmem:[#allocation4 + $0x70] sm:$0xf]
      %v9423 = vld [vmem:[#allocation4 + $0x74] sm:$0xf]
      %v9424 = vld [vmem:[#allocation4 + $0x78] sm:$0xf]
      %v9425 = vld [vmem:[#allocation4 + $0x7c] sm:$0xf]
      %v9426 = vld [vmem:[#allocation4 + $0x80] sm:$0xf]
      %v9427 = vld [vmem:[#allocation4 + $0x84] sm:$0xf]
      %v9428 = vld [vmem:[#allocation4 + $0x88] sm:$0xf]
      %v9429 = vld [vmem:[#allocation4 + $0x8c] sm:$0xf]
      %v9430 = vld [vmem:[#allocation4 + $0x90] sm:$0xf]
      %v9431 = vld [vmem:[#allocation4 + $0x94] sm:$0xf]
      %v9432 = vld [vmem:[#allocation4 + $0x98] sm:$0xf]
      %v9433 = vld [vmem:[#allocation4 + $0x9c] sm:$0xf]
      %v9434 = vld [vmem:[#allocation4 + $0xa0] sm:$0xf]
      %v9435 = vld [vmem:[#allocation4 + $0xa4] sm:$0xf]
      %v9436 = vld [vmem:[#allocation4 + $0xa8] sm:$0xf]
      %v9437 = vld [vmem:[#allocation4 + $0xac] sm:$0xf]
      %v9438 = vld [vmem:[#allocation4 + $0xb0] sm:$0xf]
      %v9439 = vld [vmem:[#allocation4 + $0xb4] sm:$0xf]
      %v9440 = vld [vmem:[#allocation4 + $0xb8] sm:$0xf]
      %v9441 = vld [vmem:[#allocation4 + $0xbc] sm:$0xf]
      %v9442 = vld [vmem:[#allocation4 + $0xc0] sm:$0xf]
      %v9443 = vld [vmem:[#allocation4 + $0xc4] sm:$0xf]
      %v9444 = vld [vmem:[#allocation4 + $0xc8] sm:$0xf]
      %v9445 = vld [vmem:[#allocation4 + $0xcc] sm:$0xf]
      %v9446 = vld [vmem:[#allocation4 + $0xd0] sm:$0xf]
      %v9447 = vld [vmem:[#allocation4 + $0xd4] sm:$0xf]
      %v9448 = vld [vmem:[#allocation4 + $0xd8] sm:$0xf]
      %v9449 = vld [vmem:[#allocation4 + $0xdc] sm:$0xf]
      %v9450 = vld [vmem:[#allocation4 + $0xe0] sm:$0xf]
      %v9451 = vld [vmem:[#allocation4 + $0xe4] sm:$0xf]
      %v9452 = vld [vmem:[#allocation4 + $0xe8] sm:$0xf]
      %v9453 = vld [vmem:[#allocation4 + $0xec] sm:$0xf]
      %v9454 = vld [vmem:[#allocation4 + $0xf0] sm:$0xf]
      %v9455 = vld [vmem:[#allocation4 + $0xf4] sm:$0xf]
      %v9456 = vld [vmem:[#allocation4 + $0xf8] sm:$0xf]
      %v9457 = vld [vmem:[#allocation4 + $0xfc] sm:$0xf]
      %v9458 = vld [vmem:[#allocation4 + $0x100] sm:$0xf]
      %v9459 = vld [vmem:[#allocation4 + $0x104] sm:$0xf]
      %v9460 = vld [vmem:[#allocation4 + $0x108] sm:$0xf]
      %v9461 = vld [vmem:[#allocation4 + $0x10c] sm:$0xf]
      %v9462 = vld [vmem:[#allocation4 + $0x110] sm:$0xf]
      %v9463 = vld [vmem:[#allocation4 + $0x114] sm:$0xf]
      %v9464 = vld [vmem:[#allocation4 + $0x118] sm:$0xf]
      %v9465 = vld [vmem:[#allocation4 + $0x11c] sm:$0xf]
      %v9466 = vld [vmem:[#allocation4 + $0x120] sm:$0xf]
      %v9467 = vld [vmem:[#allocation4 + $0x124] sm:$0xf]
      %v9468 = vld [vmem:[#allocation4 + $0x128] sm:$0xf]
      %v9469 = vld [vmem:[#allocation4 + $0x12c] sm:$0xf]
      %v9470 = vld [vmem:[#allocation4 + $0x130] sm:$0xf]
      %v9471 = vld [vmem:[#allocation4 + $0x134] sm:$0xf]
      %v9472 = vld [vmem:[#allocation4 + $0x138] sm:$0xf]
      %v9473 = vld [vmem:[#allocation4 + $0x13c] sm:$0xf]
      %v9474 = vld [vmem:[#allocation4 + $0x140] sm:$0xf]
      %v9475 = vld [vmem:[#allocation4 + $0x144] sm:$0xf]
      %v9476 = vld [vmem:[#allocation4 + $0x148] sm:$0xf]
      %v9477 = vld [vmem:[#allocation4 + $0x14c] sm:$0xf]
      %v9478 = vld [vmem:[#allocation4 + $0x150] sm:$0xf]
      %v9479 = vld [vmem:[#allocation4 + $0x154] sm:$0xf]
      %v9480 = vld [vmem:[#allocation4 + $0x158] sm:$0xf]
      %v9481 = vld [vmem:[#allocation4 + $0x15c] sm:$0xf]
      %v9482 = vld [vmem:[#allocation4 + $0x160] sm:$0xf]
      %v9483 = vld [vmem:[#allocation4 + $0x164] sm:$0xf]
      %v9484 = vld [vmem:[#allocation4 + $0x168] sm:$0xf]
      %v9485 = vld [vmem:[#allocation4 + $0x16c] sm:$0xf]
      %v9486 = vld [vmem:[#allocation4 + $0x170] sm:$0xf]
      %v9487 = vld [vmem:[#allocation4 + $0x174] sm:$0xf]
      %v9488 = vld [vmem:[#allocation4 + $0x178] sm:$0xf]
      %v9489 = vld [vmem:[#allocation4 + $0x17c] sm:$0xf]
      %v9490 = vld [vmem:[#allocation4 + $0x180] sm:$0xf]
      %v9491 = vld [vmem:[#allocation4 + $0x184] sm:$0xf]
      %v9492 = vld [vmem:[#allocation4 + $0x188] sm:$0xf]
      %v9493 = vld [vmem:[#allocation4 + $0x18c] sm:$0xf]
      %v9494 = vld [vmem:[#allocation4 + $0x190] sm:$0xf]
      %v9495 = vld [vmem:[#allocation4 + $0x194] sm:$0xf]
      %v9496 = vld [vmem:[#allocation4 + $0x198] sm:$0xf]
      %v9497 = vld [vmem:[#allocation4 + $0x19c] sm:$0xf]
      %v9498 = vld [vmem:[#allocation4 + $0x1a0] sm:$0xf]
      %v9499 = vld [vmem:[#allocation4 + $0x1a4] sm:$0xf]
      %v9500 = vld [vmem:[#allocation4 + $0x1a8] sm:$0xf]
      %v9501 = vld [vmem:[#allocation4 + $0x1ac] sm:$0xf]
      %v9502 = vld [vmem:[#allocation4 + $0x1b0] sm:$0xf]
      %v9503 = vld [vmem:[#allocation4 + $0x1b4] sm:$0xf]
      %v9504 = vld [vmem:[#allocation4 + $0x1b8] sm:$0xf]
      %v9505 = vld [vmem:[#allocation4 + $0x1bc] sm:$0xf]
      %v9506 = vld [vmem:[#allocation4 + $0x1c0] sm:$0xf]
      %v9507 = vld [vmem:[#allocation4 + $0x1c4] sm:$0xf]
      %v9508 = vld [vmem:[#allocation4 + $0x1c8] sm:$0xf]
      %v9509 = vld [vmem:[#allocation4 + $0x1cc] sm:$0xf]
      %v9510 = vld [vmem:[#allocation4 + $0x1d0] sm:$0xf]
      %v9511 = vld [vmem:[#allocation4 + $0x1d4] sm:$0xf]
      %v9512 = vld [vmem:[#allocation4 + $0x1d8] sm:$0xf]
      %v9513 = vld [vmem:[#allocation4 + $0x1dc] sm:$0xf]
      %v9514 = vld [vmem:[#allocation4 + $0x1e0] sm:$0xf]
      %v9515 = vld [vmem:[#allocation4 + $0x1e4] sm:$0xf]
      %v9516 = vld [vmem:[#allocation4 + $0x1e8] sm:$0xf]
      %v9517 = vld [vmem:[#allocation4 + $0x1ec] sm:$0xf]
      %v9518 = vld [vmem:[#allocation4 + $0x1f0] sm:$0xf]
      %v9519 = vld [vmem:[#allocation4 + $0x1f4] sm:$0xf]
      %v9520 = vld [vmem:[#allocation4 + $0x1f8] sm:$0xf]
      %v9521 = vld [vmem:[#allocation4 + $0x1fc] sm:$0xf]
      %v9522 = vld [vmem:[#allocation4 + $0x200] sm:$0xf]
      %v9523 = vld [vmem:[#allocation4 + $0x204] sm:$0xf]
      %v9524 = vld [vmem:[#allocation4 + $0x208] sm:$0xf]
      %v9525 = vld [vmem:[#allocation4 + $0x20c] sm:$0xf]
      %v9526 = vld [vmem:[#allocation4 + $0x210] sm:$0xf]
      %v9527 = vld [vmem:[#allocation4 + $0x214] sm:$0xf]
      %v9528 = vld [vmem:[#allocation4 + $0x218] sm:$0xf]
      %v9529 = vld [vmem:[#allocation4 + $0x21c] sm:$0xf]
      %v9530 = vld [vmem:[#allocation4 + $0x220] sm:$0xf]
      %v9531 = vld [vmem:[#allocation4 + $0x224] sm:$0xf]
      %v9532 = vld [vmem:[#allocation4 + $0x228] sm:$0xf]
      %v9533 = vld [vmem:[#allocation4 + $0x22c] sm:$0xf]
      %v9534 = vld [vmem:[#allocation4 + $0x230] sm:$0xf]
      %v9535 = vld [vmem:[#allocation4 + $0x234] sm:$0xf]
      %v9536 = vld [vmem:[#allocation4 + $0x238] sm:$0xf]
      %v9537 = vld [vmem:[#allocation4 + $0x23c] sm:$0xf]
      %v9538 = vld [vmem:[#allocation4 + $0x240] sm:$0xf]
      %v9539 = vld [vmem:[#allocation4 + $0x244] sm:$0xf]
      %v9540 = vld [vmem:[#allocation4 + $0x248] sm:$0xf]
      %v9541 = vld [vmem:[#allocation4 + $0x24c] sm:$0xf]
      %v9542 = vld [vmem:[#allocation4 + $0x250] sm:$0xf]
      %v9543 = vld [vmem:[#allocation4 + $0x254] sm:$0xf]
      %v9544 = vld [vmem:[#allocation4 + $0x258] sm:$0xf]
      %v9545 = vld [vmem:[#allocation4 + $0x25c] sm:$0xf]
      %v9546 = vld [vmem:[#allocation4 + $0x260] sm:$0xf]
      %v9547 = vld [vmem:[#allocation4 + $0x264] sm:$0xf]
      %v9548 = vld [vmem:[#allocation4 + $0x268] sm:$0xf]
      %v9549 = vld [vmem:[#allocation4 + $0x26c] sm:$0xf]
      %v9550 = vld [vmem:[#allocation4 + $0x270] sm:$0xf]
      %v9551 = vld [vmem:[#allocation4 + $0x274] sm:$0xf]
      %v9552 = vld [vmem:[#allocation4 + $0x278] sm:$0xf]
      %v9553 = vld [vmem:[#allocation4 + $0x27c] sm:$0xf]
      %v9554 = vld [vmem:[#allocation4 + $0x280] sm:$0xf]
      %v9555 = vld [vmem:[#allocation4 + $0x284] sm:$0xf]
      %v9556 = vld [vmem:[#allocation4 + $0x288] sm:$0xf]
      %v9557 = vld [vmem:[#allocation4 + $0x28c] sm:$0xf]
      %v9558 = vld [vmem:[#allocation4 + $0x290] sm:$0xf]
      %v9559 = vld [vmem:[#allocation4 + $0x294] sm:$0xf]
      %v9560 = vld [vmem:[#allocation4 + $0x298] sm:$0xf]
      %v9561 = vld [vmem:[#allocation4 + $0x29c] sm:$0xf]
      %v9562 = vld [vmem:[#allocation4 + $0x2a0] sm:$0xf]
      %v9563 = vld [vmem:[#allocation4 + $0x2a4] sm:$0xf]
      %v9564 = vld [vmem:[#allocation4 + $0x2a8] sm:$0xf]
      %v9565 = vld [vmem:[#allocation4 + $0x2ac] sm:$0xf]
      %v9566 = vld [vmem:[#allocation4 + $0x2b0] sm:$0xf]
      %v9567 = vld [vmem:[#allocation4 + $0x2b4] sm:$0xf]
      %v9568 = vld [vmem:[#allocation4 + $0x2b8] sm:$0xf]
      %v9569 = vld [vmem:[#allocation4 + $0x2bc] sm:$0xf]
      %v9570 = vld [vmem:[#allocation4 + $0x2c0] sm:$0xf]
      %v9571 = vld [vmem:[#allocation4 + $0x2c4] sm:$0xf]
      %v9572 = vld [vmem:[#allocation4 + $0x2c8] sm:$0xf]
      %v9573 = vld [vmem:[#allocation4 + $0x2cc] sm:$0xf]
      %v9574 = vld [vmem:[#allocation4 + $0x2d0] sm:$0xf]
      %v9575 = vld [vmem:[#allocation4 + $0x2d4] sm:$0xf]
      %v9576 = vld [vmem:[#allocation4 + $0x2d8] sm:$0xf]
      %v9577 = vld [vmem:[#allocation4 + $0x2dc] sm:$0xf]
      %v9578 = vld [vmem:[#allocation4 + $0x2e0] sm:$0xf]
      %v9579 = vld [vmem:[#allocation4 + $0x2e4] sm:$0xf]
      %v9580 = vld [vmem:[#allocation4 + $0x2e8] sm:$0xf]
      %v9581 = vld [vmem:[#allocation4 + $0x2ec] sm:$0xf]
      %v9582 = vld [vmem:[#allocation4 + $0x2f0] sm:$0xf]
      %v9583 = vld [vmem:[#allocation4 + $0x2f4] sm:$0xf]
      %v9584 = vld [vmem:[#allocation4 + $0x2f8] sm:$0xf]
      %v9585 = vld [vmem:[#allocation4 + $0x2fc] sm:$0xf]
      %v9586 = vld [vmem:[#allocation4 + $0x300] sm:$0xf]
      %v9587 = vld [vmem:[#allocation4 + $0x304] sm:$0xf]
      %v9588 = vld [vmem:[#allocation4 + $0x308] sm:$0xf]
      %v9589 = vld [vmem:[#allocation4 + $0x30c] sm:$0xf]
      %v9590 = vld [vmem:[#allocation4 + $0x310] sm:$0xf]
      %v9591 = vld [vmem:[#allocation4 + $0x314] sm:$0xf]
      %v9592 = vld [vmem:[#allocation4 + $0x318] sm:$0xf]
      %v9593 = vld [vmem:[#allocation4 + $0x31c] sm:$0xf]
      %v9594 = vld [vmem:[#allocation4 + $0x320] sm:$0xf]
      %v9595 = vld [vmem:[#allocation4 + $0x324] sm:$0xf]
      %v9596 = vld [vmem:[#allocation4 + $0x328] sm:$0xf]
      %v9597 = vld [vmem:[#allocation4 + $0x32c] sm:$0xf]
      %v9598 = vld [vmem:[#allocation4 + $0x330] sm:$0xf]
      %v9599 = vld [vmem:[#allocation4 + $0x334] sm:$0xf]
      %v9600 = vld [vmem:[#allocation4 + $0x338] sm:$0xf]
      %v9601 = vld [vmem:[#allocation4 + $0x33c] sm:$0xf]
      %v9602 = vld [vmem:[#allocation4 + $0x340] sm:$0xf]
      %v9603 = vld [vmem:[#allocation4 + $0x344] sm:$0xf]
      %v9604 = vld [vmem:[#allocation4 + $0x348] sm:$0xf]
      %v9605 = vld [vmem:[#allocation4 + $0x34c] sm:$0xf]
      %v9606 = vld [vmem:[#allocation4 + $0x350] sm:$0xf]
      %v9607 = vld [vmem:[#allocation4 + $0x354] sm:$0xf]
      %v9608 = vld [vmem:[#allocation4 + $0x358] sm:$0xf]
      %v9609 = vld [vmem:[#allocation4 + $0x35c] sm:$0xf]
      %v9610 = vld [vmem:[#allocation4 + $0x360] sm:$0xf]
      %v9611 = vld [vmem:[#allocation4 + $0x364] sm:$0xf]
      %v9612 = vld [vmem:[#allocation4 + $0x368] sm:$0xf]
      %v9613 = vld [vmem:[#allocation4 + $0x36c] sm:$0xf]
      %v9614 = vld [vmem:[#allocation4 + $0x370] sm:$0xf]
      %v9615 = vld [vmem:[#allocation4 + $0x374] sm:$0xf]
      %v9616 = vld [vmem:[#allocation4 + $0x378] sm:$0xf]
      %v9617 = vld [vmem:[#allocation4 + $0x37c] sm:$0xf]
      %v9618 = vld [vmem:[#allocation4 + $0x380] sm:$0xf]
      %v9619 = vld [vmem:[#allocation4 + $0x384] sm:$0xf]
      %v9620 = vld [vmem:[#allocation4 + $0x388] sm:$0xf]
      %v9621 = vld [vmem:[#allocation4 + $0x38c] sm:$0xf]
      %v9622 = vld [vmem:[#allocation4 + $0x390] sm:$0xf]
      %v9623 = vld [vmem:[#allocation4 + $0x394] sm:$0xf]
      %v9624 = vld [vmem:[#allocation4 + $0x398] sm:$0xf]
      %v9625 = vld [vmem:[#allocation4 + $0x39c] sm:$0xf]
      %v9626 = vld [vmem:[#allocation4 + $0x3a0] sm:$0xf]
      %v9627 = vld [vmem:[#allocation4 + $0x3a4] sm:$0xf]
      %v9628 = vld [vmem:[#allocation4 + $0x3a8] sm:$0xf]
      %v9629 = vld [vmem:[#allocation4 + $0x3ac] sm:$0xf]
      %v9630 = vld [vmem:[#allocation4 + $0x3b0] sm:$0xf]
      %v9631 = vld [vmem:[#allocation4 + $0x3b4] sm:$0xf]
      %v9632 = vld [vmem:[#allocation4 + $0x3b8] sm:$0xf]
      %v9633 = vld [vmem:[#allocation4 + $0x3bc] sm:$0xf]
      %v9634 = vld [vmem:[#allocation4 + $0x3c0] sm:$0xf]
      %v9635 = vld [vmem:[#allocation4 + $0x3c4] sm:$0xf]
      %v9636 = vld [vmem:[#allocation4 + $0x3c8] sm:$0xf]
      %v9637 = vld [vmem:[#allocation4 + $0x3cc] sm:$0xf]
      %v9638 = vld [vmem:[#allocation4 + $0x3d0] sm:$0xf]
      %v9639 = vld [vmem:[#allocation4 + $0x3d4] sm:$0xf]
      %v9640 = vld [vmem:[#allocation4 + $0x3d8] sm:$0xf]
      %v9641 = vld [vmem:[#allocation4 + $0x3dc] sm:$0xf]
      %v9642 = vld [vmem:[#allocation4 + $0x3e0] sm:$0xf]
      %v9643 = vld [vmem:[#allocation4 + $0x3e4] sm:$0xf]
      %v9644 = vld [vmem:[#allocation4 + $0x3e8] sm:$0xf]
      %v9645 = vld [vmem:[#allocation4 + $0x3ec] sm:$0xf]
      %v9646 = vld [vmem:[#allocation4 + $0x3f0] sm:$0xf]
      %v9647 = vld [vmem:[#allocation4 + $0x3f4] sm:$0xf]
      %v9648 = vld [vmem:[#allocation4 + $0x3f8] sm:$0xf]
      %v9649 = vld [vmem:[#allocation4 + $0x3fc] sm:$0xf]
      %v9650 = vld [vmem:[%s7] sm:$0xf]
      %v9651 = vld [vmem:[%s7 + $0x4] sm:$0xf]
      %v9652 = vld [vmem:[%s7 + $0x8] sm:$0xf]
      %v9653 = vld [vmem:[%s7 + $0xc] sm:$0xf]
      %v9654 = vld [vmem:[%s7 + $0x10] sm:$0xf]
      %v9655 = vld [vmem:[%s7 + $0x14] sm:$0xf]
      %v9656 = vld [vmem:[%s7 + $0x18] sm:$0xf]
      %v9657 = vld [vmem:[%s7 + $0x1c] sm:$0xf]
      %v9658 = vld [vmem:[%s7 + $0x20] sm:$0xf]
      %v9659 = vld [vmem:[%s7 + $0x24] sm:$0xf]
      %v9660 = vld [vmem:[%s7 + $0x28] sm:$0xf]
      %v9661 = vld [vmem:[%s7 + $0x2c] sm:$0xf]
      %v9662 = vld [vmem:[%s7 + $0x30] sm:$0xf]
      %v9663 = vld [vmem:[%s7 + $0x34] sm:$0xf]
      %v9664 = vld [vmem:[%s7 + $0x38] sm:$0xf]
      %v9665 = vld [vmem:[%s7 + $0x3c] sm:$0xf]
      %v9666 = vld [vmem:[%s8] sm:$0x1]
      %v9668 = vlaneseq
      %v9669 = vshrl.u32 %v9668, 7
      %v9670 = vsub.s32 0, %v9669
      %v9671 = vrot.slane %v9666, %v9670
      %v9929 = vunpack.c.l.b16 %v9394
      %v9930 = vunpack.c.l.b16 %v9395
      %v9931 = vunpack.c.l.b16 %v9396
      %v9932 = vunpack.c.l.b16 %v9397
      %v9933 = vunpack.c.l.b16 %v9398
      %v9934 = vunpack.c.l.b16 %v9399
      %v9935 = vunpack.c.l.b16 %v9400
      %v9936 = vunpack.c.l.b16 %v9401
      %v9937 = vunpack.c.l.b16 %v9402
      %v9938 = vunpack.c.l.b16 %v9403
      %v9939 = vunpack.c.l.b16 %v9404
      %v9940 = vunpack.c.l.b16 %v9405
      %v9941 = vunpack.c.l.b16 %v9406
      %v9942 = vunpack.c.l.b16 %v9407
      %v9943 = vunpack.c.l.b16 %v9408
      %v9944 = vunpack.c.l.b16 %v9409
      %v9945 = vunpack.c.l.b16 %v9410
      %v9946 = vunpack.c.l.b16 %v9411
      %v9947 = vunpack.c.l.b16 %v9412
      %v9948 = vunpack.c.l.b16 %v9413
      %v9949 = vunpack.c.l.b16 %v9414
      %v9950 = vunpack.c.l.b16 %v9415
      %v9951 = vunpack.c.l.b16 %v9416
      %v9952 = vunpack.c.l.b16 %v9417
      %v9953 = vunpack.c.l.b16 %v9418
      %v9954 = vunpack.c.l.b16 %v9419
      %v9955 = vunpack.c.l.b16 %v9420
      %v9956 = vunpack.c.l.b16 %v9421
      %v9957 = vunpack.c.l.b16 %v9422
      %v9958 = vunpack.c.l.b16 %v9423
      %v9959 = vunpack.c.l.b16 %v9424
      %v9960 = vunpack.c.l.b16 %v9425
      %v9961 = vunpack.c.l.b16 %v9426
      %v9962 = vunpack.c.l.b16 %v9427
      %v9963 = vunpack.c.l.b16 %v9428
      %v9964 = vunpack.c.l.b16 %v9429
      %v9965 = vunpack.c.l.b16 %v9430
      %v9966 = vunpack.c.l.b16 %v9431
      %v9967 = vunpack.c.l.b16 %v9432
      %v9968 = vunpack.c.l.b16 %v9433
      %v9969 = vunpack.c.l.b16 %v9434
      %v9970 = vunpack.c.l.b16 %v9435
      %v9971 = vunpack.c.l.b16 %v9436
      %v9972 = vunpack.c.l.b16 %v9437
      %v9973 = vunpack.c.l.b16 %v9438
      %v9974 = vunpack.c.l.b16 %v9439
      %v9975 = vunpack.c.l.b16 %v9440
      %v9976 = vunpack.c.l.b16 %v9441
      %v9977 = vunpack.c.l.b16 %v9442
      %v9978 = vunpack.c.l.b16 %v9443
      %v9979 = vunpack.c.l.b16 %v9444
      %v9980 = vunpack.c.l.b16 %v9445
      %v9981 = vunpack.c.l.b16 %v9446
      %v9982 = vunpack.c.l.b16 %v9447
      %v9983 = vunpack.c.l.b16 %v9448
      %v9984 = vunpack.c.l.b16 %v9449
      %v9985 = vunpack.c.l.b16 %v9450
      %v9986 = vunpack.c.l.b16 %v9451
      %v9987 = vunpack.c.l.b16 %v9452
      %v9988 = vunpack.c.l.b16 %v9453
      %v9989 = vunpack.c.l.b16 %v9454
      %v9990 = vunpack.c.l.b16 %v9455
      %v9991 = vunpack.c.l.b16 %v9456
      %v9992 = vunpack.c.l.b16 %v9457
      %v9993 = vunpack.c.l.b16 %v9458
      %v9994 = vunpack.c.l.b16 %v9459
      %v9995 = vunpack.c.l.b16 %v9460
      %v9996 = vunpack.c.l.b16 %v9461
      %v9997 = vunpack.c.l.b16 %v9462
      %v9998 = vunpack.c.l.b16 %v9463
      %v9999 = vunpack.c.l.b16 %v9464
      %v10000 = vunpack.c.l.b16 %v9465
      %v10001 = vunpack.c.l.b16 %v9466
      %v10002 = vunpack.c.l.b16 %v9467
      %v10003 = vunpack.c.l.b16 %v9468
      %v10004 = vunpack.c.l.b16 %v9469
      %v10005 = vunpack.c.l.b16 %v9470
      %v10006 = vunpack.c.l.b16 %v9471
      %v10007 = vunpack.c.l.b16 %v9472
      %v10008 = vunpack.c.l.b16 %v9473
      %v10009 = vunpack.c.l.b16 %v9474
      %v10010 = vunpack.c.l.b16 %v9475
      %v10011 = vunpack.c.l.b16 %v9476
      %v10012 = vunpack.c.l.b16 %v9477
      %v10013 = vunpack.c.l.b16 %v9478
      %v10014 = vunpack.c.l.b16 %v9479
      %v10015 = vunpack.c.l.b16 %v9480
      %v10016 = vunpack.c.l.b16 %v9481
      %v10017 = vunpack.c.l.b16 %v9482
      %v10018 = vunpack.c.l.b16 %v9483
      %v10019 = vunpack.c.l.b16 %v9484
      %v10020 = vunpack.c.l.b16 %v9485
      %v10021 = vunpack.c.l.b16 %v9486
      %v10022 = vunpack.c.l.b16 %v9487
      %v10023 = vunpack.c.l.b16 %v9488
      %v10024 = vunpack.c.l.b16 %v9489
      %v10025 = vunpack.c.l.b16 %v9490
      %v10026 = vunpack.c.l.b16 %v9491
      %v10027 = vunpack.c.l.b16 %v9492
      %v10028 = vunpack.c.l.b16 %v9493
      %v10029 = vunpack.c.l.b16 %v9494
      %v10030 = vunpack.c.l.b16 %v9495
      %v10031 = vunpack.c.l.b16 %v9496
      %v10032 = vunpack.c.l.b16 %v9497
      %v10033 = vunpack.c.l.b16 %v9498
      %v10034 = vunpack.c.l.b16 %v9499
      %v10035 = vunpack.c.l.b16 %v9500
      %v10036 = vunpack.c.l.b16 %v9501
      %v10037 = vunpack.c.l.b16 %v9502
      %v10038 = vunpack.c.l.b16 %v9503
      %v10039 = vunpack.c.l.b16 %v9504
      %v10040 = vunpack.c.l.b16 %v9505
      %v10041 = vunpack.c.l.b16 %v9506
      %v10042 = vunpack.c.l.b16 %v9507
      %v10043 = vunpack.c.l.b16 %v9508
      %v10044 = vunpack.c.l.b16 %v9509
      %v10045 = vunpack.c.l.b16 %v9510
      %v10046 = vunpack.c.l.b16 %v9511
      %v10047 = vunpack.c.l.b16 %v9512
      %v10048 = vunpack.c.l.b16 %v9513
      %v10049 = vunpack.c.l.b16 %v9514
      %v10050 = vunpack.c.l.b16 %v9515
      %v10051 = vunpack.c.l.b16 %v9516
      %v10052 = vunpack.c.l.b16 %v9517
      %v10053 = vunpack.c.l.b16 %v9518
      %v10054 = vunpack.c.l.b16 %v9519
      %v10055 = vunpack.c.l.b16 %v9520
      %v10056 = vunpack.c.l.b16 %v9521
      %v10057 = vunpack.c.l.b16 %v9522
      %v10058 = vunpack.c.l.b16 %v9523
      %v10059 = vunpack.c.l.b16 %v9524
      %v10060 = vunpack.c.l.b16 %v9525
      %v10061 = vunpack.c.l.b16 %v9526
      %v10062 = vunpack.c.l.b16 %v9527
      %v10063 = vunpack.c.l.b16 %v9528
      %v10064 = vunpack.c.l.b16 %v9529
      %v10065 = vunpack.c.l.b16 %v9530
      %v10066 = vunpack.c.l.b16 %v9531
      %v10067 = vunpack.c.l.b16 %v9532
      %v10068 = vunpack.c.l.b16 %v9533
      %v10069 = vunpack.c.l.b16 %v9534
      %v10070 = vunpack.c.l.b16 %v9535
      %v10071 = vunpack.c.l.b16 %v9536
      %v10072 = vunpack.c.l.b16 %v9537
      %v10073 = vunpack.c.l.b16 %v9538
      %v10074 = vunpack.c.l.b16 %v9539
      %v10075 = vunpack.c.l.b16 %v9540
      %v10076 = vunpack.c.l.b16 %v9541
      %v10077 = vunpack.c.l.b16 %v9542
      %v10078 = vunpack.c.l.b16 %v9543
      %v10079 = vunpack.c.l.b16 %v9544
      %v10080 = vunpack.c.l.b16 %v9545
      %v10081 = vunpack.c.l.b16 %v9546
      %v10082 = vunpack.c.l.b16 %v9547
      %v10083 = vunpack.c.l.b16 %v9548
      %v10084 = vunpack.c.l.b16 %v9549
      %v10085 = vunpack.c.l.b16 %v9550
      %v10086 = vunpack.c.l.b16 %v9551
      %v10087 = vunpack.c.l.b16 %v9552
      %v10088 = vunpack.c.l.b16 %v9553
      %v10089 = vunpack.c.l.b16 %v9554
      %v10090 = vunpack.c.l.b16 %v9555
      %v10091 = vunpack.c.l.b16 %v9556
      %v10092 = vunpack.c.l.b16 %v9557
      %v10093 = vunpack.c.l.b16 %v9558
      %v10094 = vunpack.c.l.b16 %v9559
      %v10095 = vunpack.c.l.b16 %v9560
      %v10096 = vunpack.c.l.b16 %v9561
      %v10097 = vunpack.c.l.b16 %v9562
      %v10098 = vunpack.c.l.b16 %v9563
      %v10099 = vunpack.c.l.b16 %v9564
      %v10100 = vunpack.c.l.b16 %v9565
      %v10101 = vunpack.c.l.b16 %v9566
      %v10102 = vunpack.c.l.b16 %v9567
      %v10103 = vunpack.c.l.b16 %v9568
      %v10104 = vunpack.c.l.b16 %v9569
      %v10105 = vunpack.c.l.b16 %v9570
      %v10106 = vunpack.c.l.b16 %v9571
      %v10107 = vunpack.c.l.b16 %v9572
      %v10108 = vunpack.c.l.b16 %v9573
      %v10109 = vunpack.c.l.b16 %v9574
      %v10110 = vunpack.c.l.b16 %v9575
      %v10111 = vunpack.c.l.b16 %v9576
      %v10112 = vunpack.c.l.b16 %v9577
      %v10113 = vunpack.c.l.b16 %v9578
      %v10114 = vunpack.c.l.b16 %v9579
      %v10115 = vunpack.c.l.b16 %v9580
      %v10116 = vunpack.c.l.b16 %v9581
      %v10117 = vunpack.c.l.b16 %v9582
      %v10118 = vunpack.c.l.b16 %v9583
      %v10119 = vunpack.c.l.b16 %v9584
      %v10120 = vunpack.c.l.b16 %v9585
      %v10121 = vunpack.c.l.b16 %v9586
      %v10122 = vunpack.c.l.b16 %v9587
      %v10123 = vunpack.c.l.b16 %v9588
      %v10124 = vunpack.c.l.b16 %v9589
      %v10125 = vunpack.c.l.b16 %v9590
      %v10126 = vunpack.c.l.b16 %v9591
      %v10127 = vunpack.c.l.b16 %v9592
      %v10128 = vunpack.c.l.b16 %v9593
      %v10129 = vunpack.c.l.b16 %v9594
      %v10130 = vunpack.c.l.b16 %v9595
      %v10131 = vunpack.c.l.b16 %v9596
      %v10132 = vunpack.c.l.b16 %v9597
      %v10133 = vunpack.c.l.b16 %v9598
      %v10134 = vunpack.c.l.b16 %v9599
      %v10135 = vunpack.c.l.b16 %v9600
      %v10136 = vunpack.c.l.b16 %v9601
      %v10137 = vunpack.c.l.b16 %v9602
      %v10138 = vunpack.c.l.b16 %v9603
      %v10139 = vunpack.c.l.b16 %v9604
      %v10140 = vunpack.c.l.b16 %v9605
      %v10141 = vunpack.c.l.b16 %v9606
      %v10142 = vunpack.c.l.b16 %v9607
      %v10143 = vunpack.c.l.b16 %v9608
      %v10144 = vunpack.c.l.b16 %v9609
      %v10145 = vunpack.c.l.b16 %v9610
      %v10146 = vunpack.c.l.b16 %v9611
      %v10147 = vunpack.c.l.b16 %v9612
      %v10148 = vunpack.c.l.b16 %v9613
      %v10149 = vunpack.c.l.b16 %v9614
      %v10150 = vunpack.c.l.b16 %v9615
      %v10151 = vunpack.c.l.b16 %v9616
      %v10152 = vunpack.c.l.b16 %v9617
      %v10153 = vunpack.c.l.b16 %v9618
      %v10154 = vunpack.c.l.b16 %v9619
      %v10155 = vunpack.c.l.b16 %v9620
      %v10156 = vunpack.c.l.b16 %v9621
      %v10157 = vunpack.c.l.b16 %v9622
      %v10158 = vunpack.c.l.b16 %v9623
      %v10159 = vunpack.c.l.b16 %v9624
      %v10160 = vunpack.c.l.b16 %v9625
      %v10161 = vunpack.c.l.b16 %v9626
      %v10162 = vunpack.c.l.b16 %v9627
      %v10163 = vunpack.c.l.b16 %v9628
      %v10164 = vunpack.c.l.b16 %v9629
      %v10165 = vunpack.c.l.b16 %v9630
      %v10166 = vunpack.c.l.b16 %v9631
      %v10167 = vunpack.c.l.b16 %v9632
      %v10168 = vunpack.c.l.b16 %v9633
      %v10169 = vunpack.c.l.b16 %v9634
      %v10170 = vunpack.c.l.b16 %v9635
      %v10171 = vunpack.c.l.b16 %v9636
      %v10172 = vunpack.c.l.b16 %v9637
      %v10173 = vunpack.c.l.b16 %v9638
      %v10174 = vunpack.c.l.b16 %v9639
      %v10175 = vunpack.c.l.b16 %v9640
      %v10176 = vunpack.c.l.b16 %v9641
      %v10177 = vunpack.c.l.b16 %v9642
      %v10178 = vunpack.c.l.b16 %v9643
      %v10179 = vunpack.c.l.b16 %v9644
      %v10180 = vunpack.c.l.b16 %v9645
      %v10181 = vunpack.c.l.b16 %v9646
      %v10182 = vunpack.c.l.b16 %v9647
      %v10183 = vunpack.c.l.b16 %v9648
      %v10184 = vunpack.c.l.b16 %v9649
      %v10185 = vpack.c.b16 %v9930, %v9929
      %v10186 = vpack.c.b16 %v9932, %v9931
      %v10187 = vpack.c.b16 %v9934, %v9933
      %v10188 = vpack.c.b16 %v9936, %v9935
      %v10189 = vpack.c.b16 %v9938, %v9937
      %v10190 = vpack.c.b16 %v9940, %v9939
      %v10191 = vpack.c.b16 %v9942, %v9941
      %v10192 = vpack.c.b16 %v9944, %v9943
      %v10193 = vpack.c.b16 %v9946, %v9945
      %v10194 = vpack.c.b16 %v9948, %v9947
      %v10195 = vpack.c.b16 %v9950, %v9949
      %v10196 = vpack.c.b16 %v9952, %v9951
      %v10197 = vpack.c.b16 %v9954, %v9953
      %v10198 = vpack.c.b16 %v9956, %v9955
      %v10199 = vpack.c.b16 %v9958, %v9957
      %v10200 = vpack.c.b16 %v9960, %v9959
      %v10201 = vpack.c.b16 %v9962, %v9961
      %v10202 = vpack.c.b16 %v9964, %v9963
      %v10203 = vpack.c.b16 %v9966, %v9965
      %v10204 = vpack.c.b16 %v9968, %v9967
      %v10205 = vpack.c.b16 %v9970, %v9969
      %v10206 = vpack.c.b16 %v9972, %v9971
      %v10207 = vpack.c.b16 %v9974, %v9973
      %v10208 = vpack.c.b16 %v9976, %v9975
      %v10209 = vpack.c.b16 %v9978, %v9977
      %v10210 = vpack.c.b16 %v9980, %v9979
      %v10211 = vpack.c.b16 %v9982, %v9981
      %v10212 = vpack.c.b16 %v9984, %v9983
      %v10213 = vpack.c.b16 %v9986, %v9985
      %v10214 = vpack.c.b16 %v9988, %v9987
      %v10215 = vpack.c.b16 %v9990, %v9989
      %v10216 = vpack.c.b16 %v9992, %v9991
      %v10217 = vpack.c.b16 %v9994, %v9993
      %v10218 = vpack.c.b16 %v9996, %v9995
      %v10219 = vpack.c.b16 %v9998, %v9997
      %v10220 = vpack.c.b16 %v10000, %v9999
      %v10221 = vpack.c.b16 %v10002, %v10001
      %v10222 = vpack.c.b16 %v10004, %v10003
      %v10223 = vpack.c.b16 %v10006, %v10005
      %v10224 = vpack.c.b16 %v10008, %v10007
      %v10225 = vpack.c.b16 %v10010, %v10009
      %v10226 = vpack.c.b16 %v10012, %v10011
      %v10227 = vpack.c.b16 %v10014, %v10013
      %v10228 = vpack.c.b16 %v10016, %v10015
      %v10229 = vpack.c.b16 %v10018, %v10017
      %v10230 = vpack.c.b16 %v10020, %v10019
      %v10231 = vpack.c.b16 %v10022, %v10021
      %v10232 = vpack.c.b16 %v10024, %v10023
      %v10233 = vpack.c.b16 %v10026, %v10025
      %v10234 = vpack.c.b16 %v10028, %v10027
      %v10235 = vpack.c.b16 %v10030, %v10029
      %v10236 = vpack.c.b16 %v10032, %v10031
      %v10237 = vpack.c.b16 %v10034, %v10033
      %v10238 = vpack.c.b16 %v10036, %v10035
      %v10239 = vpack.c.b16 %v10038, %v10037
      %v10240 = vpack.c.b16 %v10040, %v10039
      %v10241 = vpack.c.b16 %v10042, %v10041
      %v10242 = vpack.c.b16 %v10044, %v10043
      %v10243 = vpack.c.b16 %v10046, %v10045
      %v10244 = vpack.c.b16 %v10048, %v10047
      %v10245 = vpack.c.b16 %v10050, %v10049
      %v10246 = vpack.c.b16 %v10052, %v10051
      %v10247 = vpack.c.b16 %v10054, %v10053
      %v10248 = vpack.c.b16 %v10056, %v10055
      %v10249 = vpack.c.b16 %v10058, %v10057
      %v10250 = vpack.c.b16 %v10060, %v10059
      %v10251 = vpack.c.b16 %v10062, %v10061
      %v10252 = vpack.c.b16 %v10064, %v10063
      %v10253 = vpack.c.b16 %v10066, %v10065
      %v10254 = vpack.c.b16 %v10068, %v10067
      %v10255 = vpack.c.b16 %v10070, %v10069
      %v10256 = vpack.c.b16 %v10072, %v10071
      %v10257 = vpack.c.b16 %v10074, %v10073
      %v10258 = vpack.c.b16 %v10076, %v10075
      %v10259 = vpack.c.b16 %v10078, %v10077
      %v10260 = vpack.c.b16 %v10080, %v10079
      %v10261 = vpack.c.b16 %v10082, %v10081
      %v10262 = vpack.c.b16 %v10084, %v10083
      %v10263 = vpack.c.b16 %v10086, %v10085
      %v10264 = vpack.c.b16 %v10088, %v10087
      %v10265 = vpack.c.b16 %v10090, %v10089
      %v10266 = vpack.c.b16 %v10092, %v10091
      %v10267 = vpack.c.b16 %v10094, %v10093
      %v10268 = vpack.c.b16 %v10096, %v10095
      %v10269 = vpack.c.b16 %v10098, %v10097
      %v10270 = vpack.c.b16 %v10100, %v10099
      %v10271 = vpack.c.b16 %v10102, %v10101
      %v10272 = vpack.c.b16 %v10104, %v10103
      %v10273 = vpack.c.b16 %v10106, %v10105
      %v10274 = vpack.c.b16 %v10108, %v10107
      %v10275 = vpack.c.b16 %v10110, %v10109
      %v10276 = vpack.c.b16 %v10112, %v10111
      %v10277 = vpack.c.b16 %v10114, %v10113
      %v10278 = vpack.c.b16 %v10116, %v10115
      %v10279 = vpack.c.b16 %v10118, %v10117
      %v10280 = vpack.c.b16 %v10120, %v10119
      %v10281 = vpack.c.b16 %v10122, %v10121
      %v10282 = vpack.c.b16 %v10124, %v10123
      %v10283 = vpack.c.b16 %v10126, %v10125
      %v10284 = vpack.c.b16 %v10128, %v10127
      %v10285 = vpack.c.b16 %v10130, %v10129
      %v10286 = vpack.c.b16 %v10132, %v10131
      %v10287 = vpack.c.b16 %v10134, %v10133
      %v10288 = vpack.c.b16 %v10136, %v10135
      %v10289 = vpack.c.b16 %v10138, %v10137
      %v10290 = vpack.c.b16 %v10140, %v10139
      %v10291 = vpack.c.b16 %v10142, %v10141
      %v10292 = vpack.c.b16 %v10144, %v10143
      %v10293 = vpack.c.b16 %v10146, %v10145
      %v10294 = vpack.c.b16 %v10148, %v10147
      %v10295 = vpack.c.b16 %v10150, %v10149
      %v10296 = vpack.c.b16 %v10152, %v10151
      %v10297 = vpack.c.b16 %v10154, %v10153
      %v10298 = vpack.c.b16 %v10156, %v10155
      %v10299 = vpack.c.b16 %v10158, %v10157
      %v10300 = vpack.c.b16 %v10160, %v10159
      %v10301 = vpack.c.b16 %v10162, %v10161
      %v10302 = vpack.c.b16 %v10164, %v10163
      %v10303 = vpack.c.b16 %v10166, %v10165
      %v10304 = vpack.c.b16 %v10168, %v10167
      %v10305 = vpack.c.b16 %v10170, %v10169
      %v10306 = vpack.c.b16 %v10172, %v10171
      %v10307 = vpack.c.b16 %v10174, %v10173
      %v10308 = vpack.c.b16 %v10176, %v10175
      %v10309 = vpack.c.b16 %v10178, %v10177
      %v10310 = vpack.c.b16 %v10180, %v10179
      %v10311 = vpack.c.b16 %v10182, %v10181
      %v10312 = vpack.c.b16 %v10184, %v10183
      %v10457 = vunpack.c.l.b16 %v9650
      %v10458 = vunpack.c.l.b16 %v9651
      %v10459 = vunpack.c.l.b16 %v9652
      %v10460 = vunpack.c.l.b16 %v9653
      %v10461 = vunpack.c.l.b16 %v9654
      %v10462 = vunpack.c.l.b16 %v9655
      %v10463 = vunpack.c.l.b16 %v9656
      %v10464 = vunpack.c.l.b16 %v9657
      %v10465 = vunpack.c.l.b16 %v9658
      %v10466 = vunpack.c.l.b16 %v9659
      %v10467 = vunpack.c.l.b16 %v9660
      %v10468 = vunpack.c.l.b16 %v9661
      %v10469 = vunpack.c.l.b16 %v9662
      %v10470 = vunpack.c.l.b16 %v9663
      %v10471 = vunpack.c.l.b16 %v9664
      %v10472 = vunpack.c.l.b16 %v9665
      %v10473 = vpack.c.b16 %v10458, %v10457
      %v10474 = vpack.c.b16 %v10460, %v10459
      %v10475 = vpack.c.b16 %v10462, %v10461
      %v10476 = vpack.c.b16 %v10464, %v10463
      %v10477 = vpack.c.b16 %v10466, %v10465
      %v10478 = vpack.c.b16 %v10468, %v10467
      %v10479 = vpack.c.b16 %v10470, %v10469
      %v10480 = vpack.c.b16 %v10472, %v10471
      %10489 = vmatprep.subr.bf16.mxu0 0
      %10490 = vmatpush1.bf16.msra.mxu0 %v10480
      %10491 = vmatprep.subr.bf16.mxu0 0
      %10492 = vmatpush1.bf16.msra.mxu0 %v10479
      %10493 = vmatprep.subr.bf16.mxu0 0
      %10494 = vmatpush1.bf16.msra.mxu0 %v10478
      %10495 = vmatprep.subr.bf16.mxu0 0
      %10496 = vmatpush1.bf16.msra.mxu0 %v10477
      %10497 = vmatprep.subr.bf16.mxu0 0
      %10498 = vmatpush1.bf16.msra.mxu0 %v10476
      %10499 = vmatprep.subr.bf16.mxu0 0
      %10500 = vmatpush1.bf16.msra.mxu0 %v10475
      %10501 = vmatprep.subr.bf16.mxu0 0
      %10502 = vmatpush1.bf16.msra.mxu0 %v10474
      %10503 = vmatprep.subr.bf16.mxu0 0
      %10504 = vmatpush1.bf16.msra.mxu0 %v10473
      %10505 = vmatprep.subr.bf16.mxu0 0
      %10506 = vmatpush2.bf16.msra.mxu0 0
      %10507 = vmatprep.subr.bf16.mxu0 0
      %10508 = vmatpush2.bf16.msra.mxu0 0
      %10509 = vmatprep.subr.bf16.mxu0 0
      %10510 = vmatpush2.bf16.msra.mxu0 0
      %10511 = vmatprep.subr.bf16.mxu0 0
      %10512 = vmatpush2.bf16.msra.mxu0 0
      %10513 = vmatprep.subr.bf16.mxu0 0
      %10514 = vmatpush2.bf16.msra.mxu0 0
      %10515 = vmatprep.subr.bf16.mxu0 0
      %10516 = vmatpush2.bf16.msra.mxu0 0
      %10517 = vmatprep.subr.bf16.mxu0 0
      %10518 = vmatpush2.bf16.msra.mxu0 0
      %10519 = vmatprep.subr.bf16.mxu0 0
      %10520 = vmatpush2.bf16.msra.mxu0 0
      %10521 = vmatprep.mubr.bf16.mxu0 0
      %10522 = vmatmul.mubr.bf16.gmra.mxu0 %v10185
      %v10523 = vpop.f32.mrf.mxu0
      %v10524 = vadd.f32 %v9671, %v10523
      %v10525 = vpop.f32.mrf.mxu0
      %v10526 = vpop.f32.mrf.mxu0
      %v10527 = vadd.f32 %v9671, %v10526
      %v10528 = vpop.f32.mrf.mxu0
      %10529 = vmatprep.mubr.bf16.mxu0 0
      %10530 = vmatmul.mubr.bf16.gmra.mxu0 %v10186
      %v10531 = vpop.f32.mrf.mxu0
      %v10532 = vadd.f32 %v9671, %v10531
      %v10533 = vpop.f32.mrf.mxu0
      %v10534 = vpop.f32.mrf.mxu0
      %v10535 = vadd.f32 %v9671, %v10534
      %v10536 = vpop.f32.mrf.mxu0
      %10537 = vmatprep.mubr.bf16.mxu0 0
      %10538 = vmatmul.mubr.bf16.gmra.mxu0 %v10187
      %v10539 = vpop.f32.mrf.mxu0
      %v10540 = vadd.f32 %v9671, %v10539
      %v10541 = vpop.f32.mrf.mxu0
      %v10542 = vpop.f32.mrf.mxu0
      %v10543 = vadd.f32 %v9671, %v10542
      %v10544 = vpop.f32.mrf.mxu0
      %10545 = vmatprep.mubr.bf16.mxu0 0
      %10546 = vmatmul.mubr.bf16.gmra.mxu0 %v10188
      %v10547 = vpop.f32.mrf.mxu0
      %v10548 = vadd.f32 %v9671, %v10547
      %v10549 = vpop.f32.mrf.mxu0
      %v10550 = vpop.f32.mrf.mxu0
      %v10551 = vadd.f32 %v9671, %v10550
      %v10552 = vpop.f32.mrf.mxu0
      %10553 = vmatprep.mubr.bf16.mxu0 0
      %10554 = vmatmul.mubr.bf16.gmra.mxu0 %v10189
      %v10555 = vpop.f32.mrf.mxu0
      %v10556 = vadd.f32 %v9671, %v10555
      %v10557 = vpop.f32.mrf.mxu0
      %v10558 = vpop.f32.mrf.mxu0
      %v10559 = vadd.f32 %v9671, %v10558
      %v10560 = vpop.f32.mrf.mxu0
      %10561 = vmatprep.mubr.bf16.mxu0 0
      %10562 = vmatmul.mubr.bf16.gmra.mxu0 %v10190
      %v10563 = vpop.f32.mrf.mxu0
      %v10564 = vadd.f32 %v9671, %v10563
      %v10565 = vpop.f32.mrf.mxu0
      %v10566 = vpop.f32.mrf.mxu0
      %v10567 = vadd.f32 %v9671, %v10566
      %v10568 = vpop.f32.mrf.mxu0
      %10569 = vmatprep.mubr.bf16.mxu0 0
      %10570 = vmatmul.mubr.bf16.gmra.mxu0 %v10191
      %v10571 = vpop.f32.mrf.mxu0
      %v10572 = vadd.f32 %v9671, %v10571
      %v10573 = vpop.f32.mrf.mxu0
      %v10574 = vpop.f32.mrf.mxu0
      %v10575 = vadd.f32 %v9671, %v10574
      %v10576 = vpop.f32.mrf.mxu0
      %10577 = vmatprep.mubr.bf16.mxu0 0
      %10578 = vmatmul.mubr.bf16.gmra.mxu0 %v10192
      %v10579 = vpop.f32.mrf.mxu0
      %v10580 = vadd.f32 %v9671, %v10579
      %v10581 = vpop.f32.mrf.mxu0
      %v10582 = vpop.f32.mrf.mxu0
      %v10583 = vadd.f32 %v9671, %v10582
      %v10584 = vpop.f32.mrf.mxu0
      %10585 = vmatprep.mubr.bf16.mxu0 0
      %10586 = vmatmul.mubr.bf16.gmra.mxu0 %v10193
      %v10587 = vpop.f32.mrf.mxu0
      %v10588 = vadd.f32 %v9671, %v10587
      %v10589 = vpop.f32.mrf.mxu0
      %v10590 = vpop.f32.mrf.mxu0
      %v10591 = vadd.f32 %v9671, %v10590
      %v10592 = vpop.f32.mrf.mxu0
      %10593 = vmatprep.mubr.bf16.mxu0 0
      %10594 = vmatmul.mubr.bf16.gmra.mxu0 %v10194
      %v10595 = vpop.f32.mrf.mxu0
      %v10596 = vadd.f32 %v9671, %v10595
      %v10597 = vpop.f32.mrf.mxu0
      %v10598 = vpop.f32.mrf.mxu0
      %v10599 = vadd.f32 %v9671, %v10598
      %v10600 = vpop.f32.mrf.mxu0
      %10601 = vmatprep.mubr.bf16.mxu0 0
      %10602 = vmatmul.mubr.bf16.gmra.mxu0 %v10195
      %v10603 = vpop.f32.mrf.mxu0
      %v10604 = vadd.f32 %v9671, %v10603
      %v10605 = vpop.f32.mrf.mxu0
      %v10606 = vpop.f32.mrf.mxu0
      %v10607 = vadd.f32 %v9671, %v10606
      %v10608 = vpop.f32.mrf.mxu0
      %10609 = vmatprep.mubr.bf16.mxu0 0
      %10610 = vmatmul.mubr.bf16.gmra.mxu0 %v10196
      %v10611 = vpop.f32.mrf.mxu0
      %v10612 = vadd.f32 %v9671, %v10611
      %v10613 = vpop.f32.mrf.mxu0
      %v10614 = vpop.f32.mrf.mxu0
      %v10615 = vadd.f32 %v9671, %v10614
      %v10616 = vpop.f32.mrf.mxu0
      %10617 = vmatprep.mubr.bf16.mxu0 0
      %10618 = vmatmul.mubr.bf16.gmra.mxu0 %v10197
      %v10619 = vpop.f32.mrf.mxu0
      %v10620 = vadd.f32 %v9671, %v10619
      %v10621 = vpop.f32.mrf.mxu0
      %v10622 = vpop.f32.mrf.mxu0
      %v10623 = vadd.f32 %v9671, %v10622
      %v10624 = vpop.f32.mrf.mxu0
      %10625 = vmatprep.mubr.bf16.mxu0 0
      %10626 = vmatmul.mubr.bf16.gmra.mxu0 %v10198
      %v10627 = vpop.f32.mrf.mxu0
      %v10628 = vadd.f32 %v9671, %v10627
      %v10629 = vpop.f32.mrf.mxu0
      %v10630 = vpop.f32.mrf.mxu0
      %v10631 = vadd.f32 %v9671, %v10630
      %v10632 = vpop.f32.mrf.mxu0
      %10633 = vmatprep.mubr.bf16.mxu0 0
      %10634 = vmatmul.mubr.bf16.gmra.mxu0 %v10199
      %v10635 = vpop.f32.mrf.mxu0
      %v10636 = vadd.f32 %v9671, %v10635
      %v10637 = vpop.f32.mrf.mxu0
      %v10638 = vpop.f32.mrf.mxu0
      %v10639 = vadd.f32 %v9671, %v10638
      %v10640 = vpop.f32.mrf.mxu0
      %10641 = vmatprep.mubr.bf16.mxu0 0
      %10642 = vmatmul.mubr.bf16.gmra.mxu0 %v10200
      %v10643 = vpop.f32.mrf.mxu0
      %v10644 = vadd.f32 %v9671, %v10643
      %v10645 = vpop.f32.mrf.mxu0
      %v10646 = vpop.f32.mrf.mxu0
      %v10647 = vadd.f32 %v9671, %v10646
      %v10648 = vpop.f32.mrf.mxu0
      %10649 = vmatprep.mubr.bf16.mxu0 0
      %10650 = vmatmul.mubr.bf16.gmra.mxu0 %v10201
      %v10651 = vpop.f32.mrf.mxu0
      %v10652 = vadd.f32 %v9671, %v10651
      %v10653 = vpop.f32.mrf.mxu0
      %v10654 = vpop.f32.mrf.mxu0
      %v10655 = vadd.f32 %v9671, %v10654
      %v10656 = vpop.f32.mrf.mxu0
      %10657 = vmatprep.mubr.bf16.mxu0 0
      %10658 = vmatmul.mubr.bf16.gmra.mxu0 %v10202
      %v10659 = vpop.f32.mrf.mxu0
      %v10660 = vadd.f32 %v9671, %v10659
      %v10661 = vpop.f32.mrf.mxu0
      %v10662 = vpop.f32.mrf.mxu0
      %v10663 = vadd.f32 %v9671, %v10662
      %v10664 = vpop.f32.mrf.mxu0
      %10665 = vmatprep.mubr.bf16.mxu0 0
      %10666 = vmatmul.mubr.bf16.gmra.mxu0 %v10203
      %v10667 = vpop.f32.mrf.mxu0
      %v10668 = vadd.f32 %v9671, %v10667
      %v10669 = vpop.f32.mrf.mxu0
      %v10670 = vpop.f32.mrf.mxu0
      %v10671 = vadd.f32 %v9671, %v10670
      %v10672 = vpop.f32.mrf.mxu0
      %10673 = vmatprep.mubr.bf16.mxu0 0
      %10674 = vmatmul.mubr.bf16.gmra.mxu0 %v10204
      %v10675 = vpop.f32.mrf.mxu0
      %v10676 = vadd.f32 %v9671, %v10675
      %v10677 = vpop.f32.mrf.mxu0
      %v10678 = vpop.f32.mrf.mxu0
      %v10679 = vadd.f32 %v9671, %v10678
      %v10680 = vpop.f32.mrf.mxu0
      %10681 = vmatprep.mubr.bf16.mxu0 0
      %10682 = vmatmul.mubr.bf16.gmra.mxu0 %v10205
      %v10683 = vpop.f32.mrf.mxu0
      %v10684 = vadd.f32 %v9671, %v10683
      %v10685 = vpop.f32.mrf.mxu0
      %v10686 = vpop.f32.mrf.mxu0
      %v10687 = vadd.f32 %v9671, %v10686
      %v10688 = vpop.f32.mrf.mxu0
      %10689 = vmatprep.mubr.bf16.mxu0 0
      %10690 = vmatmul.mubr.bf16.gmra.mxu0 %v10206
      %v10691 = vpop.f32.mrf.mxu0
      %v10692 = vadd.f32 %v9671, %v10691
      %v10693 = vpop.f32.mrf.mxu0
      %v10694 = vpop.f32.mrf.mxu0
      %v10695 = vadd.f32 %v9671, %v10694
      %v10696 = vpop.f32.mrf.mxu0
      %10697 = vmatprep.mubr.bf16.mxu0 0
      %10698 = vmatmul.mubr.bf16.gmra.mxu0 %v10207
      %v10699 = vpop.f32.mrf.mxu0
      %v10700 = vadd.f32 %v9671, %v10699
      %v10701 = vpop.f32.mrf.mxu0
      %v10702 = vpop.f32.mrf.mxu0
      %v10703 = vadd.f32 %v9671, %v10702
      %v10704 = vpop.f32.mrf.mxu0
      %10705 = vmatprep.mubr.bf16.mxu0 0
      %10706 = vmatmul.mubr.bf16.gmra.mxu0 %v10208
      %v10707 = vpop.f32.mrf.mxu0
      %v10708 = vadd.f32 %v9671, %v10707
      %v10709 = vpop.f32.mrf.mxu0
      %v10710 = vpop.f32.mrf.mxu0
      %v10711 = vadd.f32 %v9671, %v10710
      %v10712 = vpop.f32.mrf.mxu0
      %10713 = vmatprep.mubr.bf16.mxu0 0
      %10714 = vmatmul.mubr.bf16.gmra.mxu0 %v10209
      %v10715 = vpop.f32.mrf.mxu0
      %v10716 = vadd.f32 %v9671, %v10715
      %v10717 = vpop.f32.mrf.mxu0
      %v10718 = vpop.f32.mrf.mxu0
      %v10719 = vadd.f32 %v9671, %v10718
      %v10720 = vpop.f32.mrf.mxu0
      %10721 = vmatprep.mubr.bf16.mxu0 0
      %10722 = vmatmul.mubr.bf16.gmra.mxu0 %v10210
      %v10723 = vpop.f32.mrf.mxu0
      %v10724 = vadd.f32 %v9671, %v10723
      %v10725 = vpop.f32.mrf.mxu0
      %v10726 = vpop.f32.mrf.mxu0
      %v10727 = vadd.f32 %v9671, %v10726
      %v10728 = vpop.f32.mrf.mxu0
      %10729 = vmatprep.mubr.bf16.mxu0 0
      %10730 = vmatmul.mubr.bf16.gmra.mxu0 %v10211
      %v10731 = vpop.f32.mrf.mxu0
      %v10732 = vadd.f32 %v9671, %v10731
      %v10733 = vpop.f32.mrf.mxu0
      %v10734 = vpop.f32.mrf.mxu0
      %v10735 = vadd.f32 %v9671, %v10734
      %v10736 = vpop.f32.mrf.mxu0
      %10737 = vmatprep.mubr.bf16.mxu0 0
      %10738 = vmatmul.mubr.bf16.gmra.mxu0 %v10212
      %v10739 = vpop.f32.mrf.mxu0
      %v10740 = vadd.f32 %v9671, %v10739
      %v10741 = vpop.f32.mrf.mxu0
      %v10742 = vpop.f32.mrf.mxu0
      %v10743 = vadd.f32 %v9671, %v10742
      %v10744 = vpop.f32.mrf.mxu0
      %10745 = vmatprep.mubr.bf16.mxu0 0
      %10746 = vmatmul.mubr.bf16.gmra.mxu0 %v10213
      %v10747 = vpop.f32.mrf.mxu0
      %v10748 = vadd.f32 %v9671, %v10747
      %v10749 = vpop.f32.mrf.mxu0
      %v10750 = vpop.f32.mrf.mxu0
      %v10751 = vadd.f32 %v9671, %v10750
      %v10752 = vpop.f32.mrf.mxu0
      %10753 = vmatprep.mubr.bf16.mxu0 0
      %10754 = vmatmul.mubr.bf16.gmra.mxu0 %v10214
      %v10755 = vpop.f32.mrf.mxu0
      %v10756 = vadd.f32 %v9671, %v10755
      %v10757 = vpop.f32.mrf.mxu0
      %v10758 = vpop.f32.mrf.mxu0
      %v10759 = vadd.f32 %v9671, %v10758
      %v10760 = vpop.f32.mrf.mxu0
      %10761 = vmatprep.mubr.bf16.mxu0 0
      %10762 = vmatmul.mubr.bf16.gmra.mxu0 %v10215
      %v10763 = vpop.f32.mrf.mxu0
      %v10764 = vadd.f32 %v9671, %v10763
      %v10765 = vpop.f32.mrf.mxu0
      %v10766 = vpop.f32.mrf.mxu0
      %v10767 = vadd.f32 %v9671, %v10766
      %v10768 = vpop.f32.mrf.mxu0
      %10769 = vmatprep.mubr.bf16.mxu0 0
      %10770 = vmatmul.mubr.bf16.gmra.mxu0 %v10216
      %v10771 = vpop.f32.mrf.mxu0
      %v10772 = vadd.f32 %v9671, %v10771
      %v10773 = vpop.f32.mrf.mxu0
      %v10774 = vpop.f32.mrf.mxu0
      %v10775 = vadd.f32 %v9671, %v10774
      %v10776 = vpop.f32.mrf.mxu0
      %10777 = vmatprep.mubr.bf16.mxu0 0
      %10778 = vmatmul.mubr.bf16.gmra.mxu0 %v10217
      %v10779 = vpop.f32.mrf.mxu0
      %v10780 = vadd.f32 %v9671, %v10779
      %v10781 = vpop.f32.mrf.mxu0
      %v10782 = vpop.f32.mrf.mxu0
      %v10783 = vadd.f32 %v9671, %v10782
      %v10784 = vpop.f32.mrf.mxu0
      %10785 = vmatprep.mubr.bf16.mxu0 0
      %10786 = vmatmul.mubr.bf16.gmra.mxu0 %v10218
      %v10787 = vpop.f32.mrf.mxu0
      %v10788 = vadd.f32 %v9671, %v10787
      %v10789 = vpop.f32.mrf.mxu0
      %v10790 = vpop.f32.mrf.mxu0
      %v10791 = vadd.f32 %v9671, %v10790
      %v10792 = vpop.f32.mrf.mxu0
      %10793 = vmatprep.mubr.bf16.mxu0 0
      %10794 = vmatmul.mubr.bf16.gmra.mxu0 %v10219
      %v10795 = vpop.f32.mrf.mxu0
      %v10796 = vadd.f32 %v9671, %v10795
      %v10797 = vpop.f32.mrf.mxu0
      %v10798 = vpop.f32.mrf.mxu0
      %v10799 = vadd.f32 %v9671, %v10798
      %v10800 = vpop.f32.mrf.mxu0
      %10801 = vmatprep.mubr.bf16.mxu0 0
      %10802 = vmatmul.mubr.bf16.gmra.mxu0 %v10220
      %v10803 = vpop.f32.mrf.mxu0
      %v10804 = vadd.f32 %v9671, %v10803
      %v10805 = vpop.f32.mrf.mxu0
      %v10806 = vpop.f32.mrf.mxu0
      %v10807 = vadd.f32 %v9671, %v10806
      %v10808 = vpop.f32.mrf.mxu0
      %10809 = vmatprep.mubr.bf16.mxu0 0
      %10810 = vmatmul.mubr.bf16.gmra.mxu0 %v10221
      %v10811 = vpop.f32.mrf.mxu0
      %v10812 = vadd.f32 %v9671, %v10811
      %v10813 = vpop.f32.mrf.mxu0
      %v10814 = vpop.f32.mrf.mxu0
      %v10815 = vadd.f32 %v9671, %v10814
      %v10816 = vpop.f32.mrf.mxu0
      %10817 = vmatprep.mubr.bf16.mxu0 0
      %10818 = vmatmul.mubr.bf16.gmra.mxu0 %v10222
      %v10819 = vpop.f32.mrf.mxu0
      %v10820 = vadd.f32 %v9671, %v10819
      %v10821 = vpop.f32.mrf.mxu0
      %v10822 = vpop.f32.mrf.mxu0
      %v10823 = vadd.f32 %v9671, %v10822
      %v10824 = vpop.f32.mrf.mxu0
      %10825 = vmatprep.mubr.bf16.mxu0 0
      %10826 = vmatmul.mubr.bf16.gmra.mxu0 %v10223
      %v10827 = vpop.f32.mrf.mxu0
      %v10828 = vadd.f32 %v9671, %v10827
      %v10829 = vpop.f32.mrf.mxu0
      %v10830 = vpop.f32.mrf.mxu0
      %v10831 = vadd.f32 %v9671, %v10830
      %v10832 = vpop.f32.mrf.mxu0
      %10833 = vmatprep.mubr.bf16.mxu0 0
      %10834 = vmatmul.mubr.bf16.gmra.mxu0 %v10224
      %v10835 = vpop.f32.mrf.mxu0
      %v10836 = vadd.f32 %v9671, %v10835
      %v10837 = vpop.f32.mrf.mxu0
      %v10838 = vpop.f32.mrf.mxu0
      %v10839 = vadd.f32 %v9671, %v10838
      %v10840 = vpop.f32.mrf.mxu0
      %10841 = vmatprep.mubr.bf16.mxu0 0
      %10842 = vmatmul.mubr.bf16.gmra.mxu0 %v10225
      %v10843 = vpop.f32.mrf.mxu0
      %v10844 = vadd.f32 %v9671, %v10843
      %v10845 = vpop.f32.mrf.mxu0
      %v10846 = vpop.f32.mrf.mxu0
      %v10847 = vadd.f32 %v9671, %v10846
      %v10848 = vpop.f32.mrf.mxu0
      %10849 = vmatprep.mubr.bf16.mxu0 0
      %10850 = vmatmul.mubr.bf16.gmra.mxu0 %v10226
      %v10851 = vpop.f32.mrf.mxu0
      %v10852 = vadd.f32 %v9671, %v10851
      %v10853 = vpop.f32.mrf.mxu0
      %v10854 = vpop.f32.mrf.mxu0
      %v10855 = vadd.f32 %v9671, %v10854
      %v10856 = vpop.f32.mrf.mxu0
      %10857 = vmatprep.mubr.bf16.mxu0 0
      %10858 = vmatmul.mubr.bf16.gmra.mxu0 %v10227
      %v10859 = vpop.f32.mrf.mxu0
      %v10860 = vadd.f32 %v9671, %v10859
      %v10861 = vpop.f32.mrf.mxu0
      %v10862 = vpop.f32.mrf.mxu0
      %v10863 = vadd.f32 %v9671, %v10862
      %v10864 = vpop.f32.mrf.mxu0
      %10865 = vmatprep.mubr.bf16.mxu0 0
      %10866 = vmatmul.mubr.bf16.gmra.mxu0 %v10228
      %v10867 = vpop.f32.mrf.mxu0
      %v10868 = vadd.f32 %v9671, %v10867
      %v10869 = vpop.f32.mrf.mxu0
      %v10870 = vpop.f32.mrf.mxu0
      %v10871 = vadd.f32 %v9671, %v10870
      %v10872 = vpop.f32.mrf.mxu0
      %10873 = vmatprep.mubr.bf16.mxu0 0
      %10874 = vmatmul.mubr.bf16.gmra.mxu0 %v10229
      %v10875 = vpop.f32.mrf.mxu0
      %v10876 = vadd.f32 %v9671, %v10875
      %v10877 = vpop.f32.mrf.mxu0
      %v10878 = vpop.f32.mrf.mxu0
      %v10879 = vadd.f32 %v9671, %v10878
      %v10880 = vpop.f32.mrf.mxu0
      %10881 = vmatprep.mubr.bf16.mxu0 0
      %10882 = vmatmul.mubr.bf16.gmra.mxu0 %v10230
      %v10883 = vpop.f32.mrf.mxu0
      %v10884 = vadd.f32 %v9671, %v10883
      %v10885 = vpop.f32.mrf.mxu0
      %v10886 = vpop.f32.mrf.mxu0
      %v10887 = vadd.f32 %v9671, %v10886
      %v10888 = vpop.f32.mrf.mxu0
      %10889 = vmatprep.mubr.bf16.mxu0 0
      %10890 = vmatmul.mubr.bf16.gmra.mxu0 %v10231
      %v10891 = vpop.f32.mrf.mxu0
      %v10892 = vadd.f32 %v9671, %v10891
      %v10893 = vpop.f32.mrf.mxu0
      %v10894 = vpop.f32.mrf.mxu0
      %v10895 = vadd.f32 %v9671, %v10894
      %v10896 = vpop.f32.mrf.mxu0
      %10897 = vmatprep.mubr.bf16.mxu0 0
      %10898 = vmatmul.mubr.bf16.gmra.mxu0 %v10232
      %v10899 = vpop.f32.mrf.mxu0
      %v10900 = vadd.f32 %v9671, %v10899
      %v10901 = vpop.f32.mrf.mxu0
      %v10902 = vpop.f32.mrf.mxu0
      %v10903 = vadd.f32 %v9671, %v10902
      %v10904 = vpop.f32.mrf.mxu0
      %10905 = vmatprep.mubr.bf16.mxu0 0
      %10906 = vmatmul.mubr.bf16.gmra.mxu0 %v10233
      %v10907 = vpop.f32.mrf.mxu0
      %v10908 = vadd.f32 %v9671, %v10907
      %v10909 = vpop.f32.mrf.mxu0
      %v10910 = vpop.f32.mrf.mxu0
      %v10911 = vadd.f32 %v9671, %v10910
      %v10912 = vpop.f32.mrf.mxu0
      %10913 = vmatprep.mubr.bf16.mxu0 0
      %10914 = vmatmul.mubr.bf16.gmra.mxu0 %v10234
      %v10915 = vpop.f32.mrf.mxu0
      %v10916 = vadd.f32 %v9671, %v10915
      %v10917 = vpop.f32.mrf.mxu0
      %v10918 = vpop.f32.mrf.mxu0
      %v10919 = vadd.f32 %v9671, %v10918
      %v10920 = vpop.f32.mrf.mxu0
      %10921 = vmatprep.mubr.bf16.mxu0 0
      %10922 = vmatmul.mubr.bf16.gmra.mxu0 %v10235
      %v10923 = vpop.f32.mrf.mxu0
      %v10924 = vadd.f32 %v9671, %v10923
      %v10925 = vpop.f32.mrf.mxu0
      %v10926 = vpop.f32.mrf.mxu0
      %v10927 = vadd.f32 %v9671, %v10926
      %v10928 = vpop.f32.mrf.mxu0
      %10929 = vmatprep.mubr.bf16.mxu0 0
      %10930 = vmatmul.mubr.bf16.gmra.mxu0 %v10236
      %v10931 = vpop.f32.mrf.mxu0
      %v10932 = vadd.f32 %v9671, %v10931
      %v10933 = vpop.f32.mrf.mxu0
      %v10934 = vpop.f32.mrf.mxu0
      %v10935 = vadd.f32 %v9671, %v10934
      %v10936 = vpop.f32.mrf.mxu0
      %10937 = vmatprep.mubr.bf16.mxu0 0
      %10938 = vmatmul.mubr.bf16.gmra.mxu0 %v10237
      %v10939 = vpop.f32.mrf.mxu0
      %v10940 = vadd.f32 %v9671, %v10939
      %v10941 = vpop.f32.mrf.mxu0
      %v10942 = vpop.f32.mrf.mxu0
      %v10943 = vadd.f32 %v9671, %v10942
      %v10944 = vpop.f32.mrf.mxu0
      %10945 = vmatprep.mubr.bf16.mxu0 0
      %10946 = vmatmul.mubr.bf16.gmra.mxu0 %v10238
      %v10947 = vpop.f32.mrf.mxu0
      %v10948 = vadd.f32 %v9671, %v10947
      %v10949 = vpop.f32.mrf.mxu0
      %v10950 = vpop.f32.mrf.mxu0
      %v10951 = vadd.f32 %v9671, %v10950
      %v10952 = vpop.f32.mrf.mxu0
      %10953 = vmatprep.mubr.bf16.mxu0 0
      %10954 = vmatmul.mubr.bf16.gmra.mxu0 %v10239
      %v10955 = vpop.f32.mrf.mxu0
      %v10956 = vadd.f32 %v9671, %v10955
      %v10957 = vpop.f32.mrf.mxu0
      %v10958 = vpop.f32.mrf.mxu0
      %v10959 = vadd.f32 %v9671, %v10958
      %v10960 = vpop.f32.mrf.mxu0
      %10961 = vmatprep.mubr.bf16.mxu0 0
      %10962 = vmatmul.mubr.bf16.gmra.mxu0 %v10240
      %v10963 = vpop.f32.mrf.mxu0
      %v10964 = vadd.f32 %v9671, %v10963
      %v10965 = vpop.f32.mrf.mxu0
      %v10966 = vpop.f32.mrf.mxu0
      %v10967 = vadd.f32 %v9671, %v10966
      %v10968 = vpop.f32.mrf.mxu0
      %10969 = vmatprep.mubr.bf16.mxu0 0
      %10970 = vmatmul.mubr.bf16.gmra.mxu0 %v10241
      %v10971 = vpop.f32.mrf.mxu0
      %v10972 = vadd.f32 %v9671, %v10971
      %v10973 = vpop.f32.mrf.mxu0
      %v10974 = vpop.f32.mrf.mxu0
      %v10975 = vadd.f32 %v9671, %v10974
      %v10976 = vpop.f32.mrf.mxu0
      %10977 = vmatprep.mubr.bf16.mxu0 0
      %10978 = vmatmul.mubr.bf16.gmra.mxu0 %v10242
      %v10979 = vpop.f32.mrf.mxu0
      %v10980 = vadd.f32 %v9671, %v10979
      %v10981 = vpop.f32.mrf.mxu0
      %v10982 = vpop.f32.mrf.mxu0
      %v10983 = vadd.f32 %v9671, %v10982
      %v10984 = vpop.f32.mrf.mxu0
      %10985 = vmatprep.mubr.bf16.mxu0 0
      %10986 = vmatmul.mubr.bf16.gmra.mxu0 %v10243
      %v10987 = vpop.f32.mrf.mxu0
      %v10988 = vadd.f32 %v9671, %v10987
      %v10989 = vpop.f32.mrf.mxu0
      %v10990 = vpop.f32.mrf.mxu0
      %v10991 = vadd.f32 %v9671, %v10990
      %v10992 = vpop.f32.mrf.mxu0
      %10993 = vmatprep.mubr.bf16.mxu0 0
      %10994 = vmatmul.mubr.bf16.gmra.mxu0 %v10244
      %v10995 = vpop.f32.mrf.mxu0
      %v10996 = vadd.f32 %v9671, %v10995
      %v10997 = vpop.f32.mrf.mxu0
      %v10998 = vpop.f32.mrf.mxu0
      %v10999 = vadd.f32 %v9671, %v10998
      %v11000 = vpop.f32.mrf.mxu0
      %11001 = vmatprep.mubr.bf16.mxu0 0
      %11002 = vmatmul.mubr.bf16.gmra.mxu0 %v10245
      %v11003 = vpop.f32.mrf.mxu0
      %v11004 = vadd.f32 %v9671, %v11003
      %v11005 = vpop.f32.mrf.mxu0
      %v11006 = vpop.f32.mrf.mxu0
      %v11007 = vadd.f32 %v9671, %v11006
      %v11008 = vpop.f32.mrf.mxu0
      %11009 = vmatprep.mubr.bf16.mxu0 0
      %11010 = vmatmul.mubr.bf16.gmra.mxu0 %v10246
      %v11011 = vpop.f32.mrf.mxu0
      %v11012 = vadd.f32 %v9671, %v11011
      %v11013 = vpop.f32.mrf.mxu0
      %v11014 = vpop.f32.mrf.mxu0
      %v11015 = vadd.f32 %v9671, %v11014
      %v11016 = vpop.f32.mrf.mxu0
      %11017 = vmatprep.mubr.bf16.mxu0 0
      %11018 = vmatmul.mubr.bf16.gmra.mxu0 %v10247
      %v11019 = vpop.f32.mrf.mxu0
      %v11020 = vadd.f32 %v9671, %v11019
      %v11021 = vpop.f32.mrf.mxu0
      %v11022 = vpop.f32.mrf.mxu0
      %v11023 = vadd.f32 %v9671, %v11022
      %v11024 = vpop.f32.mrf.mxu0
      %11025 = vmatprep.mubr.bf16.mxu0 0
      %11026 = vmatmul.mubr.bf16.gmra.mxu0 %v10248
      %v11027 = vpop.f32.mrf.mxu0
      %v11028 = vadd.f32 %v9671, %v11027
      %v11029 = vpop.f32.mrf.mxu0
      %v11030 = vpop.f32.mrf.mxu0
      %v11031 = vadd.f32 %v9671, %v11030
      %v11032 = vpop.f32.mrf.mxu0
      %11033 = vmatprep.mubr.bf16.mxu0 0
      %11034 = vmatmul.mubr.bf16.gmra.mxu0 %v10249
      %v11035 = vpop.f32.mrf.mxu0
      %v11036 = vadd.f32 %v9671, %v11035
      %v11037 = vpop.f32.mrf.mxu0
      %v11038 = vpop.f32.mrf.mxu0
      %v11039 = vadd.f32 %v9671, %v11038
      %v11040 = vpop.f32.mrf.mxu0
      %11041 = vmatprep.mubr.bf16.mxu0 0
      %11042 = vmatmul.mubr.bf16.gmra.mxu0 %v10250
      %v11043 = vpop.f32.mrf.mxu0
      %v11044 = vadd.f32 %v9671, %v11043
      %v11045 = vpop.f32.mrf.mxu0
      %v11046 = vpop.f32.mrf.mxu0
      %v11047 = vadd.f32 %v9671, %v11046
      %v11048 = vpop.f32.mrf.mxu0
      %11049 = vmatprep.mubr.bf16.mxu0 0
      %11050 = vmatmul.mubr.bf16.gmra.mxu0 %v10251
      %v11051 = vpop.f32.mrf.mxu0
      %v11052 = vadd.f32 %v9671, %v11051
      %v11053 = vpop.f32.mrf.mxu0
      %v11054 = vpop.f32.mrf.mxu0
      %v11055 = vadd.f32 %v9671, %v11054
      %v11056 = vpop.f32.mrf.mxu0
      %11057 = vmatprep.mubr.bf16.mxu0 0
      %11058 = vmatmul.mubr.bf16.gmra.mxu0 %v10252
      %v11059 = vpop.f32.mrf.mxu0
      %v11060 = vadd.f32 %v9671, %v11059
      %v11061 = vpop.f32.mrf.mxu0
      %v11062 = vpop.f32.mrf.mxu0
      %v11063 = vadd.f32 %v9671, %v11062
      %v11064 = vpop.f32.mrf.mxu0
      %11065 = vmatprep.mubr.bf16.mxu0 0
      %11066 = vmatmul.mubr.bf16.gmra.mxu0 %v10253
      %v11067 = vpop.f32.mrf.mxu0
      %v11068 = vadd.f32 %v9671, %v11067
      %v11069 = vpop.f32.mrf.mxu0
      %v11070 = vpop.f32.mrf.mxu0
      %v11071 = vadd.f32 %v9671, %v11070
      %v11072 = vpop.f32.mrf.mxu0
      %11073 = vmatprep.mubr.bf16.mxu0 0
      %11074 = vmatmul.mubr.bf16.gmra.mxu0 %v10254
      %v11075 = vpop.f32.mrf.mxu0
      %v11076 = vadd.f32 %v9671, %v11075
      %v11077 = vpop.f32.mrf.mxu0
      %v11078 = vpop.f32.mrf.mxu0
      %v11079 = vadd.f32 %v9671, %v11078
      %v11080 = vpop.f32.mrf.mxu0
      %11081 = vmatprep.mubr.bf16.mxu0 0
      %11082 = vmatmul.mubr.bf16.gmra.mxu0 %v10255
      %v11083 = vpop.f32.mrf.mxu0
      %v11084 = vadd.f32 %v9671, %v11083
      %v11085 = vpop.f32.mrf.mxu0
      %v11086 = vpop.f32.mrf.mxu0
      %v11087 = vadd.f32 %v9671, %v11086
      %v11088 = vpop.f32.mrf.mxu0
      %11089 = vmatprep.mubr.bf16.mxu0 0
      %11090 = vmatmul.mubr.bf16.gmra.mxu0 %v10256
      %v11091 = vpop.f32.mrf.mxu0
      %v11092 = vadd.f32 %v9671, %v11091
      %v11093 = vpop.f32.mrf.mxu0
      %v11094 = vpop.f32.mrf.mxu0
      %v11095 = vadd.f32 %v9671, %v11094
      %v11096 = vpop.f32.mrf.mxu0
      %11097 = vmatprep.mubr.bf16.mxu0 0
      %11098 = vmatmul.mubr.bf16.gmra.mxu0 %v10257
      %v11099 = vpop.f32.mrf.mxu0
      %v11100 = vadd.f32 %v9671, %v11099
      %v11101 = vpop.f32.mrf.mxu0
      %v11102 = vpop.f32.mrf.mxu0
      %v11103 = vadd.f32 %v9671, %v11102
      %v11104 = vpop.f32.mrf.mxu0
      %11105 = vmatprep.mubr.bf16.mxu0 0
      %11106 = vmatmul.mubr.bf16.gmra.mxu0 %v10258
      %v11107 = vpop.f32.mrf.mxu0
      %v11108 = vadd.f32 %v9671, %v11107
      %v11109 = vpop.f32.mrf.mxu0
      %v11110 = vpop.f32.mrf.mxu0
      %v11111 = vadd.f32 %v9671, %v11110
      %v11112 = vpop.f32.mrf.mxu0
      %11113 = vmatprep.mubr.bf16.mxu0 0
      %11114 = vmatmul.mubr.bf16.gmra.mxu0 %v10259
      %v11115 = vpop.f32.mrf.mxu0
      %v11116 = vadd.f32 %v9671, %v11115
      %v11117 = vpop.f32.mrf.mxu0
      %v11118 = vpop.f32.mrf.mxu0
      %v11119 = vadd.f32 %v9671, %v11118
      %v11120 = vpop.f32.mrf.mxu0
      %11121 = vmatprep.mubr.bf16.mxu0 0
      %11122 = vmatmul.mubr.bf16.gmra.mxu0 %v10260
      %v11123 = vpop.f32.mrf.mxu0
      %v11124 = vadd.f32 %v9671, %v11123
      %v11125 = vpop.f32.mrf.mxu0
      %v11126 = vpop.f32.mrf.mxu0
      %v11127 = vadd.f32 %v9671, %v11126
      %v11128 = vpop.f32.mrf.mxu0
      %11129 = vmatprep.mubr.bf16.mxu0 0
      %11130 = vmatmul.mubr.bf16.gmra.mxu0 %v10261
      %v11131 = vpop.f32.mrf.mxu0
      %v11132 = vadd.f32 %v9671, %v11131
      %v11133 = vpop.f32.mrf.mxu0
      %v11134 = vpop.f32.mrf.mxu0
      %v11135 = vadd.f32 %v9671, %v11134
      %v11136 = vpop.f32.mrf.mxu0
      %11137 = vmatprep.mubr.bf16.mxu0 0
      %11138 = vmatmul.mubr.bf16.gmra.mxu0 %v10262
      %v11139 = vpop.f32.mrf.mxu0
      %v11140 = vadd.f32 %v9671, %v11139
      %v11141 = vpop.f32.mrf.mxu0
      %v11142 = vpop.f32.mrf.mxu0
      %v11143 = vadd.f32 %v9671, %v11142
      %v11144 = vpop.f32.mrf.mxu0
      %11145 = vmatprep.mubr.bf16.mxu0 0
      %11146 = vmatmul.mubr.bf16.gmra.mxu0 %v10263
      %v11147 = vpop.f32.mrf.mxu0
      %v11148 = vadd.f32 %v9671, %v11147
      %v11149 = vpop.f32.mrf.mxu0
      %v11150 = vpop.f32.mrf.mxu0
      %v11151 = vadd.f32 %v9671, %v11150
      %v11152 = vpop.f32.mrf.mxu0
      %11153 = vmatprep.mubr.bf16.mxu0 0
      %11154 = vmatmul.mubr.bf16.gmra.mxu0 %v10264
      %v11155 = vpop.f32.mrf.mxu0
      %v11156 = vadd.f32 %v9671, %v11155
      %v11157 = vpop.f32.mrf.mxu0
      %v11158 = vpop.f32.mrf.mxu0
      %v11159 = vadd.f32 %v9671, %v11158
      %v11160 = vpop.f32.mrf.mxu0
      %11161 = vmatprep.mubr.bf16.mxu0 0
      %11162 = vmatmul.mubr.bf16.gmra.mxu0 %v10265
      %v11163 = vpop.f32.mrf.mxu0
      %v11164 = vadd.f32 %v9671, %v11163
      %v11165 = vpop.f32.mrf.mxu0
      %v11166 = vpop.f32.mrf.mxu0
      %v11167 = vadd.f32 %v9671, %v11166
      %v11168 = vpop.f32.mrf.mxu0
      %11169 = vmatprep.mubr.bf16.mxu0 0
      %11170 = vmatmul.mubr.bf16.gmra.mxu0 %v10266
      %v11171 = vpop.f32.mrf.mxu0
      %v11172 = vadd.f32 %v9671, %v11171
      %v11173 = vpop.f32.mrf.mxu0
      %v11174 = vpop.f32.mrf.mxu0
      %v11175 = vadd.f32 %v9671, %v11174
      %v11176 = vpop.f32.mrf.mxu0
      %11177 = vmatprep.mubr.bf16.mxu0 0
      %11178 = vmatmul.mubr.bf16.gmra.mxu0 %v10267
      %v11179 = vpop.f32.mrf.mxu0
      %v11180 = vadd.f32 %v9671, %v11179
      %v11181 = vpop.f32.mrf.mxu0
      %v11182 = vpop.f32.mrf.mxu0
      %v11183 = vadd.f32 %v9671, %v11182
      %v11184 = vpop.f32.mrf.mxu0
      %11185 = vmatprep.mubr.bf16.mxu0 0
      %11186 = vmatmul.mubr.bf16.gmra.mxu0 %v10268
      %v11187 = vpop.f32.mrf.mxu0
      %v11188 = vadd.f32 %v9671, %v11187
      %v11189 = vpop.f32.mrf.mxu0
      %v11190 = vpop.f32.mrf.mxu0
      %v11191 = vadd.f32 %v9671, %v11190
      %v11192 = vpop.f32.mrf.mxu0
      %11193 = vmatprep.mubr.bf16.mxu0 0
      %11194 = vmatmul.mubr.bf16.gmra.mxu0 %v10269
      %v11195 = vpop.f32.mrf.mxu0
      %v11196 = vadd.f32 %v9671, %v11195
      %v11197 = vpop.f32.mrf.mxu0
      %v11198 = vpop.f32.mrf.mxu0
      %v11199 = vadd.f32 %v9671, %v11198
      %v11200 = vpop.f32.mrf.mxu0
      %11201 = vmatprep.mubr.bf16.mxu0 0
      %11202 = vmatmul.mubr.bf16.gmra.mxu0 %v10270
      %v11203 = vpop.f32.mrf.mxu0
      %v11204 = vadd.f32 %v9671, %v11203
      %v11205 = vpop.f32.mrf.mxu0
      %v11206 = vpop.f32.mrf.mxu0
      %v11207 = vadd.f32 %v9671, %v11206
      %v11208 = vpop.f32.mrf.mxu0
      %11209 = vmatprep.mubr.bf16.mxu0 0
      %11210 = vmatmul.mubr.bf16.gmra.mxu0 %v10271
      %v11211 = vpop.f32.mrf.mxu0
      %v11212 = vadd.f32 %v9671, %v11211
      %v11213 = vpop.f32.mrf.mxu0
      %v11214 = vpop.f32.mrf.mxu0
      %v11215 = vadd.f32 %v9671, %v11214
      %v11216 = vpop.f32.mrf.mxu0
      %11217 = vmatprep.mubr.bf16.mxu0 0
      %11218 = vmatmul.mubr.bf16.gmra.mxu0 %v10272
      %v11219 = vpop.f32.mrf.mxu0
      %v11220 = vadd.f32 %v9671, %v11219
      %v11221 = vpop.f32.mrf.mxu0
      %v11222 = vpop.f32.mrf.mxu0
      %v11223 = vadd.f32 %v9671, %v11222
      %v11224 = vpop.f32.mrf.mxu0
      %11225 = vmatprep.mubr.bf16.mxu0 0
      %11226 = vmatmul.mubr.bf16.gmra.mxu0 %v10273
      %v11227 = vpop.f32.mrf.mxu0
      %v11228 = vadd.f32 %v9671, %v11227
      %v11229 = vpop.f32.mrf.mxu0
      %v11230 = vpop.f32.mrf.mxu0
      %v11231 = vadd.f32 %v9671, %v11230
      %v11232 = vpop.f32.mrf.mxu0
      %11233 = vmatprep.mubr.bf16.mxu0 0
      %11234 = vmatmul.mubr.bf16.gmra.mxu0 %v10274
      %v11235 = vpop.f32.mrf.mxu0
      %v11236 = vadd.f32 %v9671, %v11235
      %v11237 = vpop.f32.mrf.mxu0
      %v11238 = vpop.f32.mrf.mxu0
      %v11239 = vadd.f32 %v9671, %v11238
      %v11240 = vpop.f32.mrf.mxu0
      %11241 = vmatprep.mubr.bf16.mxu0 0
      %11242 = vmatmul.mubr.bf16.gmra.mxu0 %v10275
      %v11243 = vpop.f32.mrf.mxu0
      %v11244 = vadd.f32 %v9671, %v11243
      %v11245 = vpop.f32.mrf.mxu0
      %v11246 = vpop.f32.mrf.mxu0
      %v11247 = vadd.f32 %v9671, %v11246
      %v11248 = vpop.f32.mrf.mxu0
      %11249 = vmatprep.mubr.bf16.mxu0 0
      %11250 = vmatmul.mubr.bf16.gmra.mxu0 %v10276
      %v11251 = vpop.f32.mrf.mxu0
      %v11252 = vadd.f32 %v9671, %v11251
      %v11253 = vpop.f32.mrf.mxu0
      %v11254 = vpop.f32.mrf.mxu0
      %v11255 = vadd.f32 %v9671, %v11254
      %v11256 = vpop.f32.mrf.mxu0
      %11257 = vmatprep.mubr.bf16.mxu0 0
      %11258 = vmatmul.mubr.bf16.gmra.mxu0 %v10277
      %v11259 = vpop.f32.mrf.mxu0
      %v11260 = vadd.f32 %v9671, %v11259
      %v11261 = vpop.f32.mrf.mxu0
      %v11262 = vpop.f32.mrf.mxu0
      %v11263 = vadd.f32 %v9671, %v11262
      %v11264 = vpop.f32.mrf.mxu0
      %11265 = vmatprep.mubr.bf16.mxu0 0
      %11266 = vmatmul.mubr.bf16.gmra.mxu0 %v10278
      %v11267 = vpop.f32.mrf.mxu0
      %v11268 = vadd.f32 %v9671, %v11267
      %v11269 = vpop.f32.mrf.mxu0
      %v11270 = vpop.f32.mrf.mxu0
      %v11271 = vadd.f32 %v9671, %v11270
      %v11272 = vpop.f32.mrf.mxu0
      %11273 = vmatprep.mubr.bf16.mxu0 0
      %11274 = vmatmul.mubr.bf16.gmra.mxu0 %v10279
      %v11275 = vpop.f32.mrf.mxu0
      %v11276 = vadd.f32 %v9671, %v11275
      %v11277 = vpop.f32.mrf.mxu0
      %v11278 = vpop.f32.mrf.mxu0
      %v11279 = vadd.f32 %v9671, %v11278
      %v11280 = vpop.f32.mrf.mxu0
      %11281 = vmatprep.mubr.bf16.mxu0 0
      %11282 = vmatmul.mubr.bf16.gmra.mxu0 %v10280
      %v11283 = vpop.f32.mrf.mxu0
      %v11284 = vadd.f32 %v9671, %v11283
      %v11285 = vpop.f32.mrf.mxu0
      %v11286 = vpop.f32.mrf.mxu0
      %v11287 = vadd.f32 %v9671, %v11286
      %v11288 = vpop.f32.mrf.mxu0
      %11289 = vmatprep.mubr.bf16.mxu0 0
      %11290 = vmatmul.mubr.bf16.gmra.mxu0 %v10281
      %v11291 = vpop.f32.mrf.mxu0
      %v11292 = vadd.f32 %v9671, %v11291
      %v11293 = vpop.f32.mrf.mxu0
      %v11294 = vpop.f32.mrf.mxu0
      %v11295 = vadd.f32 %v9671, %v11294
      %v11296 = vpop.f32.mrf.mxu0
      %11297 = vmatprep.mubr.bf16.mxu0 0
      %11298 = vmatmul.mubr.bf16.gmra.mxu0 %v10282
      %v11299 = vpop.f32.mrf.mxu0
      %v11300 = vadd.f32 %v9671, %v11299
      %v11301 = vpop.f32.mrf.mxu0
      %v11302 = vpop.f32.mrf.mxu0
      %v11303 = vadd.f32 %v9671, %v11302
      %v11304 = vpop.f32.mrf.mxu0
      %11305 = vmatprep.mubr.bf16.mxu0 0
      %11306 = vmatmul.mubr.bf16.gmra.mxu0 %v10283
      %v11307 = vpop.f32.mrf.mxu0
      %v11308 = vadd.f32 %v9671, %v11307
      %v11309 = vpop.f32.mrf.mxu0
      %v11310 = vpop.f32.mrf.mxu0
      %v11311 = vadd.f32 %v9671, %v11310
      %v11312 = vpop.f32.mrf.mxu0
      %11313 = vmatprep.mubr.bf16.mxu0 0
      %11314 = vmatmul.mubr.bf16.gmra.mxu0 %v10284
      %v11315 = vpop.f32.mrf.mxu0
      %v11316 = vadd.f32 %v9671, %v11315
      %v11317 = vpop.f32.mrf.mxu0
      %v11318 = vpop.f32.mrf.mxu0
      %v11319 = vadd.f32 %v9671, %v11318
      %v11320 = vpop.f32.mrf.mxu0
      %11321 = vmatprep.mubr.bf16.mxu0 0
      %11322 = vmatmul.mubr.bf16.gmra.mxu0 %v10285
      %v11323 = vpop.f32.mrf.mxu0
      %v11324 = vadd.f32 %v9671, %v11323
      %v11325 = vpop.f32.mrf.mxu0
      %v11326 = vpop.f32.mrf.mxu0
      %v11327 = vadd.f32 %v9671, %v11326
      %v11328 = vpop.f32.mrf.mxu0
      %11329 = vmatprep.mubr.bf16.mxu0 0
      %11330 = vmatmul.mubr.bf16.gmra.mxu0 %v10286
      %v11331 = vpop.f32.mrf.mxu0
      %v11332 = vadd.f32 %v9671, %v11331
      %v11333 = vpop.f32.mrf.mxu0
      %v11334 = vpop.f32.mrf.mxu0
      %v11335 = vadd.f32 %v9671, %v11334
      %v11336 = vpop.f32.mrf.mxu0
      %11337 = vmatprep.mubr.bf16.mxu0 0
      %11338 = vmatmul.mubr.bf16.gmra.mxu0 %v10287
      %v11339 = vpop.f32.mrf.mxu0
      %v11340 = vadd.f32 %v9671, %v11339
      %v11341 = vpop.f32.mrf.mxu0
      %v11342 = vpop.f32.mrf.mxu0
      %v11343 = vadd.f32 %v9671, %v11342
      %v11344 = vpop.f32.mrf.mxu0
      %11345 = vmatprep.mubr.bf16.mxu0 0
      %11346 = vmatmul.mubr.bf16.gmra.mxu0 %v10288
      %v11347 = vpop.f32.mrf.mxu0
      %v11348 = vadd.f32 %v9671, %v11347
      %v11349 = vpop.f32.mrf.mxu0
      %v11350 = vpop.f32.mrf.mxu0
      %v11351 = vadd.f32 %v9671, %v11350
      %v11352 = vpop.f32.mrf.mxu0
      %11353 = vmatprep.mubr.bf16.mxu0 0
      %11354 = vmatmul.mubr.bf16.gmra.mxu0 %v10289
      %v11355 = vpop.f32.mrf.mxu0
      %v11356 = vadd.f32 %v9671, %v11355
      %v11357 = vpop.f32.mrf.mxu0
      %v11358 = vpop.f32.mrf.mxu0
      %v11359 = vadd.f32 %v9671, %v11358
      %v11360 = vpop.f32.mrf.mxu0
      %11361 = vmatprep.mubr.bf16.mxu0 0
      %11362 = vmatmul.mubr.bf16.gmra.mxu0 %v10290
      %v11363 = vpop.f32.mrf.mxu0
      %v11364 = vadd.f32 %v9671, %v11363
      %v11365 = vpop.f32.mrf.mxu0
      %v11366 = vpop.f32.mrf.mxu0
      %v11367 = vadd.f32 %v9671, %v11366
      %v11368 = vpop.f32.mrf.mxu0
      %11369 = vmatprep.mubr.bf16.mxu0 0
      %11370 = vmatmul.mubr.bf16.gmra.mxu0 %v10291
      %v11371 = vpop.f32.mrf.mxu0
      %v11372 = vadd.f32 %v9671, %v11371
      %v11373 = vpop.f32.mrf.mxu0
      %v11374 = vpop.f32.mrf.mxu0
      %v11375 = vadd.f32 %v9671, %v11374
      %v11376 = vpop.f32.mrf.mxu0
      %11377 = vmatprep.mubr.bf16.mxu0 0
      %11378 = vmatmul.mubr.bf16.gmra.mxu0 %v10292
      %v11379 = vpop.f32.mrf.mxu0
      %v11380 = vadd.f32 %v9671, %v11379
      %v11381 = vpop.f32.mrf.mxu0
      %v11382 = vpop.f32.mrf.mxu0
      %v11383 = vadd.f32 %v9671, %v11382
      %v11384 = vpop.f32.mrf.mxu0
      %11385 = vmatprep.mubr.bf16.mxu0 0
      %11386 = vmatmul.mubr.bf16.gmra.mxu0 %v10293
      %v11387 = vpop.f32.mrf.mxu0
      %v11388 = vadd.f32 %v9671, %v11387
      %v11389 = vpop.f32.mrf.mxu0
      %v11390 = vpop.f32.mrf.mxu0
      %v11391 = vadd.f32 %v9671, %v11390
      %v11392 = vpop.f32.mrf.mxu0
      %11393 = vmatprep.mubr.bf16.mxu0 0
      %11394 = vmatmul.mubr.bf16.gmra.mxu0 %v10294
      %v11395 = vpop.f32.mrf.mxu0
      %v11396 = vadd.f32 %v9671, %v11395
      %v11397 = vpop.f32.mrf.mxu0
      %v11398 = vpop.f32.mrf.mxu0
      %v11399 = vadd.f32 %v9671, %v11398
      %v11400 = vpop.f32.mrf.mxu0
      %11401 = vmatprep.mubr.bf16.mxu0 0
      %11402 = vmatmul.mubr.bf16.gmra.mxu0 %v10295
      %v11403 = vpop.f32.mrf.mxu0
      %v11404 = vadd.f32 %v9671, %v11403
      %v11405 = vpop.f32.mrf.mxu0
      %v11406 = vpop.f32.mrf.mxu0
      %v11407 = vadd.f32 %v9671, %v11406
      %v11408 = vpop.f32.mrf.mxu0
      %11409 = vmatprep.mubr.bf16.mxu0 0
      %11410 = vmatmul.mubr.bf16.gmra.mxu0 %v10296
      %v11411 = vpop.f32.mrf.mxu0
      %v11412 = vadd.f32 %v9671, %v11411
      %v11413 = vpop.f32.mrf.mxu0
      %v11414 = vpop.f32.mrf.mxu0
      %v11415 = vadd.f32 %v9671, %v11414
      %v11416 = vpop.f32.mrf.mxu0
      %11417 = vmatprep.mubr.bf16.mxu0 0
      %11418 = vmatmul.mubr.bf16.gmra.mxu0 %v10297
      %v11419 = vpop.f32.mrf.mxu0
      %v11420 = vadd.f32 %v9671, %v11419
      %v11421 = vpop.f32.mrf.mxu0
      %v11422 = vpop.f32.mrf.mxu0
      %v11423 = vadd.f32 %v9671, %v11422
      %v11424 = vpop.f32.mrf.mxu0
      %11425 = vmatprep.mubr.bf16.mxu0 0
      %11426 = vmatmul.mubr.bf16.gmra.mxu0 %v10298
      %v11427 = vpop.f32.mrf.mxu0
      %v11428 = vadd.f32 %v9671, %v11427
      %v11429 = vpop.f32.mrf.mxu0
      %v11430 = vpop.f32.mrf.mxu0
      %v11431 = vadd.f32 %v9671, %v11430
      %v11432 = vpop.f32.mrf.mxu0
      %11433 = vmatprep.mubr.bf16.mxu0 0
      %11434 = vmatmul.mubr.bf16.gmra.mxu0 %v10299
      %v11435 = vpop.f32.mrf.mxu0
      %v11436 = vadd.f32 %v9671, %v11435
      %v11437 = vpop.f32.mrf.mxu0
      %v11438 = vpop.f32.mrf.mxu0
      %v11439 = vadd.f32 %v9671, %v11438
      %v11440 = vpop.f32.mrf.mxu0
      %11441 = vmatprep.mubr.bf16.mxu0 0
      %11442 = vmatmul.mubr.bf16.gmra.mxu0 %v10300
      %v11443 = vpop.f32.mrf.mxu0
      %v11444 = vadd.f32 %v9671, %v11443
      %v11445 = vpop.f32.mrf.mxu0
      %v11446 = vpop.f32.mrf.mxu0
      %v11447 = vadd.f32 %v9671, %v11446
      %v11448 = vpop.f32.mrf.mxu0
      %11449 = vmatprep.mubr.bf16.mxu0 0
      %11450 = vmatmul.mubr.bf16.gmra.mxu0 %v10301
      %v11451 = vpop.f32.mrf.mxu0
      %v11452 = vadd.f32 %v9671, %v11451
      %v11453 = vpop.f32.mrf.mxu0
      %v11454 = vpop.f32.mrf.mxu0
      %v11455 = vadd.f32 %v9671, %v11454
      %v11456 = vpop.f32.mrf.mxu0
      %11457 = vmatprep.mubr.bf16.mxu0 0
      %11458 = vmatmul.mubr.bf16.gmra.mxu0 %v10302
      %v11459 = vpop.f32.mrf.mxu0
      %v11460 = vadd.f32 %v9671, %v11459
      %v11461 = vpop.f32.mrf.mxu0
      %v11462 = vpop.f32.mrf.mxu0
      %v11463 = vadd.f32 %v9671, %v11462
      %v11464 = vpop.f32.mrf.mxu0
      %11465 = vmatprep.mubr.bf16.mxu0 0
      %11466 = vmatmul.mubr.bf16.gmra.mxu0 %v10303
      %v11467 = vpop.f32.mrf.mxu0
      %v11468 = vadd.f32 %v9671, %v11467
      %v11469 = vpop.f32.mrf.mxu0
      %v11470 = vpop.f32.mrf.mxu0
      %v11471 = vadd.f32 %v9671, %v11470
      %v11472 = vpop.f32.mrf.mxu0
      %11473 = vmatprep.mubr.bf16.mxu0 0
      %11474 = vmatmul.mubr.bf16.gmra.mxu0 %v10304
      %v11475 = vpop.f32.mrf.mxu0
      %v11476 = vadd.f32 %v9671, %v11475
      %v11477 = vpop.f32.mrf.mxu0
      %v11478 = vpop.f32.mrf.mxu0
      %v11479 = vadd.f32 %v9671, %v11478
      %v11480 = vpop.f32.mrf.mxu0
      %11481 = vmatprep.mubr.bf16.mxu0 0
      %11482 = vmatmul.mubr.bf16.gmra.mxu0 %v10305
      %v11483 = vpop.f32.mrf.mxu0
      %v11484 = vadd.f32 %v9671, %v11483
      %v11485 = vpop.f32.mrf.mxu0
      %v11486 = vpop.f32.mrf.mxu0
      %v11487 = vadd.f32 %v9671, %v11486
      %v11488 = vpop.f32.mrf.mxu0
      %11489 = vmatprep.mubr.bf16.mxu0 0
      %11490 = vmatmul.mubr.bf16.gmra.mxu0 %v10306
      %v11491 = vpop.f32.mrf.mxu0
      %v11492 = vadd.f32 %v9671, %v11491
      %v11493 = vpop.f32.mrf.mxu0
      %v11494 = vpop.f32.mrf.mxu0
      %v11495 = vadd.f32 %v9671, %v11494
      %v11496 = vpop.f32.mrf.mxu0
      %11497 = vmatprep.mubr.bf16.mxu0 0
      %11498 = vmatmul.mubr.bf16.gmra.mxu0 %v10307
      %v11499 = vpop.f32.mrf.mxu0
      %v11500 = vadd.f32 %v9671, %v11499
      %v11501 = vpop.f32.mrf.mxu0
      %v11502 = vpop.f32.mrf.mxu0
      %v11503 = vadd.f32 %v9671, %v11502
      %v11504 = vpop.f32.mrf.mxu0
      %11505 = vmatprep.mubr.bf16.mxu0 0
      %11506 = vmatmul.mubr.bf16.gmra.mxu0 %v10308
      %v11507 = vpop.f32.mrf.mxu0
      %v11508 = vadd.f32 %v9671, %v11507
      %v11509 = vpop.f32.mrf.mxu0
      %v11510 = vpop.f32.mrf.mxu0
      %v11511 = vadd.f32 %v9671, %v11510
      %v11512 = vpop.f32.mrf.mxu0
      %11513 = vmatprep.mubr.bf16.mxu0 0
      %11514 = vmatmul.mubr.bf16.gmra.mxu0 %v10309
      %v11515 = vpop.f32.mrf.mxu0
      %v11516 = vadd.f32 %v9671, %v11515
      %v11517 = vpop.f32.mrf.mxu0
      %v11518 = vpop.f32.mrf.mxu0
      %v11519 = vadd.f32 %v9671, %v11518
      %v11520 = vpop.f32.mrf.mxu0
      %11521 = vmatprep.mubr.bf16.mxu0 0
      %11522 = vmatmul.mubr.bf16.gmra.mxu0 %v10310
      %v11523 = vpop.f32.mrf.mxu0
      %v11524 = vadd.f32 %v9671, %v11523
      %v11525 = vpop.f32.mrf.mxu0
      %v11526 = vpop.f32.mrf.mxu0
      %v11527 = vadd.f32 %v9671, %v11526
      %v11528 = vpop.f32.mrf.mxu0
      %11529 = vmatprep.mubr.bf16.mxu0 0
      %11530 = vmatmul.mubr.bf16.gmra.mxu0 %v10311
      %v11531 = vpop.f32.mrf.mxu0
      %v11532 = vadd.f32 %v9671, %v11531
      %v11533 = vpop.f32.mrf.mxu0
      %v11534 = vpop.f32.mrf.mxu0
      %v11535 = vadd.f32 %v9671, %v11534
      %v11536 = vpop.f32.mrf.mxu0
      %11537 = vmatprep.mubr.bf16.mxu0 0
      %11538 = vmatmul.mubr.bf16.gmra.mxu0 %v10312
      %v11539 = vpop.f32.mrf.mxu0
      %v11540 = vadd.f32 %v9671, %v11539
      %v11541 = vpop.f32.mrf.mxu0
      %v11542 = vpop.f32.mrf.mxu0
      %v11543 = vadd.f32 %v9671, %v11542
      %v11544 = vpop.f32.mrf.mxu0
      %11545 = vdwg.mxu0
      %v11546 = vtanh.pop %v10524
      %v11547 = vtanh.pop %v10527
      %v11548 = vtanh.pop %v10532
      %v11549 = vtanh.pop %v10535
      %v11550 = vtanh.pop %v10540
      %v11551 = vtanh.pop %v10543
      %v11552 = vtanh.pop %v10548
      %v11553 = vtanh.pop %v10551
      %v11554 = vtanh.pop %v10556
      %v11555 = vtanh.pop %v10559
      %v11556 = vtanh.pop %v10564
      %v11557 = vtanh.pop %v10567
      %v11558 = vtanh.pop %v10572
      %v11559 = vtanh.pop %v10575
      %v11560 = vtanh.pop %v10580
      %v11561 = vtanh.pop %v10583
      %v11562 = vtanh.pop %v10588
      %v11563 = vtanh.pop %v10591
      %v11564 = vtanh.pop %v10596
      %v11565 = vtanh.pop %v10599
      %v11566 = vtanh.pop %v10604
      %v11567 = vtanh.pop %v10607
      %v11568 = vtanh.pop %v10612
      %v11569 = vtanh.pop %v10615
      %v11570 = vtanh.pop %v10620
      %v11571 = vtanh.pop %v10623
      %v11572 = vtanh.pop %v10628
      %v11573 = vtanh.pop %v10631
      %v11574 = vtanh.pop %v10636
      %v11575 = vtanh.pop %v10639
      %v11576 = vtanh.pop %v10644
      %v11577 = vtanh.pop %v10647
      %v11578 = vtanh.pop %v10652
      %v11579 = vtanh.pop %v10655
      %v11580 = vtanh.pop %v10660
      %v11581 = vtanh.pop %v10663
      %v11582 = vtanh.pop %v10668
      %v11583 = vtanh.pop %v10671
      %v11584 = vtanh.pop %v10676
      %v11585 = vtanh.pop %v10679
      %v11586 = vtanh.pop %v10684
      %v11587 = vtanh.pop %v10687
      %v11588 = vtanh.pop %v10692
      %v11589 = vtanh.pop %v10695
      %v11590 = vtanh.pop %v10700
      %v11591 = vtanh.pop %v10703
      %v11592 = vtanh.pop %v10708
      %v11593 = vtanh.pop %v10711
      %v11594 = vtanh.pop %v10716
      %v11595 = vtanh.pop %v10719
      %v11596 = vtanh.pop %v10724
      %v11597 = vtanh.pop %v10727
      %v11598 = vtanh.pop %v10732
      %v11599 = vtanh.pop %v10735
      %v11600 = vtanh.pop %v10740
      %v11601 = vtanh.pop %v10743
      %v11602 = vtanh.pop %v10748
      %v11603 = vtanh.pop %v10751
      %v11604 = vtanh.pop %v10756
      %v11605 = vtanh.pop %v10759
      %v11606 = vtanh.pop %v10764
      %v11607 = vtanh.pop %v10767
      %v11608 = vtanh.pop %v10772
      %v11609 = vtanh.pop %v10775
      %v11610 = vtanh.pop %v10780
      %v11611 = vtanh.pop %v10783
      %v11612 = vtanh.pop %v10788
      %v11613 = vtanh.pop %v10791
      %v11614 = vtanh.pop %v10796
      %v11615 = vtanh.pop %v10799
      %v11616 = vtanh.pop %v10804
      %v11617 = vtanh.pop %v10807
      %v11618 = vtanh.pop %v10812
      %v11619 = vtanh.pop %v10815
      %v11620 = vtanh.pop %v10820
      %v11621 = vtanh.pop %v10823
      %v11622 = vtanh.pop %v10828
      %v11623 = vtanh.pop %v10831
      %v11624 = vtanh.pop %v10836
      %v11625 = vtanh.pop %v10839
      %v11626 = vtanh.pop %v10844
      %v11627 = vtanh.pop %v10847
      %v11628 = vtanh.pop %v10852
      %v11629 = vtanh.pop %v10855
      %v11630 = vtanh.pop %v10860
      %v11631 = vtanh.pop %v10863
      %v11632 = vtanh.pop %v10868
      %v11633 = vtanh.pop %v10871
      %v11634 = vtanh.pop %v10876
      %v11635 = vtanh.pop %v10879
      %v11636 = vtanh.pop %v10884
      %v11637 = vtanh.pop %v10887
      %v11638 = vtanh.pop %v10892
      %v11639 = vtanh.pop %v10895
      %v11640 = vtanh.pop %v10900
      %v11641 = vtanh.pop %v10903
      %v11642 = vtanh.pop %v10908
      %v11643 = vtanh.pop %v10911
      %v11644 = vtanh.pop %v10916
      %v11645 = vtanh.pop %v10919
      %v11646 = vtanh.pop %v10924
      %v11647 = vtanh.pop %v10927
      %v11648 = vtanh.pop %v10932
      %v11649 = vtanh.pop %v10935
      %v11650 = vtanh.pop %v10940
      %v11651 = vtanh.pop %v10943
      %v11652 = vtanh.pop %v10948
      %v11653 = vtanh.pop %v10951
      %v11654 = vtanh.pop %v10956
      %v11655 = vtanh.pop %v10959
      %v11656 = vtanh.pop %v10964
      %v11657 = vtanh.pop %v10967
      %v11658 = vtanh.pop %v10972
      %v11659 = vtanh.pop %v10975
      %v11660 = vtanh.pop %v10980
      %v11661 = vtanh.pop %v10983
      %v11662 = vtanh.pop %v10988
      %v11663 = vtanh.pop %v10991
      %v11664 = vtanh.pop %v10996
      %v11665 = vtanh.pop %v10999
      %v11666 = vtanh.pop %v11004
      %v11667 = vtanh.pop %v11007
      %v11668 = vtanh.pop %v11012
      %v11669 = vtanh.pop %v11015
      %v11670 = vtanh.pop %v11020
      %v11671 = vtanh.pop %v11023
      %v11672 = vtanh.pop %v11028
      %v11673 = vtanh.pop %v11031
      %v11674 = vtanh.pop %v11036
      %v11675 = vtanh.pop %v11039
      %v11676 = vtanh.pop %v11044
      %v11677 = vtanh.pop %v11047
      %v11678 = vtanh.pop %v11052
      %v11679 = vtanh.pop %v11055
      %v11680 = vtanh.pop %v11060
      %v11681 = vtanh.pop %v11063
      %v11682 = vtanh.pop %v11068
      %v11683 = vtanh.pop %v11071
      %v11684 = vtanh.pop %v11076
      %v11685 = vtanh.pop %v11079
      %v11686 = vtanh.pop %v11084
      %v11687 = vtanh.pop %v11087
      %v11688 = vtanh.pop %v11092
      %v11689 = vtanh.pop %v11095
      %v11690 = vtanh.pop %v11100
      %v11691 = vtanh.pop %v11103
      %v11692 = vtanh.pop %v11108
      %v11693 = vtanh.pop %v11111
      %v11694 = vtanh.pop %v11116
      %v11695 = vtanh.pop %v11119
      %v11696 = vtanh.pop %v11124
      %v11697 = vtanh.pop %v11127
      %v11698 = vtanh.pop %v11132
      %v11699 = vtanh.pop %v11135
      %v11700 = vtanh.pop %v11140
      %v11701 = vtanh.pop %v11143
      %v11702 = vtanh.pop %v11148
      %v11703 = vtanh.pop %v11151
      %v11704 = vtanh.pop %v11156
      %v11705 = vtanh.pop %v11159
      %v11706 = vtanh.pop %v11164
      %v11707 = vtanh.pop %v11167
      %v11708 = vtanh.pop %v11172
      %v11709 = vtanh.pop %v11175
      %v11710 = vtanh.pop %v11180
      %v11711 = vtanh.pop %v11183
      %v11712 = vtanh.pop %v11188
      %v11713 = vtanh.pop %v11191
      %v11714 = vtanh.pop %v11196
      %v11715 = vtanh.pop %v11199
      %v11716 = vtanh.pop %v11204
      %v11717 = vtanh.pop %v11207
      %v11718 = vtanh.pop %v11212
      %v11719 = vtanh.pop %v11215
      %v11720 = vtanh.pop %v11220
      %v11721 = vtanh.pop %v11223
      %v11722 = vtanh.pop %v11228
      %v11723 = vtanh.pop %v11231
      %v11724 = vtanh.pop %v11236
      %v11725 = vtanh.pop %v11239
      %v11726 = vtanh.pop %v11244
      %v11727 = vtanh.pop %v11247
      %v11728 = vtanh.pop %v11252
      %v11729 = vtanh.pop %v11255
      %v11730 = vtanh.pop %v11260
      %v11731 = vtanh.pop %v11263
      %v11732 = vtanh.pop %v11268
      %v11733 = vtanh.pop %v11271
      %v11734 = vtanh.pop %v11276
      %v11735 = vtanh.pop %v11279
      %v11736 = vtanh.pop %v11284
      %v11737 = vtanh.pop %v11287
      %v11738 = vtanh.pop %v11292
      %v11739 = vtanh.pop %v11295
      %v11740 = vtanh.pop %v11300
      %v11741 = vtanh.pop %v11303
      %v11742 = vtanh.pop %v11308
      %v11743 = vtanh.pop %v11311
      %v11744 = vtanh.pop %v11316
      %v11745 = vtanh.pop %v11319
      %v11746 = vtanh.pop %v11324
      %v11747 = vtanh.pop %v11327
      %v11748 = vtanh.pop %v11332
      %v11749 = vtanh.pop %v11335
      %v11750 = vtanh.pop %v11340
      %v11751 = vtanh.pop %v11343
      %v11752 = vtanh.pop %v11348
      %v11753 = vtanh.pop %v11351
      %v11754 = vtanh.pop %v11356
      %v11755 = vtanh.pop %v11359
      %v11756 = vtanh.pop %v11364
      %v11757 = vtanh.pop %v11367
      %v11758 = vtanh.pop %v11372
      %v11759 = vtanh.pop %v11375
      %v11760 = vtanh.pop %v11380
      %v11761 = vtanh.pop %v11383
      %v11762 = vtanh.pop %v11388
      %v11763 = vtanh.pop %v11391
      %v11764 = vtanh.pop %v11396
      %v11765 = vtanh.pop %v11399
      %v11766 = vtanh.pop %v11404
      %v11767 = vtanh.pop %v11407
      %v11768 = vtanh.pop %v11412
      %v11769 = vtanh.pop %v11415
      %v11770 = vtanh.pop %v11420
      %v11771 = vtanh.pop %v11423
      %v11772 = vtanh.pop %v11428
      %v11773 = vtanh.pop %v11431
      %v11774 = vtanh.pop %v11436
      %v11775 = vtanh.pop %v11439
      %v11776 = vtanh.pop %v11444
      %v11777 = vtanh.pop %v11447
      %v11778 = vtanh.pop %v11452
      %v11779 = vtanh.pop %v11455
      %v11780 = vtanh.pop %v11460
      %v11781 = vtanh.pop %v11463
      %v11782 = vtanh.pop %v11468
      %v11783 = vtanh.pop %v11471
      %v11784 = vtanh.pop %v11476
      %v11785 = vtanh.pop %v11479
      %v11786 = vtanh.pop %v11484
      %v11787 = vtanh.pop %v11487
      %v11788 = vtanh.pop %v11492
      %v11789 = vtanh.pop %v11495
      %v11790 = vtanh.pop %v11500
      %v11791 = vtanh.pop %v11503
      %v11792 = vtanh.pop %v11508
      %v11793 = vtanh.pop %v11511
      %v11794 = vtanh.pop %v11516
      %v11795 = vtanh.pop %v11519
      %v11796 = vtanh.pop %v11524
      %v11797 = vtanh.pop %v11527
      %v11798 = vtanh.pop %v11532
      %v11799 = vtanh.pop %v11535
      %v11800 = vtanh.pop %v11540
      %v11801 = vtanh.pop %v11543
      %v11802 = vpack.c.bf16 %v11547, %v11546
      %v11803 = vpack.c.bf16 %v11549, %v11548
      %v11804 = vpack.c.bf16 %v11551, %v11550
      %v11805 = vpack.c.bf16 %v11553, %v11552
      %v11806 = vpack.c.bf16 %v11555, %v11554
      %v11807 = vpack.c.bf16 %v11557, %v11556
      %v11808 = vpack.c.bf16 %v11559, %v11558
      %v11809 = vpack.c.bf16 %v11561, %v11560
      %v11810 = vpack.c.bf16 %v11563, %v11562
      %v11811 = vpack.c.bf16 %v11565, %v11564
      %v11812 = vpack.c.bf16 %v11567, %v11566
      %v11813 = vpack.c.bf16 %v11569, %v11568
      %v11814 = vpack.c.bf16 %v11571, %v11570
      %v11815 = vpack.c.bf16 %v11573, %v11572
      %v11816 = vpack.c.bf16 %v11575, %v11574
      %v11817 = vpack.c.bf16 %v11577, %v11576
      %v11818 = vpack.c.bf16 %v11579, %v11578
      %v11819 = vpack.c.bf16 %v11581, %v11580
      %v11820 = vpack.c.bf16 %v11583, %v11582
      %v11821 = vpack.c.bf16 %v11585, %v11584
      %v11822 = vpack.c.bf16 %v11587, %v11586
      %v11823 = vpack.c.bf16 %v11589, %v11588
      %v11824 = vpack.c.bf16 %v11591, %v11590
      %v11825 = vpack.c.bf16 %v11593, %v11592
      %v11826 = vpack.c.bf16 %v11595, %v11594
      %v11827 = vpack.c.bf16 %v11597, %v11596
      %v11828 = vpack.c.bf16 %v11599, %v11598
      %v11829 = vpack.c.bf16 %v11601, %v11600
      %v11830 = vpack.c.bf16 %v11603, %v11602
      %v11831 = vpack.c.bf16 %v11605, %v11604
      %v11832 = vpack.c.bf16 %v11607, %v11606
      %v11833 = vpack.c.bf16 %v11609, %v11608
      %v11834 = vpack.c.bf16 %v11611, %v11610
      %v11835 = vpack.c.bf16 %v11613, %v11612
      %v11836 = vpack.c.bf16 %v11615, %v11614
      %v11837 = vpack.c.bf16 %v11617, %v11616
      %v11838 = vpack.c.bf16 %v11619, %v11618
      %v11839 = vpack.c.bf16 %v11621, %v11620
      %v11840 = vpack.c.bf16 %v11623, %v11622
      %v11841 = vpack.c.bf16 %v11625, %v11624
      %v11842 = vpack.c.bf16 %v11627, %v11626
      %v11843 = vpack.c.bf16 %v11629, %v11628
      %v11844 = vpack.c.bf16 %v11631, %v11630
      %v11845 = vpack.c.bf16 %v11633, %v11632
      %v11846 = vpack.c.bf16 %v11635, %v11634
      %v11847 = vpack.c.bf16 %v11637, %v11636
      %v11848 = vpack.c.bf16 %v11639, %v11638
      %v11849 = vpack.c.bf16 %v11641, %v11640
      %v11850 = vpack.c.bf16 %v11643, %v11642
      %v11851 = vpack.c.bf16 %v11645, %v11644
      %v11852 = vpack.c.bf16 %v11647, %v11646
      %v11853 = vpack.c.bf16 %v11649, %v11648
      %v11854 = vpack.c.bf16 %v11651, %v11650
      %v11855 = vpack.c.bf16 %v11653, %v11652
      %v11856 = vpack.c.bf16 %v11655, %v11654
      %v11857 = vpack.c.bf16 %v11657, %v11656
      %v11858 = vpack.c.bf16 %v11659, %v11658
      %v11859 = vpack.c.bf16 %v11661, %v11660
      %v11860 = vpack.c.bf16 %v11663, %v11662
      %v11861 = vpack.c.bf16 %v11665, %v11664
      %v11862 = vpack.c.bf16 %v11667, %v11666
      %v11863 = vpack.c.bf16 %v11669, %v11668
      %v11864 = vpack.c.bf16 %v11671, %v11670
      %v11865 = vpack.c.bf16 %v11673, %v11672
      %v11866 = vpack.c.bf16 %v11675, %v11674
      %v11867 = vpack.c.bf16 %v11677, %v11676
      %v11868 = vpack.c.bf16 %v11679, %v11678
      %v11869 = vpack.c.bf16 %v11681, %v11680
      %v11870 = vpack.c.bf16 %v11683, %v11682
      %v11871 = vpack.c.bf16 %v11685, %v11684
      %v11872 = vpack.c.bf16 %v11687, %v11686
      %v11873 = vpack.c.bf16 %v11689, %v11688
      %v11874 = vpack.c.bf16 %v11691, %v11690
      %v11875 = vpack.c.bf16 %v11693, %v11692
      %v11876 = vpack.c.bf16 %v11695, %v11694
      %v11877 = vpack.c.bf16 %v11697, %v11696
      %v11878 = vpack.c.bf16 %v11699, %v11698
      %v11879 = vpack.c.bf16 %v11701, %v11700
      %v11880 = vpack.c.bf16 %v11703, %v11702
      %v11881 = vpack.c.bf16 %v11705, %v11704
      %v11882 = vpack.c.bf16 %v11707, %v11706
      %v11883 = vpack.c.bf16 %v11709, %v11708
      %v11884 = vpack.c.bf16 %v11711, %v11710
      %v11885 = vpack.c.bf16 %v11713, %v11712
      %v11886 = vpack.c.bf16 %v11715, %v11714
      %v11887 = vpack.c.bf16 %v11717, %v11716
      %v11888 = vpack.c.bf16 %v11719, %v11718
      %v11889 = vpack.c.bf16 %v11721, %v11720
      %v11890 = vpack.c.bf16 %v11723, %v11722
      %v11891 = vpack.c.bf16 %v11725, %v11724
      %v11892 = vpack.c.bf16 %v11727, %v11726
      %v11893 = vpack.c.bf16 %v11729, %v11728
      %v11894 = vpack.c.bf16 %v11731, %v11730
      %v11895 = vpack.c.bf16 %v11733, %v11732
      %v11896 = vpack.c.bf16 %v11735, %v11734
      %v11897 = vpack.c.bf16 %v11737, %v11736
      %v11898 = vpack.c.bf16 %v11739, %v11738
      %v11899 = vpack.c.bf16 %v11741, %v11740
      %v11900 = vpack.c.bf16 %v11743, %v11742
      %v11901 = vpack.c.bf16 %v11745, %v11744
      %v11902 = vpack.c.bf16 %v11747, %v11746
      %v11903 = vpack.c.bf16 %v11749, %v11748
      %v11904 = vpack.c.bf16 %v11751, %v11750
      %v11905 = vpack.c.bf16 %v11753, %v11752
      %v11906 = vpack.c.bf16 %v11755, %v11754
      %v11907 = vpack.c.bf16 %v11757, %v11756
      %v11908 = vpack.c.bf16 %v11759, %v11758
      %v11909 = vpack.c.bf16 %v11761, %v11760
      %v11910 = vpack.c.bf16 %v11763, %v11762
      %v11911 = vpack.c.bf16 %v11765, %v11764
      %v11912 = vpack.c.bf16 %v11767, %v11766
      %v11913 = vpack.c.bf16 %v11769, %v11768
      %v11914 = vpack.c.bf16 %v11771, %v11770
      %v11915 = vpack.c.bf16 %v11773, %v11772
      %v11916 = vpack.c.bf16 %v11775, %v11774
      %v11917 = vpack.c.bf16 %v11777, %v11776
      %v11918 = vpack.c.bf16 %v11779, %v11778
      %v11919 = vpack.c.bf16 %v11781, %v11780
      %v11920 = vpack.c.bf16 %v11783, %v11782
      %v11921 = vpack.c.bf16 %v11785, %v11784
      %v11922 = vpack.c.bf16 %v11787, %v11786
      %v11923 = vpack.c.bf16 %v11789, %v11788
      %v11924 = vpack.c.bf16 %v11791, %v11790
      %v11925 = vpack.c.bf16 %v11793, %v11792
      %v11926 = vpack.c.bf16 %v11795, %v11794
      %v11927 = vpack.c.bf16 %v11797, %v11796
      %v11928 = vpack.c.bf16 %v11799, %v11798
      %v11929 = vpack.c.bf16 %v11801, %v11800
      %v12058 = vunpack.c.l.b16 %v11802
      %v12059 = vunpack.c.h.b16 %v11802
      %v12060 = vunpack.c.l.b16 %v11803
      %v12061 = vunpack.c.h.b16 %v11803
      %v12062 = vunpack.c.l.b16 %v11804
      %v12063 = vunpack.c.h.b16 %v11804
      %v12064 = vunpack.c.l.b16 %v11805
      %v12065 = vunpack.c.h.b16 %v11805
      %v12066 = vunpack.c.l.b16 %v11806
      %v12067 = vunpack.c.h.b16 %v11806
      %v12068 = vunpack.c.l.b16 %v11807
      %v12069 = vunpack.c.h.b16 %v11807
      %v12070 = vunpack.c.l.b16 %v11808
      %v12071 = vunpack.c.h.b16 %v11808
      %v12072 = vunpack.c.l.b16 %v11809
      %v12073 = vunpack.c.h.b16 %v11809
      %v12074 = vunpack.c.l.b16 %v11810
      %v12075 = vunpack.c.h.b16 %v11810
      %v12076 = vunpack.c.l.b16 %v11811
      %v12077 = vunpack.c.h.b16 %v11811
      %v12078 = vunpack.c.l.b16 %v11812
      %v12079 = vunpack.c.h.b16 %v11812
      %v12080 = vunpack.c.l.b16 %v11813
      %v12081 = vunpack.c.h.b16 %v11813
      %v12082 = vunpack.c.l.b16 %v11814
      %v12083 = vunpack.c.h.b16 %v11814
      %v12084 = vunpack.c.l.b16 %v11815
      %v12085 = vunpack.c.h.b16 %v11815
      %v12086 = vunpack.c.l.b16 %v11816
      %v12087 = vunpack.c.h.b16 %v11816
      %v12088 = vunpack.c.l.b16 %v11817
      %v12089 = vunpack.c.h.b16 %v11817
      %v12090 = vunpack.c.l.b16 %v11818
      %v12091 = vunpack.c.h.b16 %v11818
      %v12092 = vunpack.c.l.b16 %v11819
      %v12093 = vunpack.c.h.b16 %v11819
      %v12094 = vunpack.c.l.b16 %v11820
      %v12095 = vunpack.c.h.b16 %v11820
      %v12096 = vunpack.c.l.b16 %v11821
      %v12097 = vunpack.c.h.b16 %v11821
      %v12098 = vunpack.c.l.b16 %v11822
      %v12099 = vunpack.c.h.b16 %v11822
      %v12100 = vunpack.c.l.b16 %v11823
      %v12101 = vunpack.c.h.b16 %v11823
      %v12102 = vunpack.c.l.b16 %v11824
      %v12103 = vunpack.c.h.b16 %v11824
      %v12104 = vunpack.c.l.b16 %v11825
      %v12105 = vunpack.c.h.b16 %v11825
      %v12106 = vunpack.c.l.b16 %v11826
      %v12107 = vunpack.c.h.b16 %v11826
      %v12108 = vunpack.c.l.b16 %v11827
      %v12109 = vunpack.c.h.b16 %v11827
      %v12110 = vunpack.c.l.b16 %v11828
      %v12111 = vunpack.c.h.b16 %v11828
      %v12112 = vunpack.c.l.b16 %v11829
      %v12113 = vunpack.c.h.b16 %v11829
      %v12114 = vunpack.c.l.b16 %v11830
      %v12115 = vunpack.c.h.b16 %v11830
      %v12116 = vunpack.c.l.b16 %v11831
      %v12117 = vunpack.c.h.b16 %v11831
      %v12118 = vunpack.c.l.b16 %v11832
      %v12119 = vunpack.c.h.b16 %v11832
      %v12120 = vunpack.c.l.b16 %v11833
      %v12121 = vunpack.c.h.b16 %v11833
      %v12122 = vunpack.c.l.b16 %v11834
      %v12123 = vunpack.c.h.b16 %v11834
      %v12124 = vunpack.c.l.b16 %v11835
      %v12125 = vunpack.c.h.b16 %v11835
      %v12126 = vunpack.c.l.b16 %v11836
      %v12127 = vunpack.c.h.b16 %v11836
      %v12128 = vunpack.c.l.b16 %v11837
      %v12129 = vunpack.c.h.b16 %v11837
      %v12130 = vunpack.c.l.b16 %v11838
      %v12131 = vunpack.c.h.b16 %v11838
      %v12132 = vunpack.c.l.b16 %v11839
      %v12133 = vunpack.c.h.b16 %v11839
      %v12134 = vunpack.c.l.b16 %v11840
      %v12135 = vunpack.c.h.b16 %v11840
      %v12136 = vunpack.c.l.b16 %v11841
      %v12137 = vunpack.c.h.b16 %v11841
      %v12138 = vunpack.c.l.b16 %v11842
      %v12139 = vunpack.c.h.b16 %v11842
      %v12140 = vunpack.c.l.b16 %v11843
      %v12141 = vunpack.c.h.b16 %v11843
      %v12142 = vunpack.c.l.b16 %v11844
      %v12143 = vunpack.c.h.b16 %v11844
      %v12144 = vunpack.c.l.b16 %v11845
      %v12145 = vunpack.c.h.b16 %v11845
      %v12146 = vunpack.c.l.b16 %v11846
      %v12147 = vunpack.c.h.b16 %v11846
      %v12148 = vunpack.c.l.b16 %v11847
      %v12149 = vunpack.c.h.b16 %v11847
      %v12150 = vunpack.c.l.b16 %v11848
      %v12151 = vunpack.c.h.b16 %v11848
      %v12152 = vunpack.c.l.b16 %v11849
      %v12153 = vunpack.c.h.b16 %v11849
      %v12154 = vunpack.c.l.b16 %v11850
      %v12155 = vunpack.c.h.b16 %v11850
      %v12156 = vunpack.c.l.b16 %v11851
      %v12157 = vunpack.c.h.b16 %v11851
      %v12158 = vunpack.c.l.b16 %v11852
      %v12159 = vunpack.c.h.b16 %v11852
      %v12160 = vunpack.c.l.b16 %v11853
      %v12161 = vunpack.c.h.b16 %v11853
      %v12162 = vunpack.c.l.b16 %v11854
      %v12163 = vunpack.c.h.b16 %v11854
      %v12164 = vunpack.c.l.b16 %v11855
      %v12165 = vunpack.c.h.b16 %v11855
      %v12166 = vunpack.c.l.b16 %v11856
      %v12167 = vunpack.c.h.b16 %v11856
      %v12168 = vunpack.c.l.b16 %v11857
      %v12169 = vunpack.c.h.b16 %v11857
      %v12170 = vunpack.c.l.b16 %v11858
      %v12171 = vunpack.c.h.b16 %v11858
      %v12172 = vunpack.c.l.b16 %v11859
      %v12173 = vunpack.c.h.b16 %v11859
      %v12174 = vunpack.c.l.b16 %v11860
      %v12175 = vunpack.c.h.b16 %v11860
      %v12176 = vunpack.c.l.b16 %v11861
      %v12177 = vunpack.c.h.b16 %v11861
      %v12178 = vunpack.c.l.b16 %v11862
      %v12179 = vunpack.c.h.b16 %v11862
      %v12180 = vunpack.c.l.b16 %v11863
      %v12181 = vunpack.c.h.b16 %v11863
      %v12182 = vunpack.c.l.b16 %v11864
      %v12183 = vunpack.c.h.b16 %v11864
      %v12184 = vunpack.c.l.b16 %v11865
      %v12185 = vunpack.c.h.b16 %v11865
      %v12186 = vunpack.c.l.b16 %v11866
      %v12187 = vunpack.c.h.b16 %v11866
      %v12188 = vunpack.c.l.b16 %v11867
      %v12189 = vunpack.c.h.b16 %v11867
      %v12190 = vunpack.c.l.b16 %v11868
      %v12191 = vunpack.c.h.b16 %v11868
      %v12192 = vunpack.c.l.b16 %v11869
      %v12193 = vunpack.c.h.b16 %v11869
      %v12194 = vunpack.c.l.b16 %v11870
      %v12195 = vunpack.c.h.b16 %v11870
      %v12196 = vunpack.c.l.b16 %v11871
      %v12197 = vunpack.c.h.b16 %v11871
      %v12198 = vunpack.c.l.b16 %v11872
      %v12199 = vunpack.c.h.b16 %v11872
      %v12200 = vunpack.c.l.b16 %v11873
      %v12201 = vunpack.c.h.b16 %v11873
      %v12202 = vunpack.c.l.b16 %v11874
      %v12203 = vunpack.c.h.b16 %v11874
      %v12204 = vunpack.c.l.b16 %v11875
      %v12205 = vunpack.c.h.b16 %v11875
      %v12206 = vunpack.c.l.b16 %v11876
      %v12207 = vunpack.c.h.b16 %v11876
      %v12208 = vunpack.c.l.b16 %v11877
      %v12209 = vunpack.c.h.b16 %v11877
      %v12210 = vunpack.c.l.b16 %v11878
      %v12211 = vunpack.c.h.b16 %v11878
      %v12212 = vunpack.c.l.b16 %v11879
      %v12213 = vunpack.c.h.b16 %v11879
      %v12214 = vunpack.c.l.b16 %v11880
      %v12215 = vunpack.c.h.b16 %v11880
      %v12216 = vunpack.c.l.b16 %v11881
      %v12217 = vunpack.c.h.b16 %v11881
      %v12218 = vunpack.c.l.b16 %v11882
      %v12219 = vunpack.c.h.b16 %v11882
      %v12220 = vunpack.c.l.b16 %v11883
      %v12221 = vunpack.c.h.b16 %v11883
      %v12222 = vunpack.c.l.b16 %v11884
      %v12223 = vunpack.c.h.b16 %v11884
      %v12224 = vunpack.c.l.b16 %v11885
      %v12225 = vunpack.c.h.b16 %v11885
      %v12226 = vunpack.c.l.b16 %v11886
      %v12227 = vunpack.c.h.b16 %v11886
      %v12228 = vunpack.c.l.b16 %v11887
      %v12229 = vunpack.c.h.b16 %v11887
      %v12230 = vunpack.c.l.b16 %v11888
      %v12231 = vunpack.c.h.b16 %v11888
      %v12232 = vunpack.c.l.b16 %v11889
      %v12233 = vunpack.c.h.b16 %v11889
      %v12234 = vunpack.c.l.b16 %v11890
      %v12235 = vunpack.c.h.b16 %v11890
      %v12236 = vunpack.c.l.b16 %v11891
      %v12237 = vunpack.c.h.b16 %v11891
      %v12238 = vunpack.c.l.b16 %v11892
      %v12239 = vunpack.c.h.b16 %v11892
      %v12240 = vunpack.c.l.b16 %v11893
      %v12241 = vunpack.c.h.b16 %v11893
      %v12242 = vunpack.c.l.b16 %v11894
      %v12243 = vunpack.c.h.b16 %v11894
      %v12244 = vunpack.c.l.b16 %v11895
      %v12245 = vunpack.c.h.b16 %v11895
      %v12246 = vunpack.c.l.b16 %v11896
      %v12247 = vunpack.c.h.b16 %v11896
      %v12248 = vunpack.c.l.b16 %v11897
      %v12249 = vunpack.c.h.b16 %v11897
      %v12250 = vunpack.c.l.b16 %v11898
      %v12251 = vunpack.c.h.b16 %v11898
      %v12252 = vunpack.c.l.b16 %v11899
      %v12253 = vunpack.c.h.b16 %v11899
      %v12254 = vunpack.c.l.b16 %v11900
      %v12255 = vunpack.c.h.b16 %v11900
      %v12256 = vunpack.c.l.b16 %v11901
      %v12257 = vunpack.c.h.b16 %v11901
      %v12258 = vunpack.c.l.b16 %v11902
      %v12259 = vunpack.c.h.b16 %v11902
      %v12260 = vunpack.c.l.b16 %v11903
      %v12261 = vunpack.c.h.b16 %v11903
      %v12262 = vunpack.c.l.b16 %v11904
      %v12263 = vunpack.c.h.b16 %v11904
      %v12264 = vunpack.c.l.b16 %v11905
      %v12265 = vunpack.c.h.b16 %v11905
      %v12266 = vunpack.c.l.b16 %v11906
      %v12267 = vunpack.c.h.b16 %v11906
      %v12268 = vunpack.c.l.b16 %v11907
      %v12269 = vunpack.c.h.b16 %v11907
      %v12270 = vunpack.c.l.b16 %v11908
      %v12271 = vunpack.c.h.b16 %v11908
      %v12272 = vunpack.c.l.b16 %v11909
      %v12273 = vunpack.c.h.b16 %v11909
      %v12274 = vunpack.c.l.b16 %v11910
      %v12275 = vunpack.c.h.b16 %v11910
      %v12276 = vunpack.c.l.b16 %v11911
      %v12277 = vunpack.c.h.b16 %v11911
      %v12278 = vunpack.c.l.b16 %v11912
      %v12279 = vunpack.c.h.b16 %v11912
      %v12280 = vunpack.c.l.b16 %v11913
      %v12281 = vunpack.c.h.b16 %v11913
      %v12282 = vunpack.c.l.b16 %v11914
      %v12283 = vunpack.c.h.b16 %v11914
      %v12284 = vunpack.c.l.b16 %v11915
      %v12285 = vunpack.c.h.b16 %v11915
      %v12286 = vunpack.c.l.b16 %v11916
      %v12287 = vunpack.c.h.b16 %v11916
      %v12288 = vunpack.c.l.b16 %v11917
      %v12289 = vunpack.c.h.b16 %v11917
      %v12290 = vunpack.c.l.b16 %v11918
      %v12291 = vunpack.c.h.b16 %v11918
      %v12292 = vunpack.c.l.b16 %v11919
      %v12293 = vunpack.c.h.b16 %v11919
      %v12294 = vunpack.c.l.b16 %v11920
      %v12295 = vunpack.c.h.b16 %v11920
      %v12296 = vunpack.c.l.b16 %v11921
      %v12297 = vunpack.c.h.b16 %v11921
      %v12298 = vunpack.c.l.b16 %v11922
      %v12299 = vunpack.c.h.b16 %v11922
      %v12300 = vunpack.c.l.b16 %v11923
      %v12301 = vunpack.c.h.b16 %v11923
      %v12302 = vunpack.c.l.b16 %v11924
      %v12303 = vunpack.c.h.b16 %v11924
      %v12304 = vunpack.c.l.b16 %v11925
      %v12305 = vunpack.c.h.b16 %v11925
      %v12306 = vunpack.c.l.b16 %v11926
      %v12307 = vunpack.c.h.b16 %v11926
      %v12308 = vunpack.c.l.b16 %v11927
      %v12309 = vunpack.c.h.b16 %v11927
      %v12310 = vunpack.c.l.b16 %v11928
      %v12311 = vunpack.c.h.b16 %v11928
      %v12312 = vunpack.c.l.b16 %v11929
      %v12313 = vunpack.c.h.b16 %v11929
      %v12314 = vpack.c.b16 %v12058, %v12058
      %v12315 = vpack.c.b16 %v12059, %v12059
      %v12316 = vpack.c.b16 %v12060, %v12060
      %v12317 = vpack.c.b16 %v12061, %v12061
      %v12318 = vpack.c.b16 %v12062, %v12062
      %v12319 = vpack.c.b16 %v12063, %v12063
      %v12320 = vpack.c.b16 %v12064, %v12064
      %v12321 = vpack.c.b16 %v12065, %v12065
      %v12322 = vpack.c.b16 %v12066, %v12066
      %v12323 = vpack.c.b16 %v12067, %v12067
      %v12324 = vpack.c.b16 %v12068, %v12068
      %v12325 = vpack.c.b16 %v12069, %v12069
      %v12326 = vpack.c.b16 %v12070, %v12070
      %v12327 = vpack.c.b16 %v12071, %v12071
      %v12328 = vpack.c.b16 %v12072, %v12072
      %v12329 = vpack.c.b16 %v12073, %v12073
      %v12330 = vpack.c.b16 %v12074, %v12074
      %v12331 = vpack.c.b16 %v12075, %v12075
      %v12332 = vpack.c.b16 %v12076, %v12076
      %v12333 = vpack.c.b16 %v12077, %v12077
      %v12334 = vpack.c.b16 %v12078, %v12078
      %v12335 = vpack.c.b16 %v12079, %v12079
      %v12336 = vpack.c.b16 %v12080, %v12080
      %v12337 = vpack.c.b16 %v12081, %v12081
      %v12338 = vpack.c.b16 %v12082, %v12082
      %v12339 = vpack.c.b16 %v12083, %v12083
      %v12340 = vpack.c.b16 %v12084, %v12084
      %v12341 = vpack.c.b16 %v12085, %v12085
      %v12342 = vpack.c.b16 %v12086, %v12086
      %v12343 = vpack.c.b16 %v12087, %v12087
      %v12344 = vpack.c.b16 %v12088, %v12088
      %v12345 = vpack.c.b16 %v12089, %v12089
      %v12346 = vpack.c.b16 %v12090, %v12090
      %v12347 = vpack.c.b16 %v12091, %v12091
      %v12348 = vpack.c.b16 %v12092, %v12092
      %v12349 = vpack.c.b16 %v12093, %v12093
      %v12350 = vpack.c.b16 %v12094, %v12094
      %v12351 = vpack.c.b16 %v12095, %v12095
      %v12352 = vpack.c.b16 %v12096, %v12096
      %v12353 = vpack.c.b16 %v12097, %v12097
      %v12354 = vpack.c.b16 %v12098, %v12098
      %v12355 = vpack.c.b16 %v12099, %v12099
      %v12356 = vpack.c.b16 %v12100, %v12100
      %v12357 = vpack.c.b16 %v12101, %v12101
      %v12358 = vpack.c.b16 %v12102, %v12102
      %v12359 = vpack.c.b16 %v12103, %v12103
      %v12360 = vpack.c.b16 %v12104, %v12104
      %v12361 = vpack.c.b16 %v12105, %v12105
      %v12362 = vpack.c.b16 %v12106, %v12106
      %v12363 = vpack.c.b16 %v12107, %v12107
      %v12364 = vpack.c.b16 %v12108, %v12108
      %v12365 = vpack.c.b16 %v12109, %v12109
      %v12366 = vpack.c.b16 %v12110, %v12110
      %v12367 = vpack.c.b16 %v12111, %v12111
      %v12368 = vpack.c.b16 %v12112, %v12112
      %v12369 = vpack.c.b16 %v12113, %v12113
      %v12370 = vpack.c.b16 %v12114, %v12114
      %v12371 = vpack.c.b16 %v12115, %v12115
      %v12372 = vpack.c.b16 %v12116, %v12116
      %v12373 = vpack.c.b16 %v12117, %v12117
      %v12374 = vpack.c.b16 %v12118, %v12118
      %v12375 = vpack.c.b16 %v12119, %v12119
      %v12376 = vpack.c.b16 %v12120, %v12120
      %v12377 = vpack.c.b16 %v12121, %v12121
      %v12378 = vpack.c.b16 %v12122, %v12122
      %v12379 = vpack.c.b16 %v12123, %v12123
      %v12380 = vpack.c.b16 %v12124, %v12124
      %v12381 = vpack.c.b16 %v12125, %v12125
      %v12382 = vpack.c.b16 %v12126, %v12126
      %v12383 = vpack.c.b16 %v12127, %v12127
      %v12384 = vpack.c.b16 %v12128, %v12128
      %v12385 = vpack.c.b16 %v12129, %v12129
      %v12386 = vpack.c.b16 %v12130, %v12130
      %v12387 = vpack.c.b16 %v12131, %v12131
      %v12388 = vpack.c.b16 %v12132, %v12132
      %v12389 = vpack.c.b16 %v12133, %v12133
      %v12390 = vpack.c.b16 %v12134, %v12134
      %v12391 = vpack.c.b16 %v12135, %v12135
      %v12392 = vpack.c.b16 %v12136, %v12136
      %v12393 = vpack.c.b16 %v12137, %v12137
      %v12394 = vpack.c.b16 %v12138, %v12138
      %v12395 = vpack.c.b16 %v12139, %v12139
      %v12396 = vpack.c.b16 %v12140, %v12140
      %v12397 = vpack.c.b16 %v12141, %v12141
      %v12398 = vpack.c.b16 %v12142, %v12142
      %v12399 = vpack.c.b16 %v12143, %v12143
      %v12400 = vpack.c.b16 %v12144, %v12144
      %v12401 = vpack.c.b16 %v12145, %v12145
      %v12402 = vpack.c.b16 %v12146, %v12146
      %v12403 = vpack.c.b16 %v12147, %v12147
      %v12404 = vpack.c.b16 %v12148, %v12148
      %v12405 = vpack.c.b16 %v12149, %v12149
      %v12406 = vpack.c.b16 %v12150, %v12150
      %v12407 = vpack.c.b16 %v12151, %v12151
      %v12408 = vpack.c.b16 %v12152, %v12152
      %v12409 = vpack.c.b16 %v12153, %v12153
      %v12410 = vpack.c.b16 %v12154, %v12154
      %v12411 = vpack.c.b16 %v12155, %v12155
      %v12412 = vpack.c.b16 %v12156, %v12156
      %v12413 = vpack.c.b16 %v12157, %v12157
      %v12414 = vpack.c.b16 %v12158, %v12158
      %v12415 = vpack.c.b16 %v12159, %v12159
      %v12416 = vpack.c.b16 %v12160, %v12160
      %v12417 = vpack.c.b16 %v12161, %v12161
      %v12418 = vpack.c.b16 %v12162, %v12162
      %v12419 = vpack.c.b16 %v12163, %v12163
      %v12420 = vpack.c.b16 %v12164, %v12164
      %v12421 = vpack.c.b16 %v12165, %v12165
      %v12422 = vpack.c.b16 %v12166, %v12166
      %v12423 = vpack.c.b16 %v12167, %v12167
      %v12424 = vpack.c.b16 %v12168, %v12168
      %v12425 = vpack.c.b16 %v12169, %v12169
      %v12426 = vpack.c.b16 %v12170, %v12170
      %v12427 = vpack.c.b16 %v12171, %v12171
      %v12428 = vpack.c.b16 %v12172, %v12172
      %v12429 = vpack.c.b16 %v12173, %v12173
      %v12430 = vpack.c.b16 %v12174, %v12174
      %v12431 = vpack.c.b16 %v12175, %v12175
      %v12432 = vpack.c.b16 %v12176, %v12176
      %v12433 = vpack.c.b16 %v12177, %v12177
      %v12434 = vpack.c.b16 %v12178, %v12178
      %v12435 = vpack.c.b16 %v12179, %v12179
      %v12436 = vpack.c.b16 %v12180, %v12180
      %v12437 = vpack.c.b16 %v12181, %v12181
      %v12438 = vpack.c.b16 %v12182, %v12182
      %v12439 = vpack.c.b16 %v12183, %v12183
      %v12440 = vpack.c.b16 %v12184, %v12184
      %v12441 = vpack.c.b16 %v12185, %v12185
      %v12442 = vpack.c.b16 %v12186, %v12186
      %v12443 = vpack.c.b16 %v12187, %v12187
      %v12444 = vpack.c.b16 %v12188, %v12188
      %v12445 = vpack.c.b16 %v12189, %v12189
      %v12446 = vpack.c.b16 %v12190, %v12190
      %v12447 = vpack.c.b16 %v12191, %v12191
      %v12448 = vpack.c.b16 %v12192, %v12192
      %v12449 = vpack.c.b16 %v12193, %v12193
      %v12450 = vpack.c.b16 %v12194, %v12194
      %v12451 = vpack.c.b16 %v12195, %v12195
      %v12452 = vpack.c.b16 %v12196, %v12196
      %v12453 = vpack.c.b16 %v12197, %v12197
      %v12454 = vpack.c.b16 %v12198, %v12198
      %v12455 = vpack.c.b16 %v12199, %v12199
      %v12456 = vpack.c.b16 %v12200, %v12200
      %v12457 = vpack.c.b16 %v12201, %v12201
      %v12458 = vpack.c.b16 %v12202, %v12202
      %v12459 = vpack.c.b16 %v12203, %v12203
      %v12460 = vpack.c.b16 %v12204, %v12204
      %v12461 = vpack.c.b16 %v12205, %v12205
      %v12462 = vpack.c.b16 %v12206, %v12206
      %v12463 = vpack.c.b16 %v12207, %v12207
      %v12464 = vpack.c.b16 %v12208, %v12208
      %v12465 = vpack.c.b16 %v12209, %v12209
      %v12466 = vpack.c.b16 %v12210, %v12210
      %v12467 = vpack.c.b16 %v12211, %v12211
      %v12468 = vpack.c.b16 %v12212, %v12212
      %v12469 = vpack.c.b16 %v12213, %v12213
      %v12470 = vpack.c.b16 %v12214, %v12214
      %v12471 = vpack.c.b16 %v12215, %v12215
      %v12472 = vpack.c.b16 %v12216, %v12216
      %v12473 = vpack.c.b16 %v12217, %v12217
      %v12474 = vpack.c.b16 %v12218, %v12218
      %v12475 = vpack.c.b16 %v12219, %v12219
      %v12476 = vpack.c.b16 %v12220, %v12220
      %v12477 = vpack.c.b16 %v12221, %v12221
      %v12478 = vpack.c.b16 %v12222, %v12222
      %v12479 = vpack.c.b16 %v12223, %v12223
      %v12480 = vpack.c.b16 %v12224, %v12224
      %v12481 = vpack.c.b16 %v12225, %v12225
      %v12482 = vpack.c.b16 %v12226, %v12226
      %v12483 = vpack.c.b16 %v12227, %v12227
      %v12484 = vpack.c.b16 %v12228, %v12228
      %v12485 = vpack.c.b16 %v12229, %v12229
      %v12486 = vpack.c.b16 %v12230, %v12230
      %v12487 = vpack.c.b16 %v12231, %v12231
      %v12488 = vpack.c.b16 %v12232, %v12232
      %v12489 = vpack.c.b16 %v12233, %v12233
      %v12490 = vpack.c.b16 %v12234, %v12234
      %v12491 = vpack.c.b16 %v12235, %v12235
      %v12492 = vpack.c.b16 %v12236, %v12236
      %v12493 = vpack.c.b16 %v12237, %v12237
      %v12494 = vpack.c.b16 %v12238, %v12238
      %v12495 = vpack.c.b16 %v12239, %v12239
      %v12496 = vpack.c.b16 %v12240, %v12240
      %v12497 = vpack.c.b16 %v12241, %v12241
      %v12498 = vpack.c.b16 %v12242, %v12242
      %v12499 = vpack.c.b16 %v12243, %v12243
      %v12500 = vpack.c.b16 %v12244, %v12244
      %v12501 = vpack.c.b16 %v12245, %v12245
      %v12502 = vpack.c.b16 %v12246, %v12246
      %v12503 = vpack.c.b16 %v12247, %v12247
      %v12504 = vpack.c.b16 %v12248, %v12248
      %v12505 = vpack.c.b16 %v12249, %v12249
      %v12506 = vpack.c.b16 %v12250, %v12250
      %v12507 = vpack.c.b16 %v12251, %v12251
      %v12508 = vpack.c.b16 %v12252, %v12252
      %v12509 = vpack.c.b16 %v12253, %v12253
      %v12510 = vpack.c.b16 %v12254, %v12254
      %v12511 = vpack.c.b16 %v12255, %v12255
      %v12512 = vpack.c.b16 %v12256, %v12256
      %v12513 = vpack.c.b16 %v12257, %v12257
      %v12514 = vpack.c.b16 %v12258, %v12258
      %v12515 = vpack.c.b16 %v12259, %v12259
      %v12516 = vpack.c.b16 %v12260, %v12260
      %v12517 = vpack.c.b16 %v12261, %v12261
      %v12518 = vpack.c.b16 %v12262, %v12262
      %v12519 = vpack.c.b16 %v12263, %v12263
      %v12520 = vpack.c.b16 %v12264, %v12264
      %v12521 = vpack.c.b16 %v12265, %v12265
      %v12522 = vpack.c.b16 %v12266, %v12266
      %v12523 = vpack.c.b16 %v12267, %v12267
      %v12524 = vpack.c.b16 %v12268, %v12268
      %v12525 = vpack.c.b16 %v12269, %v12269
      %v12526 = vpack.c.b16 %v12270, %v12270
      %v12527 = vpack.c.b16 %v12271, %v12271
      %v12528 = vpack.c.b16 %v12272, %v12272
      %v12529 = vpack.c.b16 %v12273, %v12273
      %v12530 = vpack.c.b16 %v12274, %v12274
      %v12531 = vpack.c.b16 %v12275, %v12275
      %v12532 = vpack.c.b16 %v12276, %v12276
      %v12533 = vpack.c.b16 %v12277, %v12277
      %v12534 = vpack.c.b16 %v12278, %v12278
      %v12535 = vpack.c.b16 %v12279, %v12279
      %v12536 = vpack.c.b16 %v12280, %v12280
      %v12537 = vpack.c.b16 %v12281, %v12281
      %v12538 = vpack.c.b16 %v12282, %v12282
      %v12539 = vpack.c.b16 %v12283, %v12283
      %v12540 = vpack.c.b16 %v12284, %v12284
      %v12541 = vpack.c.b16 %v12285, %v12285
      %v12542 = vpack.c.b16 %v12286, %v12286
      %v12543 = vpack.c.b16 %v12287, %v12287
      %v12544 = vpack.c.b16 %v12288, %v12288
      %v12545 = vpack.c.b16 %v12289, %v12289
      %v12546 = vpack.c.b16 %v12290, %v12290
      %v12547 = vpack.c.b16 %v12291, %v12291
      %v12548 = vpack.c.b16 %v12292, %v12292
      %v12549 = vpack.c.b16 %v12293, %v12293
      %v12550 = vpack.c.b16 %v12294, %v12294
      %v12551 = vpack.c.b16 %v12295, %v12295
      %v12552 = vpack.c.b16 %v12296, %v12296
      %v12553 = vpack.c.b16 %v12297, %v12297
      %v12554 = vpack.c.b16 %v12298, %v12298
      %v12555 = vpack.c.b16 %v12299, %v12299
      %v12556 = vpack.c.b16 %v12300, %v12300
      %v12557 = vpack.c.b16 %v12301, %v12301
      %v12558 = vpack.c.b16 %v12302, %v12302
      %v12559 = vpack.c.b16 %v12303, %v12303
      %v12560 = vpack.c.b16 %v12304, %v12304
      %v12561 = vpack.c.b16 %v12305, %v12305
      %v12562 = vpack.c.b16 %v12306, %v12306
      %v12563 = vpack.c.b16 %v12307, %v12307
      %v12564 = vpack.c.b16 %v12308, %v12308
      %v12565 = vpack.c.b16 %v12309, %v12309
      %v12566 = vpack.c.b16 %v12310, %v12310
      %v12567 = vpack.c.b16 %v12311, %v12311
      %v12568 = vpack.c.b16 %v12312, %v12312
      %v12569 = vpack.c.b16 %v12313, %v12313
      %12826 = vst [vmem:[%s337] sm:$0xf] %v12314
      %12827 = vst [vmem:[%s337 + $0x4] sm:$0xf] %v12315
      %12828 = vst [vmem:[%s337 + $0x8] sm:$0xf] %v12316
      %12829 = vst [vmem:[%s337 + $0xc] sm:$0xf] %v12317
      %12830 = vst [vmem:[%s337 + $0x10] sm:$0xf] %v12318
      %12831 = vst [vmem:[%s337 + $0x14] sm:$0xf] %v12319
      %12832 = vst [vmem:[%s337 + $0x18] sm:$0xf] %v12320
      %12833 = vst [vmem:[%s337 + $0x1c] sm:$0xf] %v12321
      %12834 = vst [vmem:[%s337 + $0x20] sm:$0xf] %v12322
      %12835 = vst [vmem:[%s337 + $0x24] sm:$0xf] %v12323
      %12836 = vst [vmem:[%s337 + $0x28] sm:$0xf] %v12324
      %12837 = vst [vmem:[%s337 + $0x2c] sm:$0xf] %v12325
      %12838 = vst [vmem:[%s337 + $0x30] sm:$0xf] %v12326
      %12839 = vst [vmem:[%s337 + $0x34] sm:$0xf] %v12327
      %12840 = vst [vmem:[%s337 + $0x38] sm:$0xf] %v12328
      %12841 = vst [vmem:[%s337 + $0x3c] sm:$0xf] %v12329
      %12842 = vst [vmem:[%s337 + $0x40] sm:$0xf] %v12330
      %12843 = vst [vmem:[%s337 + $0x44] sm:$0xf] %v12331
      %12844 = vst [vmem:[%s337 + $0x48] sm:$0xf] %v12332
      %12845 = vst [vmem:[%s337 + $0x4c] sm:$0xf] %v12333
      %12846 = vst [vmem:[%s337 + $0x50] sm:$0xf] %v12334
      %12847 = vst [vmem:[%s337 + $0x54] sm:$0xf] %v12335
      %12848 = vst [vmem:[%s337 + $0x58] sm:$0xf] %v12336
      %12849 = vst [vmem:[%s337 + $0x5c] sm:$0xf] %v12337
      %12850 = vst [vmem:[%s337 + $0x60] sm:$0xf] %v12338
      %12851 = vst [vmem:[%s337 + $0x64] sm:$0xf] %v12339
      %12852 = vst [vmem:[%s337 + $0x68] sm:$0xf] %v12340
      %12853 = vst [vmem:[%s337 + $0x6c] sm:$0xf] %v12341
      %12854 = vst [vmem:[%s337 + $0x70] sm:$0xf] %v12342
      %12855 = vst [vmem:[%s337 + $0x74] sm:$0xf] %v12343
      %12856 = vst [vmem:[%s337 + $0x78] sm:$0xf] %v12344
      %12857 = vst [vmem:[%s337 + $0x7c] sm:$0xf] %v12345
      %12858 = vst [vmem:[%s337 + $0x80] sm:$0xf] %v12346
      %12859 = vst [vmem:[%s337 + $0x84] sm:$0xf] %v12347
      %12860 = vst [vmem:[%s337 + $0x88] sm:$0xf] %v12348
      %12861 = vst [vmem:[%s337 + $0x8c] sm:$0xf] %v12349
      %12862 = vst [vmem:[%s337 + $0x90] sm:$0xf] %v12350
      %12863 = vst [vmem:[%s337 + $0x94] sm:$0xf] %v12351
      %12864 = vst [vmem:[%s337 + $0x98] sm:$0xf] %v12352
      %12865 = vst [vmem:[%s337 + $0x9c] sm:$0xf] %v12353
      %12866 = vst [vmem:[%s337 + $0xa0] sm:$0xf] %v12354
      %12867 = vst [vmem:[%s337 + $0xa4] sm:$0xf] %v12355
      %12868 = vst [vmem:[%s337 + $0xa8] sm:$0xf] %v12356
      %12869 = vst [vmem:[%s337 + $0xac] sm:$0xf] %v12357
      %12870 = vst [vmem:[%s337 + $0xb0] sm:$0xf] %v12358
      %12871 = vst [vmem:[%s337 + $0xb4] sm:$0xf] %v12359
      %12872 = vst [vmem:[%s337 + $0xb8] sm:$0xf] %v12360
      %12873 = vst [vmem:[%s337 + $0xbc] sm:$0xf] %v12361
      %12874 = vst [vmem:[%s337 + $0xc0] sm:$0xf] %v12362
      %12875 = vst [vmem:[%s337 + $0xc4] sm:$0xf] %v12363
      %12876 = vst [vmem:[%s337 + $0xc8] sm:$0xf] %v12364
      %12877 = vst [vmem:[%s337 + $0xcc] sm:$0xf] %v12365
      %12878 = vst [vmem:[%s337 + $0xd0] sm:$0xf] %v12366
      %12879 = vst [vmem:[%s337 + $0xd4] sm:$0xf] %v12367
      %12880 = vst [vmem:[%s337 + $0xd8] sm:$0xf] %v12368
      %12881 = vst [vmem:[%s337 + $0xdc] sm:$0xf] %v12369
      %12882 = vst [vmem:[%s337 + $0xe0] sm:$0xf] %v12370
      %12883 = vst [vmem:[%s337 + $0xe4] sm:$0xf] %v12371
      %12884 = vst [vmem:[%s337 + $0xe8] sm:$0xf] %v12372
      %12885 = vst [vmem:[%s337 + $0xec] sm:$0xf] %v12373
      %12886 = vst [vmem:[%s337 + $0xf0] sm:$0xf] %v12374
      %12887 = vst [vmem:[%s337 + $0xf4] sm:$0xf] %v12375
      %12888 = vst [vmem:[%s337 + $0xf8] sm:$0xf] %v12376
      %12889 = vst [vmem:[%s337 + $0xfc] sm:$0xf] %v12377
      %12890 = vst [vmem:[%s337 + $0x100] sm:$0xf] %v12378
      %12891 = vst [vmem:[%s337 + $0x104] sm:$0xf] %v12379
      %12892 = vst [vmem:[%s337 + $0x108] sm:$0xf] %v12380
      %12893 = vst [vmem:[%s337 + $0x10c] sm:$0xf] %v12381
      %12894 = vst [vmem:[%s337 + $0x110] sm:$0xf] %v12382
      %12895 = vst [vmem:[%s337 + $0x114] sm:$0xf] %v12383
      %12896 = vst [vmem:[%s337 + $0x118] sm:$0xf] %v12384
      %12897 = vst [vmem:[%s337 + $0x11c] sm:$0xf] %v12385
      %12898 = vst [vmem:[%s337 + $0x120] sm:$0xf] %v12386
      %12899 = vst [vmem:[%s337 + $0x124] sm:$0xf] %v12387
      %12900 = vst [vmem:[%s337 + $0x128] sm:$0xf] %v12388
      %12901 = vst [vmem:[%s337 + $0x12c] sm:$0xf] %v12389
      %12902 = vst [vmem:[%s337 + $0x130] sm:$0xf] %v12390
      %12903 = vst [vmem:[%s337 + $0x134] sm:$0xf] %v12391
      %12904 = vst [vmem:[%s337 + $0x138] sm:$0xf] %v12392
      %12905 = vst [vmem:[%s337 + $0x13c] sm:$0xf] %v12393
      %12906 = vst [vmem:[%s337 + $0x140] sm:$0xf] %v12394
      %12907 = vst [vmem:[%s337 + $0x144] sm:$0xf] %v12395
      %12908 = vst [vmem:[%s337 + $0x148] sm:$0xf] %v12396
      %12909 = vst [vmem:[%s337 + $0x14c] sm:$0xf] %v12397
      %12910 = vst [vmem:[%s337 + $0x150] sm:$0xf] %v12398
      %12911 = vst [vmem:[%s337 + $0x154] sm:$0xf] %v12399
      %12912 = vst [vmem:[%s337 + $0x158] sm:$0xf] %v12400
      %12913 = vst [vmem:[%s337 + $0x15c] sm:$0xf] %v12401
      %12914 = vst [vmem:[%s337 + $0x160] sm:$0xf] %v12402
      %12915 = vst [vmem:[%s337 + $0x164] sm:$0xf] %v12403
      %12916 = vst [vmem:[%s337 + $0x168] sm:$0xf] %v12404
      %12917 = vst [vmem:[%s337 + $0x16c] sm:$0xf] %v12405
      %12918 = vst [vmem:[%s337 + $0x170] sm:$0xf] %v12406
      %12919 = vst [vmem:[%s337 + $0x174] sm:$0xf] %v12407
      %12920 = vst [vmem:[%s337 + $0x178] sm:$0xf] %v12408
      %12921 = vst [vmem:[%s337 + $0x17c] sm:$0xf] %v12409
      %12922 = vst [vmem:[%s337 + $0x180] sm:$0xf] %v12410
      %12923 = vst [vmem:[%s337 + $0x184] sm:$0xf] %v12411
      %12924 = vst [vmem:[%s337 + $0x188] sm:$0xf] %v12412
      %12925 = vst [vmem:[%s337 + $0x18c] sm:$0xf] %v12413
      %12926 = vst [vmem:[%s337 + $0x190] sm:$0xf] %v12414
      %12927 = vst [vmem:[%s337 + $0x194] sm:$0xf] %v12415
      %12928 = vst [vmem:[%s337 + $0x198] sm:$0xf] %v12416
      %12929 = vst [vmem:[%s337 + $0x19c] sm:$0xf] %v12417
      %12930 = vst [vmem:[%s337 + $0x1a0] sm:$0xf] %v12418
      %12931 = vst [vmem:[%s337 + $0x1a4] sm:$0xf] %v12419
      %12932 = vst [vmem:[%s337 + $0x1a8] sm:$0xf] %v12420
      %12933 = vst [vmem:[%s337 + $0x1ac] sm:$0xf] %v12421
      %12934 = vst [vmem:[%s337 + $0x1b0] sm:$0xf] %v12422
      %12935 = vst [vmem:[%s337 + $0x1b4] sm:$0xf] %v12423
      %12936 = vst [vmem:[%s337 + $0x1b8] sm:$0xf] %v12424
      %12937 = vst [vmem:[%s337 + $0x1bc] sm:$0xf] %v12425
      %12938 = vst [vmem:[%s337 + $0x1c0] sm:$0xf] %v12426
      %12939 = vst [vmem:[%s337 + $0x1c4] sm:$0xf] %v12427
      %12940 = vst [vmem:[%s337 + $0x1c8] sm:$0xf] %v12428
      %12941 = vst [vmem:[%s337 + $0x1cc] sm:$0xf] %v12429
      %12942 = vst [vmem:[%s337 + $0x1d0] sm:$0xf] %v12430
      %12943 = vst [vmem:[%s337 + $0x1d4] sm:$0xf] %v12431
      %12944 = vst [vmem:[%s337 + $0x1d8] sm:$0xf] %v12432
      %12945 = vst [vmem:[%s337 + $0x1dc] sm:$0xf] %v12433
      %12946 = vst [vmem:[%s337 + $0x1e0] sm:$0xf] %v12434
      %12947 = vst [vmem:[%s337 + $0x1e4] sm:$0xf] %v12435
      %12948 = vst [vmem:[%s337 + $0x1e8] sm:$0xf] %v12436
      %12949 = vst [vmem:[%s337 + $0x1ec] sm:$0xf] %v12437
      %12950 = vst [vmem:[%s337 + $0x1f0] sm:$0xf] %v12438
      %12951 = vst [vmem:[%s337 + $0x1f4] sm:$0xf] %v12439
      %12952 = vst [vmem:[%s337 + $0x1f8] sm:$0xf] %v12440
      %12953 = vst [vmem:[%s337 + $0x1fc] sm:$0xf] %v12441
      %12954 = vst [vmem:[%s337 + $0x200] sm:$0xf] %v12442
      %12955 = vst [vmem:[%s337 + $0x204] sm:$0xf] %v12443
      %12956 = vst [vmem:[%s337 + $0x208] sm:$0xf] %v12444
      %12957 = vst [vmem:[%s337 + $0x20c] sm:$0xf] %v12445
      %12958 = vst [vmem:[%s337 + $0x210] sm:$0xf] %v12446
      %12959 = vst [vmem:[%s337 + $0x214] sm:$0xf] %v12447
      %12960 = vst [vmem:[%s337 + $0x218] sm:$0xf] %v12448
      %12961 = vst [vmem:[%s337 + $0x21c] sm:$0xf] %v12449
      %12962 = vst [vmem:[%s337 + $0x220] sm:$0xf] %v12450
      %12963 = vst [vmem:[%s337 + $0x224] sm:$0xf] %v12451
      %12964 = vst [vmem:[%s337 + $0x228] sm:$0xf] %v12452
      %12965 = vst [vmem:[%s337 + $0x22c] sm:$0xf] %v12453
      %12966 = vst [vmem:[%s337 + $0x230] sm:$0xf] %v12454
      %12967 = vst [vmem:[%s337 + $0x234] sm:$0xf] %v12455
      %12968 = vst [vmem:[%s337 + $0x238] sm:$0xf] %v12456
      %12969 = vst [vmem:[%s337 + $0x23c] sm:$0xf] %v12457
      %12970 = vst [vmem:[%s337 + $0x240] sm:$0xf] %v12458
      %12971 = vst [vmem:[%s337 + $0x244] sm:$0xf] %v12459
      %12972 = vst [vmem:[%s337 + $0x248] sm:$0xf] %v12460
      %12973 = vst [vmem:[%s337 + $0x24c] sm:$0xf] %v12461
      %12974 = vst [vmem:[%s337 + $0x250] sm:$0xf] %v12462
      %12975 = vst [vmem:[%s337 + $0x254] sm:$0xf] %v12463
      %12976 = vst [vmem:[%s337 + $0x258] sm:$0xf] %v12464
      %12977 = vst [vmem:[%s337 + $0x25c] sm:$0xf] %v12465
      %12978 = vst [vmem:[%s337 + $0x260] sm:$0xf] %v12466
      %12979 = vst [vmem:[%s337 + $0x264] sm:$0xf] %v12467
      %12980 = vst [vmem:[%s337 + $0x268] sm:$0xf] %v12468
      %12981 = vst [vmem:[%s337 + $0x26c] sm:$0xf] %v12469
      %12982 = vst [vmem:[%s337 + $0x270] sm:$0xf] %v12470
      %12983 = vst [vmem:[%s337 + $0x274] sm:$0xf] %v12471
      %12984 = vst [vmem:[%s337 + $0x278] sm:$0xf] %v12472
      %12985 = vst [vmem:[%s337 + $0x27c] sm:$0xf] %v12473
      %12986 = vst [vmem:[%s337 + $0x280] sm:$0xf] %v12474
      %12987 = vst [vmem:[%s337 + $0x284] sm:$0xf] %v12475
      %12988 = vst [vmem:[%s337 + $0x288] sm:$0xf] %v12476
      %12989 = vst [vmem:[%s337 + $0x28c] sm:$0xf] %v12477
      %12990 = vst [vmem:[%s337 + $0x290] sm:$0xf] %v12478
      %12991 = vst [vmem:[%s337 + $0x294] sm:$0xf] %v12479
      %12992 = vst [vmem:[%s337 + $0x298] sm:$0xf] %v12480
      %12993 = vst [vmem:[%s337 + $0x29c] sm:$0xf] %v12481
      %12994 = vst [vmem:[%s337 + $0x2a0] sm:$0xf] %v12482
      %12995 = vst [vmem:[%s337 + $0x2a4] sm:$0xf] %v12483
      %12996 = vst [vmem:[%s337 + $0x2a8] sm:$0xf] %v12484
      %12997 = vst [vmem:[%s337 + $0x2ac] sm:$0xf] %v12485
      %12998 = vst [vmem:[%s337 + $0x2b0] sm:$0xf] %v12486
      %12999 = vst [vmem:[%s337 + $0x2b4] sm:$0xf] %v12487
      %13000 = vst [vmem:[%s337 + $0x2b8] sm:$0xf] %v12488
      %13001 = vst [vmem:[%s337 + $0x2bc] sm:$0xf] %v12489
      %13002 = vst [vmem:[%s337 + $0x2c0] sm:$0xf] %v12490
      %13003 = vst [vmem:[%s337 + $0x2c4] sm:$0xf] %v12491
      %13004 = vst [vmem:[%s337 + $0x2c8] sm:$0xf] %v12492
      %13005 = vst [vmem:[%s337 + $0x2cc] sm:$0xf] %v12493
      %13006 = vst [vmem:[%s337 + $0x2d0] sm:$0xf] %v12494
      %13007 = vst [vmem:[%s337 + $0x2d4] sm:$0xf] %v12495
      %13008 = vst [vmem:[%s337 + $0x2d8] sm:$0xf] %v12496
      %13009 = vst [vmem:[%s337 + $0x2dc] sm:$0xf] %v12497
      %13010 = vst [vmem:[%s337 + $0x2e0] sm:$0xf] %v12498
      %13011 = vst [vmem:[%s337 + $0x2e4] sm:$0xf] %v12499
      %13012 = vst [vmem:[%s337 + $0x2e8] sm:$0xf] %v12500
      %13013 = vst [vmem:[%s337 + $0x2ec] sm:$0xf] %v12501
      %13014 = vst [vmem:[%s337 + $0x2f0] sm:$0xf] %v12502
      %13015 = vst [vmem:[%s337 + $0x2f4] sm:$0xf] %v12503
      %13016 = vst [vmem:[%s337 + $0x2f8] sm:$0xf] %v12504
      %13017 = vst [vmem:[%s337 + $0x2fc] sm:$0xf] %v12505
      %13018 = vst [vmem:[%s337 + $0x300] sm:$0xf] %v12506
      %13019 = vst [vmem:[%s337 + $0x304] sm:$0xf] %v12507
      %13020 = vst [vmem:[%s337 + $0x308] sm:$0xf] %v12508
      %13021 = vst [vmem:[%s337 + $0x30c] sm:$0xf] %v12509
      %13022 = vst [vmem:[%s337 + $0x310] sm:$0xf] %v12510
      %13023 = vst [vmem:[%s337 + $0x314] sm:$0xf] %v12511
      %13024 = vst [vmem:[%s337 + $0x318] sm:$0xf] %v12512
      %13025 = vst [vmem:[%s337 + $0x31c] sm:$0xf] %v12513
      %13026 = vst [vmem:[%s337 + $0x320] sm:$0xf] %v12514
      %13027 = vst [vmem:[%s337 + $0x324] sm:$0xf] %v12515
      %13028 = vst [vmem:[%s337 + $0x328] sm:$0xf] %v12516
      %13029 = vst [vmem:[%s337 + $0x32c] sm:$0xf] %v12517
      %13030 = vst [vmem:[%s337 + $0x330] sm:$0xf] %v12518
      %13031 = vst [vmem:[%s337 + $0x334] sm:$0xf] %v12519
      %13032 = vst [vmem:[%s337 + $0x338] sm:$0xf] %v12520
      %13033 = vst [vmem:[%s337 + $0x33c] sm:$0xf] %v12521
      %13034 = vst [vmem:[%s337 + $0x340] sm:$0xf] %v12522
      %13035 = vst [vmem:[%s337 + $0x344] sm:$0xf] %v12523
      %13036 = vst [vmem:[%s337 + $0x348] sm:$0xf] %v12524
      %13037 = vst [vmem:[%s337 + $0x34c] sm:$0xf] %v12525
      %13038 = vst [vmem:[%s337 + $0x350] sm:$0xf] %v12526
      %13039 = vst [vmem:[%s337 + $0x354] sm:$0xf] %v12527
      %13040 = vst [vmem:[%s337 + $0x358] sm:$0xf] %v12528
      %13041 = vst [vmem:[%s337 + $0x35c] sm:$0xf] %v12529
      %13042 = vst [vmem:[%s337 + $0x360] sm:$0xf] %v12530
      %13043 = vst [vmem:[%s337 + $0x364] sm:$0xf] %v12531
      %13044 = vst [vmem:[%s337 + $0x368] sm:$0xf] %v12532
      %13045 = vst [vmem:[%s337 + $0x36c] sm:$0xf] %v12533
      %13046 = vst [vmem:[%s337 + $0x370] sm:$0xf] %v12534
      %13047 = vst [vmem:[%s337 + $0x374] sm:$0xf] %v12535
      %13048 = vst [vmem:[%s337 + $0x378] sm:$0xf] %v12536
      %13049 = vst [vmem:[%s337 + $0x37c] sm:$0xf] %v12537
      %13050 = vst [vmem:[%s337 + $0x380] sm:$0xf] %v12538
      %13051 = vst [vmem:[%s337 + $0x384] sm:$0xf] %v12539
      %13052 = vst [vmem:[%s337 + $0x388] sm:$0xf] %v12540
      %13053 = vst [vmem:[%s337 + $0x38c] sm:$0xf] %v12541
      %13054 = vst [vmem:[%s337 + $0x390] sm:$0xf] %v12542
      %13055 = vst [vmem:[%s337 + $0x394] sm:$0xf] %v12543
      %13056 = vst [vmem:[%s337 + $0x398] sm:$0xf] %v12544
      %13057 = vst [vmem:[%s337 + $0x39c] sm:$0xf] %v12545
      %13058 = vst [vmem:[%s337 + $0x3a0] sm:$0xf] %v12546
      %13059 = vst [vmem:[%s337 + $0x3a4] sm:$0xf] %v12547
      %13060 = vst [vmem:[%s337 + $0x3a8] sm:$0xf] %v12548
      %13061 = vst [vmem:[%s337 + $0x3ac] sm:$0xf] %v12549
      %13062 = vst [vmem:[%s337 + $0x3b0] sm:$0xf] %v12550
      %13063 = vst [vmem:[%s337 + $0x3b4] sm:$0xf] %v12551
      %13064 = vst [vmem:[%s337 + $0x3b8] sm:$0xf] %v12552
      %13065 = vst [vmem:[%s337 + $0x3bc] sm:$0xf] %v12553
      %13066 = vst [vmem:[%s337 + $0x3c0] sm:$0xf] %v12554
      %13067 = vst [vmem:[%s337 + $0x3c4] sm:$0xf] %v12555
      %13068 = vst [vmem:[%s337 + $0x3c8] sm:$0xf] %v12556
      %13069 = vst [vmem:[%s337 + $0x3cc] sm:$0xf] %v12557
      %13070 = vst [vmem:[%s337 + $0x3d0] sm:$0xf] %v12558
      %13071 = vst [vmem:[%s337 + $0x3d4] sm:$0xf] %v12559
      %13072 = vst [vmem:[%s337 + $0x3d8] sm:$0xf] %v12560
      %13073 = vst [vmem:[%s337 + $0x3dc] sm:$0xf] %v12561
      %13074 = vst [vmem:[%s337 + $0x3e0] sm:$0xf] %v12562
      %13075 = vst [vmem:[%s337 + $0x3e4] sm:$0xf] %v12563
      %13076 = vst [vmem:[%s337 + $0x3e8] sm:$0xf] %v12564
      %13077 = vst [vmem:[%s337 + $0x3ec] sm:$0xf] %v12565
      %13078 = vst [vmem:[%s337 + $0x3f0] sm:$0xf] %v12566
      %13079 = vst [vmem:[%s337 + $0x3f4] sm:$0xf] %v12567
      %13080 = vst [vmem:[%s337 + $0x3f8] sm:$0xf] %v12568
      %13081 = vst [vmem:[%s337 + $0x3fc] sm:$0xf] %v12569
      %s13082 = smul.u32 256, %s20
      %p13083 = scmp.lt.s32.totalorder %s13082, 511
      %s13084 = scalar_select %p13083, %s13082, 511
      %s13085 = smul.addr %s13084, 4
      %s13086 = scalar_lea.vmem %s9, %s13085
      // Predicated region
      $region57: #{generator_forward.1} parent=55 // pred_check
        %p13087 = pneg %p232
      $region58: #{generator_forward.1} parent=55 // pred_check_branch
        %13089 = sbr.rel (%p13087) target = $region60
      $region59: #{generator_forward.1} parent=55 // pred_region
        %s13090 = smul.u32 256, %s20
      $region60: #{generator_forward.1} parent=55 // pred_fallthru
        _
    $region56: #{generator_forward.1} parent=5 // pred_fallthru
      _
    %p13091 = scmp.le.s32.totalorder 2, %s15
    // Predicated region
    $region61: #{generator_forward.1} parent=5 // pred_check
      %p13092 = pneg %p13091
    $region62: #{generator_forward.1} parent=5 // pred_check_branch
      %13094 = sbr.rel (%p13092) target = $region64
    $region63: #{generator_forward.1} parent=5 // pred_region
      %s13095 = ssub.s32 %s15, 2
      // Predicated region
      $region65: #{generator_forward.1} parent=63 // pred_check
        %p13096 = pneg %p238
      $region66: #{generator_forward.1} parent=63 // pred_check_branch
        %13098 = sbr.rel (%p13096) target = $region68
      $region67: #{generator_forward.1} parent=63 // pred_region
        %s13099 = smul.u32 256, %s21
        %p13100 = scmp.lt.s32.totalorder %s13099, 511
        %s13101 = scalar_select %p13100, %s13099, 511
        %s13102 = smul.addr %s13101, 4
        %s13103 = scalar_lea.vmem %s9, %s13102
      $region68: #{generator_forward.1} parent=63 // pred_fallthru
        _
    $region64: #{generator_forward.1} parent=5 // pred_fallthru
      _
  $region6: #{generator_forward.1} parent=0 // loop_footer
    %s19 = sadd.s32 1, %s15
  $region7: #{generator_forward.1} parent=0 // loop_footer_branch
    %14 = sbr.rel target = $region3
  $region8: #{generator_forward.1} parent=0 // loop_exit
    _

</llo_original>
